<compile_context>
chip_gen: v7x
topology: tpu7x:2x2x1
jax: 0.10.0
libtpu: 0.0.40
codegen_flags: <defaults>
</compile_context>

<pallas_src>
import jax
import jax.numpy as jnp
from jax.experimental import pallas as pl
from jax.experimental.pallas import tpu as pltpu


def netg_kernel(x_ref, w2_ref, aux_ref, o_ref):
    x = x_ref[...]                       # (2, TN)  batch on lanes
    aux = aux_ref[...]                   # (10, 8)  packed small params

    x0 = x[0:1, :]                       # (1, TN)
    x1 = x[1:2, :]

    w1c0 = aux[:, 0:1]                   # (10, 1)  W1[:, 0]
    w1c1 = aux[:, 1:2]                   # (10, 1)  W1[:, 1]
    b1 = aux[:, 2:3]                     # (10, 1)
    b2 = aux[:, 3:4]                     # (10, 1)
    w3r = aux[:, 4:5]                    # (10, 1)  W3[0, :]
    b3 = aux[0:1, 5:6]                   # (1, 1)

    # fc1: K=2 -> two broadcast FMAs on the VPU, sin on the EUP.
    h1 = jnp.sin(w1c0 * x0 + w1c1 * x1 + b1)                       # (10, TN)

    # fc2: the only real matmul (10x10) -> MXU.
    h2 = jnp.sin(
        jnp.dot(w2_ref[...], h1, preferred_element_type=jnp.float32) + b2)

    # fc3 (out_features=1): weighted sublane reduction, no MXU.
    out = jnp.sum(w3r * h2, axis=0, keepdims=True)                 # (1, TN)
    # skip connection x @ eye(2, 10) folded into fc3: + w3[0]*x0 + w3[1]*x1
    out = out + w3r[0:1, :] * x0 + w3r[1:2, :] * x1 + b3
    o_ref[...] = out


def netg_forward(x, packed_params, *, tn=2048):
    """x: (N, 2) float32. Returns (N, 1) float32."""
    w2, aux = packed_params
    N, din = x.shape
    assert din == 2

    tn = max(128, (tn // 128) * 128)                  # lane-aligned tile
    n_lane = ((N + 127) // 128) * 128
    tn_eff = min(tn, n_lane)
    n_pad = ((N + tn_eff - 1) // tn_eff) * tn_eff
    grid = (n_pad // tn_eff,)

    # Feature-major, zero-padded batch: (2, n_pad).
    xt = jnp.zeros((2, n_pad), jnp.float32).at[:, :N].set(
        x.astype(jnp.float32).T)

    out_t = pl.pallas_call(
        netg_kernel,
        out_shape=jax.ShapeDtypeStruct((1, n_pad), jnp.float32),
        grid_spec=pltpu.PrefetchScalarGridSpec(
            num_scalar_prefetch=0,
            grid=grid,
            in_specs=[
                pl.BlockSpec((2, tn_eff), lambda i: (0, i)),   # x tile
                pl.BlockSpec(w2.shape, lambda i: (0, 0)),      # fc2 weight
                pl.BlockSpec(aux.shape, lambda i: (0, 0)),     # packed params
            ],
            out_specs=pl.BlockSpec((1, tn_eff), lambda i: (0, i)),
        ),
        compiler_params=pltpu.CompilerParams(
            dimension_semantics=("parallel",)),
        cost_estimate=pl.CostEstimate(
            flops=260 * n_pad,
            transcendentals=20 * n_pad,
            bytes_accessed=12 * n_pad),
    )(xt, w2, aux)

    return out_t[:, :N].T                             # (N, 1)


def init_natural_params(key):
    """PyTorch-style Linear init. Weights in (out_features, in_features)."""
    ks = jax.random.split(key, 6)

    def uinit(k, shape, fan_in):
        bound = 1.0 / jnp.sqrt(fan_in)
        return jax.random.uniform(k, shape, jnp.float32, -bound, bound)

    W1 = uinit(ks[0], (10, 2), 2.0)
    b1 = uinit(ks[1], (10,), 2.0)
    W2 = uinit(ks[2], (10, 10), 10.0)
    b2 = uinit(ks[3], (10,), 10.0)
    W3 = uinit(ks[4], (1, 10), 10.0)
    b3 = uinit(ks[5], (1,), 10.0)
    return W1, b1, W2, b2, W3, b3


def pack_params(W1, b1, W2, b2, W3, b3):
    """Pack all small tensors except W2 into one (10, 8) aux array."""
    aux = jnp.zeros((10, 8), jnp.float32)
    aux = aux.at[:, 0].set(W1[:, 0])
    aux = aux.at[:, 1].set(W1[:, 1])
    aux = aux.at[:, 2].set(b1)
    aux = aux.at[:, 3].set(b2)
    aux = aux.at[:, 4].set(W3[0, :])
    aux = aux.at[:, 5].set(b3[0])
    return W2.astype(jnp.float32), aux


def netg_reference(x, natural):
    """Pure-JAX reference matching the PyTorch module exactly."""
    W1, b1, W2, b2, W3, b3 = natural
    eye = jnp.eye(2, 10, dtype=jnp.float32)
    h1 = jnp.sin(x @ W1.T + b1)
    h2 = jnp.sin(h1 @ W2.T + b2) + x @ eye
    return h2 @ W3.T + b3


if __name__ == "__main__":
    key = jax.random.PRNGKey(0)
    kx, kp = jax.random.split(key)

    # Batch of 2-D collocation points (non-multiple of the tile -> exercises
    # padding; > tile size -> exercises a 2-step grid for megacore sharding).
    N = 3000
    x = jax.random.normal(kx, (N, 2), jnp.float32)

    natural = init_natural_params(kp)
    packed = pack_params(*natural)

    out = netg_forward(x, packed, tn=2048)
    out = jax.block_until_ready(out)

    ref = netg_reference(x, natural)
    assert out.shape == (N, 1)
    assert jnp.allclose(out, ref, atol=1e-5, rtol=1e-5), "mismatch vs reference"

    print("KERNEL_OK")
</pallas_src>

<mosaic_0001>
module attributes {stable_mosaic.version = 11 : i64} {
  func.func @netg_kernel(%arg0: i32, %arg1: memref<2x2048xf32, #tpu.memory_space<vmem>>, %arg2: memref<10x10xf32, #tpu.memory_space<vmem>>, %arg3: memref<10x8xf32, #tpu.memory_space<vmem>>, %arg4: memref<1x2048xf32, #tpu.memory_space<vmem>>) attributes {dimension_semantics = [#tpu.dimension_semantics<parallel>], iteration_bounds = array<i64: 2>, scalar_prefetch = 0 : i64, scratch_operands = 0 : i64, tpu.core_type = #tpu.core_type<tc>, window_params = [{transform_indices = @transform_0, window_bounds = array<i64: 2, 2048>}, {pipeline_mode = #tpu.pipeline_mode<synchronous>, transform_indices = @transform_1, window_bounds = array<i64: 10, 10>}, {pipeline_mode = #tpu.pipeline_mode<synchronous>, transform_indices = @transform_2, window_bounds = array<i64: 10, 8>}, {transform_indices = @transform_3, window_bounds = array<i64: 1, 2048>}]} {
    %c0 = arith.constant 0 : index
    %c0_0 = arith.constant 0 : index
    %0 = vector.load %arg1[%c0, %c0_0] : memref<2x2048xf32, #tpu.memory_space<vmem>>, vector<2x2048xf32>
    %c0_1 = arith.constant 0 : index
    %c0_2 = arith.constant 0 : index
    %1 = vector.load %arg3[%c0_1, %c0_2] : memref<10x8xf32, #tpu.memory_space<vmem>>, vector<10x8xf32>
    %2 = vector.extract_strided_slice %0 {offsets = [0, 0], sizes = [1, 2048], strides = [1, 1]} : vector<2x2048xf32> to vector<1x2048xf32>
    %3 = vector.extract_strided_slice %0 {offsets = [1, 0], sizes = [1, 2048], strides = [1, 1]} : vector<2x2048xf32> to vector<1x2048xf32>
    %4 = vector.extract_strided_slice %1 {offsets = [0, 0], sizes = [10, 1], strides = [1, 1]} : vector<10x8xf32> to vector<10x1xf32>
    %5 = vector.extract_strided_slice %1 {offsets = [0, 1], sizes = [10, 1], strides = [1, 1]} : vector<10x8xf32> to vector<10x1xf32>
    %6 = vector.extract_strided_slice %1 {offsets = [0, 2], sizes = [10, 1], strides = [1, 1]} : vector<10x8xf32> to vector<10x1xf32>
    %7 = vector.extract_strided_slice %1 {offsets = [0, 3], sizes = [10, 1], strides = [1, 1]} : vector<10x8xf32> to vector<10x1xf32>
    %8 = vector.extract_strided_slice %1 {offsets = [0, 4], sizes = [10, 1], strides = [1, 1]} : vector<10x8xf32> to vector<10x1xf32>
    %9 = vector.extract_strided_slice %1 {offsets = [0, 5], sizes = [1, 1], strides = [1, 1]} : vector<10x8xf32> to vector<1x1xf32>
    %10 = vector.broadcast %4 : vector<10x1xf32> to vector<10x2048xf32>
    %11 = vector.broadcast %2 : vector<1x2048xf32> to vector<10x2048xf32>
    %12 = arith.mulf %10, %11 : vector<10x2048xf32>
    %13 = vector.broadcast %5 : vector<10x1xf32> to vector<10x2048xf32>
    %14 = vector.broadcast %3 : vector<1x2048xf32> to vector<10x2048xf32>
    %15 = arith.mulf %13, %14 : vector<10x2048xf32>
    %16 = arith.addf %12, %15 : vector<10x2048xf32>
    %17 = vector.broadcast %6 : vector<10x1xf32> to vector<10x2048xf32>
    %18 = arith.addf %16, %17 : vector<10x2048xf32>
    %19 = math.sin %18 : vector<10x2048xf32>
    %c0_3 = arith.constant 0 : index
    %c0_4 = arith.constant 0 : index
    %20 = vector.load %arg2[%c0_3, %c0_4] : memref<10x10xf32, #tpu.memory_space<vmem>>, vector<10x10xf32>
    %cst = arith.constant dense<0.000000e+00> : vector<10x2048xf32>
    %21 = tpu.matmul %20, %19, %cst {dimension_numbers = #tpu.dot_dimension_numbers<[1], [0], [0], [1], [0, 0, 1, 1], [], []>} : vector<10x10xf32>, vector<10x2048xf32>, vector<10x2048xf32> -> vector<10x2048xf32>
    %22 = vector.broadcast %7 : vector<10x1xf32> to vector<10x2048xf32>
    %23 = arith.addf %21, %22 : vector<10x2048xf32>
    %24 = math.sin %23 : vector<10x2048xf32>
    %25 = vector.broadcast %8 : vector<10x1xf32> to vector<10x2048xf32>
    %26 = arith.mulf %25, %24 : vector<10x2048xf32>
    %cst_5 = arith.constant dense<0.000000e+00> : vector<2048xf32>
    %27 = vector.multi_reduction <add>, %26, %cst_5 [0] : vector<10x2048xf32> to vector<2048xf32>
    %28 = vector.shape_cast %27 : vector<2048xf32> to vector<1x2048xf32>
    %29 = vector.extract_strided_slice %8 {offsets = [0, 0], sizes = [1, 1], strides = [1, 1]} : vector<10x1xf32> to vector<1x1xf32>
    %30 = vector.broadcast %29 : vector<1x1xf32> to vector<1x2048xf32>
    %31 = arith.mulf %30, %2 : vector<1x2048xf32>
    %32 = arith.addf %28, %31 : vector<1x2048xf32>
    %33 = vector.extract_strided_slice %8 {offsets = [1, 0], sizes = [1, 1], strides = [1, 1]} : vector<10x1xf32> to vector<1x1xf32>
    %34 = vector.broadcast %33 : vector<1x1xf32> to vector<1x2048xf32>
    %35 = arith.mulf %34, %3 : vector<1x2048xf32>
    %36 = arith.addf %32, %35 : vector<1x2048xf32>
    %37 = vector.broadcast %9 : vector<1x1xf32> to vector<1x2048xf32>
    %38 = arith.addf %36, %37 : vector<1x2048xf32>
    %c0_6 = arith.constant 0 : index
    %c0_7 = arith.constant 0 : index
    %39 = vector.load %arg4[%c0_6, %c0_7] : memref<1x2048xf32, #tpu.memory_space<vmem>>, vector<1x2048xf32>
    tpu.vector_store %arg4[%c0_6, %c0_7], %38 {strides = array<i32>} : memref<1x2048xf32, #tpu.memory_space<vmem>>, vector<1x2048xf32>,
    return
  }
  func.func @transform_0(%arg0: i32) -> (i32, i32) {
    %c0_i32 = arith.constant 0 : i32
    %c0_i32_0 = arith.constant 0 : i32
    return %c0_i32, %arg0 : i32, i32
  }
  func.func @transform_1(%arg0: i32) -> (i32, i32) {
    %c0_i32 = arith.constant 0 : i32
    %c0_i32_0 = arith.constant 0 : i32
    %c0_i32_1 = arith.constant 0 : i32
    return %c0_i32, %c0_i32_0 : i32, i32
  }
  func.func @transform_2(%arg0: i32) -> (i32, i32) {
    %c0_i32 = arith.constant 0 : i32
    %c0_i32_0 = arith.constant 0 : i32
    %c0_i32_1 = arith.constant 0 : i32
    return %c0_i32, %c0_i32_0 : i32, i32
  }
  func.func @transform_3(%arg0: i32) -> (i32, i32) {
    %c0_i32 = arith.constant 0 : i32
    %c0_i32_0 = arith.constant 0 : i32
    return %c0_i32, %arg0 : i32, i32
  }
}

</mosaic_0001>

<llo_original>
// kernel: tpu_custom_call.1
$region0: #{tpu_custom_call.1}
  #allocation0 [shape = 'u32[]', space=smem, size = 0x4, offset = 0x4, fixed_abs, tag = 'smem constant byte address 0x4 - core index']
  #allocation1 [shape = 'u32[144,128]{1,0:T(1,128)}', space=vmem, size = 0x12000, scoped, tag = 'internal scratch']
  %s0 = inlined_call_operand.hbm [shape: f32[2,4096], index: 0, kind: input, shape index: {}]
  %s1 = inlined_call_operand.vmem [shape: f32[10,10], index: 1, kind: input, shape index: {}]
  %s2 = inlined_call_operand.vmem [shape: f32[10,8], index: 2, kind: input, shape index: {}]
  %s3 = inlined_call_operand.hbm [shape: f32[1,4096], index: 3, kind: output, shape index: {}]
  %s4 = sld [smem:[#allocation0]]
  $region49: #{tpu_custom_call.1} parent=0
    _
  %s6 = ssub.s32 1, %s4
  %s7 = scalar_select 0, %s6, %s4
  $region1: #{tpu_custom_call.1} parent=0
    #allocation2 [shape = 'u8[32768]{0}', space=vmem, size = 0x8000, scoped, tag = 'input window, operand 0']
    #allocation3 [shape = 's32[2]{0}', space=sflag, size = 0x8, scoped, tag = 'scoped memory for tpu_custom_call.1']
    #allocation4 [shape = 's32[2]{0}', space=sflag, size = 0x8, scoped, tag = 'scoped memory for tpu_custom_call.1']
    #allocation5 [shape = 'u8[16384]{0}', space=vmem, size = 0x4000, scoped, tag = 'output window, operand 0']
    %8 = vsyncpa [#allocation3], 0
    %s9 = scalar_lea.sflag [#allocation3], 1
    %10 = vsyncpa %s9, 0
    %11 = vsyncpa [#allocation4], 0
    %s12 = scalar_lea.sflag [#allocation4], 1
    %13 = vsyncpa %s12, 0
    loop: start=0, step=1, limit=4
    $region2: #{tpu_custom_call.1} parent=1 // loop_pre_header
      _
    $region3: #{tpu_custom_call.1} parent=1 // loop_header
      %s15 = sphi 0, %s19
      %p16 = scmp.ge.s32.totalorder %s15, 4
      %s25 = sphi 0, %s27
      %s28 = sphi 0, %s25
      %s29 = sphi 0, %s28
      %s45 = sphi 0, %s29
      %s49 = sphi 0, %s49
      %s51 = sphi 0, %s49
      %s52 = sphi 0, %s51
      %s66 = sphi 0, %s52
      %s70 = sphi 0, %s70
      %s72 = sphi 0, %s70
      %s73 = sphi 0, %s72
      %s87 = sphi 0, %s73
      %s93 = sphi 0, %s95
      %s96 = sphi 0, %s93
      %s97 = sphi 0, %s96
      %s113 = sphi 0, %s97
    $region4: #{tpu_custom_call.1} parent=1 // loop_header_branch
      %18 = sbr.rel (%p16) target = $region8
    $region5: #{tpu_custom_call.1} parent=1 // loop_body
      %s20 = ssub.s32 %s15, 1
      %s21 = ssub.s32 %s15, 2
      %s22 = sadd.s32 %s15, 1
      %s23 = ssub.s32 %s15, %s22
      %p24 = scmp.eq.s32.totalorder %s23, 0
      %s26 = sadd.s32 %s25, 1
      %s27 = scalar_select %p24, %s25, %s26
      %p30 = pneg %p24
      %p31 = scmp.eq.s32.totalorder %s15, 1
      %p32 = por %p30, %p31
      %p33 = scmp.ne.s32.totalorder %s25, %s28
      %p34 = scmp.eq.s32.totalorder %s15, 0
      %p35 = por %p33, %p34
      %p36 = scmp.ne.s32.totalorder %s25, %s28
      %p37 = scmp.eq.s32.totalorder %s20, 1
      %p38 = por %p36, %p37
      %p39 = scmp.ne.s32.totalorder %s28, %s29
      %p40 = scmp.eq.s32.totalorder %s20, 0
      %p41 = por %p39, %p40
      %p42 = scmp.ne.s32.totalorder %s28, %s29
      %p43 = scmp.eq.s32.totalorder %s21, 1
      %p44 = por %p42, %p43
      %p46 = scmp.ne.s32.totalorder %s29, %s45
      %p47 = scmp.eq.s32.totalorder %s21, 0
      %p48 = por %p46, %p47
      %s50 = sadd.s32 %s49, 1
      %p53 = scmp.eq.s32.totalorder %s15, 1
      %p54 = scmp.ne.s32.totalorder %s49, %s51
      %p55 = scmp.eq.s32.totalorder %s15, 0
      %p56 = por %p54, %p55
      %p57 = scmp.ne.s32.totalorder %s49, %s51
      %p58 = scmp.eq.s32.totalorder %s20, 1
      %p59 = por %p57, %p58
      %p60 = scmp.ne.s32.totalorder %s51, %s52
      %p61 = scmp.eq.s32.totalorder %s20, 0
      %p62 = por %p60, %p61
      %p63 = scmp.ne.s32.totalorder %s51, %s52
      %p64 = scmp.eq.s32.totalorder %s21, 1
      %p65 = por %p63, %p64
      %p67 = scmp.ne.s32.totalorder %s52, %s66
      %p68 = scmp.eq.s32.totalorder %s21, 0
      %p69 = por %p67, %p68
      %s71 = sadd.s32 %s70, 1
      %p74 = scmp.eq.s32.totalorder %s15, 1
      %p75 = scmp.ne.s32.totalorder %s70, %s72
      %p76 = scmp.eq.s32.totalorder %s15, 0
      %p77 = por %p75, %p76
      %p78 = scmp.ne.s32.totalorder %s70, %s72
      %p79 = scmp.eq.s32.totalorder %s20, 1
      %p80 = por %p78, %p79
      %p81 = scmp.ne.s32.totalorder %s72, %s73
      %p82 = scmp.eq.s32.totalorder %s20, 0
      %p83 = por %p81, %p82
      %p84 = scmp.ne.s32.totalorder %s72, %s73
      %p85 = scmp.eq.s32.totalorder %s21, 1
      %p86 = por %p84, %p85
      %p88 = scmp.ne.s32.totalorder %s73, %s87
      %p89 = scmp.eq.s32.totalorder %s21, 0
      %p90 = por %p88, %p89
      %s91 = ssub.s32 %s15, %s22
      %p92 = scmp.eq.s32.totalorder %s91, 0
      %s94 = sadd.s32 %s93, 1
      %s95 = scalar_select %p92, %s93, %s94
      %p98 = pneg %p92
      %p99 = scmp.eq.s32.totalorder %s15, 1
      %p100 = por %p98, %p99
      %p101 = scmp.ne.s32.totalorder %s93, %s96
      %p102 = scmp.eq.s32.totalorder %s15, 0
      %p103 = por %p101, %p102
      %p104 = scmp.ne.s32.totalorder %s93, %s96
      %p105 = scmp.eq.s32.totalorder %s20, 1
      %p106 = por %p104, %p105
      %p107 = scmp.ne.s32.totalorder %s96, %s97
      %p108 = scmp.eq.s32.totalorder %s20, 0
      %p109 = por %p107, %p108
      %p110 = scmp.ne.s32.totalorder %s96, %s97
      %p111 = scmp.eq.s32.totalorder %s21, 1
      %p112 = por %p110, %p111
      %p114 = scmp.ne.s32.totalorder %s97, %s113
      %p115 = scmp.eq.s32.totalorder %s21, 0
      %p116 = por %p114, %p115
      %p117 = scmp.le.s32.totalorder 1, %s15
      %p118 = scmp.lt.s32.totalorder %s15, 3
      %p119 = pnand %p117, %p118
      %p120 = pneg %p119
      // Predicated region
      $region9: #{tpu_custom_call.1} parent=5 // pred_check
        _
      $region10: #{tpu_custom_call.1} parent=5 // pred_check_branch
        %122 = sbr.rel (%p119) target = $region12
      $region11: #{tpu_custom_call.1} parent=5 // pred_region
        %s123 = ssub.s32 %s15, 1
        // Predicated region
        $region13: #{tpu_custom_call.1} parent=11 // pred_check
          %p124 = pneg %p62
        $region14: #{tpu_custom_call.1} parent=11 // pred_check_branch
          %126 = sbr.rel (%p124) target = $region16
        $region15: #{tpu_custom_call.1} parent=11 // pred_region
          _
        $region16: #{tpu_custom_call.1} parent=11 // pred_fallthru
          _
        // Predicated region
        $region17: #{tpu_custom_call.1} parent=11 // pred_check
          %p127 = pneg %p83
        $region18: #{tpu_custom_call.1} parent=11 // pred_check_branch
          %129 = sbr.rel (%p127) target = $region20
        $region19: #{tpu_custom_call.1} parent=11 // pred_region
          _
        $region20: #{tpu_custom_call.1} parent=11 // pred_fallthru
          _
      $region12: #{tpu_custom_call.1} parent=5 // pred_fallthru
        _
      %p130 = scmp.lt.s32.totalorder %s15, 2
      // Predicated region
      $region21: #{tpu_custom_call.1} parent=5 // pred_check
        %p131 = pneg %p130
      $region22: #{tpu_custom_call.1} parent=5 // pred_check_branch
        %133 = sbr.rel (%p131) target = $region24
      $region23: #{tpu_custom_call.1} parent=5 // pred_region
        // Predicated region
        $region25: #{tpu_custom_call.1} parent=23 // pred_check
          %p134 = pneg %p35
        $region26: #{tpu_custom_call.1} parent=23 // pred_check_branch
          %136 = sbr.rel (%p134) target = $region28
        $region27: #{tpu_custom_call.1} parent=23 // pred_region
          %s137 = sand.u32 %s25, 1
          %s138 = scalar_lea.sflag [#allocation3], %s137
          %s139 = sand.u32 %s25, 1
          %s140 = smul.addr %s139, 32
          %s141 = scalar_lea.vmem [#allocation2], %s140
          %s142 = smul.u32 16, %s15
          %s144 = ssub.s32 512, 512
          %145 = vsyncadd %s138, %s144
          %s146 = smul.addr %s142, 32
          %s147 = scalar_lea.hbm %s0, %s146
          %s149 = sshll.u32 %s141, 4
          %s150 = int_to_ptr.vmem [resolvable:$true] %s149
          %152 = dma.hbm_to_vmem [thread:$0]  %s147, 512, %s150, %s138
        $region28: #{tpu_custom_call.1} parent=23 // pred_fallthru
          _
      $region24: #{tpu_custom_call.1} parent=5 // pred_fallthru
        _
      %p153 = scmp.le.s32.totalorder 1, %s15
      %p154 = scmp.lt.s32.totalorder %s15, 3
      %p155 = pnand %p153, %p154
      %p156 = pneg %p155
      // Predicated region
      $region29: #{tpu_custom_call.1} parent=5 // pred_check
        _
      $region30: #{tpu_custom_call.1} parent=5 // pred_check_branch
        %158 = sbr.rel (%p155) target = $region32
      $region31: #{tpu_custom_call.1} parent=5 // pred_region
        %s159 = ssub.s32 %s15, 1
        %s160 = sand.u32 %s28, 1
        %s161 = scalar_lea.sflag [#allocation3], %s160
        %s162 = sand.u32 %s28, 1
        %s163 = smul.addr %s162, 32
        %s164 = scalar_lea.vmem [#allocation2], %s163
        // Predicated region
        $region33: #{tpu_custom_call.1} parent=31 // pred_check
          %p165 = pneg %p41
        $region34: #{tpu_custom_call.1} parent=31 // pred_check_branch
          %167 = sbr.rel (%p165) target = $region36
        $region35: #{tpu_custom_call.1} parent=31 // pred_region
          %168 = dma.done %s161, 512
        $region36: #{tpu_custom_call.1} parent=31 // pred_fallthru
          _
        %s169 = sand.u32 %s28, 1
        %s170 = scalar_lea.sflag [#allocation3], %s169
        %s171 = sand.u32 %s28, 1
        %s172 = smul.addr %s171, 32
        %s173 = scalar_lea.vmem [#allocation2], %s172
        %p174 = pneg %p41
        %p175 = pneg %p38
        %p176 = pneg %p62
        %p177 = pneg %p59
        %p178 = pneg %p83
        %p179 = pneg %p80
        %p180 = pneg %p109
        %p181 = pneg %p106
        %s182 = sand.u32 %s96, 1
        %s183 = scalar_lea.sflag [#allocation4], %s182
        %s184 = sand.u32 %s96, 1
        %s185 = smul.addr %s184, 16
        %s186 = scalar_lea.vmem [#allocation5], %s185
        %s187 = smul.u32 16, %s20
        %s188 = smul.u32 16, %s20
        %v189 = vld [vmem:[%s164] sm:$0xff]
        %v190 = vld [vmem:[%s164 + $0x8] sm:$0xff]
        %v191 = vld [vmem:[%s164 + $0x10] sm:$0xff]
        %v192 = vld [vmem:[%s164 + $0x18] sm:$0xff]
        %v193 = vld [vmem:[%s2] sm:$0xff]
        %v194 = vld [vmem:[%s2 + $0x8] sm:$0x3]
        %196 = vset.pattern.permute.xlu0 0
        %197 = vperm.xlu0 %196, %v193
        %v198 = vpop.permute.xlu0 %197
        %201 = vset.pattern.permute.xlu0 0
        %202 = vperm.xlu0 %201, %v194
        %v203 = vpop.permute.xlu0 %202
        %v209 = vlaneseq
        %v210 = vshrl.u32 %v209, 7
        %v211 = vsub.s32 0, %v210
        %v212 = vrot.slane %v189, %v211
        %v213 = vlaneseq
        %v214 = vshrl.u32 %v213, 7
        %v215 = vsub.s32 2, %v214
        %v216 = vrot.slane %v189, %v215
        %v217 = vlaneseq
        %v218 = vshrl.u32 %v217, 7
        %v219 = vsub.s32 4, %v218
        %v220 = vrot.slane %v189, %v219
        %v221 = vlaneseq
        %v222 = vshrl.u32 %v221, 7
        %v223 = vsub.s32 6, %v222
        %v224 = vrot.slane %v189, %v223
        %v225 = vlaneseq
        %v226 = vshrl.u32 %v225, 7
        %v227 = vsub.s32 0, %v226
        %v228 = vrot.slane %v190, %v227
        %v229 = vlaneseq
        %v230 = vshrl.u32 %v229, 7
        %v231 = vsub.s32 2, %v230
        %v232 = vrot.slane %v190, %v231
        %v233 = vlaneseq
        %v234 = vshrl.u32 %v233, 7
        %v235 = vsub.s32 4, %v234
        %v236 = vrot.slane %v190, %v235
        %v237 = vlaneseq
        %v238 = vshrl.u32 %v237, 7
        %v239 = vsub.s32 6, %v238
        %v240 = vrot.slane %v190, %v239
        %v241 = vlaneseq
        %v242 = vshrl.u32 %v241, 7
        %v243 = vsub.s32 0, %v242
        %v244 = vrot.slane %v191, %v243
        %v245 = vlaneseq
        %v246 = vshrl.u32 %v245, 7
        %v247 = vsub.s32 2, %v246
        %v248 = vrot.slane %v191, %v247
        %v249 = vlaneseq
        %v250 = vshrl.u32 %v249, 7
        %v251 = vsub.s32 4, %v250
        %v252 = vrot.slane %v191, %v251
        %v253 = vlaneseq
        %v254 = vshrl.u32 %v253, 7
        %v255 = vsub.s32 6, %v254
        %v256 = vrot.slane %v191, %v255
        %v257 = vlaneseq
        %v258 = vshrl.u32 %v257, 7
        %v259 = vsub.s32 0, %v258
        %v260 = vrot.slane %v192, %v259
        %v261 = vlaneseq
        %v262 = vshrl.u32 %v261, 7
        %v263 = vsub.s32 2, %v262
        %v264 = vrot.slane %v192, %v263
        %v265 = vlaneseq
        %v266 = vshrl.u32 %v265, 7
        %v267 = vsub.s32 4, %v266
        %v268 = vrot.slane %v192, %v267
        %v269 = vlaneseq
        %v270 = vshrl.u32 %v269, 7
        %v271 = vsub.s32 6, %v270
        %v272 = vrot.slane %v192, %v271
        %v289 = vlaneseq
        %v290 = vshrl.u32 %v289, 7
        %v291 = vsub.s32 0, %v290
        %v292 = vrot.slane %v212, %v291
        %v293 = vlaneseq
        %v294 = vshrl.u32 %v293, 7
        %v295 = vsub.s32 0, %v294
        %v296 = vrot.slane %v216, %v295
        %v297 = vlaneseq
        %v298 = vshrl.u32 %v297, 7
        %v299 = vsub.s32 0, %v298
        %v300 = vrot.slane %v220, %v299
        %v301 = vlaneseq
        %v302 = vshrl.u32 %v301, 7
        %v303 = vsub.s32 0, %v302
        %v304 = vrot.slane %v224, %v303
        %v305 = vlaneseq
        %v306 = vshrl.u32 %v305, 7
        %v307 = vsub.s32 0, %v306
        %v308 = vrot.slane %v228, %v307
        %v309 = vlaneseq
        %v310 = vshrl.u32 %v309, 7
        %v311 = vsub.s32 0, %v310
        %v312 = vrot.slane %v232, %v311
        %v313 = vlaneseq
        %v314 = vshrl.u32 %v313, 7
        %v315 = vsub.s32 0, %v314
        %v316 = vrot.slane %v236, %v315
        %v317 = vlaneseq
        %v318 = vshrl.u32 %v317, 7
        %v319 = vsub.s32 0, %v318
        %v320 = vrot.slane %v240, %v319
        %v321 = vlaneseq
        %v322 = vshrl.u32 %v321, 7
        %v323 = vsub.s32 0, %v322
        %v324 = vrot.slane %v244, %v323
        %v325 = vlaneseq
        %v326 = vshrl.u32 %v325, 7
        %v327 = vsub.s32 0, %v326
        %v328 = vrot.slane %v248, %v327
        %v329 = vlaneseq
        %v330 = vshrl.u32 %v329, 7
        %v331 = vsub.s32 0, %v330
        %v332 = vrot.slane %v252, %v331
        %v333 = vlaneseq
        %v334 = vshrl.u32 %v333, 7
        %v335 = vsub.s32 0, %v334
        %v336 = vrot.slane %v256, %v335
        %v337 = vlaneseq
        %v338 = vshrl.u32 %v337, 7
        %v339 = vsub.s32 0, %v338
        %v340 = vrot.slane %v260, %v339
        %v341 = vlaneseq
        %v342 = vshrl.u32 %v341, 7
        %v343 = vsub.s32 0, %v342
        %v344 = vrot.slane %v264, %v343
        %v345 = vlaneseq
        %v346 = vshrl.u32 %v345, 7
        %v347 = vsub.s32 0, %v346
        %v348 = vrot.slane %v268, %v347
        %v349 = vlaneseq
        %v350 = vshrl.u32 %v349, 7
        %v351 = vsub.s32 0, %v350
        %v352 = vrot.slane %v272, %v351
        %v353 = vmul.f32 %v198, %v292
        %v354 = vmul.f32 %v198, %v296
        %v355 = vmul.f32 %v198, %v300
        %v356 = vmul.f32 %v198, %v304
        %v357 = vmul.f32 %v198, %v308
        %v358 = vmul.f32 %v198, %v312
        %v359 = vmul.f32 %v198, %v316
        %v360 = vmul.f32 %v198, %v320
        %v361 = vmul.f32 %v198, %v324
        %v362 = vmul.f32 %v198, %v328
        %v363 = vmul.f32 %v198, %v332
        %v364 = vmul.f32 %v198, %v336
        %v365 = vmul.f32 %v198, %v340
        %v366 = vmul.f32 %v198, %v344
        %v367 = vmul.f32 %v198, %v348
        %v368 = vmul.f32 %v198, %v352
        %v369 = vmul.f32 %v203, %v292
        %v370 = vmul.f32 %v203, %v296
        %v371 = vmul.f32 %v203, %v300
        %v372 = vmul.f32 %v203, %v304
        %v373 = vmul.f32 %v203, %v308
        %v374 = vmul.f32 %v203, %v312
        %v375 = vmul.f32 %v203, %v316
        %v376 = vmul.f32 %v203, %v320
        %v377 = vmul.f32 %v203, %v324
        %v378 = vmul.f32 %v203, %v328
        %v379 = vmul.f32 %v203, %v332
        %v380 = vmul.f32 %v203, %v336
        %v381 = vmul.f32 %v203, %v340
        %v382 = vmul.f32 %v203, %v344
        %v383 = vmul.f32 %v203, %v348
        %v384 = vmul.f32 %v203, %v352
        %385 = vset.pattern.permute.xlu0 1
        %386 = vperm.xlu0 %385, %v193
        %v387 = vpop.permute.xlu0 %386
        %389 = vset.pattern.permute.xlu0 1
        %390 = vperm.xlu0 %389, %v194
        %v391 = vpop.permute.xlu0 %390
        %v393 = vlaneseq
        %v394 = vshrl.u32 %v393, 7
        %v395 = vsub.s32 1, %v394
        %v396 = vrot.slane %v189, %v395
        %v397 = vlaneseq
        %v398 = vshrl.u32 %v397, 7
        %v399 = vsub.s32 3, %v398
        %v400 = vrot.slane %v189, %v399
        %v401 = vlaneseq
        %v402 = vshrl.u32 %v401, 7
        %v403 = vsub.s32 5, %v402
        %v404 = vrot.slane %v189, %v403
        %v405 = vlaneseq
        %v406 = vshrl.u32 %v405, 7
        %v407 = vsub.s32 7, %v406
        %v408 = vrot.slane %v189, %v407
        %v409 = vlaneseq
        %v410 = vshrl.u32 %v409, 7
        %v411 = vsub.s32 1, %v410
        %v412 = vrot.slane %v190, %v411
        %v413 = vlaneseq
        %v414 = vshrl.u32 %v413, 7
        %v415 = vsub.s32 3, %v414
        %v416 = vrot.slane %v190, %v415
        %v417 = vlaneseq
        %v418 = vshrl.u32 %v417, 7
        %v419 = vsub.s32 5, %v418
        %v420 = vrot.slane %v190, %v419
        %v421 = vlaneseq
        %v422 = vshrl.u32 %v421, 7
        %v423 = vsub.s32 7, %v422
        %v424 = vrot.slane %v190, %v423
        %v425 = vlaneseq
        %v426 = vshrl.u32 %v425, 7
        %v427 = vsub.s32 1, %v426
        %v428 = vrot.slane %v191, %v427
        %v429 = vlaneseq
        %v430 = vshrl.u32 %v429, 7
        %v431 = vsub.s32 3, %v430
        %v432 = vrot.slane %v191, %v431
        %v433 = vlaneseq
        %v434 = vshrl.u32 %v433, 7
        %v435 = vsub.s32 5, %v434
        %v436 = vrot.slane %v191, %v435
        %v437 = vlaneseq
        %v438 = vshrl.u32 %v437, 7
        %v439 = vsub.s32 7, %v438
        %v440 = vrot.slane %v191, %v439
        %v441 = vlaneseq
        %v442 = vshrl.u32 %v441, 7
        %v443 = vsub.s32 1, %v442
        %v444 = vrot.slane %v192, %v443
        %v445 = vlaneseq
        %v446 = vshrl.u32 %v445, 7
        %v447 = vsub.s32 3, %v446
        %v448 = vrot.slane %v192, %v447
        %v449 = vlaneseq
        %v450 = vshrl.u32 %v449, 7
        %v451 = vsub.s32 5, %v450
        %v452 = vrot.slane %v192, %v451
        %v453 = vlaneseq
        %v454 = vshrl.u32 %v453, 7
        %v455 = vsub.s32 7, %v454
        %v456 = vrot.slane %v192, %v455
        %v473 = vlaneseq
        %v474 = vshrl.u32 %v473, 7
        %v475 = vsub.s32 1, %v474
        %v476 = vrot.slane %v396, %v475
        %v477 = vlaneseq
        %v478 = vshrl.u32 %v477, 7
        %v479 = vsub.s32 1, %v478
        %v480 = vrot.slane %v400, %v479
        %v481 = vlaneseq
        %v482 = vshrl.u32 %v481, 7
        %v483 = vsub.s32 1, %v482
        %v484 = vrot.slane %v404, %v483
        %v485 = vlaneseq
        %v486 = vshrl.u32 %v485, 7
        %v487 = vsub.s32 1, %v486
        %v488 = vrot.slane %v408, %v487
        %v489 = vlaneseq
        %v490 = vshrl.u32 %v489, 7
        %v491 = vsub.s32 1, %v490
        %v492 = vrot.slane %v412, %v491
        %v493 = vlaneseq
        %v494 = vshrl.u32 %v493, 7
        %v495 = vsub.s32 1, %v494
        %v496 = vrot.slane %v416, %v495
        %v497 = vlaneseq
        %v498 = vshrl.u32 %v497, 7
        %v499 = vsub.s32 1, %v498
        %v500 = vrot.slane %v420, %v499
        %v501 = vlaneseq
        %v502 = vshrl.u32 %v501, 7
        %v503 = vsub.s32 1, %v502
        %v504 = vrot.slane %v424, %v503
        %v505 = vlaneseq
        %v506 = vshrl.u32 %v505, 7
        %v507 = vsub.s32 1, %v506
        %v508 = vrot.slane %v428, %v507
        %v509 = vlaneseq
        %v510 = vshrl.u32 %v509, 7
        %v511 = vsub.s32 1, %v510
        %v512 = vrot.slane %v432, %v511
        %v513 = vlaneseq
        %v514 = vshrl.u32 %v513, 7
        %v515 = vsub.s32 1, %v514
        %v516 = vrot.slane %v436, %v515
        %v517 = vlaneseq
        %v518 = vshrl.u32 %v517, 7
        %v519 = vsub.s32 1, %v518
        %v520 = vrot.slane %v440, %v519
        %v521 = vlaneseq
        %v522 = vshrl.u32 %v521, 7
        %v523 = vsub.s32 1, %v522
        %v524 = vrot.slane %v444, %v523
        %v525 = vlaneseq
        %v526 = vshrl.u32 %v525, 7
        %v527 = vsub.s32 1, %v526
        %v528 = vrot.slane %v448, %v527
        %v529 = vlaneseq
        %v530 = vshrl.u32 %v529, 7
        %v531 = vsub.s32 1, %v530
        %v532 = vrot.slane %v452, %v531
        %v533 = vlaneseq
        %v534 = vshrl.u32 %v533, 7
        %v535 = vsub.s32 1, %v534
        %v536 = vrot.slane %v456, %v535
        %v537 = vmul.f32 %v387, %v476
        %v538 = vmul.f32 %v387, %v480
        %v539 = vmul.f32 %v387, %v484
        %v540 = vmul.f32 %v387, %v488
        %v541 = vmul.f32 %v387, %v492
        %v542 = vmul.f32 %v387, %v496
        %v543 = vmul.f32 %v387, %v500
        %v544 = vmul.f32 %v387, %v504
        %v545 = vmul.f32 %v387, %v508
        %v546 = vmul.f32 %v387, %v512
        %v547 = vmul.f32 %v387, %v516
        %v548 = vmul.f32 %v387, %v520
        %v549 = vmul.f32 %v387, %v524
        %v550 = vmul.f32 %v387, %v528
        %v551 = vmul.f32 %v387, %v532
        %v552 = vmul.f32 %v387, %v536
        %v553 = vmul.f32 %v391, %v476
        %v554 = vmul.f32 %v391, %v480
        %v555 = vmul.f32 %v391, %v484
        %v556 = vmul.f32 %v391, %v488
        %v557 = vmul.f32 %v391, %v492
        %v558 = vmul.f32 %v391, %v496
        %v559 = vmul.f32 %v391, %v500
        %v560 = vmul.f32 %v391, %v504
        %v561 = vmul.f32 %v391, %v508
        %v562 = vmul.f32 %v391, %v512
        %v563 = vmul.f32 %v391, %v516
        %v564 = vmul.f32 %v391, %v520
        %v565 = vmul.f32 %v391, %v524
        %v566 = vmul.f32 %v391, %v528
        %v567 = vmul.f32 %v391, %v532
        %v568 = vmul.f32 %v391, %v536
        %v569 = vadd.f32 %v353, %v537
        %v570 = vadd.f32 %v354, %v538
        %v571 = vadd.f32 %v355, %v539
        %v572 = vadd.f32 %v356, %v540
        %v573 = vadd.f32 %v357, %v541
        %v574 = vadd.f32 %v358, %v542
        %v575 = vadd.f32 %v359, %v543
        %v576 = vadd.f32 %v360, %v544
        %v577 = vadd.f32 %v361, %v545
        %v578 = vadd.f32 %v362, %v546
        %v579 = vadd.f32 %v363, %v547
        %v580 = vadd.f32 %v364, %v548
        %v581 = vadd.f32 %v365, %v549
        %v582 = vadd.f32 %v366, %v550
        %v583 = vadd.f32 %v367, %v551
        %v584 = vadd.f32 %v368, %v552
        %v585 = vadd.f32 %v369, %v553
        %v586 = vadd.f32 %v370, %v554
        %v587 = vadd.f32 %v371, %v555
        %v588 = vadd.f32 %v372, %v556
        %v589 = vadd.f32 %v373, %v557
        %v590 = vadd.f32 %v374, %v558
        %v591 = vadd.f32 %v375, %v559
        %v592 = vadd.f32 %v376, %v560
        %v593 = vadd.f32 %v377, %v561
        %v594 = vadd.f32 %v378, %v562
        %v595 = vadd.f32 %v379, %v563
        %v596 = vadd.f32 %v380, %v564
        %v597 = vadd.f32 %v381, %v565
        %v598 = vadd.f32 %v382, %v566
        %v599 = vadd.f32 %v383, %v567
        %v600 = vadd.f32 %v384, %v568
        %601 = vset.pattern.permute.xlu0 2
        %602 = vperm.xlu0 %601, %v193
        %v603 = vpop.permute.xlu0 %602
        %605 = vset.pattern.permute.xlu0 2
        %606 = vperm.xlu0 %605, %v194
        %v607 = vpop.permute.xlu0 %606
        %v609 = vadd.f32 %v569, %v603
        %v610 = vadd.f32 %v570, %v603
        %v611 = vadd.f32 %v571, %v603
        %v612 = vadd.f32 %v572, %v603
        %v613 = vadd.f32 %v573, %v603
        %v614 = vadd.f32 %v574, %v603
        %v615 = vadd.f32 %v575, %v603
        %v616 = vadd.f32 %v576, %v603
        %v617 = vadd.f32 %v577, %v603
        %v618 = vadd.f32 %v578, %v603
        %v619 = vadd.f32 %v579, %v603
        %v620 = vadd.f32 %v580, %v603
        %v621 = vadd.f32 %v581, %v603
        %v622 = vadd.f32 %v582, %v603
        %v623 = vadd.f32 %v583, %v603
        %v624 = vadd.f32 %v584, %v603
        %v625 = vadd.f32 %v585, %v607
        %v626 = vadd.f32 %v586, %v607
        %v627 = vadd.f32 %v587, %v607
        %v628 = vadd.f32 %v588, %v607
        %v629 = vadd.f32 %v589, %v607
        %v630 = vadd.f32 %v590, %v607
        %v631 = vadd.f32 %v591, %v607
        %v632 = vadd.f32 %v592, %v607
        %v633 = vadd.f32 %v593, %v607
        %v634 = vadd.f32 %v594, %v607
        %v635 = vadd.f32 %v595, %v607
        %v636 = vadd.f32 %v596, %v607
        %v637 = vadd.f32 %v597, %v607
        %v638 = vadd.f32 %v598, %v607
        %v639 = vadd.f32 %v599, %v607
        %v640 = vadd.f32 %v600, %v607
        %v641 = vand.u32 2147483647, %v609
        %vm642 = vcmp.le.f32.partialorder %v641, 0.7853982
        %vm643 = vcmp.lt.s32.totalorder %v609, 0
        %v644 = vand.u32 %v609, 2139095040
        %v645 = vshrl.u32 %v644, 23
        %v646 = vsub.s32 %v645, 127
        %v647 = vand.u32 2147483647, %v609
        %v648 = vand.u32 %v647, 8388607
        %v649 = vor.u32 %v648, 8388608
        %v650 = vsub.s32 0, %v649
        %v651 = vadd.s32 %v646, 1
        %vm652 = vcmp.gt.s32.totalorder %v651, 0
        %v653 = vsel %vm652, %v651, 0
        %v654 = vshrl.u32 %v653, 5
        %v655 = vand.u32 %v653, 31
        %v656 = vsub.s32 32, %v655
        %v657 = vshrl.u32 683565275, %v656
        %v658 = vshll.u32 683565275, %v655
        %v659 = vshrl.u32 2475754826, %v656
        %v660 = vor.u32 %v658, %v659
        %v661 = vshll.u32 2475754826, %v655
        %v662 = vshrl.u32 2131351028, %v656
        %v663 = vor.u32 %v661, %v662
        %v664 = vshll.u32 2131351028, %v655
        %v665 = vshrl.u32 2102212464, %v656
        %v666 = vor.u32 %v664, %v665
        %v667 = vshll.u32 2102212464, %v655
        %v668 = vshrl.u32 920167782, %v656
        %v669 = vor.u32 %v667, %v668
        %v670 = vshll.u32 920167782, %v655
        %v671 = vshrl.u32 1326507024, %v656
        %v672 = vor.u32 %v670, %v671
        %vm673 = vcmp.lt.s32.totalorder %v654, 1
        %vm674 = vcmp.lt.s32.totalorder %v654, 2
        %vm675 = vcmp.lt.s32.totalorder %v654, 3
        %vm676 = vcmp.lt.s32.totalorder %v654, 4
        %v677 = vsel %vm673, %v657, %v660
        %v678 = vsel %vm676, %v666, 2102212464
        %v679 = vsel %vm675, %v663, %v678
        %v680 = vsel %vm674, %v677, %v679
        %v681 = vsel %vm673, %v660, %v663
        %v682 = vsel %vm676, %v669, 920167782
        %v683 = vsel %vm675, %v666, %v682
        %v684 = vsel %vm674, %v681, %v683
        %v685 = vsel %vm673, %v663, %v666
        %v686 = vsel %vm676, %v672, 1326507024
        %v687 = vsel %vm675, %v669, %v686
        %v688 = vsel %vm674, %v685, %v687
        %v689 = vshll.u32 %v649, 8
        %v690 = vmul.u32.u64.compose %v689, %v688
        %v691 = vextract.low.u32 %v690
        %v692 = vextract.high.u32 %v690
        %v693 = vmul.u32.u64.compose %v689, %v684
        %v694 = vextract.low.u32 %v693
        %v695 = vextract.high.u32 %v693
        %v696 = vmul.u32 %v689, %v680
        %v697 = vadd.s32 %v692, %v694
        %vm698 = vc.u32 %v692, %v694
        %v699 = vadd.s32 %v695, 1
        %v700 = vsel %vm698, %v699, %v695
        %v701 = vadd.s32 %v696, %v700
        %v702 = vadd.s32 %v701, 536870912
        %v703 = vshrl.u32 %v702, 30
        %v704 = vshll.u32 %v703, 30
        %v705 = vsub.s32 %v701, %v704
        %vm706 = vcmp.lt.s32.totalorder %v705, 0
        %v707 = vsub.s32 0, %v705
        %v708 = vsel %vm706, %v707, %v705
        %v709 = vclz %v708
        %v710 = vsub.s32 %v709, 2
        %vm711 = vcmp.gt.s32.totalorder 0, %v710
        %v712 = vsel %vm711, 0, %v710
        %v713 = vsub.s32 32, %v712
        %v714 = vshll.u32 %v705, %v712
        %v715 = vshrl.u32 %v697, %v713
        %v716 = vor.u32 %v714, %v715
        %v717 = vsub.s32 4294967266, %v712
        %v718 = vadd.s32 %v717, 127
        %v719 = vshll.u32 %v718, 23
        %v720 = vor.u32 4788187, %v719
        %v721 = vand.u32 2147483647, %v720
        %v723 = vcvt.s32.f32 %v716
        %v724 = vmul.f32 %v723, %v721
        %v725 = vxor.u32 %v724, 2147483648
        %v726 = vsel %vm643, %v725, %v724
        %v727 = vsub.s32 4, %v703
        %v728 = vsel %vm643, %v727, %v703
        %v729 = vsel %vm642, %v609, %v726
        %v730 = vsel %vm642, 0, %v728
        %v731 = vcosq.f32.pop %v729
        %v732 = vsinq.f32.pop %v729
        %vm733 = vweird.f32 %v609
        %v734 = vadd.s32 %v730, 3
        %v735 = vand.u32 %v734, 3
        %vm736 = vcmp.lt.s32.totalorder %v735, 2
        %vm737 = vcmp.eq.s32.totalorder %v735, 0
        %v738 = vxor.u32 %v732, 2147483648
        %v739 = vsel %vm737, %v731, %v738
        %vm740 = vcmp.eq.s32.totalorder %v735, 2
        %v741 = vxor.u32 %v731, 2147483648
        %v742 = vsel %vm740, %v741, %v732
        %v743 = vsel %vm736, %v739, %v742
        %v744 = vsel %vm733, nan, %v743
        %v745 = vand.u32 2147483647, %v610
        %vm746 = vcmp.le.f32.partialorder %v745, 0.7853982
        %vm747 = vcmp.lt.s32.totalorder %v610, 0
        %v748 = vand.u32 %v610, 2139095040
        %v749 = vshrl.u32 %v748, 23
        %v750 = vsub.s32 %v749, 127
        %v751 = vand.u32 2147483647, %v610
        %v752 = vand.u32 %v751, 8388607
        %v753 = vor.u32 %v752, 8388608
        %v754 = vsub.s32 0, %v753
        %v755 = vadd.s32 %v750, 1
        %vm756 = vcmp.gt.s32.totalorder %v755, 0
        %v757 = vsel %vm756, %v755, 0
        %v758 = vshrl.u32 %v757, 5
        %v759 = vand.u32 %v757, 31
        %v760 = vsub.s32 32, %v759
        %v761 = vshrl.u32 683565275, %v760
        %v762 = vshll.u32 683565275, %v759
        %v763 = vshrl.u32 2475754826, %v760
        %v764 = vor.u32 %v762, %v763
        %v765 = vshll.u32 2475754826, %v759
        %v766 = vshrl.u32 2131351028, %v760
        %v767 = vor.u32 %v765, %v766
        %v768 = vshll.u32 2131351028, %v759
        %v769 = vshrl.u32 2102212464, %v760
        %v770 = vor.u32 %v768, %v769
        %v771 = vshll.u32 2102212464, %v759
        %v772 = vshrl.u32 920167782, %v760
        %v773 = vor.u32 %v771, %v772
        %v774 = vshll.u32 920167782, %v759
        %v775 = vshrl.u32 1326507024, %v760
        %v776 = vor.u32 %v774, %v775
        %vm777 = vcmp.lt.s32.totalorder %v758, 1
        %vm778 = vcmp.lt.s32.totalorder %v758, 2
        %vm779 = vcmp.lt.s32.totalorder %v758, 3
        %vm780 = vcmp.lt.s32.totalorder %v758, 4
        %v781 = vsel %vm777, %v761, %v764
        %v782 = vsel %vm780, %v770, 2102212464
        %v783 = vsel %vm779, %v767, %v782
        %v784 = vsel %vm778, %v781, %v783
        %v785 = vsel %vm777, %v764, %v767
        %v786 = vsel %vm780, %v773, 920167782
        %v787 = vsel %vm779, %v770, %v786
        %v788 = vsel %vm778, %v785, %v787
        %v789 = vsel %vm777, %v767, %v770
        %v790 = vsel %vm780, %v776, 1326507024
        %v791 = vsel %vm779, %v773, %v790
        %v792 = vsel %vm778, %v789, %v791
        %v793 = vshll.u32 %v753, 8
        %v794 = vmul.u32.u64.compose %v793, %v792
        %v795 = vextract.low.u32 %v794
        %v796 = vextract.high.u32 %v794
        %v797 = vmul.u32.u64.compose %v793, %v788
        %v798 = vextract.low.u32 %v797
        %v799 = vextract.high.u32 %v797
        %v800 = vmul.u32 %v793, %v784
        %v801 = vadd.s32 %v796, %v798
        %vm802 = vc.u32 %v796, %v798
        %v803 = vadd.s32 %v799, 1
        %v804 = vsel %vm802, %v803, %v799
        %v805 = vadd.s32 %v800, %v804
        %v806 = vadd.s32 %v805, 536870912
        %v807 = vshrl.u32 %v806, 30
        %v808 = vshll.u32 %v807, 30
        %v809 = vsub.s32 %v805, %v808
        %vm810 = vcmp.lt.s32.totalorder %v809, 0
        %v811 = vsub.s32 0, %v809
        %v812 = vsel %vm810, %v811, %v809
        %v813 = vclz %v812
        %v814 = vsub.s32 %v813, 2
        %vm815 = vcmp.gt.s32.totalorder 0, %v814
        %v816 = vsel %vm815, 0, %v814
        %v817 = vsub.s32 32, %v816
        %v818 = vshll.u32 %v809, %v816
        %v819 = vshrl.u32 %v801, %v817
        %v820 = vor.u32 %v818, %v819
        %v821 = vsub.s32 4294967266, %v816
        %v822 = vadd.s32 %v821, 127
        %v823 = vshll.u32 %v822, 23
        %v824 = vor.u32 4788187, %v823
        %v825 = vand.u32 2147483647, %v824
        %v827 = vcvt.s32.f32 %v820
        %v828 = vmul.f32 %v827, %v825
        %v829 = vxor.u32 %v828, 2147483648
        %v830 = vsel %vm747, %v829, %v828
        %v831 = vsub.s32 4, %v807
        %v832 = vsel %vm747, %v831, %v807
        %v833 = vsel %vm746, %v610, %v830
        %v834 = vsel %vm746, 0, %v832
        %v835 = vcosq.f32.pop %v833
        %v836 = vsinq.f32.pop %v833
        %vm837 = vweird.f32 %v610
        %v838 = vadd.s32 %v834, 3
        %v839 = vand.u32 %v838, 3
        %vm840 = vcmp.lt.s32.totalorder %v839, 2
        %vm841 = vcmp.eq.s32.totalorder %v839, 0
        %v842 = vxor.u32 %v836, 2147483648
        %v843 = vsel %vm841, %v835, %v842
        %vm844 = vcmp.eq.s32.totalorder %v839, 2
        %v845 = vxor.u32 %v835, 2147483648
        %v846 = vsel %vm844, %v845, %v836
        %v847 = vsel %vm840, %v843, %v846
        %v848 = vsel %vm837, nan, %v847
        %v849 = vand.u32 2147483647, %v611
        %vm850 = vcmp.le.f32.partialorder %v849, 0.7853982
        %vm851 = vcmp.lt.s32.totalorder %v611, 0
        %v852 = vand.u32 %v611, 2139095040
        %v853 = vshrl.u32 %v852, 23
        %v854 = vsub.s32 %v853, 127
        %v855 = vand.u32 2147483647, %v611
        %v856 = vand.u32 %v855, 8388607
        %v857 = vor.u32 %v856, 8388608
        %v858 = vsub.s32 0, %v857
        %v859 = vadd.s32 %v854, 1
        %vm860 = vcmp.gt.s32.totalorder %v859, 0
        %v861 = vsel %vm860, %v859, 0
        %v862 = vshrl.u32 %v861, 5
        %v863 = vand.u32 %v861, 31
        %v864 = vsub.s32 32, %v863
        %v865 = vshrl.u32 683565275, %v864
        %v866 = vshll.u32 683565275, %v863
        %v867 = vshrl.u32 2475754826, %v864
        %v868 = vor.u32 %v866, %v867
        %v869 = vshll.u32 2475754826, %v863
        %v870 = vshrl.u32 2131351028, %v864
        %v871 = vor.u32 %v869, %v870
        %v872 = vshll.u32 2131351028, %v863
        %v873 = vshrl.u32 2102212464, %v864
        %v874 = vor.u32 %v872, %v873
        %v875 = vshll.u32 2102212464, %v863
        %v876 = vshrl.u32 920167782, %v864
        %v877 = vor.u32 %v875, %v876
        %v878 = vshll.u32 920167782, %v863
        %v879 = vshrl.u32 1326507024, %v864
        %v880 = vor.u32 %v878, %v879
        %vm881 = vcmp.lt.s32.totalorder %v862, 1
        %vm882 = vcmp.lt.s32.totalorder %v862, 2
        %vm883 = vcmp.lt.s32.totalorder %v862, 3
        %vm884 = vcmp.lt.s32.totalorder %v862, 4
        %v885 = vsel %vm881, %v865, %v868
        %v886 = vsel %vm884, %v874, 2102212464
        %v887 = vsel %vm883, %v871, %v886
        %v888 = vsel %vm882, %v885, %v887
        %v889 = vsel %vm881, %v868, %v871
        %v890 = vsel %vm884, %v877, 920167782
        %v891 = vsel %vm883, %v874, %v890
        %v892 = vsel %vm882, %v889, %v891
        %v893 = vsel %vm881, %v871, %v874
        %v894 = vsel %vm884, %v880, 1326507024
        %v895 = vsel %vm883, %v877, %v894
        %v896 = vsel %vm882, %v893, %v895
        %v897 = vshll.u32 %v857, 8
        %v898 = vmul.u32.u64.compose %v897, %v896
        %v899 = vextract.low.u32 %v898
        %v900 = vextract.high.u32 %v898
        %v901 = vmul.u32.u64.compose %v897, %v892
        %v902 = vextract.low.u32 %v901
        %v903 = vextract.high.u32 %v901
        %v904 = vmul.u32 %v897, %v888
        %v905 = vadd.s32 %v900, %v902
        %vm906 = vc.u32 %v900, %v902
        %v907 = vadd.s32 %v903, 1
        %v908 = vsel %vm906, %v907, %v903
        %v909 = vadd.s32 %v904, %v908
        %v910 = vadd.s32 %v909, 536870912
        %v911 = vshrl.u32 %v910, 30
        %v912 = vshll.u32 %v911, 30
        %v913 = vsub.s32 %v909, %v912
        %vm914 = vcmp.lt.s32.totalorder %v913, 0
        %v915 = vsub.s32 0, %v913
        %v916 = vsel %vm914, %v915, %v913
        %v917 = vclz %v916
        %v918 = vsub.s32 %v917, 2
        %vm919 = vcmp.gt.s32.totalorder 0, %v918
        %v920 = vsel %vm919, 0, %v918
        %v921 = vsub.s32 32, %v920
        %v922 = vshll.u32 %v913, %v920
        %v923 = vshrl.u32 %v905, %v921
        %v924 = vor.u32 %v922, %v923
        %v925 = vsub.s32 4294967266, %v920
        %v926 = vadd.s32 %v925, 127
        %v927 = vshll.u32 %v926, 23
        %v928 = vor.u32 4788187, %v927
        %v929 = vand.u32 2147483647, %v928
        %v931 = vcvt.s32.f32 %v924
        %v932 = vmul.f32 %v931, %v929
        %v933 = vxor.u32 %v932, 2147483648
        %v934 = vsel %vm851, %v933, %v932
        %v935 = vsub.s32 4, %v911
        %v936 = vsel %vm851, %v935, %v911
        %v937 = vsel %vm850, %v611, %v934
        %v938 = vsel %vm850, 0, %v936
        %v939 = vcosq.f32.pop %v937
        %v940 = vsinq.f32.pop %v937
        %vm941 = vweird.f32 %v611
        %v942 = vadd.s32 %v938, 3
        %v943 = vand.u32 %v942, 3
        %vm944 = vcmp.lt.s32.totalorder %v943, 2
        %vm945 = vcmp.eq.s32.totalorder %v943, 0
        %v946 = vxor.u32 %v940, 2147483648
        %v947 = vsel %vm945, %v939, %v946
        %vm948 = vcmp.eq.s32.totalorder %v943, 2
        %v949 = vxor.u32 %v939, 2147483648
        %v950 = vsel %vm948, %v949, %v940
        %v951 = vsel %vm944, %v947, %v950
        %v952 = vsel %vm941, nan, %v951
        %v953 = vand.u32 2147483647, %v612
        %vm954 = vcmp.le.f32.partialorder %v953, 0.7853982
        %vm955 = vcmp.lt.s32.totalorder %v612, 0
        %v956 = vand.u32 %v612, 2139095040
        %v957 = vshrl.u32 %v956, 23
        %v958 = vsub.s32 %v957, 127
        %v959 = vand.u32 2147483647, %v612
        %v960 = vand.u32 %v959, 8388607
        %v961 = vor.u32 %v960, 8388608
        %v962 = vsub.s32 0, %v961
        %v963 = vadd.s32 %v958, 1
        %vm964 = vcmp.gt.s32.totalorder %v963, 0
        %v965 = vsel %vm964, %v963, 0
        %v966 = vshrl.u32 %v965, 5
        %v967 = vand.u32 %v965, 31
        %v968 = vsub.s32 32, %v967
        %v969 = vshrl.u32 683565275, %v968
        %v970 = vshll.u32 683565275, %v967
        %v971 = vshrl.u32 2475754826, %v968
        %v972 = vor.u32 %v970, %v971
        %v973 = vshll.u32 2475754826, %v967
        %v974 = vshrl.u32 2131351028, %v968
        %v975 = vor.u32 %v973, %v974
        %v976 = vshll.u32 2131351028, %v967
        %v977 = vshrl.u32 2102212464, %v968
        %v978 = vor.u32 %v976, %v977
        %v979 = vshll.u32 2102212464, %v967
        %v980 = vshrl.u32 920167782, %v968
        %v981 = vor.u32 %v979, %v980
        %v982 = vshll.u32 920167782, %v967
        %v983 = vshrl.u32 1326507024, %v968
        %v984 = vor.u32 %v982, %v983
        %vm985 = vcmp.lt.s32.totalorder %v966, 1
        %vm986 = vcmp.lt.s32.totalorder %v966, 2
        %vm987 = vcmp.lt.s32.totalorder %v966, 3
        %vm988 = vcmp.lt.s32.totalorder %v966, 4
        %v989 = vsel %vm985, %v969, %v972
        %v990 = vsel %vm988, %v978, 2102212464
        %v991 = vsel %vm987, %v975, %v990
        %v992 = vsel %vm986, %v989, %v991
        %v993 = vsel %vm985, %v972, %v975
        %v994 = vsel %vm988, %v981, 920167782
        %v995 = vsel %vm987, %v978, %v994
        %v996 = vsel %vm986, %v993, %v995
        %v997 = vsel %vm985, %v975, %v978
        %v998 = vsel %vm988, %v984, 1326507024
        %v999 = vsel %vm987, %v981, %v998
        %v1000 = vsel %vm986, %v997, %v999
        %v1001 = vshll.u32 %v961, 8
        %v1002 = vmul.u32.u64.compose %v1001, %v1000
        %v1003 = vextract.low.u32 %v1002
        %v1004 = vextract.high.u32 %v1002
        %v1005 = vmul.u32.u64.compose %v1001, %v996
        %v1006 = vextract.low.u32 %v1005
        %v1007 = vextract.high.u32 %v1005
        %v1008 = vmul.u32 %v1001, %v992
        %v1009 = vadd.s32 %v1004, %v1006
        %vm1010 = vc.u32 %v1004, %v1006
        %v1011 = vadd.s32 %v1007, 1
        %v1012 = vsel %vm1010, %v1011, %v1007
        %v1013 = vadd.s32 %v1008, %v1012
        %v1014 = vadd.s32 %v1013, 536870912
        %v1015 = vshrl.u32 %v1014, 30
        %v1016 = vshll.u32 %v1015, 30
        %v1017 = vsub.s32 %v1013, %v1016
        %vm1018 = vcmp.lt.s32.totalorder %v1017, 0
        %v1019 = vsub.s32 0, %v1017
        %v1020 = vsel %vm1018, %v1019, %v1017
        %v1021 = vclz %v1020
        %v1022 = vsub.s32 %v1021, 2
        %vm1023 = vcmp.gt.s32.totalorder 0, %v1022
        %v1024 = vsel %vm1023, 0, %v1022
        %v1025 = vsub.s32 32, %v1024
        %v1026 = vshll.u32 %v1017, %v1024
        %v1027 = vshrl.u32 %v1009, %v1025
        %v1028 = vor.u32 %v1026, %v1027
        %v1029 = vsub.s32 4294967266, %v1024
        %v1030 = vadd.s32 %v1029, 127
        %v1031 = vshll.u32 %v1030, 23
        %v1032 = vor.u32 4788187, %v1031
        %v1033 = vand.u32 2147483647, %v1032
        %v1035 = vcvt.s32.f32 %v1028
        %v1036 = vmul.f32 %v1035, %v1033
        %v1037 = vxor.u32 %v1036, 2147483648
        %v1038 = vsel %vm955, %v1037, %v1036
        %v1039 = vsub.s32 4, %v1015
        %v1040 = vsel %vm955, %v1039, %v1015
        %v1041 = vsel %vm954, %v612, %v1038
        %v1042 = vsel %vm954, 0, %v1040
        %v1043 = vcosq.f32.pop %v1041
        %v1044 = vsinq.f32.pop %v1041
        %vm1045 = vweird.f32 %v612
        %v1046 = vadd.s32 %v1042, 3
        %v1047 = vand.u32 %v1046, 3
        %vm1048 = vcmp.lt.s32.totalorder %v1047, 2
        %vm1049 = vcmp.eq.s32.totalorder %v1047, 0
        %v1050 = vxor.u32 %v1044, 2147483648
        %v1051 = vsel %vm1049, %v1043, %v1050
        %vm1052 = vcmp.eq.s32.totalorder %v1047, 2
        %v1053 = vxor.u32 %v1043, 2147483648
        %v1054 = vsel %vm1052, %v1053, %v1044
        %v1055 = vsel %vm1048, %v1051, %v1054
        %v1056 = vsel %vm1045, nan, %v1055
        %v1057 = vand.u32 2147483647, %v613
        %vm1058 = vcmp.le.f32.partialorder %v1057, 0.7853982
        %vm1059 = vcmp.lt.s32.totalorder %v613, 0
        %v1060 = vand.u32 %v613, 2139095040
        %v1061 = vshrl.u32 %v1060, 23
        %v1062 = vsub.s32 %v1061, 127
        %v1063 = vand.u32 2147483647, %v613
        %v1064 = vand.u32 %v1063, 8388607
        %v1065 = vor.u32 %v1064, 8388608
        %v1066 = vsub.s32 0, %v1065
        %v1067 = vadd.s32 %v1062, 1
        %vm1068 = vcmp.gt.s32.totalorder %v1067, 0
        %v1069 = vsel %vm1068, %v1067, 0
        %v1070 = vshrl.u32 %v1069, 5
        %v1071 = vand.u32 %v1069, 31
        %v1072 = vsub.s32 32, %v1071
        %v1073 = vshrl.u32 683565275, %v1072
        %v1074 = vshll.u32 683565275, %v1071
        %v1075 = vshrl.u32 2475754826, %v1072
        %v1076 = vor.u32 %v1074, %v1075
        %v1077 = vshll.u32 2475754826, %v1071
        %v1078 = vshrl.u32 2131351028, %v1072
        %v1079 = vor.u32 %v1077, %v1078
        %v1080 = vshll.u32 2131351028, %v1071
        %v1081 = vshrl.u32 2102212464, %v1072
        %v1082 = vor.u32 %v1080, %v1081
        %v1083 = vshll.u32 2102212464, %v1071
        %v1084 = vshrl.u32 920167782, %v1072
        %v1085 = vor.u32 %v1083, %v1084
        %v1086 = vshll.u32 920167782, %v1071
        %v1087 = vshrl.u32 1326507024, %v1072
        %v1088 = vor.u32 %v1086, %v1087
        %vm1089 = vcmp.lt.s32.totalorder %v1070, 1
        %vm1090 = vcmp.lt.s32.totalorder %v1070, 2
        %vm1091 = vcmp.lt.s32.totalorder %v1070, 3
        %vm1092 = vcmp.lt.s32.totalorder %v1070, 4
        %v1093 = vsel %vm1089, %v1073, %v1076
        %v1094 = vsel %vm1092, %v1082, 2102212464
        %v1095 = vsel %vm1091, %v1079, %v1094
        %v1096 = vsel %vm1090, %v1093, %v1095
        %v1097 = vsel %vm1089, %v1076, %v1079
        %v1098 = vsel %vm1092, %v1085, 920167782
        %v1099 = vsel %vm1091, %v1082, %v1098
        %v1100 = vsel %vm1090, %v1097, %v1099
        %v1101 = vsel %vm1089, %v1079, %v1082
        %v1102 = vsel %vm1092, %v1088, 1326507024
        %v1103 = vsel %vm1091, %v1085, %v1102
        %v1104 = vsel %vm1090, %v1101, %v1103
        %v1105 = vshll.u32 %v1065, 8
        %v1106 = vmul.u32.u64.compose %v1105, %v1104
        %v1107 = vextract.low.u32 %v1106
        %v1108 = vextract.high.u32 %v1106
        %v1109 = vmul.u32.u64.compose %v1105, %v1100
        %v1110 = vextract.low.u32 %v1109
        %v1111 = vextract.high.u32 %v1109
        %v1112 = vmul.u32 %v1105, %v1096
        %v1113 = vadd.s32 %v1108, %v1110
        %vm1114 = vc.u32 %v1108, %v1110
        %v1115 = vadd.s32 %v1111, 1
        %v1116 = vsel %vm1114, %v1115, %v1111
        %v1117 = vadd.s32 %v1112, %v1116
        %v1118 = vadd.s32 %v1117, 536870912
        %v1119 = vshrl.u32 %v1118, 30
        %v1120 = vshll.u32 %v1119, 30
        %v1121 = vsub.s32 %v1117, %v1120
        %vm1122 = vcmp.lt.s32.totalorder %v1121, 0
        %v1123 = vsub.s32 0, %v1121
        %v1124 = vsel %vm1122, %v1123, %v1121
        %v1125 = vclz %v1124
        %v1126 = vsub.s32 %v1125, 2
        %vm1127 = vcmp.gt.s32.totalorder 0, %v1126
        %v1128 = vsel %vm1127, 0, %v1126
        %v1129 = vsub.s32 32, %v1128
        %v1130 = vshll.u32 %v1121, %v1128
        %v1131 = vshrl.u32 %v1113, %v1129
        %v1132 = vor.u32 %v1130, %v1131
        %v1133 = vsub.s32 4294967266, %v1128
        %v1134 = vadd.s32 %v1133, 127
        %v1135 = vshll.u32 %v1134, 23
        %v1136 = vor.u32 4788187, %v1135
        %v1137 = vand.u32 2147483647, %v1136
        %v1139 = vcvt.s32.f32 %v1132
        %v1140 = vmul.f32 %v1139, %v1137
        %v1141 = vxor.u32 %v1140, 2147483648
        %v1142 = vsel %vm1059, %v1141, %v1140
        %v1143 = vsub.s32 4, %v1119
        %v1144 = vsel %vm1059, %v1143, %v1119
        %v1145 = vsel %vm1058, %v613, %v1142
        %v1146 = vsel %vm1058, 0, %v1144
        %v1147 = vcosq.f32.pop %v1145
        %v1148 = vsinq.f32.pop %v1145
        %vm1149 = vweird.f32 %v613
        %v1150 = vadd.s32 %v1146, 3
        %v1151 = vand.u32 %v1150, 3
        %vm1152 = vcmp.lt.s32.totalorder %v1151, 2
        %vm1153 = vcmp.eq.s32.totalorder %v1151, 0
        %v1154 = vxor.u32 %v1148, 2147483648
        %v1155 = vsel %vm1153, %v1147, %v1154
        %vm1156 = vcmp.eq.s32.totalorder %v1151, 2
        %v1157 = vxor.u32 %v1147, 2147483648
        %v1158 = vsel %vm1156, %v1157, %v1148
        %v1159 = vsel %vm1152, %v1155, %v1158
        %v1160 = vsel %vm1149, nan, %v1159
        %v1161 = vand.u32 2147483647, %v614
        %vm1162 = vcmp.le.f32.partialorder %v1161, 0.7853982
        %vm1163 = vcmp.lt.s32.totalorder %v614, 0
        %v1164 = vand.u32 %v614, 2139095040
        %v1165 = vshrl.u32 %v1164, 23
        %v1166 = vsub.s32 %v1165, 127
        %v1167 = vand.u32 2147483647, %v614
        %v1168 = vand.u32 %v1167, 8388607
        %v1169 = vor.u32 %v1168, 8388608
        %v1170 = vsub.s32 0, %v1169
        %v1171 = vadd.s32 %v1166, 1
        %vm1172 = vcmp.gt.s32.totalorder %v1171, 0
        %v1173 = vsel %vm1172, %v1171, 0
        %v1174 = vshrl.u32 %v1173, 5
        %v1175 = vand.u32 %v1173, 31
        %v1176 = vsub.s32 32, %v1175
        %v1177 = vshrl.u32 683565275, %v1176
        %v1178 = vshll.u32 683565275, %v1175
        %v1179 = vshrl.u32 2475754826, %v1176
        %v1180 = vor.u32 %v1178, %v1179
        %v1181 = vshll.u32 2475754826, %v1175
        %v1182 = vshrl.u32 2131351028, %v1176
        %v1183 = vor.u32 %v1181, %v1182
        %v1184 = vshll.u32 2131351028, %v1175
        %v1185 = vshrl.u32 2102212464, %v1176
        %v1186 = vor.u32 %v1184, %v1185
        %v1187 = vshll.u32 2102212464, %v1175
        %v1188 = vshrl.u32 920167782, %v1176
        %v1189 = vor.u32 %v1187, %v1188
        %v1190 = vshll.u32 920167782, %v1175
        %v1191 = vshrl.u32 1326507024, %v1176
        %v1192 = vor.u32 %v1190, %v1191
        %vm1193 = vcmp.lt.s32.totalorder %v1174, 1
        %vm1194 = vcmp.lt.s32.totalorder %v1174, 2
        %vm1195 = vcmp.lt.s32.totalorder %v1174, 3
        %vm1196 = vcmp.lt.s32.totalorder %v1174, 4
        %v1197 = vsel %vm1193, %v1177, %v1180
        %v1198 = vsel %vm1196, %v1186, 2102212464
        %v1199 = vsel %vm1195, %v1183, %v1198
        %v1200 = vsel %vm1194, %v1197, %v1199
        %v1201 = vsel %vm1193, %v1180, %v1183
        %v1202 = vsel %vm1196, %v1189, 920167782
        %v1203 = vsel %vm1195, %v1186, %v1202
        %v1204 = vsel %vm1194, %v1201, %v1203
        %v1205 = vsel %vm1193, %v1183, %v1186
        %v1206 = vsel %vm1196, %v1192, 1326507024
        %v1207 = vsel %vm1195, %v1189, %v1206
        %v1208 = vsel %vm1194, %v1205, %v1207
        %v1209 = vshll.u32 %v1169, 8
        %v1210 = vmul.u32.u64.compose %v1209, %v1208
        %v1211 = vextract.low.u32 %v1210
        %v1212 = vextract.high.u32 %v1210
        %v1213 = vmul.u32.u64.compose %v1209, %v1204
        %v1214 = vextract.low.u32 %v1213
        %v1215 = vextract.high.u32 %v1213
        %v1216 = vmul.u32 %v1209, %v1200
        %v1217 = vadd.s32 %v1212, %v1214
        %vm1218 = vc.u32 %v1212, %v1214
        %v1219 = vadd.s32 %v1215, 1
        %v1220 = vsel %vm1218, %v1219, %v1215
        %v1221 = vadd.s32 %v1216, %v1220
        %v1222 = vadd.s32 %v1221, 536870912
        %v1223 = vshrl.u32 %v1222, 30
        %v1224 = vshll.u32 %v1223, 30
        %v1225 = vsub.s32 %v1221, %v1224
        %vm1226 = vcmp.lt.s32.totalorder %v1225, 0
        %v1227 = vsub.s32 0, %v1225
        %v1228 = vsel %vm1226, %v1227, %v1225
        %v1229 = vclz %v1228
        %v1230 = vsub.s32 %v1229, 2
        %vm1231 = vcmp.gt.s32.totalorder 0, %v1230
        %v1232 = vsel %vm1231, 0, %v1230
        %v1233 = vsub.s32 32, %v1232
        %v1234 = vshll.u32 %v1225, %v1232
        %v1235 = vshrl.u32 %v1217, %v1233
        %v1236 = vor.u32 %v1234, %v1235
        %v1237 = vsub.s32 4294967266, %v1232
        %v1238 = vadd.s32 %v1237, 127
        %v1239 = vshll.u32 %v1238, 23
        %v1240 = vor.u32 4788187, %v1239
        %v1241 = vand.u32 2147483647, %v1240
        %v1243 = vcvt.s32.f32 %v1236
        %v1244 = vmul.f32 %v1243, %v1241
        %v1245 = vxor.u32 %v1244, 2147483648
        %v1246 = vsel %vm1163, %v1245, %v1244
        %v1247 = vsub.s32 4, %v1223
        %v1248 = vsel %vm1163, %v1247, %v1223
        %v1249 = vsel %vm1162, %v614, %v1246
        %v1250 = vsel %vm1162, 0, %v1248
        %v1251 = vcosq.f32.pop %v1249
        %v1252 = vsinq.f32.pop %v1249
        %vm1253 = vweird.f32 %v614
        %v1254 = vadd.s32 %v1250, 3
        %v1255 = vand.u32 %v1254, 3
        %vm1256 = vcmp.lt.s32.totalorder %v1255, 2
        %vm1257 = vcmp.eq.s32.totalorder %v1255, 0
        %v1258 = vxor.u32 %v1252, 2147483648
        %v1259 = vsel %vm1257, %v1251, %v1258
        %vm1260 = vcmp.eq.s32.totalorder %v1255, 2
        %v1261 = vxor.u32 %v1251, 2147483648
        %v1262 = vsel %vm1260, %v1261, %v1252
        %v1263 = vsel %vm1256, %v1259, %v1262
        %v1264 = vsel %vm1253, nan, %v1263
        %v1265 = vand.u32 2147483647, %v615
        %vm1266 = vcmp.le.f32.partialorder %v1265, 0.7853982
        %vm1267 = vcmp.lt.s32.totalorder %v615, 0
        %v1268 = vand.u32 %v615, 2139095040
        %v1269 = vshrl.u32 %v1268, 23
        %v1270 = vsub.s32 %v1269, 127
        %v1271 = vand.u32 2147483647, %v615
        %v1272 = vand.u32 %v1271, 8388607
        %v1273 = vor.u32 %v1272, 8388608
        %v1274 = vsub.s32 0, %v1273
        %v1275 = vadd.s32 %v1270, 1
        %vm1276 = vcmp.gt.s32.totalorder %v1275, 0
        %v1277 = vsel %vm1276, %v1275, 0
        %v1278 = vshrl.u32 %v1277, 5
        %v1279 = vand.u32 %v1277, 31
        %v1280 = vsub.s32 32, %v1279
        %v1281 = vshrl.u32 683565275, %v1280
        %v1282 = vshll.u32 683565275, %v1279
        %v1283 = vshrl.u32 2475754826, %v1280
        %v1284 = vor.u32 %v1282, %v1283
        %v1285 = vshll.u32 2475754826, %v1279
        %v1286 = vshrl.u32 2131351028, %v1280
        %v1287 = vor.u32 %v1285, %v1286
        %v1288 = vshll.u32 2131351028, %v1279
        %v1289 = vshrl.u32 2102212464, %v1280
        %v1290 = vor.u32 %v1288, %v1289
        %v1291 = vshll.u32 2102212464, %v1279
        %v1292 = vshrl.u32 920167782, %v1280
        %v1293 = vor.u32 %v1291, %v1292
        %v1294 = vshll.u32 920167782, %v1279
        %v1295 = vshrl.u32 1326507024, %v1280
        %v1296 = vor.u32 %v1294, %v1295
        %vm1297 = vcmp.lt.s32.totalorder %v1278, 1
        %vm1298 = vcmp.lt.s32.totalorder %v1278, 2
        %vm1299 = vcmp.lt.s32.totalorder %v1278, 3
        %vm1300 = vcmp.lt.s32.totalorder %v1278, 4
        %v1301 = vsel %vm1297, %v1281, %v1284
        %v1302 = vsel %vm1300, %v1290, 2102212464
        %v1303 = vsel %vm1299, %v1287, %v1302
        %v1304 = vsel %vm1298, %v1301, %v1303
        %v1305 = vsel %vm1297, %v1284, %v1287
        %v1306 = vsel %vm1300, %v1293, 920167782
        %v1307 = vsel %vm1299, %v1290, %v1306
        %v1308 = vsel %vm1298, %v1305, %v1307
        %v1309 = vsel %vm1297, %v1287, %v1290
        %v1310 = vsel %vm1300, %v1296, 1326507024
        %v1311 = vsel %vm1299, %v1293, %v1310
        %v1312 = vsel %vm1298, %v1309, %v1311
        %v1313 = vshll.u32 %v1273, 8
        %v1314 = vmul.u32.u64.compose %v1313, %v1312
        %v1315 = vextract.low.u32 %v1314
        %v1316 = vextract.high.u32 %v1314
        %v1317 = vmul.u32.u64.compose %v1313, %v1308
        %v1318 = vextract.low.u32 %v1317
        %v1319 = vextract.high.u32 %v1317
        %v1320 = vmul.u32 %v1313, %v1304
        %v1321 = vadd.s32 %v1316, %v1318
        %vm1322 = vc.u32 %v1316, %v1318
        %v1323 = vadd.s32 %v1319, 1
        %v1324 = vsel %vm1322, %v1323, %v1319
        %v1325 = vadd.s32 %v1320, %v1324
        %v1326 = vadd.s32 %v1325, 536870912
        %v1327 = vshrl.u32 %v1326, 30
        %v1328 = vshll.u32 %v1327, 30
        %v1329 = vsub.s32 %v1325, %v1328
        %vm1330 = vcmp.lt.s32.totalorder %v1329, 0
        %v1331 = vsub.s32 0, %v1329
        %v1332 = vsel %vm1330, %v1331, %v1329
        %v1333 = vclz %v1332
        %v1334 = vsub.s32 %v1333, 2
        %vm1335 = vcmp.gt.s32.totalorder 0, %v1334
        %v1336 = vsel %vm1335, 0, %v1334
        %v1337 = vsub.s32 32, %v1336
        %v1338 = vshll.u32 %v1329, %v1336
        %v1339 = vshrl.u32 %v1321, %v1337
        %v1340 = vor.u32 %v1338, %v1339
        %v1341 = vsub.s32 4294967266, %v1336
        %v1342 = vadd.s32 %v1341, 127
        %v1343 = vshll.u32 %v1342, 23
        %v1344 = vor.u32 4788187, %v1343
        %v1345 = vand.u32 2147483647, %v1344
        %v1347 = vcvt.s32.f32 %v1340
        %v1348 = vmul.f32 %v1347, %v1345
        %v1349 = vxor.u32 %v1348, 2147483648
        %v1350 = vsel %vm1267, %v1349, %v1348
        %v1351 = vsub.s32 4, %v1327
        %v1352 = vsel %vm1267, %v1351, %v1327
        %v1353 = vsel %vm1266, %v615, %v1350
        %v1354 = vsel %vm1266, 0, %v1352
        %v1355 = vcosq.f32.pop %v1353
        %v1356 = vsinq.f32.pop %v1353
        %vm1357 = vweird.f32 %v615
        %v1358 = vadd.s32 %v1354, 3
        %v1359 = vand.u32 %v1358, 3
        %vm1360 = vcmp.lt.s32.totalorder %v1359, 2
        %vm1361 = vcmp.eq.s32.totalorder %v1359, 0
        %v1362 = vxor.u32 %v1356, 2147483648
        %v1363 = vsel %vm1361, %v1355, %v1362
        %vm1364 = vcmp.eq.s32.totalorder %v1359, 2
        %v1365 = vxor.u32 %v1355, 2147483648
        %v1366 = vsel %vm1364, %v1365, %v1356
        %v1367 = vsel %vm1360, %v1363, %v1366
        %v1368 = vsel %vm1357, nan, %v1367
        %v1369 = vand.u32 2147483647, %v616
        %vm1370 = vcmp.le.f32.partialorder %v1369, 0.7853982
        %vm1371 = vcmp.lt.s32.totalorder %v616, 0
        %v1372 = vand.u32 %v616, 2139095040
        %v1373 = vshrl.u32 %v1372, 23
        %v1374 = vsub.s32 %v1373, 127
        %v1375 = vand.u32 2147483647, %v616
        %v1376 = vand.u32 %v1375, 8388607
        %v1377 = vor.u32 %v1376, 8388608
        %v1378 = vsub.s32 0, %v1377
        %v1379 = vadd.s32 %v1374, 1
        %vm1380 = vcmp.gt.s32.totalorder %v1379, 0
        %v1381 = vsel %vm1380, %v1379, 0
        %v1382 = vshrl.u32 %v1381, 5
        %v1383 = vand.u32 %v1381, 31
        %v1384 = vsub.s32 32, %v1383
        %v1385 = vshrl.u32 683565275, %v1384
        %v1386 = vshll.u32 683565275, %v1383
        %v1387 = vshrl.u32 2475754826, %v1384
        %v1388 = vor.u32 %v1386, %v1387
        %v1389 = vshll.u32 2475754826, %v1383
        %v1390 = vshrl.u32 2131351028, %v1384
        %v1391 = vor.u32 %v1389, %v1390
        %v1392 = vshll.u32 2131351028, %v1383
        %v1393 = vshrl.u32 2102212464, %v1384
        %v1394 = vor.u32 %v1392, %v1393
        %v1395 = vshll.u32 2102212464, %v1383
        %v1396 = vshrl.u32 920167782, %v1384
        %v1397 = vor.u32 %v1395, %v1396
        %v1398 = vshll.u32 920167782, %v1383
        %v1399 = vshrl.u32 1326507024, %v1384
        %v1400 = vor.u32 %v1398, %v1399
        %vm1401 = vcmp.lt.s32.totalorder %v1382, 1
        %vm1402 = vcmp.lt.s32.totalorder %v1382, 2
        %vm1403 = vcmp.lt.s32.totalorder %v1382, 3
        %vm1404 = vcmp.lt.s32.totalorder %v1382, 4
        %v1405 = vsel %vm1401, %v1385, %v1388
        %v1406 = vsel %vm1404, %v1394, 2102212464
        %v1407 = vsel %vm1403, %v1391, %v1406
        %v1408 = vsel %vm1402, %v1405, %v1407
        %v1409 = vsel %vm1401, %v1388, %v1391
        %v1410 = vsel %vm1404, %v1397, 920167782
        %v1411 = vsel %vm1403, %v1394, %v1410
        %v1412 = vsel %vm1402, %v1409, %v1411
        %v1413 = vsel %vm1401, %v1391, %v1394
        %v1414 = vsel %vm1404, %v1400, 1326507024
        %v1415 = vsel %vm1403, %v1397, %v1414
        %v1416 = vsel %vm1402, %v1413, %v1415
        %v1417 = vshll.u32 %v1377, 8
        %v1418 = vmul.u32.u64.compose %v1417, %v1416
        %v1419 = vextract.low.u32 %v1418
        %v1420 = vextract.high.u32 %v1418
        %v1421 = vmul.u32.u64.compose %v1417, %v1412
        %v1422 = vextract.low.u32 %v1421
        %v1423 = vextract.high.u32 %v1421
        %v1424 = vmul.u32 %v1417, %v1408
        %v1425 = vadd.s32 %v1420, %v1422
        %vm1426 = vc.u32 %v1420, %v1422
        %v1427 = vadd.s32 %v1423, 1
        %v1428 = vsel %vm1426, %v1427, %v1423
        %v1429 = vadd.s32 %v1424, %v1428
        %v1430 = vadd.s32 %v1429, 536870912
        %v1431 = vshrl.u32 %v1430, 30
        %v1432 = vshll.u32 %v1431, 30
        %v1433 = vsub.s32 %v1429, %v1432
        %vm1434 = vcmp.lt.s32.totalorder %v1433, 0
        %v1435 = vsub.s32 0, %v1433
        %v1436 = vsel %vm1434, %v1435, %v1433
        %v1437 = vclz %v1436
        %v1438 = vsub.s32 %v1437, 2
        %vm1439 = vcmp.gt.s32.totalorder 0, %v1438
        %v1440 = vsel %vm1439, 0, %v1438
        %v1441 = vsub.s32 32, %v1440
        %v1442 = vshll.u32 %v1433, %v1440
        %v1443 = vshrl.u32 %v1425, %v1441
        %v1444 = vor.u32 %v1442, %v1443
        %v1445 = vsub.s32 4294967266, %v1440
        %v1446 = vadd.s32 %v1445, 127
        %v1447 = vshll.u32 %v1446, 23
        %v1448 = vor.u32 4788187, %v1447
        %v1449 = vand.u32 2147483647, %v1448
        %v1451 = vcvt.s32.f32 %v1444
        %v1452 = vmul.f32 %v1451, %v1449
        %v1453 = vxor.u32 %v1452, 2147483648
        %v1454 = vsel %vm1371, %v1453, %v1452
        %v1455 = vsub.s32 4, %v1431
        %v1456 = vsel %vm1371, %v1455, %v1431
        %v1457 = vsel %vm1370, %v616, %v1454
        %v1458 = vsel %vm1370, 0, %v1456
        %v1459 = vcosq.f32.pop %v1457
        %v1460 = vsinq.f32.pop %v1457
        %vm1461 = vweird.f32 %v616
        %v1462 = vadd.s32 %v1458, 3
        %v1463 = vand.u32 %v1462, 3
        %vm1464 = vcmp.lt.s32.totalorder %v1463, 2
        %vm1465 = vcmp.eq.s32.totalorder %v1463, 0
        %v1466 = vxor.u32 %v1460, 2147483648
        %v1467 = vsel %vm1465, %v1459, %v1466
        %vm1468 = vcmp.eq.s32.totalorder %v1463, 2
        %v1469 = vxor.u32 %v1459, 2147483648
        %v1470 = vsel %vm1468, %v1469, %v1460
        %v1471 = vsel %vm1464, %v1467, %v1470
        %v1472 = vsel %vm1461, nan, %v1471
        %v1473 = vand.u32 2147483647, %v617
        %vm1474 = vcmp.le.f32.partialorder %v1473, 0.7853982
        %vm1475 = vcmp.lt.s32.totalorder %v617, 0
        %v1476 = vand.u32 %v617, 2139095040
        %v1477 = vshrl.u32 %v1476, 23
        %v1478 = vsub.s32 %v1477, 127
        %v1479 = vand.u32 2147483647, %v617
        %v1480 = vand.u32 %v1479, 8388607
        %v1481 = vor.u32 %v1480, 8388608
        %v1482 = vsub.s32 0, %v1481
        %v1483 = vadd.s32 %v1478, 1
        %vm1484 = vcmp.gt.s32.totalorder %v1483, 0
        %v1485 = vsel %vm1484, %v1483, 0
        %v1486 = vshrl.u32 %v1485, 5
        %v1487 = vand.u32 %v1485, 31
        %v1488 = vsub.s32 32, %v1487
        %v1489 = vshrl.u32 683565275, %v1488
        %v1490 = vshll.u32 683565275, %v1487
        %v1491 = vshrl.u32 2475754826, %v1488
        %v1492 = vor.u32 %v1490, %v1491
        %v1493 = vshll.u32 2475754826, %v1487
        %v1494 = vshrl.u32 2131351028, %v1488
        %v1495 = vor.u32 %v1493, %v1494
        %v1496 = vshll.u32 2131351028, %v1487
        %v1497 = vshrl.u32 2102212464, %v1488
        %v1498 = vor.u32 %v1496, %v1497
        %v1499 = vshll.u32 2102212464, %v1487
        %v1500 = vshrl.u32 920167782, %v1488
        %v1501 = vor.u32 %v1499, %v1500
        %v1502 = vshll.u32 920167782, %v1487
        %v1503 = vshrl.u32 1326507024, %v1488
        %v1504 = vor.u32 %v1502, %v1503
        %vm1505 = vcmp.lt.s32.totalorder %v1486, 1
        %vm1506 = vcmp.lt.s32.totalorder %v1486, 2
        %vm1507 = vcmp.lt.s32.totalorder %v1486, 3
        %vm1508 = vcmp.lt.s32.totalorder %v1486, 4
        %v1509 = vsel %vm1505, %v1489, %v1492
        %v1510 = vsel %vm1508, %v1498, 2102212464
        %v1511 = vsel %vm1507, %v1495, %v1510
        %v1512 = vsel %vm1506, %v1509, %v1511
        %v1513 = vsel %vm1505, %v1492, %v1495
        %v1514 = vsel %vm1508, %v1501, 920167782
        %v1515 = vsel %vm1507, %v1498, %v1514
        %v1516 = vsel %vm1506, %v1513, %v1515
        %v1517 = vsel %vm1505, %v1495, %v1498
        %v1518 = vsel %vm1508, %v1504, 1326507024
        %v1519 = vsel %vm1507, %v1501, %v1518
        %v1520 = vsel %vm1506, %v1517, %v1519
        %v1521 = vshll.u32 %v1481, 8
        %v1522 = vmul.u32.u64.compose %v1521, %v1520
        %v1523 = vextract.low.u32 %v1522
        %v1524 = vextract.high.u32 %v1522
        %v1525 = vmul.u32.u64.compose %v1521, %v1516
        %v1526 = vextract.low.u32 %v1525
        %v1527 = vextract.high.u32 %v1525
        %v1528 = vmul.u32 %v1521, %v1512
        %v1529 = vadd.s32 %v1524, %v1526
        %vm1530 = vc.u32 %v1524, %v1526
        %v1531 = vadd.s32 %v1527, 1
        %v1532 = vsel %vm1530, %v1531, %v1527
        %v1533 = vadd.s32 %v1528, %v1532
        %v1534 = vadd.s32 %v1533, 536870912
        %v1535 = vshrl.u32 %v1534, 30
        %v1536 = vshll.u32 %v1535, 30
        %v1537 = vsub.s32 %v1533, %v1536
        %vm1538 = vcmp.lt.s32.totalorder %v1537, 0
        %v1539 = vsub.s32 0, %v1537
        %v1540 = vsel %vm1538, %v1539, %v1537
        %v1541 = vclz %v1540
        %v1542 = vsub.s32 %v1541, 2
        %vm1543 = vcmp.gt.s32.totalorder 0, %v1542
        %v1544 = vsel %vm1543, 0, %v1542
        %v1545 = vsub.s32 32, %v1544
        %v1546 = vshll.u32 %v1537, %v1544
        %v1547 = vshrl.u32 %v1529, %v1545
        %v1548 = vor.u32 %v1546, %v1547
        %v1549 = vsub.s32 4294967266, %v1544
        %v1550 = vadd.s32 %v1549, 127
        %v1551 = vshll.u32 %v1550, 23
        %v1552 = vor.u32 4788187, %v1551
        %v1553 = vand.u32 2147483647, %v1552
        %v1555 = vcvt.s32.f32 %v1548
        %v1556 = vmul.f32 %v1555, %v1553
        %v1557 = vxor.u32 %v1556, 2147483648
        %v1558 = vsel %vm1475, %v1557, %v1556
        %v1559 = vsub.s32 4, %v1535
        %v1560 = vsel %vm1475, %v1559, %v1535
        %v1561 = vsel %vm1474, %v617, %v1558
        %v1562 = vsel %vm1474, 0, %v1560
        %v1563 = vcosq.f32.pop %v1561
        %v1564 = vsinq.f32.pop %v1561
        %vm1565 = vweird.f32 %v617
        %v1566 = vadd.s32 %v1562, 3
        %v1567 = vand.u32 %v1566, 3
        %vm1568 = vcmp.lt.s32.totalorder %v1567, 2
        %vm1569 = vcmp.eq.s32.totalorder %v1567, 0
        %v1570 = vxor.u32 %v1564, 2147483648
        %v1571 = vsel %vm1569, %v1563, %v1570
        %vm1572 = vcmp.eq.s32.totalorder %v1567, 2
        %v1573 = vxor.u32 %v1563, 2147483648
        %v1574 = vsel %vm1572, %v1573, %v1564
        %v1575 = vsel %vm1568, %v1571, %v1574
        %v1576 = vsel %vm1565, nan, %v1575
        %v1577 = vand.u32 2147483647, %v618
        %vm1578 = vcmp.le.f32.partialorder %v1577, 0.7853982
        %vm1579 = vcmp.lt.s32.totalorder %v618, 0
        %v1580 = vand.u32 %v618, 2139095040
        %v1581 = vshrl.u32 %v1580, 23
        %v1582 = vsub.s32 %v1581, 127
        %v1583 = vand.u32 2147483647, %v618
        %v1584 = vand.u32 %v1583, 8388607
        %v1585 = vor.u32 %v1584, 8388608
        %v1586 = vsub.s32 0, %v1585
        %v1587 = vadd.s32 %v1582, 1
        %vm1588 = vcmp.gt.s32.totalorder %v1587, 0
        %v1589 = vsel %vm1588, %v1587, 0
        %v1590 = vshrl.u32 %v1589, 5
        %v1591 = vand.u32 %v1589, 31
        %v1592 = vsub.s32 32, %v1591
        %v1593 = vshrl.u32 683565275, %v1592
        %v1594 = vshll.u32 683565275, %v1591
        %v1595 = vshrl.u32 2475754826, %v1592
        %v1596 = vor.u32 %v1594, %v1595
        %v1597 = vshll.u32 2475754826, %v1591
        %v1598 = vshrl.u32 2131351028, %v1592
        %v1599 = vor.u32 %v1597, %v1598
        %v1600 = vshll.u32 2131351028, %v1591
        %v1601 = vshrl.u32 2102212464, %v1592
        %v1602 = vor.u32 %v1600, %v1601
        %v1603 = vshll.u32 2102212464, %v1591
        %v1604 = vshrl.u32 920167782, %v1592
        %v1605 = vor.u32 %v1603, %v1604
        %v1606 = vshll.u32 920167782, %v1591
        %v1607 = vshrl.u32 1326507024, %v1592
        %v1608 = vor.u32 %v1606, %v1607
        %vm1609 = vcmp.lt.s32.totalorder %v1590, 1
        %vm1610 = vcmp.lt.s32.totalorder %v1590, 2
        %vm1611 = vcmp.lt.s32.totalorder %v1590, 3
        %vm1612 = vcmp.lt.s32.totalorder %v1590, 4
        %v1613 = vsel %vm1609, %v1593, %v1596
        %v1614 = vsel %vm1612, %v1602, 2102212464
        %v1615 = vsel %vm1611, %v1599, %v1614
        %v1616 = vsel %vm1610, %v1613, %v1615
        %v1617 = vsel %vm1609, %v1596, %v1599
        %v1618 = vsel %vm1612, %v1605, 920167782
        %v1619 = vsel %vm1611, %v1602, %v1618
        %v1620 = vsel %vm1610, %v1617, %v1619
        %v1621 = vsel %vm1609, %v1599, %v1602
        %v1622 = vsel %vm1612, %v1608, 1326507024
        %v1623 = vsel %vm1611, %v1605, %v1622
        %v1624 = vsel %vm1610, %v1621, %v1623
        %v1625 = vshll.u32 %v1585, 8
        %v1626 = vmul.u32.u64.compose %v1625, %v1624
        %v1627 = vextract.low.u32 %v1626
        %v1628 = vextract.high.u32 %v1626
        %v1629 = vmul.u32.u64.compose %v1625, %v1620
        %v1630 = vextract.low.u32 %v1629
        %v1631 = vextract.high.u32 %v1629
        %v1632 = vmul.u32 %v1625, %v1616
        %v1633 = vadd.s32 %v1628, %v1630
        %vm1634 = vc.u32 %v1628, %v1630
        %v1635 = vadd.s32 %v1631, 1
        %v1636 = vsel %vm1634, %v1635, %v1631
        %v1637 = vadd.s32 %v1632, %v1636
        %v1638 = vadd.s32 %v1637, 536870912
        %v1639 = vshrl.u32 %v1638, 30
        %v1640 = vshll.u32 %v1639, 30
        %v1641 = vsub.s32 %v1637, %v1640
        %vm1642 = vcmp.lt.s32.totalorder %v1641, 0
        %v1643 = vsub.s32 0, %v1641
        %v1644 = vsel %vm1642, %v1643, %v1641
        %v1645 = vclz %v1644
        %v1646 = vsub.s32 %v1645, 2
        %vm1647 = vcmp.gt.s32.totalorder 0, %v1646
        %v1648 = vsel %vm1647, 0, %v1646
        %v1649 = vsub.s32 32, %v1648
        %v1650 = vshll.u32 %v1641, %v1648
        %v1651 = vshrl.u32 %v1633, %v1649
        %v1652 = vor.u32 %v1650, %v1651
        %v1653 = vsub.s32 4294967266, %v1648
        %v1654 = vadd.s32 %v1653, 127
        %v1655 = vshll.u32 %v1654, 23
        %v1656 = vor.u32 4788187, %v1655
        %v1657 = vand.u32 2147483647, %v1656
        %v1659 = vcvt.s32.f32 %v1652
        %v1660 = vmul.f32 %v1659, %v1657
        %v1661 = vxor.u32 %v1660, 2147483648
        %v1662 = vsel %vm1579, %v1661, %v1660
        %v1663 = vsub.s32 4, %v1639
        %v1664 = vsel %vm1579, %v1663, %v1639
        %v1665 = vsel %vm1578, %v618, %v1662
        %v1666 = vsel %vm1578, 0, %v1664
        %v1667 = vcosq.f32.pop %v1665
        %v1668 = vsinq.f32.pop %v1665
        %vm1669 = vweird.f32 %v618
        %v1670 = vadd.s32 %v1666, 3
        %v1671 = vand.u32 %v1670, 3
        %vm1672 = vcmp.lt.s32.totalorder %v1671, 2
        %vm1673 = vcmp.eq.s32.totalorder %v1671, 0
        %v1674 = vxor.u32 %v1668, 2147483648
        %v1675 = vsel %vm1673, %v1667, %v1674
        %vm1676 = vcmp.eq.s32.totalorder %v1671, 2
        %v1677 = vxor.u32 %v1667, 2147483648
        %v1678 = vsel %vm1676, %v1677, %v1668
        %v1679 = vsel %vm1672, %v1675, %v1678
        %v1680 = vsel %vm1669, nan, %v1679
        %v1681 = vand.u32 2147483647, %v619
        %vm1682 = vcmp.le.f32.partialorder %v1681, 0.7853982
        %vm1683 = vcmp.lt.s32.totalorder %v619, 0
        %v1684 = vand.u32 %v619, 2139095040
        %v1685 = vshrl.u32 %v1684, 23
        %v1686 = vsub.s32 %v1685, 127
        %v1687 = vand.u32 2147483647, %v619
        %v1688 = vand.u32 %v1687, 8388607
        %v1689 = vor.u32 %v1688, 8388608
        %v1690 = vsub.s32 0, %v1689
        %v1691 = vadd.s32 %v1686, 1
        %vm1692 = vcmp.gt.s32.totalorder %v1691, 0
        %v1693 = vsel %vm1692, %v1691, 0
        %v1694 = vshrl.u32 %v1693, 5
        %v1695 = vand.u32 %v1693, 31
        %v1696 = vsub.s32 32, %v1695
        %v1697 = vshrl.u32 683565275, %v1696
        %v1698 = vshll.u32 683565275, %v1695
        %v1699 = vshrl.u32 2475754826, %v1696
        %v1700 = vor.u32 %v1698, %v1699
        %v1701 = vshll.u32 2475754826, %v1695
        %v1702 = vshrl.u32 2131351028, %v1696
        %v1703 = vor.u32 %v1701, %v1702
        %v1704 = vshll.u32 2131351028, %v1695
        %v1705 = vshrl.u32 2102212464, %v1696
        %v1706 = vor.u32 %v1704, %v1705
        %v1707 = vshll.u32 2102212464, %v1695
        %v1708 = vshrl.u32 920167782, %v1696
        %v1709 = vor.u32 %v1707, %v1708
        %v1710 = vshll.u32 920167782, %v1695
        %v1711 = vshrl.u32 1326507024, %v1696
        %v1712 = vor.u32 %v1710, %v1711
        %vm1713 = vcmp.lt.s32.totalorder %v1694, 1
        %vm1714 = vcmp.lt.s32.totalorder %v1694, 2
        %vm1715 = vcmp.lt.s32.totalorder %v1694, 3
        %vm1716 = vcmp.lt.s32.totalorder %v1694, 4
        %v1717 = vsel %vm1713, %v1697, %v1700
        %v1718 = vsel %vm1716, %v1706, 2102212464
        %v1719 = vsel %vm1715, %v1703, %v1718
        %v1720 = vsel %vm1714, %v1717, %v1719
        %v1721 = vsel %vm1713, %v1700, %v1703
        %v1722 = vsel %vm1716, %v1709, 920167782
        %v1723 = vsel %vm1715, %v1706, %v1722
        %v1724 = vsel %vm1714, %v1721, %v1723
        %v1725 = vsel %vm1713, %v1703, %v1706
        %v1726 = vsel %vm1716, %v1712, 1326507024
        %v1727 = vsel %vm1715, %v1709, %v1726
        %v1728 = vsel %vm1714, %v1725, %v1727
        %v1729 = vshll.u32 %v1689, 8
        %v1730 = vmul.u32.u64.compose %v1729, %v1728
        %v1731 = vextract.low.u32 %v1730
        %v1732 = vextract.high.u32 %v1730
        %v1733 = vmul.u32.u64.compose %v1729, %v1724
        %v1734 = vextract.low.u32 %v1733
        %v1735 = vextract.high.u32 %v1733
        %v1736 = vmul.u32 %v1729, %v1720
        %v1737 = vadd.s32 %v1732, %v1734
        %vm1738 = vc.u32 %v1732, %v1734
        %v1739 = vadd.s32 %v1735, 1
        %v1740 = vsel %vm1738, %v1739, %v1735
        %v1741 = vadd.s32 %v1736, %v1740
        %v1742 = vadd.s32 %v1741, 536870912
        %v1743 = vshrl.u32 %v1742, 30
        %v1744 = vshll.u32 %v1743, 30
        %v1745 = vsub.s32 %v1741, %v1744
        %vm1746 = vcmp.lt.s32.totalorder %v1745, 0
        %v1747 = vsub.s32 0, %v1745
        %v1748 = vsel %vm1746, %v1747, %v1745
        %v1749 = vclz %v1748
        %v1750 = vsub.s32 %v1749, 2
        %vm1751 = vcmp.gt.s32.totalorder 0, %v1750
        %v1752 = vsel %vm1751, 0, %v1750
        %v1753 = vsub.s32 32, %v1752
        %v1754 = vshll.u32 %v1745, %v1752
        %v1755 = vshrl.u32 %v1737, %v1753
        %v1756 = vor.u32 %v1754, %v1755
        %v1757 = vsub.s32 4294967266, %v1752
        %v1758 = vadd.s32 %v1757, 127
        %v1759 = vshll.u32 %v1758, 23
        %v1760 = vor.u32 4788187, %v1759
        %v1761 = vand.u32 2147483647, %v1760
        %v1763 = vcvt.s32.f32 %v1756
        %v1764 = vmul.f32 %v1763, %v1761
        %v1765 = vxor.u32 %v1764, 2147483648
        %v1766 = vsel %vm1683, %v1765, %v1764
        %v1767 = vsub.s32 4, %v1743
        %v1768 = vsel %vm1683, %v1767, %v1743
        %v1769 = vsel %vm1682, %v619, %v1766
        %v1770 = vsel %vm1682, 0, %v1768
        %v1771 = vcosq.f32.pop %v1769
        %v1772 = vsinq.f32.pop %v1769
        %vm1773 = vweird.f32 %v619
        %v1774 = vadd.s32 %v1770, 3
        %v1775 = vand.u32 %v1774, 3
        %vm1776 = vcmp.lt.s32.totalorder %v1775, 2
        %vm1777 = vcmp.eq.s32.totalorder %v1775, 0
        %v1778 = vxor.u32 %v1772, 2147483648
        %v1779 = vsel %vm1777, %v1771, %v1778
        %vm1780 = vcmp.eq.s32.totalorder %v1775, 2
        %v1781 = vxor.u32 %v1771, 2147483648
        %v1782 = vsel %vm1780, %v1781, %v1772
        %v1783 = vsel %vm1776, %v1779, %v1782
        %v1784 = vsel %vm1773, nan, %v1783
        %v1785 = vand.u32 2147483647, %v620
        %vm1786 = vcmp.le.f32.partialorder %v1785, 0.7853982
        %vm1787 = vcmp.lt.s32.totalorder %v620, 0
        %v1788 = vand.u32 %v620, 2139095040
        %v1789 = vshrl.u32 %v1788, 23
        %v1790 = vsub.s32 %v1789, 127
        %v1791 = vand.u32 2147483647, %v620
        %v1792 = vand.u32 %v1791, 8388607
        %v1793 = vor.u32 %v1792, 8388608
        %v1794 = vsub.s32 0, %v1793
        %v1795 = vadd.s32 %v1790, 1
        %vm1796 = vcmp.gt.s32.totalorder %v1795, 0
        %v1797 = vsel %vm1796, %v1795, 0
        %v1798 = vshrl.u32 %v1797, 5
        %v1799 = vand.u32 %v1797, 31
        %v1800 = vsub.s32 32, %v1799
        %v1801 = vshrl.u32 683565275, %v1800
        %v1802 = vshll.u32 683565275, %v1799
        %v1803 = vshrl.u32 2475754826, %v1800
        %v1804 = vor.u32 %v1802, %v1803
        %v1805 = vshll.u32 2475754826, %v1799
        %v1806 = vshrl.u32 2131351028, %v1800
        %v1807 = vor.u32 %v1805, %v1806
        %v1808 = vshll.u32 2131351028, %v1799
        %v1809 = vshrl.u32 2102212464, %v1800
        %v1810 = vor.u32 %v1808, %v1809
        %v1811 = vshll.u32 2102212464, %v1799
        %v1812 = vshrl.u32 920167782, %v1800
        %v1813 = vor.u32 %v1811, %v1812
        %v1814 = vshll.u32 920167782, %v1799
        %v1815 = vshrl.u32 1326507024, %v1800
        %v1816 = vor.u32 %v1814, %v1815
        %vm1817 = vcmp.lt.s32.totalorder %v1798, 1
        %vm1818 = vcmp.lt.s32.totalorder %v1798, 2
        %vm1819 = vcmp.lt.s32.totalorder %v1798, 3
        %vm1820 = vcmp.lt.s32.totalorder %v1798, 4
        %v1821 = vsel %vm1817, %v1801, %v1804
        %v1822 = vsel %vm1820, %v1810, 2102212464
        %v1823 = vsel %vm1819, %v1807, %v1822
        %v1824 = vsel %vm1818, %v1821, %v1823
        %v1825 = vsel %vm1817, %v1804, %v1807
        %v1826 = vsel %vm1820, %v1813, 920167782
        %v1827 = vsel %vm1819, %v1810, %v1826
        %v1828 = vsel %vm1818, %v1825, %v1827
        %v1829 = vsel %vm1817, %v1807, %v1810
        %v1830 = vsel %vm1820, %v1816, 1326507024
        %v1831 = vsel %vm1819, %v1813, %v1830
        %v1832 = vsel %vm1818, %v1829, %v1831
        %v1833 = vshll.u32 %v1793, 8
        %v1834 = vmul.u32.u64.compose %v1833, %v1832
        %v1835 = vextract.low.u32 %v1834
        %v1836 = vextract.high.u32 %v1834
        %v1837 = vmul.u32.u64.compose %v1833, %v1828
        %v1838 = vextract.low.u32 %v1837
        %v1839 = vextract.high.u32 %v1837
        %v1840 = vmul.u32 %v1833, %v1824
        %v1841 = vadd.s32 %v1836, %v1838
        %vm1842 = vc.u32 %v1836, %v1838
        %v1843 = vadd.s32 %v1839, 1
        %v1844 = vsel %vm1842, %v1843, %v1839
        %v1845 = vadd.s32 %v1840, %v1844
        %v1846 = vadd.s32 %v1845, 536870912
        %v1847 = vshrl.u32 %v1846, 30
        %v1848 = vshll.u32 %v1847, 30
        %v1849 = vsub.s32 %v1845, %v1848
        %vm1850 = vcmp.lt.s32.totalorder %v1849, 0
        %v1851 = vsub.s32 0, %v1849
        %v1852 = vsel %vm1850, %v1851, %v1849
        %v1853 = vclz %v1852
        %v1854 = vsub.s32 %v1853, 2
        %vm1855 = vcmp.gt.s32.totalorder 0, %v1854
        %v1856 = vsel %vm1855, 0, %v1854
        %v1857 = vsub.s32 32, %v1856
        %v1858 = vshll.u32 %v1849, %v1856
        %v1859 = vshrl.u32 %v1841, %v1857
        %v1860 = vor.u32 %v1858, %v1859
        %v1861 = vsub.s32 4294967266, %v1856
        %v1862 = vadd.s32 %v1861, 127
        %v1863 = vshll.u32 %v1862, 23
        %v1864 = vor.u32 4788187, %v1863
        %v1865 = vand.u32 2147483647, %v1864
        %v1867 = vcvt.s32.f32 %v1860
        %v1868 = vmul.f32 %v1867, %v1865
        %v1869 = vxor.u32 %v1868, 2147483648
        %v1870 = vsel %vm1787, %v1869, %v1868
        %v1871 = vsub.s32 4, %v1847
        %v1872 = vsel %vm1787, %v1871, %v1847
        %v1873 = vsel %vm1786, %v620, %v1870
        %v1874 = vsel %vm1786, 0, %v1872
        %v1875 = vcosq.f32.pop %v1873
        %v1876 = vsinq.f32.pop %v1873
        %vm1877 = vweird.f32 %v620
        %v1878 = vadd.s32 %v1874, 3
        %v1879 = vand.u32 %v1878, 3
        %vm1880 = vcmp.lt.s32.totalorder %v1879, 2
        %vm1881 = vcmp.eq.s32.totalorder %v1879, 0
        %v1882 = vxor.u32 %v1876, 2147483648
        %v1883 = vsel %vm1881, %v1875, %v1882
        %vm1884 = vcmp.eq.s32.totalorder %v1879, 2
        %v1885 = vxor.u32 %v1875, 2147483648
        %v1886 = vsel %vm1884, %v1885, %v1876
        %v1887 = vsel %vm1880, %v1883, %v1886
        %v1888 = vsel %vm1877, nan, %v1887
        %v1889 = vand.u32 2147483647, %v621
        %vm1890 = vcmp.le.f32.partialorder %v1889, 0.7853982
        %vm1891 = vcmp.lt.s32.totalorder %v621, 0
        %v1892 = vand.u32 %v621, 2139095040
        %v1893 = vshrl.u32 %v1892, 23
        %v1894 = vsub.s32 %v1893, 127
        %v1895 = vand.u32 2147483647, %v621
        %v1896 = vand.u32 %v1895, 8388607
        %v1897 = vor.u32 %v1896, 8388608
        %v1898 = vsub.s32 0, %v1897
        %v1899 = vadd.s32 %v1894, 1
        %vm1900 = vcmp.gt.s32.totalorder %v1899, 0
        %v1901 = vsel %vm1900, %v1899, 0
        %v1902 = vshrl.u32 %v1901, 5
        %v1903 = vand.u32 %v1901, 31
        %v1904 = vsub.s32 32, %v1903
        %v1905 = vshrl.u32 683565275, %v1904
        %v1906 = vshll.u32 683565275, %v1903
        %v1907 = vshrl.u32 2475754826, %v1904
        %v1908 = vor.u32 %v1906, %v1907
        %v1909 = vshll.u32 2475754826, %v1903
        %v1910 = vshrl.u32 2131351028, %v1904
        %v1911 = vor.u32 %v1909, %v1910
        %v1912 = vshll.u32 2131351028, %v1903
        %v1913 = vshrl.u32 2102212464, %v1904
        %v1914 = vor.u32 %v1912, %v1913
        %v1915 = vshll.u32 2102212464, %v1903
        %v1916 = vshrl.u32 920167782, %v1904
        %v1917 = vor.u32 %v1915, %v1916
        %v1918 = vshll.u32 920167782, %v1903
        %v1919 = vshrl.u32 1326507024, %v1904
        %v1920 = vor.u32 %v1918, %v1919
        %vm1921 = vcmp.lt.s32.totalorder %v1902, 1
        %vm1922 = vcmp.lt.s32.totalorder %v1902, 2
        %vm1923 = vcmp.lt.s32.totalorder %v1902, 3
        %vm1924 = vcmp.lt.s32.totalorder %v1902, 4
        %v1925 = vsel %vm1921, %v1905, %v1908
        %v1926 = vsel %vm1924, %v1914, 2102212464
        %v1927 = vsel %vm1923, %v1911, %v1926
        %v1928 = vsel %vm1922, %v1925, %v1927
        %v1929 = vsel %vm1921, %v1908, %v1911
        %v1930 = vsel %vm1924, %v1917, 920167782
        %v1931 = vsel %vm1923, %v1914, %v1930
        %v1932 = vsel %vm1922, %v1929, %v1931
        %v1933 = vsel %vm1921, %v1911, %v1914
        %v1934 = vsel %vm1924, %v1920, 1326507024
        %v1935 = vsel %vm1923, %v1917, %v1934
        %v1936 = vsel %vm1922, %v1933, %v1935
        %v1937 = vshll.u32 %v1897, 8
        %v1938 = vmul.u32.u64.compose %v1937, %v1936
        %v1939 = vextract.low.u32 %v1938
        %v1940 = vextract.high.u32 %v1938
        %v1941 = vmul.u32.u64.compose %v1937, %v1932
        %v1942 = vextract.low.u32 %v1941
        %v1943 = vextract.high.u32 %v1941
        %v1944 = vmul.u32 %v1937, %v1928
        %v1945 = vadd.s32 %v1940, %v1942
        %vm1946 = vc.u32 %v1940, %v1942
        %v1947 = vadd.s32 %v1943, 1
        %v1948 = vsel %vm1946, %v1947, %v1943
        %v1949 = vadd.s32 %v1944, %v1948
        %v1950 = vadd.s32 %v1949, 536870912
        %v1951 = vshrl.u32 %v1950, 30
        %v1952 = vshll.u32 %v1951, 30
        %v1953 = vsub.s32 %v1949, %v1952
        %vm1954 = vcmp.lt.s32.totalorder %v1953, 0
        %v1955 = vsub.s32 0, %v1953
        %v1956 = vsel %vm1954, %v1955, %v1953
        %v1957 = vclz %v1956
        %v1958 = vsub.s32 %v1957, 2
        %vm1959 = vcmp.gt.s32.totalorder 0, %v1958
        %v1960 = vsel %vm1959, 0, %v1958
        %v1961 = vsub.s32 32, %v1960
        %v1962 = vshll.u32 %v1953, %v1960
        %v1963 = vshrl.u32 %v1945, %v1961
        %v1964 = vor.u32 %v1962, %v1963
        %v1965 = vsub.s32 4294967266, %v1960
        %v1966 = vadd.s32 %v1965, 127
        %v1967 = vshll.u32 %v1966, 23
        %v1968 = vor.u32 4788187, %v1967
        %v1969 = vand.u32 2147483647, %v1968
        %v1971 = vcvt.s32.f32 %v1964
        %v1972 = vmul.f32 %v1971, %v1969
        %v1973 = vxor.u32 %v1972, 2147483648
        %v1974 = vsel %vm1891, %v1973, %v1972
        %v1975 = vsub.s32 4, %v1951
        %v1976 = vsel %vm1891, %v1975, %v1951
        %v1977 = vsel %vm1890, %v621, %v1974
        %v1978 = vsel %vm1890, 0, %v1976
        %v1979 = vcosq.f32.pop %v1977
        %v1980 = vsinq.f32.pop %v1977
        %vm1981 = vweird.f32 %v621
        %v1982 = vadd.s32 %v1978, 3
        %v1983 = vand.u32 %v1982, 3
        %vm1984 = vcmp.lt.s32.totalorder %v1983, 2
        %vm1985 = vcmp.eq.s32.totalorder %v1983, 0
        %v1986 = vxor.u32 %v1980, 2147483648
        %v1987 = vsel %vm1985, %v1979, %v1986
        %vm1988 = vcmp.eq.s32.totalorder %v1983, 2
        %v1989 = vxor.u32 %v1979, 2147483648
        %v1990 = vsel %vm1988, %v1989, %v1980
        %v1991 = vsel %vm1984, %v1987, %v1990
        %v1992 = vsel %vm1981, nan, %v1991
        %v1993 = vand.u32 2147483647, %v622
        %vm1994 = vcmp.le.f32.partialorder %v1993, 0.7853982
        %vm1995 = vcmp.lt.s32.totalorder %v622, 0
        %v1996 = vand.u32 %v622, 2139095040
        %v1997 = vshrl.u32 %v1996, 23
        %v1998 = vsub.s32 %v1997, 127
        %v1999 = vand.u32 2147483647, %v622
        %v2000 = vand.u32 %v1999, 8388607
        %v2001 = vor.u32 %v2000, 8388608
        %v2002 = vsub.s32 0, %v2001
        %v2003 = vadd.s32 %v1998, 1
        %vm2004 = vcmp.gt.s32.totalorder %v2003, 0
        %v2005 = vsel %vm2004, %v2003, 0
        %v2006 = vshrl.u32 %v2005, 5
        %v2007 = vand.u32 %v2005, 31
        %v2008 = vsub.s32 32, %v2007
        %v2009 = vshrl.u32 683565275, %v2008
        %v2010 = vshll.u32 683565275, %v2007
        %v2011 = vshrl.u32 2475754826, %v2008
        %v2012 = vor.u32 %v2010, %v2011
        %v2013 = vshll.u32 2475754826, %v2007
        %v2014 = vshrl.u32 2131351028, %v2008
        %v2015 = vor.u32 %v2013, %v2014
        %v2016 = vshll.u32 2131351028, %v2007
        %v2017 = vshrl.u32 2102212464, %v2008
        %v2018 = vor.u32 %v2016, %v2017
        %v2019 = vshll.u32 2102212464, %v2007
        %v2020 = vshrl.u32 920167782, %v2008
        %v2021 = vor.u32 %v2019, %v2020
        %v2022 = vshll.u32 920167782, %v2007
        %v2023 = vshrl.u32 1326507024, %v2008
        %v2024 = vor.u32 %v2022, %v2023
        %vm2025 = vcmp.lt.s32.totalorder %v2006, 1
        %vm2026 = vcmp.lt.s32.totalorder %v2006, 2
        %vm2027 = vcmp.lt.s32.totalorder %v2006, 3
        %vm2028 = vcmp.lt.s32.totalorder %v2006, 4
        %v2029 = vsel %vm2025, %v2009, %v2012
        %v2030 = vsel %vm2028, %v2018, 2102212464
        %v2031 = vsel %vm2027, %v2015, %v2030
        %v2032 = vsel %vm2026, %v2029, %v2031
        %v2033 = vsel %vm2025, %v2012, %v2015
        %v2034 = vsel %vm2028, %v2021, 920167782
        %v2035 = vsel %vm2027, %v2018, %v2034
        %v2036 = vsel %vm2026, %v2033, %v2035
        %v2037 = vsel %vm2025, %v2015, %v2018
        %v2038 = vsel %vm2028, %v2024, 1326507024
        %v2039 = vsel %vm2027, %v2021, %v2038
        %v2040 = vsel %vm2026, %v2037, %v2039
        %v2041 = vshll.u32 %v2001, 8
        %v2042 = vmul.u32.u64.compose %v2041, %v2040
        %v2043 = vextract.low.u32 %v2042
        %v2044 = vextract.high.u32 %v2042
        %v2045 = vmul.u32.u64.compose %v2041, %v2036
        %v2046 = vextract.low.u32 %v2045
        %v2047 = vextract.high.u32 %v2045
        %v2048 = vmul.u32 %v2041, %v2032
        %v2049 = vadd.s32 %v2044, %v2046
        %vm2050 = vc.u32 %v2044, %v2046
        %v2051 = vadd.s32 %v2047, 1
        %v2052 = vsel %vm2050, %v2051, %v2047
        %v2053 = vadd.s32 %v2048, %v2052
        %v2054 = vadd.s32 %v2053, 536870912
        %v2055 = vshrl.u32 %v2054, 30
        %v2056 = vshll.u32 %v2055, 30
        %v2057 = vsub.s32 %v2053, %v2056
        %vm2058 = vcmp.lt.s32.totalorder %v2057, 0
        %v2059 = vsub.s32 0, %v2057
        %v2060 = vsel %vm2058, %v2059, %v2057
        %v2061 = vclz %v2060
        %v2062 = vsub.s32 %v2061, 2
        %vm2063 = vcmp.gt.s32.totalorder 0, %v2062
        %v2064 = vsel %vm2063, 0, %v2062
        %v2065 = vsub.s32 32, %v2064
        %v2066 = vshll.u32 %v2057, %v2064
        %v2067 = vshrl.u32 %v2049, %v2065
        %v2068 = vor.u32 %v2066, %v2067
        %v2069 = vsub.s32 4294967266, %v2064
        %v2070 = vadd.s32 %v2069, 127
        %v2071 = vshll.u32 %v2070, 23
        %v2072 = vor.u32 4788187, %v2071
        %v2073 = vand.u32 2147483647, %v2072
        %v2075 = vcvt.s32.f32 %v2068
        %v2076 = vmul.f32 %v2075, %v2073
        %v2077 = vxor.u32 %v2076, 2147483648
        %v2078 = vsel %vm1995, %v2077, %v2076
        %v2079 = vsub.s32 4, %v2055
        %v2080 = vsel %vm1995, %v2079, %v2055
        %v2081 = vsel %vm1994, %v622, %v2078
        %v2082 = vsel %vm1994, 0, %v2080
        %v2083 = vcosq.f32.pop %v2081
        %v2084 = vsinq.f32.pop %v2081
        %vm2085 = vweird.f32 %v622
        %v2086 = vadd.s32 %v2082, 3
        %v2087 = vand.u32 %v2086, 3
        %vm2088 = vcmp.lt.s32.totalorder %v2087, 2
        %vm2089 = vcmp.eq.s32.totalorder %v2087, 0
        %v2090 = vxor.u32 %v2084, 2147483648
        %v2091 = vsel %vm2089, %v2083, %v2090
        %vm2092 = vcmp.eq.s32.totalorder %v2087, 2
        %v2093 = vxor.u32 %v2083, 2147483648
        %v2094 = vsel %vm2092, %v2093, %v2084
        %v2095 = vsel %vm2088, %v2091, %v2094
        %v2096 = vsel %vm2085, nan, %v2095
        %v2097 = vand.u32 2147483647, %v623
        %vm2098 = vcmp.le.f32.partialorder %v2097, 0.7853982
        %vm2099 = vcmp.lt.s32.totalorder %v623, 0
        %v2100 = vand.u32 %v623, 2139095040
        %v2101 = vshrl.u32 %v2100, 23
        %v2102 = vsub.s32 %v2101, 127
        %v2103 = vand.u32 2147483647, %v623
        %v2104 = vand.u32 %v2103, 8388607
        %v2105 = vor.u32 %v2104, 8388608
        %v2106 = vsub.s32 0, %v2105
        %v2107 = vadd.s32 %v2102, 1
        %vm2108 = vcmp.gt.s32.totalorder %v2107, 0
        %v2109 = vsel %vm2108, %v2107, 0
        %v2110 = vshrl.u32 %v2109, 5
        %v2111 = vand.u32 %v2109, 31
        %v2112 = vsub.s32 32, %v2111
        %v2113 = vshrl.u32 683565275, %v2112
        %v2114 = vshll.u32 683565275, %v2111
        %v2115 = vshrl.u32 2475754826, %v2112
        %v2116 = vor.u32 %v2114, %v2115
        %v2117 = vshll.u32 2475754826, %v2111
        %v2118 = vshrl.u32 2131351028, %v2112
        %v2119 = vor.u32 %v2117, %v2118
        %v2120 = vshll.u32 2131351028, %v2111
        %v2121 = vshrl.u32 2102212464, %v2112
        %v2122 = vor.u32 %v2120, %v2121
        %v2123 = vshll.u32 2102212464, %v2111
        %v2124 = vshrl.u32 920167782, %v2112
        %v2125 = vor.u32 %v2123, %v2124
        %v2126 = vshll.u32 920167782, %v2111
        %v2127 = vshrl.u32 1326507024, %v2112
        %v2128 = vor.u32 %v2126, %v2127
        %vm2129 = vcmp.lt.s32.totalorder %v2110, 1
        %vm2130 = vcmp.lt.s32.totalorder %v2110, 2
        %vm2131 = vcmp.lt.s32.totalorder %v2110, 3
        %vm2132 = vcmp.lt.s32.totalorder %v2110, 4
        %v2133 = vsel %vm2129, %v2113, %v2116
        %v2134 = vsel %vm2132, %v2122, 2102212464
        %v2135 = vsel %vm2131, %v2119, %v2134
        %v2136 = vsel %vm2130, %v2133, %v2135
        %v2137 = vsel %vm2129, %v2116, %v2119
        %v2138 = vsel %vm2132, %v2125, 920167782
        %v2139 = vsel %vm2131, %v2122, %v2138
        %v2140 = vsel %vm2130, %v2137, %v2139
        %v2141 = vsel %vm2129, %v2119, %v2122
        %v2142 = vsel %vm2132, %v2128, 1326507024
        %v2143 = vsel %vm2131, %v2125, %v2142
        %v2144 = vsel %vm2130, %v2141, %v2143
        %v2145 = vshll.u32 %v2105, 8
        %v2146 = vmul.u32.u64.compose %v2145, %v2144
        %v2147 = vextract.low.u32 %v2146
        %v2148 = vextract.high.u32 %v2146
        %v2149 = vmul.u32.u64.compose %v2145, %v2140
        %v2150 = vextract.low.u32 %v2149
        %v2151 = vextract.high.u32 %v2149
        %v2152 = vmul.u32 %v2145, %v2136
        %v2153 = vadd.s32 %v2148, %v2150
        %vm2154 = vc.u32 %v2148, %v2150
        %v2155 = vadd.s32 %v2151, 1
        %v2156 = vsel %vm2154, %v2155, %v2151
        %v2157 = vadd.s32 %v2152, %v2156
        %v2158 = vadd.s32 %v2157, 536870912
        %v2159 = vshrl.u32 %v2158, 30
        %v2160 = vshll.u32 %v2159, 30
        %v2161 = vsub.s32 %v2157, %v2160
        %vm2162 = vcmp.lt.s32.totalorder %v2161, 0
        %v2163 = vsub.s32 0, %v2161
        %v2164 = vsel %vm2162, %v2163, %v2161
        %v2165 = vclz %v2164
        %v2166 = vsub.s32 %v2165, 2
        %vm2167 = vcmp.gt.s32.totalorder 0, %v2166
        %v2168 = vsel %vm2167, 0, %v2166
        %v2169 = vsub.s32 32, %v2168
        %v2170 = vshll.u32 %v2161, %v2168
        %v2171 = vshrl.u32 %v2153, %v2169
        %v2172 = vor.u32 %v2170, %v2171
        %v2173 = vsub.s32 4294967266, %v2168
        %v2174 = vadd.s32 %v2173, 127
        %v2175 = vshll.u32 %v2174, 23
        %v2176 = vor.u32 4788187, %v2175
        %v2177 = vand.u32 2147483647, %v2176
        %v2179 = vcvt.s32.f32 %v2172
        %v2180 = vmul.f32 %v2179, %v2177
        %v2181 = vxor.u32 %v2180, 2147483648
        %v2182 = vsel %vm2099, %v2181, %v2180
        %v2183 = vsub.s32 4, %v2159
        %v2184 = vsel %vm2099, %v2183, %v2159
        %v2185 = vsel %vm2098, %v623, %v2182
        %v2186 = vsel %vm2098, 0, %v2184
        %v2187 = vcosq.f32.pop %v2185
        %v2188 = vsinq.f32.pop %v2185
        %vm2189 = vweird.f32 %v623
        %v2190 = vadd.s32 %v2186, 3
        %v2191 = vand.u32 %v2190, 3
        %vm2192 = vcmp.lt.s32.totalorder %v2191, 2
        %vm2193 = vcmp.eq.s32.totalorder %v2191, 0
        %v2194 = vxor.u32 %v2188, 2147483648
        %v2195 = vsel %vm2193, %v2187, %v2194
        %vm2196 = vcmp.eq.s32.totalorder %v2191, 2
        %v2197 = vxor.u32 %v2187, 2147483648
        %v2198 = vsel %vm2196, %v2197, %v2188
        %v2199 = vsel %vm2192, %v2195, %v2198
        %v2200 = vsel %vm2189, nan, %v2199
        %v2201 = vand.u32 2147483647, %v624
        %vm2202 = vcmp.le.f32.partialorder %v2201, 0.7853982
        %vm2203 = vcmp.lt.s32.totalorder %v624, 0
        %v2204 = vand.u32 %v624, 2139095040
        %v2205 = vshrl.u32 %v2204, 23
        %v2206 = vsub.s32 %v2205, 127
        %v2207 = vand.u32 2147483647, %v624
        %v2208 = vand.u32 %v2207, 8388607
        %v2209 = vor.u32 %v2208, 8388608
        %v2210 = vsub.s32 0, %v2209
        %v2211 = vadd.s32 %v2206, 1
        %vm2212 = vcmp.gt.s32.totalorder %v2211, 0
        %v2213 = vsel %vm2212, %v2211, 0
        %v2214 = vshrl.u32 %v2213, 5
        %v2215 = vand.u32 %v2213, 31
        %v2216 = vsub.s32 32, %v2215
        %v2217 = vshrl.u32 683565275, %v2216
        %v2218 = vshll.u32 683565275, %v2215
        %v2219 = vshrl.u32 2475754826, %v2216
        %v2220 = vor.u32 %v2218, %v2219
        %v2221 = vshll.u32 2475754826, %v2215
        %v2222 = vshrl.u32 2131351028, %v2216
        %v2223 = vor.u32 %v2221, %v2222
        %v2224 = vshll.u32 2131351028, %v2215
        %v2225 = vshrl.u32 2102212464, %v2216
        %v2226 = vor.u32 %v2224, %v2225
        %v2227 = vshll.u32 2102212464, %v2215
        %v2228 = vshrl.u32 920167782, %v2216
        %v2229 = vor.u32 %v2227, %v2228
        %v2230 = vshll.u32 920167782, %v2215
        %v2231 = vshrl.u32 1326507024, %v2216
        %v2232 = vor.u32 %v2230, %v2231
        %vm2233 = vcmp.lt.s32.totalorder %v2214, 1
        %vm2234 = vcmp.lt.s32.totalorder %v2214, 2
        %vm2235 = vcmp.lt.s32.totalorder %v2214, 3
        %vm2236 = vcmp.lt.s32.totalorder %v2214, 4
        %v2237 = vsel %vm2233, %v2217, %v2220
        %v2238 = vsel %vm2236, %v2226, 2102212464
        %v2239 = vsel %vm2235, %v2223, %v2238
        %v2240 = vsel %vm2234, %v2237, %v2239
        %v2241 = vsel %vm2233, %v2220, %v2223
        %v2242 = vsel %vm2236, %v2229, 920167782
        %v2243 = vsel %vm2235, %v2226, %v2242
        %v2244 = vsel %vm2234, %v2241, %v2243
        %v2245 = vsel %vm2233, %v2223, %v2226
        %v2246 = vsel %vm2236, %v2232, 1326507024
        %v2247 = vsel %vm2235, %v2229, %v2246
        %v2248 = vsel %vm2234, %v2245, %v2247
        %v2249 = vshll.u32 %v2209, 8
        %v2250 = vmul.u32.u64.compose %v2249, %v2248
        %v2251 = vextract.low.u32 %v2250
        %v2252 = vextract.high.u32 %v2250
        %v2253 = vmul.u32.u64.compose %v2249, %v2244
        %v2254 = vextract.low.u32 %v2253
        %v2255 = vextract.high.u32 %v2253
        %v2256 = vmul.u32 %v2249, %v2240
        %v2257 = vadd.s32 %v2252, %v2254
        %vm2258 = vc.u32 %v2252, %v2254
        %v2259 = vadd.s32 %v2255, 1
        %v2260 = vsel %vm2258, %v2259, %v2255
        %v2261 = vadd.s32 %v2256, %v2260
        %v2262 = vadd.s32 %v2261, 536870912
        %v2263 = vshrl.u32 %v2262, 30
        %v2264 = vshll.u32 %v2263, 30
        %v2265 = vsub.s32 %v2261, %v2264
        %vm2266 = vcmp.lt.s32.totalorder %v2265, 0
        %v2267 = vsub.s32 0, %v2265
        %v2268 = vsel %vm2266, %v2267, %v2265
        %v2269 = vclz %v2268
        %v2270 = vsub.s32 %v2269, 2
        %vm2271 = vcmp.gt.s32.totalorder 0, %v2270
        %v2272 = vsel %vm2271, 0, %v2270
        %v2273 = vsub.s32 32, %v2272
        %v2274 = vshll.u32 %v2265, %v2272
        %v2275 = vshrl.u32 %v2257, %v2273
        %v2276 = vor.u32 %v2274, %v2275
        %v2277 = vsub.s32 4294967266, %v2272
        %v2278 = vadd.s32 %v2277, 127
        %v2279 = vshll.u32 %v2278, 23
        %v2280 = vor.u32 4788187, %v2279
        %v2281 = vand.u32 2147483647, %v2280
        %v2283 = vcvt.s32.f32 %v2276
        %v2284 = vmul.f32 %v2283, %v2281
        %v2285 = vxor.u32 %v2284, 2147483648
        %v2286 = vsel %vm2203, %v2285, %v2284
        %v2287 = vsub.s32 4, %v2263
        %v2288 = vsel %vm2203, %v2287, %v2263
        %v2289 = vsel %vm2202, %v624, %v2286
        %v2290 = vsel %vm2202, 0, %v2288
        %v2291 = vcosq.f32.pop %v2289
        %v2292 = vsinq.f32.pop %v2289
        %vm2293 = vweird.f32 %v624
        %v2294 = vadd.s32 %v2290, 3
        %v2295 = vand.u32 %v2294, 3
        %vm2296 = vcmp.lt.s32.totalorder %v2295, 2
        %vm2297 = vcmp.eq.s32.totalorder %v2295, 0
        %v2298 = vxor.u32 %v2292, 2147483648
        %v2299 = vsel %vm2297, %v2291, %v2298
        %vm2300 = vcmp.eq.s32.totalorder %v2295, 2
        %v2301 = vxor.u32 %v2291, 2147483648
        %v2302 = vsel %vm2300, %v2301, %v2292
        %v2303 = vsel %vm2296, %v2299, %v2302
        %v2304 = vsel %vm2293, nan, %v2303
        %v2305 = vand.u32 2147483647, %v625
        %vm2306 = vcmp.le.f32.partialorder %v2305, 0.7853982
        %vm2307 = vcmp.lt.s32.totalorder %v625, 0
        %v2308 = vand.u32 %v625, 2139095040
        %v2309 = vshrl.u32 %v2308, 23
        %v2310 = vsub.s32 %v2309, 127
        %v2311 = vand.u32 2147483647, %v625
        %v2312 = vand.u32 %v2311, 8388607
        %v2313 = vor.u32 %v2312, 8388608
        %v2314 = vsub.s32 0, %v2313
        %v2315 = vadd.s32 %v2310, 1
        %vm2316 = vcmp.gt.s32.totalorder %v2315, 0
        %v2317 = vsel %vm2316, %v2315, 0
        %v2318 = vshrl.u32 %v2317, 5
        %v2319 = vand.u32 %v2317, 31
        %v2320 = vsub.s32 32, %v2319
        %v2321 = vshrl.u32 683565275, %v2320
        %v2322 = vshll.u32 683565275, %v2319
        %v2323 = vshrl.u32 2475754826, %v2320
        %v2324 = vor.u32 %v2322, %v2323
        %v2325 = vshll.u32 2475754826, %v2319
        %v2326 = vshrl.u32 2131351028, %v2320
        %v2327 = vor.u32 %v2325, %v2326
        %v2328 = vshll.u32 2131351028, %v2319
        %v2329 = vshrl.u32 2102212464, %v2320
        %v2330 = vor.u32 %v2328, %v2329
        %v2331 = vshll.u32 2102212464, %v2319
        %v2332 = vshrl.u32 920167782, %v2320
        %v2333 = vor.u32 %v2331, %v2332
        %v2334 = vshll.u32 920167782, %v2319
        %v2335 = vshrl.u32 1326507024, %v2320
        %v2336 = vor.u32 %v2334, %v2335
        %vm2337 = vcmp.lt.s32.totalorder %v2318, 1
        %vm2338 = vcmp.lt.s32.totalorder %v2318, 2
        %vm2339 = vcmp.lt.s32.totalorder %v2318, 3
        %vm2340 = vcmp.lt.s32.totalorder %v2318, 4
        %v2341 = vsel %vm2337, %v2321, %v2324
        %v2342 = vsel %vm2340, %v2330, 2102212464
        %v2343 = vsel %vm2339, %v2327, %v2342
        %v2344 = vsel %vm2338, %v2341, %v2343
        %v2345 = vsel %vm2337, %v2324, %v2327
        %v2346 = vsel %vm2340, %v2333, 920167782
        %v2347 = vsel %vm2339, %v2330, %v2346
        %v2348 = vsel %vm2338, %v2345, %v2347
        %v2349 = vsel %vm2337, %v2327, %v2330
        %v2350 = vsel %vm2340, %v2336, 1326507024
        %v2351 = vsel %vm2339, %v2333, %v2350
        %v2352 = vsel %vm2338, %v2349, %v2351
        %v2353 = vshll.u32 %v2313, 8
        %v2354 = vmul.u32.u64.compose %v2353, %v2352
        %v2355 = vextract.low.u32 %v2354
        %v2356 = vextract.high.u32 %v2354
        %v2357 = vmul.u32.u64.compose %v2353, %v2348
        %v2358 = vextract.low.u32 %v2357
        %v2359 = vextract.high.u32 %v2357
        %v2360 = vmul.u32 %v2353, %v2344
        %v2361 = vadd.s32 %v2356, %v2358
        %vm2362 = vc.u32 %v2356, %v2358
        %v2363 = vadd.s32 %v2359, 1
        %v2364 = vsel %vm2362, %v2363, %v2359
        %v2365 = vadd.s32 %v2360, %v2364
        %v2366 = vadd.s32 %v2365, 536870912
        %v2367 = vshrl.u32 %v2366, 30
        %v2368 = vshll.u32 %v2367, 30
        %v2369 = vsub.s32 %v2365, %v2368
        %vm2370 = vcmp.lt.s32.totalorder %v2369, 0
        %v2371 = vsub.s32 0, %v2369
        %v2372 = vsel %vm2370, %v2371, %v2369
        %v2373 = vclz %v2372
        %v2374 = vsub.s32 %v2373, 2
        %vm2375 = vcmp.gt.s32.totalorder 0, %v2374
        %v2376 = vsel %vm2375, 0, %v2374
        %v2377 = vsub.s32 32, %v2376
        %v2378 = vshll.u32 %v2369, %v2376
        %v2379 = vshrl.u32 %v2361, %v2377
        %v2380 = vor.u32 %v2378, %v2379
        %v2381 = vsub.s32 4294967266, %v2376
        %v2382 = vadd.s32 %v2381, 127
        %v2383 = vshll.u32 %v2382, 23
        %v2384 = vor.u32 4788187, %v2383
        %v2385 = vand.u32 2147483647, %v2384
        %v2387 = vcvt.s32.f32 %v2380
        %v2388 = vmul.f32 %v2387, %v2385
        %v2389 = vxor.u32 %v2388, 2147483648
        %v2390 = vsel %vm2307, %v2389, %v2388
        %v2391 = vsub.s32 4, %v2367
        %v2392 = vsel %vm2307, %v2391, %v2367
        %v2393 = vsel %vm2306, %v625, %v2390
        %v2394 = vsel %vm2306, 0, %v2392
        %v2395 = vcosq.f32.pop %v2393
        %v2396 = vsinq.f32.pop %v2393
        %vm2397 = vweird.f32 %v625
        %v2398 = vadd.s32 %v2394, 3
        %v2399 = vand.u32 %v2398, 3
        %vm2400 = vcmp.lt.s32.totalorder %v2399, 2
        %vm2401 = vcmp.eq.s32.totalorder %v2399, 0
        %v2402 = vxor.u32 %v2396, 2147483648
        %v2403 = vsel %vm2401, %v2395, %v2402
        %vm2404 = vcmp.eq.s32.totalorder %v2399, 2
        %v2405 = vxor.u32 %v2395, 2147483648
        %v2406 = vsel %vm2404, %v2405, %v2396
        %v2407 = vsel %vm2400, %v2403, %v2406
        %v2408 = vsel %vm2397, nan, %v2407
        %v2409 = vand.u32 2147483647, %v626
        %vm2410 = vcmp.le.f32.partialorder %v2409, 0.7853982
        %vm2411 = vcmp.lt.s32.totalorder %v626, 0
        %v2412 = vand.u32 %v626, 2139095040
        %v2413 = vshrl.u32 %v2412, 23
        %v2414 = vsub.s32 %v2413, 127
        %v2415 = vand.u32 2147483647, %v626
        %v2416 = vand.u32 %v2415, 8388607
        %v2417 = vor.u32 %v2416, 8388608
        %v2418 = vsub.s32 0, %v2417
        %v2419 = vadd.s32 %v2414, 1
        %vm2420 = vcmp.gt.s32.totalorder %v2419, 0
        %v2421 = vsel %vm2420, %v2419, 0
        %v2422 = vshrl.u32 %v2421, 5
        %v2423 = vand.u32 %v2421, 31
        %v2424 = vsub.s32 32, %v2423
        %v2425 = vshrl.u32 683565275, %v2424
        %v2426 = vshll.u32 683565275, %v2423
        %v2427 = vshrl.u32 2475754826, %v2424
        %v2428 = vor.u32 %v2426, %v2427
        %v2429 = vshll.u32 2475754826, %v2423
        %v2430 = vshrl.u32 2131351028, %v2424
        %v2431 = vor.u32 %v2429, %v2430
        %v2432 = vshll.u32 2131351028, %v2423
        %v2433 = vshrl.u32 2102212464, %v2424
        %v2434 = vor.u32 %v2432, %v2433
        %v2435 = vshll.u32 2102212464, %v2423
        %v2436 = vshrl.u32 920167782, %v2424
        %v2437 = vor.u32 %v2435, %v2436
        %v2438 = vshll.u32 920167782, %v2423
        %v2439 = vshrl.u32 1326507024, %v2424
        %v2440 = vor.u32 %v2438, %v2439
        %vm2441 = vcmp.lt.s32.totalorder %v2422, 1
        %vm2442 = vcmp.lt.s32.totalorder %v2422, 2
        %vm2443 = vcmp.lt.s32.totalorder %v2422, 3
        %vm2444 = vcmp.lt.s32.totalorder %v2422, 4
        %v2445 = vsel %vm2441, %v2425, %v2428
        %v2446 = vsel %vm2444, %v2434, 2102212464
        %v2447 = vsel %vm2443, %v2431, %v2446
        %v2448 = vsel %vm2442, %v2445, %v2447
        %v2449 = vsel %vm2441, %v2428, %v2431
        %v2450 = vsel %vm2444, %v2437, 920167782
        %v2451 = vsel %vm2443, %v2434, %v2450
        %v2452 = vsel %vm2442, %v2449, %v2451
        %v2453 = vsel %vm2441, %v2431, %v2434
        %v2454 = vsel %vm2444, %v2440, 1326507024
        %v2455 = vsel %vm2443, %v2437, %v2454
        %v2456 = vsel %vm2442, %v2453, %v2455
        %v2457 = vshll.u32 %v2417, 8
        %v2458 = vmul.u32.u64.compose %v2457, %v2456
        %v2459 = vextract.low.u32 %v2458
        %v2460 = vextract.high.u32 %v2458
        %v2461 = vmul.u32.u64.compose %v2457, %v2452
        %v2462 = vextract.low.u32 %v2461
        %v2463 = vextract.high.u32 %v2461
        %v2464 = vmul.u32 %v2457, %v2448
        %v2465 = vadd.s32 %v2460, %v2462
        %vm2466 = vc.u32 %v2460, %v2462
        %v2467 = vadd.s32 %v2463, 1
        %v2468 = vsel %vm2466, %v2467, %v2463
        %v2469 = vadd.s32 %v2464, %v2468
        %v2470 = vadd.s32 %v2469, 536870912
        %v2471 = vshrl.u32 %v2470, 30
        %v2472 = vshll.u32 %v2471, 30
        %v2473 = vsub.s32 %v2469, %v2472
        %vm2474 = vcmp.lt.s32.totalorder %v2473, 0
        %v2475 = vsub.s32 0, %v2473
        %v2476 = vsel %vm2474, %v2475, %v2473
        %v2477 = vclz %v2476
        %v2478 = vsub.s32 %v2477, 2
        %vm2479 = vcmp.gt.s32.totalorder 0, %v2478
        %v2480 = vsel %vm2479, 0, %v2478
        %v2481 = vsub.s32 32, %v2480
        %v2482 = vshll.u32 %v2473, %v2480
        %v2483 = vshrl.u32 %v2465, %v2481
        %v2484 = vor.u32 %v2482, %v2483
        %v2485 = vsub.s32 4294967266, %v2480
        %v2486 = vadd.s32 %v2485, 127
        %v2487 = vshll.u32 %v2486, 23
        %v2488 = vor.u32 4788187, %v2487
        %v2489 = vand.u32 2147483647, %v2488
        %v2491 = vcvt.s32.f32 %v2484
        %v2492 = vmul.f32 %v2491, %v2489
        %v2493 = vxor.u32 %v2492, 2147483648
        %v2494 = vsel %vm2411, %v2493, %v2492
        %v2495 = vsub.s32 4, %v2471
        %v2496 = vsel %vm2411, %v2495, %v2471
        %v2497 = vsel %vm2410, %v626, %v2494
        %v2498 = vsel %vm2410, 0, %v2496
        %v2499 = vcosq.f32.pop %v2497
        %v2500 = vsinq.f32.pop %v2497
        %vm2501 = vweird.f32 %v626
        %v2502 = vadd.s32 %v2498, 3
        %v2503 = vand.u32 %v2502, 3
        %vm2504 = vcmp.lt.s32.totalorder %v2503, 2
        %vm2505 = vcmp.eq.s32.totalorder %v2503, 0
        %v2506 = vxor.u32 %v2500, 2147483648
        %v2507 = vsel %vm2505, %v2499, %v2506
        %vm2508 = vcmp.eq.s32.totalorder %v2503, 2
        %v2509 = vxor.u32 %v2499, 2147483648
        %v2510 = vsel %vm2508, %v2509, %v2500
        %v2511 = vsel %vm2504, %v2507, %v2510
        %v2512 = vsel %vm2501, nan, %v2511
        %v2513 = vand.u32 2147483647, %v627
        %vm2514 = vcmp.le.f32.partialorder %v2513, 0.7853982
        %vm2515 = vcmp.lt.s32.totalorder %v627, 0
        %v2516 = vand.u32 %v627, 2139095040
        %v2517 = vshrl.u32 %v2516, 23
        %v2518 = vsub.s32 %v2517, 127
        %v2519 = vand.u32 2147483647, %v627
        %v2520 = vand.u32 %v2519, 8388607
        %v2521 = vor.u32 %v2520, 8388608
        %v2522 = vsub.s32 0, %v2521
        %v2523 = vadd.s32 %v2518, 1
        %vm2524 = vcmp.gt.s32.totalorder %v2523, 0
        %v2525 = vsel %vm2524, %v2523, 0
        %v2526 = vshrl.u32 %v2525, 5
        %v2527 = vand.u32 %v2525, 31
        %v2528 = vsub.s32 32, %v2527
        %v2529 = vshrl.u32 683565275, %v2528
        %v2530 = vshll.u32 683565275, %v2527
        %v2531 = vshrl.u32 2475754826, %v2528
        %v2532 = vor.u32 %v2530, %v2531
        %v2533 = vshll.u32 2475754826, %v2527
        %v2534 = vshrl.u32 2131351028, %v2528
        %v2535 = vor.u32 %v2533, %v2534
        %v2536 = vshll.u32 2131351028, %v2527
        %v2537 = vshrl.u32 2102212464, %v2528
        %v2538 = vor.u32 %v2536, %v2537
        %v2539 = vshll.u32 2102212464, %v2527
        %v2540 = vshrl.u32 920167782, %v2528
        %v2541 = vor.u32 %v2539, %v2540
        %v2542 = vshll.u32 920167782, %v2527
        %v2543 = vshrl.u32 1326507024, %v2528
        %v2544 = vor.u32 %v2542, %v2543
        %vm2545 = vcmp.lt.s32.totalorder %v2526, 1
        %vm2546 = vcmp.lt.s32.totalorder %v2526, 2
        %vm2547 = vcmp.lt.s32.totalorder %v2526, 3
        %vm2548 = vcmp.lt.s32.totalorder %v2526, 4
        %v2549 = vsel %vm2545, %v2529, %v2532
        %v2550 = vsel %vm2548, %v2538, 2102212464
        %v2551 = vsel %vm2547, %v2535, %v2550
        %v2552 = vsel %vm2546, %v2549, %v2551
        %v2553 = vsel %vm2545, %v2532, %v2535
        %v2554 = vsel %vm2548, %v2541, 920167782
        %v2555 = vsel %vm2547, %v2538, %v2554
        %v2556 = vsel %vm2546, %v2553, %v2555
        %v2557 = vsel %vm2545, %v2535, %v2538
        %v2558 = vsel %vm2548, %v2544, 1326507024
        %v2559 = vsel %vm2547, %v2541, %v2558
        %v2560 = vsel %vm2546, %v2557, %v2559
        %v2561 = vshll.u32 %v2521, 8
        %v2562 = vmul.u32.u64.compose %v2561, %v2560
        %v2563 = vextract.low.u32 %v2562
        %v2564 = vextract.high.u32 %v2562
        %v2565 = vmul.u32.u64.compose %v2561, %v2556
        %v2566 = vextract.low.u32 %v2565
        %v2567 = vextract.high.u32 %v2565
        %v2568 = vmul.u32 %v2561, %v2552
        %v2569 = vadd.s32 %v2564, %v2566
        %vm2570 = vc.u32 %v2564, %v2566
        %v2571 = vadd.s32 %v2567, 1
        %v2572 = vsel %vm2570, %v2571, %v2567
        %v2573 = vadd.s32 %v2568, %v2572
        %v2574 = vadd.s32 %v2573, 536870912
        %v2575 = vshrl.u32 %v2574, 30
        %v2576 = vshll.u32 %v2575, 30
        %v2577 = vsub.s32 %v2573, %v2576
        %vm2578 = vcmp.lt.s32.totalorder %v2577, 0
        %v2579 = vsub.s32 0, %v2577
        %v2580 = vsel %vm2578, %v2579, %v2577
        %v2581 = vclz %v2580
        %v2582 = vsub.s32 %v2581, 2
        %vm2583 = vcmp.gt.s32.totalorder 0, %v2582
        %v2584 = vsel %vm2583, 0, %v2582
        %v2585 = vsub.s32 32, %v2584
        %v2586 = vshll.u32 %v2577, %v2584
        %v2587 = vshrl.u32 %v2569, %v2585
        %v2588 = vor.u32 %v2586, %v2587
        %v2589 = vsub.s32 4294967266, %v2584
        %v2590 = vadd.s32 %v2589, 127
        %v2591 = vshll.u32 %v2590, 23
        %v2592 = vor.u32 4788187, %v2591
        %v2593 = vand.u32 2147483647, %v2592
        %v2595 = vcvt.s32.f32 %v2588
        %v2596 = vmul.f32 %v2595, %v2593
        %v2597 = vxor.u32 %v2596, 2147483648
        %v2598 = vsel %vm2515, %v2597, %v2596
        %v2599 = vsub.s32 4, %v2575
        %v2600 = vsel %vm2515, %v2599, %v2575
        %v2601 = vsel %vm2514, %v627, %v2598
        %v2602 = vsel %vm2514, 0, %v2600
        %v2603 = vcosq.f32.pop %v2601
        %v2604 = vsinq.f32.pop %v2601
        %vm2605 = vweird.f32 %v627
        %v2606 = vadd.s32 %v2602, 3
        %v2607 = vand.u32 %v2606, 3
        %vm2608 = vcmp.lt.s32.totalorder %v2607, 2
        %vm2609 = vcmp.eq.s32.totalorder %v2607, 0
        %v2610 = vxor.u32 %v2604, 2147483648
        %v2611 = vsel %vm2609, %v2603, %v2610
        %vm2612 = vcmp.eq.s32.totalorder %v2607, 2
        %v2613 = vxor.u32 %v2603, 2147483648
        %v2614 = vsel %vm2612, %v2613, %v2604
        %v2615 = vsel %vm2608, %v2611, %v2614
        %v2616 = vsel %vm2605, nan, %v2615
        %v2617 = vand.u32 2147483647, %v628
        %vm2618 = vcmp.le.f32.partialorder %v2617, 0.7853982
        %vm2619 = vcmp.lt.s32.totalorder %v628, 0
        %v2620 = vand.u32 %v628, 2139095040
        %v2621 = vshrl.u32 %v2620, 23
        %v2622 = vsub.s32 %v2621, 127
        %v2623 = vand.u32 2147483647, %v628
        %v2624 = vand.u32 %v2623, 8388607
        %v2625 = vor.u32 %v2624, 8388608
        %v2626 = vsub.s32 0, %v2625
        %v2627 = vadd.s32 %v2622, 1
        %vm2628 = vcmp.gt.s32.totalorder %v2627, 0
        %v2629 = vsel %vm2628, %v2627, 0
        %v2630 = vshrl.u32 %v2629, 5
        %v2631 = vand.u32 %v2629, 31
        %v2632 = vsub.s32 32, %v2631
        %v2633 = vshrl.u32 683565275, %v2632
        %v2634 = vshll.u32 683565275, %v2631
        %v2635 = vshrl.u32 2475754826, %v2632
        %v2636 = vor.u32 %v2634, %v2635
        %v2637 = vshll.u32 2475754826, %v2631
        %v2638 = vshrl.u32 2131351028, %v2632
        %v2639 = vor.u32 %v2637, %v2638
        %v2640 = vshll.u32 2131351028, %v2631
        %v2641 = vshrl.u32 2102212464, %v2632
        %v2642 = vor.u32 %v2640, %v2641
        %v2643 = vshll.u32 2102212464, %v2631
        %v2644 = vshrl.u32 920167782, %v2632
        %v2645 = vor.u32 %v2643, %v2644
        %v2646 = vshll.u32 920167782, %v2631
        %v2647 = vshrl.u32 1326507024, %v2632
        %v2648 = vor.u32 %v2646, %v2647
        %vm2649 = vcmp.lt.s32.totalorder %v2630, 1
        %vm2650 = vcmp.lt.s32.totalorder %v2630, 2
        %vm2651 = vcmp.lt.s32.totalorder %v2630, 3
        %vm2652 = vcmp.lt.s32.totalorder %v2630, 4
        %v2653 = vsel %vm2649, %v2633, %v2636
        %v2654 = vsel %vm2652, %v2642, 2102212464
        %v2655 = vsel %vm2651, %v2639, %v2654
        %v2656 = vsel %vm2650, %v2653, %v2655
        %v2657 = vsel %vm2649, %v2636, %v2639
        %v2658 = vsel %vm2652, %v2645, 920167782
        %v2659 = vsel %vm2651, %v2642, %v2658
        %v2660 = vsel %vm2650, %v2657, %v2659
        %v2661 = vsel %vm2649, %v2639, %v2642
        %v2662 = vsel %vm2652, %v2648, 1326507024
        %v2663 = vsel %vm2651, %v2645, %v2662
        %v2664 = vsel %vm2650, %v2661, %v2663
        %v2665 = vshll.u32 %v2625, 8
        %v2666 = vmul.u32.u64.compose %v2665, %v2664
        %v2667 = vextract.low.u32 %v2666
        %v2668 = vextract.high.u32 %v2666
        %v2669 = vmul.u32.u64.compose %v2665, %v2660
        %v2670 = vextract.low.u32 %v2669
        %v2671 = vextract.high.u32 %v2669
        %v2672 = vmul.u32 %v2665, %v2656
        %v2673 = vadd.s32 %v2668, %v2670
        %vm2674 = vc.u32 %v2668, %v2670
        %v2675 = vadd.s32 %v2671, 1
        %v2676 = vsel %vm2674, %v2675, %v2671
        %v2677 = vadd.s32 %v2672, %v2676
        %v2678 = vadd.s32 %v2677, 536870912
        %v2679 = vshrl.u32 %v2678, 30
        %v2680 = vshll.u32 %v2679, 30
        %v2681 = vsub.s32 %v2677, %v2680
        %vm2682 = vcmp.lt.s32.totalorder %v2681, 0
        %v2683 = vsub.s32 0, %v2681
        %v2684 = vsel %vm2682, %v2683, %v2681
        %v2685 = vclz %v2684
        %v2686 = vsub.s32 %v2685, 2
        %vm2687 = vcmp.gt.s32.totalorder 0, %v2686
        %v2688 = vsel %vm2687, 0, %v2686
        %v2689 = vsub.s32 32, %v2688
        %v2690 = vshll.u32 %v2681, %v2688
        %v2691 = vshrl.u32 %v2673, %v2689
        %v2692 = vor.u32 %v2690, %v2691
        %v2693 = vsub.s32 4294967266, %v2688
        %v2694 = vadd.s32 %v2693, 127
        %v2695 = vshll.u32 %v2694, 23
        %v2696 = vor.u32 4788187, %v2695
        %v2697 = vand.u32 2147483647, %v2696
        %v2699 = vcvt.s32.f32 %v2692
        %v2700 = vmul.f32 %v2699, %v2697
        %v2701 = vxor.u32 %v2700, 2147483648
        %v2702 = vsel %vm2619, %v2701, %v2700
        %v2703 = vsub.s32 4, %v2679
        %v2704 = vsel %vm2619, %v2703, %v2679
        %v2705 = vsel %vm2618, %v628, %v2702
        %v2706 = vsel %vm2618, 0, %v2704
        %v2707 = vcosq.f32.pop %v2705
        %v2708 = vsinq.f32.pop %v2705
        %vm2709 = vweird.f32 %v628
        %v2710 = vadd.s32 %v2706, 3
        %v2711 = vand.u32 %v2710, 3
        %vm2712 = vcmp.lt.s32.totalorder %v2711, 2
        %vm2713 = vcmp.eq.s32.totalorder %v2711, 0
        %v2714 = vxor.u32 %v2708, 2147483648
        %v2715 = vsel %vm2713, %v2707, %v2714
        %vm2716 = vcmp.eq.s32.totalorder %v2711, 2
        %v2717 = vxor.u32 %v2707, 2147483648
        %v2718 = vsel %vm2716, %v2717, %v2708
        %v2719 = vsel %vm2712, %v2715, %v2718
        %v2720 = vsel %vm2709, nan, %v2719
        %v2721 = vand.u32 2147483647, %v629
        %vm2722 = vcmp.le.f32.partialorder %v2721, 0.7853982
        %vm2723 = vcmp.lt.s32.totalorder %v629, 0
        %v2724 = vand.u32 %v629, 2139095040
        %v2725 = vshrl.u32 %v2724, 23
        %v2726 = vsub.s32 %v2725, 127
        %v2727 = vand.u32 2147483647, %v629
        %v2728 = vand.u32 %v2727, 8388607
        %v2729 = vor.u32 %v2728, 8388608
        %v2730 = vsub.s32 0, %v2729
        %v2731 = vadd.s32 %v2726, 1
        %vm2732 = vcmp.gt.s32.totalorder %v2731, 0
        %v2733 = vsel %vm2732, %v2731, 0
        %v2734 = vshrl.u32 %v2733, 5
        %v2735 = vand.u32 %v2733, 31
        %v2736 = vsub.s32 32, %v2735
        %v2737 = vshrl.u32 683565275, %v2736
        %v2738 = vshll.u32 683565275, %v2735
        %v2739 = vshrl.u32 2475754826, %v2736
        %v2740 = vor.u32 %v2738, %v2739
        %v2741 = vshll.u32 2475754826, %v2735
        %v2742 = vshrl.u32 2131351028, %v2736
        %v2743 = vor.u32 %v2741, %v2742
        %v2744 = vshll.u32 2131351028, %v2735
        %v2745 = vshrl.u32 2102212464, %v2736
        %v2746 = vor.u32 %v2744, %v2745
        %v2747 = vshll.u32 2102212464, %v2735
        %v2748 = vshrl.u32 920167782, %v2736
        %v2749 = vor.u32 %v2747, %v2748
        %v2750 = vshll.u32 920167782, %v2735
        %v2751 = vshrl.u32 1326507024, %v2736
        %v2752 = vor.u32 %v2750, %v2751
        %vm2753 = vcmp.lt.s32.totalorder %v2734, 1
        %vm2754 = vcmp.lt.s32.totalorder %v2734, 2
        %vm2755 = vcmp.lt.s32.totalorder %v2734, 3
        %vm2756 = vcmp.lt.s32.totalorder %v2734, 4
        %v2757 = vsel %vm2753, %v2737, %v2740
        %v2758 = vsel %vm2756, %v2746, 2102212464
        %v2759 = vsel %vm2755, %v2743, %v2758
        %v2760 = vsel %vm2754, %v2757, %v2759
        %v2761 = vsel %vm2753, %v2740, %v2743
        %v2762 = vsel %vm2756, %v2749, 920167782
        %v2763 = vsel %vm2755, %v2746, %v2762
        %v2764 = vsel %vm2754, %v2761, %v2763
        %v2765 = vsel %vm2753, %v2743, %v2746
        %v2766 = vsel %vm2756, %v2752, 1326507024
        %v2767 = vsel %vm2755, %v2749, %v2766
        %v2768 = vsel %vm2754, %v2765, %v2767
        %v2769 = vshll.u32 %v2729, 8
        %v2770 = vmul.u32.u64.compose %v2769, %v2768
        %v2771 = vextract.low.u32 %v2770
        %v2772 = vextract.high.u32 %v2770
        %v2773 = vmul.u32.u64.compose %v2769, %v2764
        %v2774 = vextract.low.u32 %v2773
        %v2775 = vextract.high.u32 %v2773
        %v2776 = vmul.u32 %v2769, %v2760
        %v2777 = vadd.s32 %v2772, %v2774
        %vm2778 = vc.u32 %v2772, %v2774
        %v2779 = vadd.s32 %v2775, 1
        %v2780 = vsel %vm2778, %v2779, %v2775
        %v2781 = vadd.s32 %v2776, %v2780
        %v2782 = vadd.s32 %v2781, 536870912
        %v2783 = vshrl.u32 %v2782, 30
        %v2784 = vshll.u32 %v2783, 30
        %v2785 = vsub.s32 %v2781, %v2784
        %vm2786 = vcmp.lt.s32.totalorder %v2785, 0
        %v2787 = vsub.s32 0, %v2785
        %v2788 = vsel %vm2786, %v2787, %v2785
        %v2789 = vclz %v2788
        %v2790 = vsub.s32 %v2789, 2
        %vm2791 = vcmp.gt.s32.totalorder 0, %v2790
        %v2792 = vsel %vm2791, 0, %v2790
        %v2793 = vsub.s32 32, %v2792
        %v2794 = vshll.u32 %v2785, %v2792
        %v2795 = vshrl.u32 %v2777, %v2793
        %v2796 = vor.u32 %v2794, %v2795
        %v2797 = vsub.s32 4294967266, %v2792
        %v2798 = vadd.s32 %v2797, 127
        %v2799 = vshll.u32 %v2798, 23
        %v2800 = vor.u32 4788187, %v2799
        %v2801 = vand.u32 2147483647, %v2800
        %v2803 = vcvt.s32.f32 %v2796
        %v2804 = vmul.f32 %v2803, %v2801
        %v2805 = vxor.u32 %v2804, 2147483648
        %v2806 = vsel %vm2723, %v2805, %v2804
        %v2807 = vsub.s32 4, %v2783
        %v2808 = vsel %vm2723, %v2807, %v2783
        %v2809 = vsel %vm2722, %v629, %v2806
        %v2810 = vsel %vm2722, 0, %v2808
        %v2811 = vcosq.f32.pop %v2809
        %v2812 = vsinq.f32.pop %v2809
        %vm2813 = vweird.f32 %v629
        %v2814 = vadd.s32 %v2810, 3
        %v2815 = vand.u32 %v2814, 3
        %vm2816 = vcmp.lt.s32.totalorder %v2815, 2
        %vm2817 = vcmp.eq.s32.totalorder %v2815, 0
        %v2818 = vxor.u32 %v2812, 2147483648
        %v2819 = vsel %vm2817, %v2811, %v2818
        %vm2820 = vcmp.eq.s32.totalorder %v2815, 2
        %v2821 = vxor.u32 %v2811, 2147483648
        %v2822 = vsel %vm2820, %v2821, %v2812
        %v2823 = vsel %vm2816, %v2819, %v2822
        %v2824 = vsel %vm2813, nan, %v2823
        %v2825 = vand.u32 2147483647, %v630
        %vm2826 = vcmp.le.f32.partialorder %v2825, 0.7853982
        %vm2827 = vcmp.lt.s32.totalorder %v630, 0
        %v2828 = vand.u32 %v630, 2139095040
        %v2829 = vshrl.u32 %v2828, 23
        %v2830 = vsub.s32 %v2829, 127
        %v2831 = vand.u32 2147483647, %v630
        %v2832 = vand.u32 %v2831, 8388607
        %v2833 = vor.u32 %v2832, 8388608
        %v2834 = vsub.s32 0, %v2833
        %v2835 = vadd.s32 %v2830, 1
        %vm2836 = vcmp.gt.s32.totalorder %v2835, 0
        %v2837 = vsel %vm2836, %v2835, 0
        %v2838 = vshrl.u32 %v2837, 5
        %v2839 = vand.u32 %v2837, 31
        %v2840 = vsub.s32 32, %v2839
        %v2841 = vshrl.u32 683565275, %v2840
        %v2842 = vshll.u32 683565275, %v2839
        %v2843 = vshrl.u32 2475754826, %v2840
        %v2844 = vor.u32 %v2842, %v2843
        %v2845 = vshll.u32 2475754826, %v2839
        %v2846 = vshrl.u32 2131351028, %v2840
        %v2847 = vor.u32 %v2845, %v2846
        %v2848 = vshll.u32 2131351028, %v2839
        %v2849 = vshrl.u32 2102212464, %v2840
        %v2850 = vor.u32 %v2848, %v2849
        %v2851 = vshll.u32 2102212464, %v2839
        %v2852 = vshrl.u32 920167782, %v2840
        %v2853 = vor.u32 %v2851, %v2852
        %v2854 = vshll.u32 920167782, %v2839
        %v2855 = vshrl.u32 1326507024, %v2840
        %v2856 = vor.u32 %v2854, %v2855
        %vm2857 = vcmp.lt.s32.totalorder %v2838, 1
        %vm2858 = vcmp.lt.s32.totalorder %v2838, 2
        %vm2859 = vcmp.lt.s32.totalorder %v2838, 3
        %vm2860 = vcmp.lt.s32.totalorder %v2838, 4
        %v2861 = vsel %vm2857, %v2841, %v2844
        %v2862 = vsel %vm2860, %v2850, 2102212464
        %v2863 = vsel %vm2859, %v2847, %v2862
        %v2864 = vsel %vm2858, %v2861, %v2863
        %v2865 = vsel %vm2857, %v2844, %v2847
        %v2866 = vsel %vm2860, %v2853, 920167782
        %v2867 = vsel %vm2859, %v2850, %v2866
        %v2868 = vsel %vm2858, %v2865, %v2867
        %v2869 = vsel %vm2857, %v2847, %v2850
        %v2870 = vsel %vm2860, %v2856, 1326507024
        %v2871 = vsel %vm2859, %v2853, %v2870
        %v2872 = vsel %vm2858, %v2869, %v2871
        %v2873 = vshll.u32 %v2833, 8
        %v2874 = vmul.u32.u64.compose %v2873, %v2872
        %v2875 = vextract.low.u32 %v2874
        %v2876 = vextract.high.u32 %v2874
        %v2877 = vmul.u32.u64.compose %v2873, %v2868
        %v2878 = vextract.low.u32 %v2877
        %v2879 = vextract.high.u32 %v2877
        %v2880 = vmul.u32 %v2873, %v2864
        %v2881 = vadd.s32 %v2876, %v2878
        %vm2882 = vc.u32 %v2876, %v2878
        %v2883 = vadd.s32 %v2879, 1
        %v2884 = vsel %vm2882, %v2883, %v2879
        %v2885 = vadd.s32 %v2880, %v2884
        %v2886 = vadd.s32 %v2885, 536870912
        %v2887 = vshrl.u32 %v2886, 30
        %v2888 = vshll.u32 %v2887, 30
        %v2889 = vsub.s32 %v2885, %v2888
        %vm2890 = vcmp.lt.s32.totalorder %v2889, 0
        %v2891 = vsub.s32 0, %v2889
        %v2892 = vsel %vm2890, %v2891, %v2889
        %v2893 = vclz %v2892
        %v2894 = vsub.s32 %v2893, 2
        %vm2895 = vcmp.gt.s32.totalorder 0, %v2894
        %v2896 = vsel %vm2895, 0, %v2894
        %v2897 = vsub.s32 32, %v2896
        %v2898 = vshll.u32 %v2889, %v2896
        %v2899 = vshrl.u32 %v2881, %v2897
        %v2900 = vor.u32 %v2898, %v2899
        %v2901 = vsub.s32 4294967266, %v2896
        %v2902 = vadd.s32 %v2901, 127
        %v2903 = vshll.u32 %v2902, 23
        %v2904 = vor.u32 4788187, %v2903
        %v2905 = vand.u32 2147483647, %v2904
        %v2907 = vcvt.s32.f32 %v2900
        %v2908 = vmul.f32 %v2907, %v2905
        %v2909 = vxor.u32 %v2908, 2147483648
        %v2910 = vsel %vm2827, %v2909, %v2908
        %v2911 = vsub.s32 4, %v2887
        %v2912 = vsel %vm2827, %v2911, %v2887
        %v2913 = vsel %vm2826, %v630, %v2910
        %v2914 = vsel %vm2826, 0, %v2912
        %v2915 = vcosq.f32.pop %v2913
        %v2916 = vsinq.f32.pop %v2913
        %vm2917 = vweird.f32 %v630
        %v2918 = vadd.s32 %v2914, 3
        %v2919 = vand.u32 %v2918, 3
        %vm2920 = vcmp.lt.s32.totalorder %v2919, 2
        %vm2921 = vcmp.eq.s32.totalorder %v2919, 0
        %v2922 = vxor.u32 %v2916, 2147483648
        %v2923 = vsel %vm2921, %v2915, %v2922
        %vm2924 = vcmp.eq.s32.totalorder %v2919, 2
        %v2925 = vxor.u32 %v2915, 2147483648
        %v2926 = vsel %vm2924, %v2925, %v2916
        %v2927 = vsel %vm2920, %v2923, %v2926
        %v2928 = vsel %vm2917, nan, %v2927
        %v2929 = vand.u32 2147483647, %v631
        %vm2930 = vcmp.le.f32.partialorder %v2929, 0.7853982
        %vm2931 = vcmp.lt.s32.totalorder %v631, 0
        %v2932 = vand.u32 %v631, 2139095040
        %v2933 = vshrl.u32 %v2932, 23
        %v2934 = vsub.s32 %v2933, 127
        %v2935 = vand.u32 2147483647, %v631
        %v2936 = vand.u32 %v2935, 8388607
        %v2937 = vor.u32 %v2936, 8388608
        %v2938 = vsub.s32 0, %v2937
        %v2939 = vadd.s32 %v2934, 1
        %vm2940 = vcmp.gt.s32.totalorder %v2939, 0
        %v2941 = vsel %vm2940, %v2939, 0
        %v2942 = vshrl.u32 %v2941, 5
        %v2943 = vand.u32 %v2941, 31
        %v2944 = vsub.s32 32, %v2943
        %v2945 = vshrl.u32 683565275, %v2944
        %v2946 = vshll.u32 683565275, %v2943
        %v2947 = vshrl.u32 2475754826, %v2944
        %v2948 = vor.u32 %v2946, %v2947
        %v2949 = vshll.u32 2475754826, %v2943
        %v2950 = vshrl.u32 2131351028, %v2944
        %v2951 = vor.u32 %v2949, %v2950
        %v2952 = vshll.u32 2131351028, %v2943
        %v2953 = vshrl.u32 2102212464, %v2944
        %v2954 = vor.u32 %v2952, %v2953
        %v2955 = vshll.u32 2102212464, %v2943
        %v2956 = vshrl.u32 920167782, %v2944
        %v2957 = vor.u32 %v2955, %v2956
        %v2958 = vshll.u32 920167782, %v2943
        %v2959 = vshrl.u32 1326507024, %v2944
        %v2960 = vor.u32 %v2958, %v2959
        %vm2961 = vcmp.lt.s32.totalorder %v2942, 1
        %vm2962 = vcmp.lt.s32.totalorder %v2942, 2
        %vm2963 = vcmp.lt.s32.totalorder %v2942, 3
        %vm2964 = vcmp.lt.s32.totalorder %v2942, 4
        %v2965 = vsel %vm2961, %v2945, %v2948
        %v2966 = vsel %vm2964, %v2954, 2102212464
        %v2967 = vsel %vm2963, %v2951, %v2966
        %v2968 = vsel %vm2962, %v2965, %v2967
        %v2969 = vsel %vm2961, %v2948, %v2951
        %v2970 = vsel %vm2964, %v2957, 920167782
        %v2971 = vsel %vm2963, %v2954, %v2970
        %v2972 = vsel %vm2962, %v2969, %v2971
        %v2973 = vsel %vm2961, %v2951, %v2954
        %v2974 = vsel %vm2964, %v2960, 1326507024
        %v2975 = vsel %vm2963, %v2957, %v2974
        %v2976 = vsel %vm2962, %v2973, %v2975
        %v2977 = vshll.u32 %v2937, 8
        %v2978 = vmul.u32.u64.compose %v2977, %v2976
        %v2979 = vextract.low.u32 %v2978
        %v2980 = vextract.high.u32 %v2978
        %v2981 = vmul.u32.u64.compose %v2977, %v2972
        %v2982 = vextract.low.u32 %v2981
        %v2983 = vextract.high.u32 %v2981
        %v2984 = vmul.u32 %v2977, %v2968
        %v2985 = vadd.s32 %v2980, %v2982
        %vm2986 = vc.u32 %v2980, %v2982
        %v2987 = vadd.s32 %v2983, 1
        %v2988 = vsel %vm2986, %v2987, %v2983
        %v2989 = vadd.s32 %v2984, %v2988
        %v2990 = vadd.s32 %v2989, 536870912
        %v2991 = vshrl.u32 %v2990, 30
        %v2992 = vshll.u32 %v2991, 30
        %v2993 = vsub.s32 %v2989, %v2992
        %vm2994 = vcmp.lt.s32.totalorder %v2993, 0
        %v2995 = vsub.s32 0, %v2993
        %v2996 = vsel %vm2994, %v2995, %v2993
        %v2997 = vclz %v2996
        %v2998 = vsub.s32 %v2997, 2
        %vm2999 = vcmp.gt.s32.totalorder 0, %v2998
        %v3000 = vsel %vm2999, 0, %v2998
        %v3001 = vsub.s32 32, %v3000
        %v3002 = vshll.u32 %v2993, %v3000
        %v3003 = vshrl.u32 %v2985, %v3001
        %v3004 = vor.u32 %v3002, %v3003
        %v3005 = vsub.s32 4294967266, %v3000
        %v3006 = vadd.s32 %v3005, 127
        %v3007 = vshll.u32 %v3006, 23
        %v3008 = vor.u32 4788187, %v3007
        %v3009 = vand.u32 2147483647, %v3008
        %v3011 = vcvt.s32.f32 %v3004
        %v3012 = vmul.f32 %v3011, %v3009
        %v3013 = vxor.u32 %v3012, 2147483648
        %v3014 = vsel %vm2931, %v3013, %v3012
        %v3015 = vsub.s32 4, %v2991
        %v3016 = vsel %vm2931, %v3015, %v2991
        %v3017 = vsel %vm2930, %v631, %v3014
        %v3018 = vsel %vm2930, 0, %v3016
        %v3019 = vcosq.f32.pop %v3017
        %v3020 = vsinq.f32.pop %v3017
        %vm3021 = vweird.f32 %v631
        %v3022 = vadd.s32 %v3018, 3
        %v3023 = vand.u32 %v3022, 3
        %vm3024 = vcmp.lt.s32.totalorder %v3023, 2
        %vm3025 = vcmp.eq.s32.totalorder %v3023, 0
        %v3026 = vxor.u32 %v3020, 2147483648
        %v3027 = vsel %vm3025, %v3019, %v3026
        %vm3028 = vcmp.eq.s32.totalorder %v3023, 2
        %v3029 = vxor.u32 %v3019, 2147483648
        %v3030 = vsel %vm3028, %v3029, %v3020
        %v3031 = vsel %vm3024, %v3027, %v3030
        %v3032 = vsel %vm3021, nan, %v3031
        %v3033 = vand.u32 2147483647, %v632
        %vm3034 = vcmp.le.f32.partialorder %v3033, 0.7853982
        %vm3035 = vcmp.lt.s32.totalorder %v632, 0
        %v3036 = vand.u32 %v632, 2139095040
        %v3037 = vshrl.u32 %v3036, 23
        %v3038 = vsub.s32 %v3037, 127
        %v3039 = vand.u32 2147483647, %v632
        %v3040 = vand.u32 %v3039, 8388607
        %v3041 = vor.u32 %v3040, 8388608
        %v3042 = vsub.s32 0, %v3041
        %v3043 = vadd.s32 %v3038, 1
        %vm3044 = vcmp.gt.s32.totalorder %v3043, 0
        %v3045 = vsel %vm3044, %v3043, 0
        %v3046 = vshrl.u32 %v3045, 5
        %v3047 = vand.u32 %v3045, 31
        %v3048 = vsub.s32 32, %v3047
        %v3049 = vshrl.u32 683565275, %v3048
        %v3050 = vshll.u32 683565275, %v3047
        %v3051 = vshrl.u32 2475754826, %v3048
        %v3052 = vor.u32 %v3050, %v3051
        %v3053 = vshll.u32 2475754826, %v3047
        %v3054 = vshrl.u32 2131351028, %v3048
        %v3055 = vor.u32 %v3053, %v3054
        %v3056 = vshll.u32 2131351028, %v3047
        %v3057 = vshrl.u32 2102212464, %v3048
        %v3058 = vor.u32 %v3056, %v3057
        %v3059 = vshll.u32 2102212464, %v3047
        %v3060 = vshrl.u32 920167782, %v3048
        %v3061 = vor.u32 %v3059, %v3060
        %v3062 = vshll.u32 920167782, %v3047
        %v3063 = vshrl.u32 1326507024, %v3048
        %v3064 = vor.u32 %v3062, %v3063
        %vm3065 = vcmp.lt.s32.totalorder %v3046, 1
        %vm3066 = vcmp.lt.s32.totalorder %v3046, 2
        %vm3067 = vcmp.lt.s32.totalorder %v3046, 3
        %vm3068 = vcmp.lt.s32.totalorder %v3046, 4
        %v3069 = vsel %vm3065, %v3049, %v3052
        %v3070 = vsel %vm3068, %v3058, 2102212464
        %v3071 = vsel %vm3067, %v3055, %v3070
        %v3072 = vsel %vm3066, %v3069, %v3071
        %v3073 = vsel %vm3065, %v3052, %v3055
        %v3074 = vsel %vm3068, %v3061, 920167782
        %v3075 = vsel %vm3067, %v3058, %v3074
        %v3076 = vsel %vm3066, %v3073, %v3075
        %v3077 = vsel %vm3065, %v3055, %v3058
        %v3078 = vsel %vm3068, %v3064, 1326507024
        %v3079 = vsel %vm3067, %v3061, %v3078
        %v3080 = vsel %vm3066, %v3077, %v3079
        %v3081 = vshll.u32 %v3041, 8
        %v3082 = vmul.u32.u64.compose %v3081, %v3080
        %v3083 = vextract.low.u32 %v3082
        %v3084 = vextract.high.u32 %v3082
        %v3085 = vmul.u32.u64.compose %v3081, %v3076
        %v3086 = vextract.low.u32 %v3085
        %v3087 = vextract.high.u32 %v3085
        %v3088 = vmul.u32 %v3081, %v3072
        %v3089 = vadd.s32 %v3084, %v3086
        %vm3090 = vc.u32 %v3084, %v3086
        %v3091 = vadd.s32 %v3087, 1
        %v3092 = vsel %vm3090, %v3091, %v3087
        %v3093 = vadd.s32 %v3088, %v3092
        %v3094 = vadd.s32 %v3093, 536870912
        %v3095 = vshrl.u32 %v3094, 30
        %v3096 = vshll.u32 %v3095, 30
        %v3097 = vsub.s32 %v3093, %v3096
        %vm3098 = vcmp.lt.s32.totalorder %v3097, 0
        %v3099 = vsub.s32 0, %v3097
        %v3100 = vsel %vm3098, %v3099, %v3097
        %v3101 = vclz %v3100
        %v3102 = vsub.s32 %v3101, 2
        %vm3103 = vcmp.gt.s32.totalorder 0, %v3102
        %v3104 = vsel %vm3103, 0, %v3102
        %v3105 = vsub.s32 32, %v3104
        %v3106 = vshll.u32 %v3097, %v3104
        %v3107 = vshrl.u32 %v3089, %v3105
        %v3108 = vor.u32 %v3106, %v3107
        %v3109 = vsub.s32 4294967266, %v3104
        %v3110 = vadd.s32 %v3109, 127
        %v3111 = vshll.u32 %v3110, 23
        %v3112 = vor.u32 4788187, %v3111
        %v3113 = vand.u32 2147483647, %v3112
        %v3115 = vcvt.s32.f32 %v3108
        %v3116 = vmul.f32 %v3115, %v3113
        %v3117 = vxor.u32 %v3116, 2147483648
        %v3118 = vsel %vm3035, %v3117, %v3116
        %v3119 = vsub.s32 4, %v3095
        %v3120 = vsel %vm3035, %v3119, %v3095
        %v3121 = vsel %vm3034, %v632, %v3118
        %v3122 = vsel %vm3034, 0, %v3120
        %v3123 = vcosq.f32.pop %v3121
        %v3124 = vsinq.f32.pop %v3121
        %vm3125 = vweird.f32 %v632
        %v3126 = vadd.s32 %v3122, 3
        %v3127 = vand.u32 %v3126, 3
        %vm3128 = vcmp.lt.s32.totalorder %v3127, 2
        %vm3129 = vcmp.eq.s32.totalorder %v3127, 0
        %v3130 = vxor.u32 %v3124, 2147483648
        %v3131 = vsel %vm3129, %v3123, %v3130
        %vm3132 = vcmp.eq.s32.totalorder %v3127, 2
        %v3133 = vxor.u32 %v3123, 2147483648
        %v3134 = vsel %vm3132, %v3133, %v3124
        %v3135 = vsel %vm3128, %v3131, %v3134
        %v3136 = vsel %vm3125, nan, %v3135
        %v3137 = vand.u32 2147483647, %v633
        %vm3138 = vcmp.le.f32.partialorder %v3137, 0.7853982
        %vm3139 = vcmp.lt.s32.totalorder %v633, 0
        %v3140 = vand.u32 %v633, 2139095040
        %v3141 = vshrl.u32 %v3140, 23
        %v3142 = vsub.s32 %v3141, 127
        %v3143 = vand.u32 2147483647, %v633
        %v3144 = vand.u32 %v3143, 8388607
        %v3145 = vor.u32 %v3144, 8388608
        %v3146 = vsub.s32 0, %v3145
        %v3147 = vadd.s32 %v3142, 1
        %vm3148 = vcmp.gt.s32.totalorder %v3147, 0
        %v3149 = vsel %vm3148, %v3147, 0
        %v3150 = vshrl.u32 %v3149, 5
        %v3151 = vand.u32 %v3149, 31
        %v3152 = vsub.s32 32, %v3151
        %v3153 = vshrl.u32 683565275, %v3152
        %v3154 = vshll.u32 683565275, %v3151
        %v3155 = vshrl.u32 2475754826, %v3152
        %v3156 = vor.u32 %v3154, %v3155
        %v3157 = vshll.u32 2475754826, %v3151
        %v3158 = vshrl.u32 2131351028, %v3152
        %v3159 = vor.u32 %v3157, %v3158
        %v3160 = vshll.u32 2131351028, %v3151
        %v3161 = vshrl.u32 2102212464, %v3152
        %v3162 = vor.u32 %v3160, %v3161
        %v3163 = vshll.u32 2102212464, %v3151
        %v3164 = vshrl.u32 920167782, %v3152
        %v3165 = vor.u32 %v3163, %v3164
        %v3166 = vshll.u32 920167782, %v3151
        %v3167 = vshrl.u32 1326507024, %v3152
        %v3168 = vor.u32 %v3166, %v3167
        %vm3169 = vcmp.lt.s32.totalorder %v3150, 1
        %vm3170 = vcmp.lt.s32.totalorder %v3150, 2
        %vm3171 = vcmp.lt.s32.totalorder %v3150, 3
        %vm3172 = vcmp.lt.s32.totalorder %v3150, 4
        %v3173 = vsel %vm3169, %v3153, %v3156
        %v3174 = vsel %vm3172, %v3162, 2102212464
        %v3175 = vsel %vm3171, %v3159, %v3174
        %v3176 = vsel %vm3170, %v3173, %v3175
        %v3177 = vsel %vm3169, %v3156, %v3159
        %v3178 = vsel %vm3172, %v3165, 920167782
        %v3179 = vsel %vm3171, %v3162, %v3178
        %v3180 = vsel %vm3170, %v3177, %v3179
        %v3181 = vsel %vm3169, %v3159, %v3162
        %v3182 = vsel %vm3172, %v3168, 1326507024
        %v3183 = vsel %vm3171, %v3165, %v3182
        %v3184 = vsel %vm3170, %v3181, %v3183
        %v3185 = vshll.u32 %v3145, 8
        %v3186 = vmul.u32.u64.compose %v3185, %v3184
        %v3187 = vextract.low.u32 %v3186
        %v3188 = vextract.high.u32 %v3186
        %v3189 = vmul.u32.u64.compose %v3185, %v3180
        %v3190 = vextract.low.u32 %v3189
        %v3191 = vextract.high.u32 %v3189
        %v3192 = vmul.u32 %v3185, %v3176
        %v3193 = vadd.s32 %v3188, %v3190
        %vm3194 = vc.u32 %v3188, %v3190
        %v3195 = vadd.s32 %v3191, 1
        %v3196 = vsel %vm3194, %v3195, %v3191
        %v3197 = vadd.s32 %v3192, %v3196
        %v3198 = vadd.s32 %v3197, 536870912
        %v3199 = vshrl.u32 %v3198, 30
        %v3200 = vshll.u32 %v3199, 30
        %v3201 = vsub.s32 %v3197, %v3200
        %vm3202 = vcmp.lt.s32.totalorder %v3201, 0
        %v3203 = vsub.s32 0, %v3201
        %v3204 = vsel %vm3202, %v3203, %v3201
        %v3205 = vclz %v3204
        %v3206 = vsub.s32 %v3205, 2
        %vm3207 = vcmp.gt.s32.totalorder 0, %v3206
        %v3208 = vsel %vm3207, 0, %v3206
        %v3209 = vsub.s32 32, %v3208
        %v3210 = vshll.u32 %v3201, %v3208
        %v3211 = vshrl.u32 %v3193, %v3209
        %v3212 = vor.u32 %v3210, %v3211
        %v3213 = vsub.s32 4294967266, %v3208
        %v3214 = vadd.s32 %v3213, 127
        %v3215 = vshll.u32 %v3214, 23
        %v3216 = vor.u32 4788187, %v3215
        %v3217 = vand.u32 2147483647, %v3216
        %v3219 = vcvt.s32.f32 %v3212
        %v3220 = vmul.f32 %v3219, %v3217
        %v3221 = vxor.u32 %v3220, 2147483648
        %v3222 = vsel %vm3139, %v3221, %v3220
        %v3223 = vsub.s32 4, %v3199
        %v3224 = vsel %vm3139, %v3223, %v3199
        %v3225 = vsel %vm3138, %v633, %v3222
        %v3226 = vsel %vm3138, 0, %v3224
        %v3227 = vcosq.f32.pop %v3225
        %v3228 = vsinq.f32.pop %v3225
        %vm3229 = vweird.f32 %v633
        %v3230 = vadd.s32 %v3226, 3
        %v3231 = vand.u32 %v3230, 3
        %vm3232 = vcmp.lt.s32.totalorder %v3231, 2
        %vm3233 = vcmp.eq.s32.totalorder %v3231, 0
        %v3234 = vxor.u32 %v3228, 2147483648
        %v3235 = vsel %vm3233, %v3227, %v3234
        %vm3236 = vcmp.eq.s32.totalorder %v3231, 2
        %v3237 = vxor.u32 %v3227, 2147483648
        %v3238 = vsel %vm3236, %v3237, %v3228
        %v3239 = vsel %vm3232, %v3235, %v3238
        %v3240 = vsel %vm3229, nan, %v3239
        %v3241 = vand.u32 2147483647, %v634
        %vm3242 = vcmp.le.f32.partialorder %v3241, 0.7853982
        %vm3243 = vcmp.lt.s32.totalorder %v634, 0
        %v3244 = vand.u32 %v634, 2139095040
        %v3245 = vshrl.u32 %v3244, 23
        %v3246 = vsub.s32 %v3245, 127
        %v3247 = vand.u32 2147483647, %v634
        %v3248 = vand.u32 %v3247, 8388607
        %v3249 = vor.u32 %v3248, 8388608
        %v3250 = vsub.s32 0, %v3249
        %v3251 = vadd.s32 %v3246, 1
        %vm3252 = vcmp.gt.s32.totalorder %v3251, 0
        %v3253 = vsel %vm3252, %v3251, 0
        %v3254 = vshrl.u32 %v3253, 5
        %v3255 = vand.u32 %v3253, 31
        %v3256 = vsub.s32 32, %v3255
        %v3257 = vshrl.u32 683565275, %v3256
        %v3258 = vshll.u32 683565275, %v3255
        %v3259 = vshrl.u32 2475754826, %v3256
        %v3260 = vor.u32 %v3258, %v3259
        %v3261 = vshll.u32 2475754826, %v3255
        %v3262 = vshrl.u32 2131351028, %v3256
        %v3263 = vor.u32 %v3261, %v3262
        %v3264 = vshll.u32 2131351028, %v3255
        %v3265 = vshrl.u32 2102212464, %v3256
        %v3266 = vor.u32 %v3264, %v3265
        %v3267 = vshll.u32 2102212464, %v3255
        %v3268 = vshrl.u32 920167782, %v3256
        %v3269 = vor.u32 %v3267, %v3268
        %v3270 = vshll.u32 920167782, %v3255
        %v3271 = vshrl.u32 1326507024, %v3256
        %v3272 = vor.u32 %v3270, %v3271
        %vm3273 = vcmp.lt.s32.totalorder %v3254, 1
        %vm3274 = vcmp.lt.s32.totalorder %v3254, 2
        %vm3275 = vcmp.lt.s32.totalorder %v3254, 3
        %vm3276 = vcmp.lt.s32.totalorder %v3254, 4
        %v3277 = vsel %vm3273, %v3257, %v3260
        %v3278 = vsel %vm3276, %v3266, 2102212464
        %v3279 = vsel %vm3275, %v3263, %v3278
        %v3280 = vsel %vm3274, %v3277, %v3279
        %v3281 = vsel %vm3273, %v3260, %v3263
        %v3282 = vsel %vm3276, %v3269, 920167782
        %v3283 = vsel %vm3275, %v3266, %v3282
        %v3284 = vsel %vm3274, %v3281, %v3283
        %v3285 = vsel %vm3273, %v3263, %v3266
        %v3286 = vsel %vm3276, %v3272, 1326507024
        %v3287 = vsel %vm3275, %v3269, %v3286
        %v3288 = vsel %vm3274, %v3285, %v3287
        %v3289 = vshll.u32 %v3249, 8
        %v3290 = vmul.u32.u64.compose %v3289, %v3288
        %v3291 = vextract.low.u32 %v3290
        %v3292 = vextract.high.u32 %v3290
        %v3293 = vmul.u32.u64.compose %v3289, %v3284
        %v3294 = vextract.low.u32 %v3293
        %v3295 = vextract.high.u32 %v3293
        %v3296 = vmul.u32 %v3289, %v3280
        %v3297 = vadd.s32 %v3292, %v3294
        %vm3298 = vc.u32 %v3292, %v3294
        %v3299 = vadd.s32 %v3295, 1
        %v3300 = vsel %vm3298, %v3299, %v3295
        %v3301 = vadd.s32 %v3296, %v3300
        %v3302 = vadd.s32 %v3301, 536870912
        %v3303 = vshrl.u32 %v3302, 30
        %v3304 = vshll.u32 %v3303, 30
        %v3305 = vsub.s32 %v3301, %v3304
        %vm3306 = vcmp.lt.s32.totalorder %v3305, 0
        %v3307 = vsub.s32 0, %v3305
        %v3308 = vsel %vm3306, %v3307, %v3305
        %v3309 = vclz %v3308
        %v3310 = vsub.s32 %v3309, 2
        %vm3311 = vcmp.gt.s32.totalorder 0, %v3310
        %v3312 = vsel %vm3311, 0, %v3310
        %v3313 = vsub.s32 32, %v3312
        %v3314 = vshll.u32 %v3305, %v3312
        %v3315 = vshrl.u32 %v3297, %v3313
        %v3316 = vor.u32 %v3314, %v3315
        %v3317 = vsub.s32 4294967266, %v3312
        %v3318 = vadd.s32 %v3317, 127
        %v3319 = vshll.u32 %v3318, 23
        %v3320 = vor.u32 4788187, %v3319
        %v3321 = vand.u32 2147483647, %v3320
        %v3323 = vcvt.s32.f32 %v3316
        %v3324 = vmul.f32 %v3323, %v3321
        %v3325 = vxor.u32 %v3324, 2147483648
        %v3326 = vsel %vm3243, %v3325, %v3324
        %v3327 = vsub.s32 4, %v3303
        %v3328 = vsel %vm3243, %v3327, %v3303
        %v3329 = vsel %vm3242, %v634, %v3326
        %v3330 = vsel %vm3242, 0, %v3328
        %v3331 = vcosq.f32.pop %v3329
        %v3332 = vsinq.f32.pop %v3329
        %vm3333 = vweird.f32 %v634
        %v3334 = vadd.s32 %v3330, 3
        %v3335 = vand.u32 %v3334, 3
        %vm3336 = vcmp.lt.s32.totalorder %v3335, 2
        %vm3337 = vcmp.eq.s32.totalorder %v3335, 0
        %v3338 = vxor.u32 %v3332, 2147483648
        %v3339 = vsel %vm3337, %v3331, %v3338
        %vm3340 = vcmp.eq.s32.totalorder %v3335, 2
        %v3341 = vxor.u32 %v3331, 2147483648
        %v3342 = vsel %vm3340, %v3341, %v3332
        %v3343 = vsel %vm3336, %v3339, %v3342
        %v3344 = vsel %vm3333, nan, %v3343
        %v3345 = vand.u32 2147483647, %v635
        %vm3346 = vcmp.le.f32.partialorder %v3345, 0.7853982
        %vm3347 = vcmp.lt.s32.totalorder %v635, 0
        %v3348 = vand.u32 %v635, 2139095040
        %v3349 = vshrl.u32 %v3348, 23
        %v3350 = vsub.s32 %v3349, 127
        %v3351 = vand.u32 2147483647, %v635
        %v3352 = vand.u32 %v3351, 8388607
        %v3353 = vor.u32 %v3352, 8388608
        %v3354 = vsub.s32 0, %v3353
        %v3355 = vadd.s32 %v3350, 1
        %vm3356 = vcmp.gt.s32.totalorder %v3355, 0
        %v3357 = vsel %vm3356, %v3355, 0
        %v3358 = vshrl.u32 %v3357, 5
        %v3359 = vand.u32 %v3357, 31
        %v3360 = vsub.s32 32, %v3359
        %v3361 = vshrl.u32 683565275, %v3360
        %v3362 = vshll.u32 683565275, %v3359
        %v3363 = vshrl.u32 2475754826, %v3360
        %v3364 = vor.u32 %v3362, %v3363
        %v3365 = vshll.u32 2475754826, %v3359
        %v3366 = vshrl.u32 2131351028, %v3360
        %v3367 = vor.u32 %v3365, %v3366
        %v3368 = vshll.u32 2131351028, %v3359
        %v3369 = vshrl.u32 2102212464, %v3360
        %v3370 = vor.u32 %v3368, %v3369
        %v3371 = vshll.u32 2102212464, %v3359
        %v3372 = vshrl.u32 920167782, %v3360
        %v3373 = vor.u32 %v3371, %v3372
        %v3374 = vshll.u32 920167782, %v3359
        %v3375 = vshrl.u32 1326507024, %v3360
        %v3376 = vor.u32 %v3374, %v3375
        %vm3377 = vcmp.lt.s32.totalorder %v3358, 1
        %vm3378 = vcmp.lt.s32.totalorder %v3358, 2
        %vm3379 = vcmp.lt.s32.totalorder %v3358, 3
        %vm3380 = vcmp.lt.s32.totalorder %v3358, 4
        %v3381 = vsel %vm3377, %v3361, %v3364
        %v3382 = vsel %vm3380, %v3370, 2102212464
        %v3383 = vsel %vm3379, %v3367, %v3382
        %v3384 = vsel %vm3378, %v3381, %v3383
        %v3385 = vsel %vm3377, %v3364, %v3367
        %v3386 = vsel %vm3380, %v3373, 920167782
        %v3387 = vsel %vm3379, %v3370, %v3386
        %v3388 = vsel %vm3378, %v3385, %v3387
        %v3389 = vsel %vm3377, %v3367, %v3370
        %v3390 = vsel %vm3380, %v3376, 1326507024
        %v3391 = vsel %vm3379, %v3373, %v3390
        %v3392 = vsel %vm3378, %v3389, %v3391
        %v3393 = vshll.u32 %v3353, 8
        %v3394 = vmul.u32.u64.compose %v3393, %v3392
        %v3395 = vextract.low.u32 %v3394
        %v3396 = vextract.high.u32 %v3394
        %v3397 = vmul.u32.u64.compose %v3393, %v3388
        %v3398 = vextract.low.u32 %v3397
        %v3399 = vextract.high.u32 %v3397
        %v3400 = vmul.u32 %v3393, %v3384
        %v3401 = vadd.s32 %v3396, %v3398
        %vm3402 = vc.u32 %v3396, %v3398
        %v3403 = vadd.s32 %v3399, 1
        %v3404 = vsel %vm3402, %v3403, %v3399
        %v3405 = vadd.s32 %v3400, %v3404
        %v3406 = vadd.s32 %v3405, 536870912
        %v3407 = vshrl.u32 %v3406, 30
        %v3408 = vshll.u32 %v3407, 30
        %v3409 = vsub.s32 %v3405, %v3408
        %vm3410 = vcmp.lt.s32.totalorder %v3409, 0
        %v3411 = vsub.s32 0, %v3409
        %v3412 = vsel %vm3410, %v3411, %v3409
        %v3413 = vclz %v3412
        %v3414 = vsub.s32 %v3413, 2
        %vm3415 = vcmp.gt.s32.totalorder 0, %v3414
        %v3416 = vsel %vm3415, 0, %v3414
        %v3417 = vsub.s32 32, %v3416
        %v3418 = vshll.u32 %v3409, %v3416
        %v3419 = vshrl.u32 %v3401, %v3417
        %v3420 = vor.u32 %v3418, %v3419
        %v3421 = vsub.s32 4294967266, %v3416
        %v3422 = vadd.s32 %v3421, 127
        %v3423 = vshll.u32 %v3422, 23
        %v3424 = vor.u32 4788187, %v3423
        %v3425 = vand.u32 2147483647, %v3424
        %v3427 = vcvt.s32.f32 %v3420
        %v3428 = vmul.f32 %v3427, %v3425
        %v3429 = vxor.u32 %v3428, 2147483648
        %v3430 = vsel %vm3347, %v3429, %v3428
        %v3431 = vsub.s32 4, %v3407
        %v3432 = vsel %vm3347, %v3431, %v3407
        %v3433 = vsel %vm3346, %v635, %v3430
        %v3434 = vsel %vm3346, 0, %v3432
        %v3435 = vcosq.f32.pop %v3433
        %v3436 = vsinq.f32.pop %v3433
        %vm3437 = vweird.f32 %v635
        %v3438 = vadd.s32 %v3434, 3
        %v3439 = vand.u32 %v3438, 3
        %vm3440 = vcmp.lt.s32.totalorder %v3439, 2
        %vm3441 = vcmp.eq.s32.totalorder %v3439, 0
        %v3442 = vxor.u32 %v3436, 2147483648
        %v3443 = vsel %vm3441, %v3435, %v3442
        %vm3444 = vcmp.eq.s32.totalorder %v3439, 2
        %v3445 = vxor.u32 %v3435, 2147483648
        %v3446 = vsel %vm3444, %v3445, %v3436
        %v3447 = vsel %vm3440, %v3443, %v3446
        %v3448 = vsel %vm3437, nan, %v3447
        %v3449 = vand.u32 2147483647, %v636
        %vm3450 = vcmp.le.f32.partialorder %v3449, 0.7853982
        %vm3451 = vcmp.lt.s32.totalorder %v636, 0
        %v3452 = vand.u32 %v636, 2139095040
        %v3453 = vshrl.u32 %v3452, 23
        %v3454 = vsub.s32 %v3453, 127
        %v3455 = vand.u32 2147483647, %v636
        %v3456 = vand.u32 %v3455, 8388607
        %v3457 = vor.u32 %v3456, 8388608
        %v3458 = vsub.s32 0, %v3457
        %v3459 = vadd.s32 %v3454, 1
        %vm3460 = vcmp.gt.s32.totalorder %v3459, 0
        %v3461 = vsel %vm3460, %v3459, 0
        %v3462 = vshrl.u32 %v3461, 5
        %v3463 = vand.u32 %v3461, 31
        %v3464 = vsub.s32 32, %v3463
        %v3465 = vshrl.u32 683565275, %v3464
        %v3466 = vshll.u32 683565275, %v3463
        %v3467 = vshrl.u32 2475754826, %v3464
        %v3468 = vor.u32 %v3466, %v3467
        %v3469 = vshll.u32 2475754826, %v3463
        %v3470 = vshrl.u32 2131351028, %v3464
        %v3471 = vor.u32 %v3469, %v3470
        %v3472 = vshll.u32 2131351028, %v3463
        %v3473 = vshrl.u32 2102212464, %v3464
        %v3474 = vor.u32 %v3472, %v3473
        %v3475 = vshll.u32 2102212464, %v3463
        %v3476 = vshrl.u32 920167782, %v3464
        %v3477 = vor.u32 %v3475, %v3476
        %v3478 = vshll.u32 920167782, %v3463
        %v3479 = vshrl.u32 1326507024, %v3464
        %v3480 = vor.u32 %v3478, %v3479
        %vm3481 = vcmp.lt.s32.totalorder %v3462, 1
        %vm3482 = vcmp.lt.s32.totalorder %v3462, 2
        %vm3483 = vcmp.lt.s32.totalorder %v3462, 3
        %vm3484 = vcmp.lt.s32.totalorder %v3462, 4
        %v3485 = vsel %vm3481, %v3465, %v3468
        %v3486 = vsel %vm3484, %v3474, 2102212464
        %v3487 = vsel %vm3483, %v3471, %v3486
        %v3488 = vsel %vm3482, %v3485, %v3487
        %v3489 = vsel %vm3481, %v3468, %v3471
        %v3490 = vsel %vm3484, %v3477, 920167782
        %v3491 = vsel %vm3483, %v3474, %v3490
        %v3492 = vsel %vm3482, %v3489, %v3491
        %v3493 = vsel %vm3481, %v3471, %v3474
        %v3494 = vsel %vm3484, %v3480, 1326507024
        %v3495 = vsel %vm3483, %v3477, %v3494
        %v3496 = vsel %vm3482, %v3493, %v3495
        %v3497 = vshll.u32 %v3457, 8
        %v3498 = vmul.u32.u64.compose %v3497, %v3496
        %v3499 = vextract.low.u32 %v3498
        %v3500 = vextract.high.u32 %v3498
        %v3501 = vmul.u32.u64.compose %v3497, %v3492
        %v3502 = vextract.low.u32 %v3501
        %v3503 = vextract.high.u32 %v3501
        %v3504 = vmul.u32 %v3497, %v3488
        %v3505 = vadd.s32 %v3500, %v3502
        %vm3506 = vc.u32 %v3500, %v3502
        %v3507 = vadd.s32 %v3503, 1
        %v3508 = vsel %vm3506, %v3507, %v3503
        %v3509 = vadd.s32 %v3504, %v3508
        %v3510 = vadd.s32 %v3509, 536870912
        %v3511 = vshrl.u32 %v3510, 30
        %v3512 = vshll.u32 %v3511, 30
        %v3513 = vsub.s32 %v3509, %v3512
        %vm3514 = vcmp.lt.s32.totalorder %v3513, 0
        %v3515 = vsub.s32 0, %v3513
        %v3516 = vsel %vm3514, %v3515, %v3513
        %v3517 = vclz %v3516
        %v3518 = vsub.s32 %v3517, 2
        %vm3519 = vcmp.gt.s32.totalorder 0, %v3518
        %v3520 = vsel %vm3519, 0, %v3518
        %v3521 = vsub.s32 32, %v3520
        %v3522 = vshll.u32 %v3513, %v3520
        %v3523 = vshrl.u32 %v3505, %v3521
        %v3524 = vor.u32 %v3522, %v3523
        %v3525 = vsub.s32 4294967266, %v3520
        %v3526 = vadd.s32 %v3525, 127
        %v3527 = vshll.u32 %v3526, 23
        %v3528 = vor.u32 4788187, %v3527
        %v3529 = vand.u32 2147483647, %v3528
        %v3531 = vcvt.s32.f32 %v3524
        %v3532 = vmul.f32 %v3531, %v3529
        %v3533 = vxor.u32 %v3532, 2147483648
        %v3534 = vsel %vm3451, %v3533, %v3532
        %v3535 = vsub.s32 4, %v3511
        %v3536 = vsel %vm3451, %v3535, %v3511
        %v3537 = vsel %vm3450, %v636, %v3534
        %v3538 = vsel %vm3450, 0, %v3536
        %v3539 = vcosq.f32.pop %v3537
        %v3540 = vsinq.f32.pop %v3537
        %vm3541 = vweird.f32 %v636
        %v3542 = vadd.s32 %v3538, 3
        %v3543 = vand.u32 %v3542, 3
        %vm3544 = vcmp.lt.s32.totalorder %v3543, 2
        %vm3545 = vcmp.eq.s32.totalorder %v3543, 0
        %v3546 = vxor.u32 %v3540, 2147483648
        %v3547 = vsel %vm3545, %v3539, %v3546
        %vm3548 = vcmp.eq.s32.totalorder %v3543, 2
        %v3549 = vxor.u32 %v3539, 2147483648
        %v3550 = vsel %vm3548, %v3549, %v3540
        %v3551 = vsel %vm3544, %v3547, %v3550
        %v3552 = vsel %vm3541, nan, %v3551
        %v3553 = vand.u32 2147483647, %v637
        %vm3554 = vcmp.le.f32.partialorder %v3553, 0.7853982
        %vm3555 = vcmp.lt.s32.totalorder %v637, 0
        %v3556 = vand.u32 %v637, 2139095040
        %v3557 = vshrl.u32 %v3556, 23
        %v3558 = vsub.s32 %v3557, 127
        %v3559 = vand.u32 2147483647, %v637
        %v3560 = vand.u32 %v3559, 8388607
        %v3561 = vor.u32 %v3560, 8388608
        %v3562 = vsub.s32 0, %v3561
        %v3563 = vadd.s32 %v3558, 1
        %vm3564 = vcmp.gt.s32.totalorder %v3563, 0
        %v3565 = vsel %vm3564, %v3563, 0
        %v3566 = vshrl.u32 %v3565, 5
        %v3567 = vand.u32 %v3565, 31
        %v3568 = vsub.s32 32, %v3567
        %v3569 = vshrl.u32 683565275, %v3568
        %v3570 = vshll.u32 683565275, %v3567
        %v3571 = vshrl.u32 2475754826, %v3568
        %v3572 = vor.u32 %v3570, %v3571
        %v3573 = vshll.u32 2475754826, %v3567
        %v3574 = vshrl.u32 2131351028, %v3568
        %v3575 = vor.u32 %v3573, %v3574
        %v3576 = vshll.u32 2131351028, %v3567
        %v3577 = vshrl.u32 2102212464, %v3568
        %v3578 = vor.u32 %v3576, %v3577
        %v3579 = vshll.u32 2102212464, %v3567
        %v3580 = vshrl.u32 920167782, %v3568
        %v3581 = vor.u32 %v3579, %v3580
        %v3582 = vshll.u32 920167782, %v3567
        %v3583 = vshrl.u32 1326507024, %v3568
        %v3584 = vor.u32 %v3582, %v3583
        %vm3585 = vcmp.lt.s32.totalorder %v3566, 1
        %vm3586 = vcmp.lt.s32.totalorder %v3566, 2
        %vm3587 = vcmp.lt.s32.totalorder %v3566, 3
        %vm3588 = vcmp.lt.s32.totalorder %v3566, 4
        %v3589 = vsel %vm3585, %v3569, %v3572
        %v3590 = vsel %vm3588, %v3578, 2102212464
        %v3591 = vsel %vm3587, %v3575, %v3590
        %v3592 = vsel %vm3586, %v3589, %v3591
        %v3593 = vsel %vm3585, %v3572, %v3575
        %v3594 = vsel %vm3588, %v3581, 920167782
        %v3595 = vsel %vm3587, %v3578, %v3594
        %v3596 = vsel %vm3586, %v3593, %v3595
        %v3597 = vsel %vm3585, %v3575, %v3578
        %v3598 = vsel %vm3588, %v3584, 1326507024
        %v3599 = vsel %vm3587, %v3581, %v3598
        %v3600 = vsel %vm3586, %v3597, %v3599
        %v3601 = vshll.u32 %v3561, 8
        %v3602 = vmul.u32.u64.compose %v3601, %v3600
        %v3603 = vextract.low.u32 %v3602
        %v3604 = vextract.high.u32 %v3602
        %v3605 = vmul.u32.u64.compose %v3601, %v3596
        %v3606 = vextract.low.u32 %v3605
        %v3607 = vextract.high.u32 %v3605
        %v3608 = vmul.u32 %v3601, %v3592
        %v3609 = vadd.s32 %v3604, %v3606
        %vm3610 = vc.u32 %v3604, %v3606
        %v3611 = vadd.s32 %v3607, 1
        %v3612 = vsel %vm3610, %v3611, %v3607
        %v3613 = vadd.s32 %v3608, %v3612
        %v3614 = vadd.s32 %v3613, 536870912
        %v3615 = vshrl.u32 %v3614, 30
        %v3616 = vshll.u32 %v3615, 30
        %v3617 = vsub.s32 %v3613, %v3616
        %vm3618 = vcmp.lt.s32.totalorder %v3617, 0
        %v3619 = vsub.s32 0, %v3617
        %v3620 = vsel %vm3618, %v3619, %v3617
        %v3621 = vclz %v3620
        %v3622 = vsub.s32 %v3621, 2
        %vm3623 = vcmp.gt.s32.totalorder 0, %v3622
        %v3624 = vsel %vm3623, 0, %v3622
        %v3625 = vsub.s32 32, %v3624
        %v3626 = vshll.u32 %v3617, %v3624
        %v3627 = vshrl.u32 %v3609, %v3625
        %v3628 = vor.u32 %v3626, %v3627
        %v3629 = vsub.s32 4294967266, %v3624
        %v3630 = vadd.s32 %v3629, 127
        %v3631 = vshll.u32 %v3630, 23
        %v3632 = vor.u32 4788187, %v3631
        %v3633 = vand.u32 2147483647, %v3632
        %v3635 = vcvt.s32.f32 %v3628
        %v3636 = vmul.f32 %v3635, %v3633
        %v3637 = vxor.u32 %v3636, 2147483648
        %v3638 = vsel %vm3555, %v3637, %v3636
        %v3639 = vsub.s32 4, %v3615
        %v3640 = vsel %vm3555, %v3639, %v3615
        %v3641 = vsel %vm3554, %v637, %v3638
        %v3642 = vsel %vm3554, 0, %v3640
        %v3643 = vcosq.f32.pop %v3641
        %v3644 = vsinq.f32.pop %v3641
        %vm3645 = vweird.f32 %v637
        %v3646 = vadd.s32 %v3642, 3
        %v3647 = vand.u32 %v3646, 3
        %vm3648 = vcmp.lt.s32.totalorder %v3647, 2
        %vm3649 = vcmp.eq.s32.totalorder %v3647, 0
        %v3650 = vxor.u32 %v3644, 2147483648
        %v3651 = vsel %vm3649, %v3643, %v3650
        %vm3652 = vcmp.eq.s32.totalorder %v3647, 2
        %v3653 = vxor.u32 %v3643, 2147483648
        %v3654 = vsel %vm3652, %v3653, %v3644
        %v3655 = vsel %vm3648, %v3651, %v3654
        %v3656 = vsel %vm3645, nan, %v3655
        %v3657 = vand.u32 2147483647, %v638
        %vm3658 = vcmp.le.f32.partialorder %v3657, 0.7853982
        %vm3659 = vcmp.lt.s32.totalorder %v638, 0
        %v3660 = vand.u32 %v638, 2139095040
        %v3661 = vshrl.u32 %v3660, 23
        %v3662 = vsub.s32 %v3661, 127
        %v3663 = vand.u32 2147483647, %v638
        %v3664 = vand.u32 %v3663, 8388607
        %v3665 = vor.u32 %v3664, 8388608
        %v3666 = vsub.s32 0, %v3665
        %v3667 = vadd.s32 %v3662, 1
        %vm3668 = vcmp.gt.s32.totalorder %v3667, 0
        %v3669 = vsel %vm3668, %v3667, 0
        %v3670 = vshrl.u32 %v3669, 5
        %v3671 = vand.u32 %v3669, 31
        %v3672 = vsub.s32 32, %v3671
        %v3673 = vshrl.u32 683565275, %v3672
        %v3674 = vshll.u32 683565275, %v3671
        %v3675 = vshrl.u32 2475754826, %v3672
        %v3676 = vor.u32 %v3674, %v3675
        %v3677 = vshll.u32 2475754826, %v3671
        %v3678 = vshrl.u32 2131351028, %v3672
        %v3679 = vor.u32 %v3677, %v3678
        %v3680 = vshll.u32 2131351028, %v3671
        %v3681 = vshrl.u32 2102212464, %v3672
        %v3682 = vor.u32 %v3680, %v3681
        %v3683 = vshll.u32 2102212464, %v3671
        %v3684 = vshrl.u32 920167782, %v3672
        %v3685 = vor.u32 %v3683, %v3684
        %v3686 = vshll.u32 920167782, %v3671
        %v3687 = vshrl.u32 1326507024, %v3672
        %v3688 = vor.u32 %v3686, %v3687
        %vm3689 = vcmp.lt.s32.totalorder %v3670, 1
        %vm3690 = vcmp.lt.s32.totalorder %v3670, 2
        %vm3691 = vcmp.lt.s32.totalorder %v3670, 3
        %vm3692 = vcmp.lt.s32.totalorder %v3670, 4
        %v3693 = vsel %vm3689, %v3673, %v3676
        %v3694 = vsel %vm3692, %v3682, 2102212464
        %v3695 = vsel %vm3691, %v3679, %v3694
        %v3696 = vsel %vm3690, %v3693, %v3695
        %v3697 = vsel %vm3689, %v3676, %v3679
        %v3698 = vsel %vm3692, %v3685, 920167782
        %v3699 = vsel %vm3691, %v3682, %v3698
        %v3700 = vsel %vm3690, %v3697, %v3699
        %v3701 = vsel %vm3689, %v3679, %v3682
        %v3702 = vsel %vm3692, %v3688, 1326507024
        %v3703 = vsel %vm3691, %v3685, %v3702
        %v3704 = vsel %vm3690, %v3701, %v3703
        %v3705 = vshll.u32 %v3665, 8
        %v3706 = vmul.u32.u64.compose %v3705, %v3704
        %v3707 = vextract.low.u32 %v3706
        %v3708 = vextract.high.u32 %v3706
        %v3709 = vmul.u32.u64.compose %v3705, %v3700
        %v3710 = vextract.low.u32 %v3709
        %v3711 = vextract.high.u32 %v3709
        %v3712 = vmul.u32 %v3705, %v3696
        %v3713 = vadd.s32 %v3708, %v3710
        %vm3714 = vc.u32 %v3708, %v3710
        %v3715 = vadd.s32 %v3711, 1
        %v3716 = vsel %vm3714, %v3715, %v3711
        %v3717 = vadd.s32 %v3712, %v3716
        %v3718 = vadd.s32 %v3717, 536870912
        %v3719 = vshrl.u32 %v3718, 30
        %v3720 = vshll.u32 %v3719, 30
        %v3721 = vsub.s32 %v3717, %v3720
        %vm3722 = vcmp.lt.s32.totalorder %v3721, 0
        %v3723 = vsub.s32 0, %v3721
        %v3724 = vsel %vm3722, %v3723, %v3721
        %v3725 = vclz %v3724
        %v3726 = vsub.s32 %v3725, 2
        %vm3727 = vcmp.gt.s32.totalorder 0, %v3726
        %v3728 = vsel %vm3727, 0, %v3726
        %v3729 = vsub.s32 32, %v3728
        %v3730 = vshll.u32 %v3721, %v3728
        %v3731 = vshrl.u32 %v3713, %v3729
        %v3732 = vor.u32 %v3730, %v3731
        %v3733 = vsub.s32 4294967266, %v3728
        %v3734 = vadd.s32 %v3733, 127
        %v3735 = vshll.u32 %v3734, 23
        %v3736 = vor.u32 4788187, %v3735
        %v3737 = vand.u32 2147483647, %v3736
        %v3739 = vcvt.s32.f32 %v3732
        %v3740 = vmul.f32 %v3739, %v3737
        %v3741 = vxor.u32 %v3740, 2147483648
        %v3742 = vsel %vm3659, %v3741, %v3740
        %v3743 = vsub.s32 4, %v3719
        %v3744 = vsel %vm3659, %v3743, %v3719
        %v3745 = vsel %vm3658, %v638, %v3742
        %v3746 = vsel %vm3658, 0, %v3744
        %v3747 = vcosq.f32.pop %v3745
        %v3748 = vsinq.f32.pop %v3745
        %vm3749 = vweird.f32 %v638
        %v3750 = vadd.s32 %v3746, 3
        %v3751 = vand.u32 %v3750, 3
        %vm3752 = vcmp.lt.s32.totalorder %v3751, 2
        %vm3753 = vcmp.eq.s32.totalorder %v3751, 0
        %v3754 = vxor.u32 %v3748, 2147483648
        %v3755 = vsel %vm3753, %v3747, %v3754
        %vm3756 = vcmp.eq.s32.totalorder %v3751, 2
        %v3757 = vxor.u32 %v3747, 2147483648
        %v3758 = vsel %vm3756, %v3757, %v3748
        %v3759 = vsel %vm3752, %v3755, %v3758
        %v3760 = vsel %vm3749, nan, %v3759
        %v3761 = vand.u32 2147483647, %v639
        %vm3762 = vcmp.le.f32.partialorder %v3761, 0.7853982
        %vm3763 = vcmp.lt.s32.totalorder %v639, 0
        %v3764 = vand.u32 %v639, 2139095040
        %v3765 = vshrl.u32 %v3764, 23
        %v3766 = vsub.s32 %v3765, 127
        %v3767 = vand.u32 2147483647, %v639
        %v3768 = vand.u32 %v3767, 8388607
        %v3769 = vor.u32 %v3768, 8388608
        %v3770 = vsub.s32 0, %v3769
        %v3771 = vadd.s32 %v3766, 1
        %vm3772 = vcmp.gt.s32.totalorder %v3771, 0
        %v3773 = vsel %vm3772, %v3771, 0
        %v3774 = vshrl.u32 %v3773, 5
        %v3775 = vand.u32 %v3773, 31
        %v3776 = vsub.s32 32, %v3775
        %v3777 = vshrl.u32 683565275, %v3776
        %v3778 = vshll.u32 683565275, %v3775
        %v3779 = vshrl.u32 2475754826, %v3776
        %v3780 = vor.u32 %v3778, %v3779
        %v3781 = vshll.u32 2475754826, %v3775
        %v3782 = vshrl.u32 2131351028, %v3776
        %v3783 = vor.u32 %v3781, %v3782
        %v3784 = vshll.u32 2131351028, %v3775
        %v3785 = vshrl.u32 2102212464, %v3776
        %v3786 = vor.u32 %v3784, %v3785
        %v3787 = vshll.u32 2102212464, %v3775
        %v3788 = vshrl.u32 920167782, %v3776
        %v3789 = vor.u32 %v3787, %v3788
        %v3790 = vshll.u32 920167782, %v3775
        %v3791 = vshrl.u32 1326507024, %v3776
        %v3792 = vor.u32 %v3790, %v3791
        %vm3793 = vcmp.lt.s32.totalorder %v3774, 1
        %vm3794 = vcmp.lt.s32.totalorder %v3774, 2
        %vm3795 = vcmp.lt.s32.totalorder %v3774, 3
        %vm3796 = vcmp.lt.s32.totalorder %v3774, 4
        %v3797 = vsel %vm3793, %v3777, %v3780
        %v3798 = vsel %vm3796, %v3786, 2102212464
        %v3799 = vsel %vm3795, %v3783, %v3798
        %v3800 = vsel %vm3794, %v3797, %v3799
        %v3801 = vsel %vm3793, %v3780, %v3783
        %v3802 = vsel %vm3796, %v3789, 920167782
        %v3803 = vsel %vm3795, %v3786, %v3802
        %v3804 = vsel %vm3794, %v3801, %v3803
        %v3805 = vsel %vm3793, %v3783, %v3786
        %v3806 = vsel %vm3796, %v3792, 1326507024
        %v3807 = vsel %vm3795, %v3789, %v3806
        %v3808 = vsel %vm3794, %v3805, %v3807
        %v3809 = vshll.u32 %v3769, 8
        %v3810 = vmul.u32.u64.compose %v3809, %v3808
        %v3811 = vextract.low.u32 %v3810
        %v3812 = vextract.high.u32 %v3810
        %v3813 = vmul.u32.u64.compose %v3809, %v3804
        %v3814 = vextract.low.u32 %v3813
        %v3815 = vextract.high.u32 %v3813
        %v3816 = vmul.u32 %v3809, %v3800
        %v3817 = vadd.s32 %v3812, %v3814
        %vm3818 = vc.u32 %v3812, %v3814
        %v3819 = vadd.s32 %v3815, 1
        %v3820 = vsel %vm3818, %v3819, %v3815
        %v3821 = vadd.s32 %v3816, %v3820
        %v3822 = vadd.s32 %v3821, 536870912
        %v3823 = vshrl.u32 %v3822, 30
        %v3824 = vshll.u32 %v3823, 30
        %v3825 = vsub.s32 %v3821, %v3824
        %vm3826 = vcmp.lt.s32.totalorder %v3825, 0
        %v3827 = vsub.s32 0, %v3825
        %v3828 = vsel %vm3826, %v3827, %v3825
        %v3829 = vclz %v3828
        %v3830 = vsub.s32 %v3829, 2
        %vm3831 = vcmp.gt.s32.totalorder 0, %v3830
        %v3832 = vsel %vm3831, 0, %v3830
        %v3833 = vsub.s32 32, %v3832
        %v3834 = vshll.u32 %v3825, %v3832
        %v3835 = vshrl.u32 %v3817, %v3833
        %v3836 = vor.u32 %v3834, %v3835
        %v3837 = vsub.s32 4294967266, %v3832
        %v3838 = vadd.s32 %v3837, 127
        %v3839 = vshll.u32 %v3838, 23
        %v3840 = vor.u32 4788187, %v3839
        %v3841 = vand.u32 2147483647, %v3840
        %v3843 = vcvt.s32.f32 %v3836
        %v3844 = vmul.f32 %v3843, %v3841
        %v3845 = vxor.u32 %v3844, 2147483648
        %v3846 = vsel %vm3763, %v3845, %v3844
        %v3847 = vsub.s32 4, %v3823
        %v3848 = vsel %vm3763, %v3847, %v3823
        %v3849 = vsel %vm3762, %v639, %v3846
        %v3850 = vsel %vm3762, 0, %v3848
        %v3851 = vcosq.f32.pop %v3849
        %v3852 = vsinq.f32.pop %v3849
        %vm3853 = vweird.f32 %v639
        %v3854 = vadd.s32 %v3850, 3
        %v3855 = vand.u32 %v3854, 3
        %vm3856 = vcmp.lt.s32.totalorder %v3855, 2
        %vm3857 = vcmp.eq.s32.totalorder %v3855, 0
        %v3858 = vxor.u32 %v3852, 2147483648
        %v3859 = vsel %vm3857, %v3851, %v3858
        %vm3860 = vcmp.eq.s32.totalorder %v3855, 2
        %v3861 = vxor.u32 %v3851, 2147483648
        %v3862 = vsel %vm3860, %v3861, %v3852
        %v3863 = vsel %vm3856, %v3859, %v3862
        %v3864 = vsel %vm3853, nan, %v3863
        %v3865 = vand.u32 2147483647, %v640
        %vm3866 = vcmp.le.f32.partialorder %v3865, 0.7853982
        %vm3867 = vcmp.lt.s32.totalorder %v640, 0
        %v3868 = vand.u32 %v640, 2139095040
        %v3869 = vshrl.u32 %v3868, 23
        %v3870 = vsub.s32 %v3869, 127
        %v3871 = vand.u32 2147483647, %v640
        %v3872 = vand.u32 %v3871, 8388607
        %v3873 = vor.u32 %v3872, 8388608
        %v3874 = vsub.s32 0, %v3873
        %v3875 = vadd.s32 %v3870, 1
        %vm3876 = vcmp.gt.s32.totalorder %v3875, 0
        %v3877 = vsel %vm3876, %v3875, 0
        %v3878 = vshrl.u32 %v3877, 5
        %v3879 = vand.u32 %v3877, 31
        %v3880 = vsub.s32 32, %v3879
        %v3881 = vshrl.u32 683565275, %v3880
        %v3882 = vshll.u32 683565275, %v3879
        %v3883 = vshrl.u32 2475754826, %v3880
        %v3884 = vor.u32 %v3882, %v3883
        %v3885 = vshll.u32 2475754826, %v3879
        %v3886 = vshrl.u32 2131351028, %v3880
        %v3887 = vor.u32 %v3885, %v3886
        %v3888 = vshll.u32 2131351028, %v3879
        %v3889 = vshrl.u32 2102212464, %v3880
        %v3890 = vor.u32 %v3888, %v3889
        %v3891 = vshll.u32 2102212464, %v3879
        %v3892 = vshrl.u32 920167782, %v3880
        %v3893 = vor.u32 %v3891, %v3892
        %v3894 = vshll.u32 920167782, %v3879
        %v3895 = vshrl.u32 1326507024, %v3880
        %v3896 = vor.u32 %v3894, %v3895
        %vm3897 = vcmp.lt.s32.totalorder %v3878, 1
        %vm3898 = vcmp.lt.s32.totalorder %v3878, 2
        %vm3899 = vcmp.lt.s32.totalorder %v3878, 3
        %vm3900 = vcmp.lt.s32.totalorder %v3878, 4
        %v3901 = vsel %vm3897, %v3881, %v3884
        %v3902 = vsel %vm3900, %v3890, 2102212464
        %v3903 = vsel %vm3899, %v3887, %v3902
        %v3904 = vsel %vm3898, %v3901, %v3903
        %v3905 = vsel %vm3897, %v3884, %v3887
        %v3906 = vsel %vm3900, %v3893, 920167782
        %v3907 = vsel %vm3899, %v3890, %v3906
        %v3908 = vsel %vm3898, %v3905, %v3907
        %v3909 = vsel %vm3897, %v3887, %v3890
        %v3910 = vsel %vm3900, %v3896, 1326507024
        %v3911 = vsel %vm3899, %v3893, %v3910
        %v3912 = vsel %vm3898, %v3909, %v3911
        %v3913 = vshll.u32 %v3873, 8
        %v3914 = vmul.u32.u64.compose %v3913, %v3912
        %v3915 = vextract.low.u32 %v3914
        %v3916 = vextract.high.u32 %v3914
        %v3917 = vmul.u32.u64.compose %v3913, %v3908
        %v3918 = vextract.low.u32 %v3917
        %v3919 = vextract.high.u32 %v3917
        %v3920 = vmul.u32 %v3913, %v3904
        %v3921 = vadd.s32 %v3916, %v3918
        %vm3922 = vc.u32 %v3916, %v3918
        %v3923 = vadd.s32 %v3919, 1
        %v3924 = vsel %vm3922, %v3923, %v3919
        %v3925 = vadd.s32 %v3920, %v3924
        %v3926 = vadd.s32 %v3925, 536870912
        %v3927 = vshrl.u32 %v3926, 30
        %v3928 = vshll.u32 %v3927, 30
        %v3929 = vsub.s32 %v3925, %v3928
        %vm3930 = vcmp.lt.s32.totalorder %v3929, 0
        %v3931 = vsub.s32 0, %v3929
        %v3932 = vsel %vm3930, %v3931, %v3929
        %v3933 = vclz %v3932
        %v3934 = vsub.s32 %v3933, 2
        %vm3935 = vcmp.gt.s32.totalorder 0, %v3934
        %v3936 = vsel %vm3935, 0, %v3934
        %v3937 = vsub.s32 32, %v3936
        %v3938 = vshll.u32 %v3929, %v3936
        %v3939 = vshrl.u32 %v3921, %v3937
        %v3940 = vor.u32 %v3938, %v3939
        %v3941 = vsub.s32 4294967266, %v3936
        %v3942 = vadd.s32 %v3941, 127
        %v3943 = vshll.u32 %v3942, 23
        %v3944 = vor.u32 4788187, %v3943
        %v3945 = vand.u32 2147483647, %v3944
        %v3947 = vcvt.s32.f32 %v3940
        %v3948 = vmul.f32 %v3947, %v3945
        %v3949 = vxor.u32 %v3948, 2147483648
        %v3950 = vsel %vm3867, %v3949, %v3948
        %v3951 = vsub.s32 4, %v3927
        %v3952 = vsel %vm3867, %v3951, %v3927
        %v3953 = vsel %vm3866, %v640, %v3950
        %v3954 = vsel %vm3866, 0, %v3952
        %v3955 = vcosq.f32.pop %v3953
        %v3956 = vsinq.f32.pop %v3953
        %vm3957 = vweird.f32 %v640
        %v3958 = vadd.s32 %v3954, 3
        %v3959 = vand.u32 %v3958, 3
        %vm3960 = vcmp.lt.s32.totalorder %v3959, 2
        %vm3961 = vcmp.eq.s32.totalorder %v3959, 0
        %v3962 = vxor.u32 %v3956, 2147483648
        %v3963 = vsel %vm3961, %v3955, %v3962
        %vm3964 = vcmp.eq.s32.totalorder %v3959, 2
        %v3965 = vxor.u32 %v3955, 2147483648
        %v3966 = vsel %vm3964, %v3965, %v3956
        %v3967 = vsel %vm3960, %v3963, %v3966
        %v3968 = vsel %vm3957, nan, %v3967
        %v3969 = vld [vmem:[%s1] sm:$0xff]
        %v3970 = vld [vmem:[%s1 + $0x8] sm:$0x3]
        %3971 = vset.pattern.permute.xlu0 3
        %3972 = vperm.xlu0 %3971, %v193
        %v3973 = vpop.permute.xlu0 %3972
        %3975 = vset.pattern.permute.xlu0 3
        %3976 = vperm.xlu0 %3975, %v194
        %v3977 = vpop.permute.xlu0 %3976
        %vm3979 = vcmask 80896
        %v3981 = vsel %vm3979, %v3969, 0
        %v3984 = vsel %vm3979, %v3970, 0
        %vm3986 = vcmask 1041408
        %v3988 = vsel %vm3986, %v2408, 0
        %v3991 = vsel %vm3986, %v2512, 0
        %v3994 = vsel %vm3986, %v2616, 0
        %v3997 = vsel %vm3986, %v2720, 0
        %v4000 = vsel %vm3986, %v2824, 0
        %v4003 = vsel %vm3986, %v2928, 0
        %v4006 = vsel %vm3986, %v3032, 0
        %v4009 = vsel %vm3986, %v3136, 0
        %v4012 = vsel %vm3986, %v3240, 0
        %v4015 = vsel %vm3986, %v3344, 0
        %v4018 = vsel %vm3986, %v3448, 0
        %v4021 = vsel %vm3986, %v3552, 0
        %v4024 = vsel %vm3986, %v3656, 0
        %v4027 = vsel %vm3986, %v3760, 0
        %v4030 = vsel %vm3986, %v3864, 0
        %v4033 = vsel %vm3986, %v3968, 0
        %4035 = vmatprep.subr.mxu0 %v848
        %4036 = vmatpush1.msra.mxu0 %v744
        %4037 = vmatprep.subr.mxu0 %v3991
        %4038 = vmatpush1.msra.mxu0 %v3988
        %4039 = vmatprep.subr.mxu0 0.0
        %4040 = vmatpush1.msra.mxu0 0.0
        %4041 = vmatprep.subr.mxu0 0.0
        %4042 = vmatpush1.msra.mxu0 0.0
        %4043 = vmatprep.subr.mxu0 0.0
        %4044 = vmatpush1.msra.mxu0 0.0
        %4045 = vmatprep.subr.mxu0 0.0
        %4046 = vmatpush1.msra.mxu0 0.0
        %4047 = vmatprep.subr.mxu0 0.0
        %4048 = vmatpush1.msra.mxu0 0.0
        %4049 = vmatprep.subr.mxu0 0.0
        %4050 = vmatpush1.msra.mxu0 0.0
        %4051 = vmatprep.subr.mxu0 0.0
        %4052 = vmatpush1.msra.mxu0 0.0
        %4053 = vmatprep.subr.mxu0 0.0
        %4054 = vmatpush1.msra.mxu0 0.0
        %4055 = vmatprep.subr.mxu0 0.0
        %4056 = vmatpush1.msra.mxu0 0.0
        %4057 = vmatprep.subr.mxu0 0.0
        %4058 = vmatpush1.msra.mxu0 0.0
        %4059 = vmatprep.subr.mxu0 0.0
        %4060 = vmatpush1.msra.mxu0 0.0
        %4061 = vmatprep.subr.mxu0 0.0
        %4062 = vmatpush1.msra.mxu0 0.0
        %4063 = vmatprep.subr.mxu0 0.0
        %4064 = vmatpush1.msra.mxu0 0.0
        %4065 = vmatprep.subr.mxu0 0.0
        %4066 = vmatpush1.msra.mxu0 0.0
        %4067 = vmatprep.subr.mxu0 0.0
        %4068 = vmatpush1.msra.mxu0 0.0
        %4069 = vmatprep.subr.mxu0 0.0
        %4070 = vmatpush1.msra.mxu0 0.0
        %4071 = vmatprep.subr.mxu0 0.0
        %4072 = vmatpush1.msra.mxu0 0.0
        %4073 = vmatprep.subr.mxu0 0.0
        %4074 = vmatpush1.msra.mxu0 0.0
        %4075 = vmatprep.subr.mxu0 0.0
        %4076 = vmatpush1.msra.mxu0 0.0
        %4077 = vmatprep.subr.mxu0 0.0
        %4078 = vmatpush1.msra.mxu0 0.0
        %4079 = vmatprep.subr.mxu0 0.0
        %4080 = vmatpush1.msra.mxu0 0.0
        %4081 = vmatprep.subr.mxu0 0.0
        %4082 = vmatpush1.msra.mxu0 0.0
        %4083 = vmatprep.subr.mxu0 0.0
        %4084 = vmatpush1.msra.mxu0 0.0
        %4085 = vmatprep.subr.mxu0 0.0
        %4086 = vmatpush1.msra.mxu0 0.0
        %4087 = vmatprep.subr.mxu0 0.0
        %4088 = vmatpush1.msra.mxu0 0.0
        %4089 = vmatprep.subr.mxu0 0.0
        %4090 = vmatpush1.msra.mxu0 0.0
        %4091 = vmatprep.subr.mxu0 0.0
        %4092 = vmatpush1.msra.mxu0 0.0
        %4093 = vmatprep.subr.mxu0 0.0
        %4094 = vmatpush1.msra.mxu0 0.0
        %4095 = vmatprep.subr.mxu0 0.0
        %4096 = vmatpush1.msra.mxu0 0.0
        %4097 = vmatprep.subr.mxu0 0.0
        %4098 = vmatpush1.msra.mxu0 0.0
        %4099 = vmatprep.mubr.f32.mxu0 0.0
        %4100 = vmatmul.mubr.f32.gmra.mrb[0].mxu0 %v3981
        %v4101 = vpop.f32.mrb[0].mxu0
        %v4102 = vadd.f32 %v3973, %v4101
        %v4103 = vpop.f32.mrb[0].mxu0
        %v4104 = vadd.f32 %v3973, %v4103
        %4105 = vmatprep.mubr.f32.mxu0 0.0
        %4106 = vmatmul.mubr.f32.gmra.mrb[0].mxu0 %v3984
        %v4107 = vpop.f32.mrb[0].mxu0
        %v4108 = vadd.f32 %v3977, %v4107
        %v4109 = vpop.f32.mrb[0].mxu0
        %v4110 = vadd.f32 %v3977, %v4109
        %4111 = vdwg.mxu0
        %4112 = vmatprep.subr.mxu0 %v1056
        %4113 = vmatpush1.msra.mxu0 %v952
        %4114 = vmatprep.subr.mxu0 %v3997
        %4115 = vmatpush1.msra.mxu0 %v3994
        %4116 = vmatprep.subr.mxu0 0.0
        %4117 = vmatpush1.msra.mxu0 0.0
        %4118 = vmatprep.subr.mxu0 0.0
        %4119 = vmatpush1.msra.mxu0 0.0
        %4120 = vmatprep.subr.mxu0 0.0
        %4121 = vmatpush1.msra.mxu0 0.0
        %4122 = vmatprep.subr.mxu0 0.0
        %4123 = vmatpush1.msra.mxu0 0.0
        %4124 = vmatprep.subr.mxu0 0.0
        %4125 = vmatpush1.msra.mxu0 0.0
        %4126 = vmatprep.subr.mxu0 0.0
        %4127 = vmatpush1.msra.mxu0 0.0
        %4128 = vmatprep.subr.mxu0 0.0
        %4129 = vmatpush1.msra.mxu0 0.0
        %4130 = vmatprep.subr.mxu0 0.0
        %4131 = vmatpush1.msra.mxu0 0.0
        %4132 = vmatprep.subr.mxu0 0.0
        %4133 = vmatpush1.msra.mxu0 0.0
        %4134 = vmatprep.subr.mxu0 0.0
        %4135 = vmatpush1.msra.mxu0 0.0
        %4136 = vmatprep.subr.mxu0 0.0
        %4137 = vmatpush1.msra.mxu0 0.0
        %4138 = vmatprep.subr.mxu0 0.0
        %4139 = vmatpush1.msra.mxu0 0.0
        %4140 = vmatprep.subr.mxu0 0.0
        %4141 = vmatpush1.msra.mxu0 0.0
        %4142 = vmatprep.subr.mxu0 0.0
        %4143 = vmatpush1.msra.mxu0 0.0
        %4144 = vmatprep.subr.mxu0 0.0
        %4145 = vmatpush1.msra.mxu0 0.0
        %4146 = vmatprep.subr.mxu0 0.0
        %4147 = vmatpush1.msra.mxu0 0.0
        %4148 = vmatprep.subr.mxu0 0.0
        %4149 = vmatpush1.msra.mxu0 0.0
        %4150 = vmatprep.subr.mxu0 0.0
        %4151 = vmatpush1.msra.mxu0 0.0
        %4152 = vmatprep.subr.mxu0 0.0
        %4153 = vmatpush1.msra.mxu0 0.0
        %4154 = vmatprep.subr.mxu0 0.0
        %4155 = vmatpush1.msra.mxu0 0.0
        %4156 = vmatprep.subr.mxu0 0.0
        %4157 = vmatpush1.msra.mxu0 0.0
        %4158 = vmatprep.subr.mxu0 0.0
        %4159 = vmatpush1.msra.mxu0 0.0
        %4160 = vmatprep.subr.mxu0 0.0
        %4161 = vmatpush1.msra.mxu0 0.0
        %4162 = vmatprep.subr.mxu0 0.0
        %4163 = vmatpush1.msra.mxu0 0.0
        %4164 = vmatprep.subr.mxu0 0.0
        %4165 = vmatpush1.msra.mxu0 0.0
        %4166 = vmatprep.subr.mxu0 0.0
        %4167 = vmatpush1.msra.mxu0 0.0
        %4168 = vmatprep.subr.mxu0 0.0
        %4169 = vmatpush1.msra.mxu0 0.0
        %4170 = vmatprep.subr.mxu0 0.0
        %4171 = vmatpush1.msra.mxu0 0.0
        %4172 = vmatprep.subr.mxu0 0.0
        %4173 = vmatpush1.msra.mxu0 0.0
        %4174 = vmatprep.subr.mxu0 0.0
        %4175 = vmatpush1.msra.mxu0 0.0
        %4176 = vmatprep.mubr.f32.mxu0 0.0
        %4177 = vmatmul.mubr.f32.gmra.mrb[0].mxu0 %v3981
        %v4178 = vpop.f32.mrb[0].mxu0
        %v4179 = vadd.f32 %v3973, %v4178
        %v4180 = vpop.f32.mrb[0].mxu0
        %v4181 = vadd.f32 %v3973, %v4180
        %4182 = vmatprep.mubr.f32.mxu0 0.0
        %4183 = vmatmul.mubr.f32.gmra.mrb[0].mxu0 %v3984
        %v4184 = vpop.f32.mrb[0].mxu0
        %v4185 = vadd.f32 %v3977, %v4184
        %v4186 = vpop.f32.mrb[0].mxu0
        %v4187 = vadd.f32 %v3977, %v4186
        %4188 = vdwg.mxu0
        %4189 = vmatprep.subr.mxu0 %v1264
        %4190 = vmatpush1.msra.mxu0 %v1160
        %4191 = vmatprep.subr.mxu0 %v4003
        %4192 = vmatpush1.msra.mxu0 %v4000
        %4193 = vmatprep.subr.mxu0 0.0
        %4194 = vmatpush1.msra.mxu0 0.0
        %4195 = vmatprep.subr.mxu0 0.0
        %4196 = vmatpush1.msra.mxu0 0.0
        %4197 = vmatprep.subr.mxu0 0.0
        %4198 = vmatpush1.msra.mxu0 0.0
        %4199 = vmatprep.subr.mxu0 0.0
        %4200 = vmatpush1.msra.mxu0 0.0
        %4201 = vmatprep.subr.mxu0 0.0
        %4202 = vmatpush1.msra.mxu0 0.0
        %4203 = vmatprep.subr.mxu0 0.0
        %4204 = vmatpush1.msra.mxu0 0.0
        %4205 = vmatprep.subr.mxu0 0.0
        %4206 = vmatpush1.msra.mxu0 0.0
        %4207 = vmatprep.subr.mxu0 0.0
        %4208 = vmatpush1.msra.mxu0 0.0
        %4209 = vmatprep.subr.mxu0 0.0
        %4210 = vmatpush1.msra.mxu0 0.0
        %4211 = vmatprep.subr.mxu0 0.0
        %4212 = vmatpush1.msra.mxu0 0.0
        %4213 = vmatprep.subr.mxu0 0.0
        %4214 = vmatpush1.msra.mxu0 0.0
        %4215 = vmatprep.subr.mxu0 0.0
        %4216 = vmatpush1.msra.mxu0 0.0
        %4217 = vmatprep.subr.mxu0 0.0
        %4218 = vmatpush1.msra.mxu0 0.0
        %4219 = vmatprep.subr.mxu0 0.0
        %4220 = vmatpush1.msra.mxu0 0.0
        %4221 = vmatprep.subr.mxu0 0.0
        %4222 = vmatpush1.msra.mxu0 0.0
        %4223 = vmatprep.subr.mxu0 0.0
        %4224 = vmatpush1.msra.mxu0 0.0
        %4225 = vmatprep.subr.mxu0 0.0
        %4226 = vmatpush1.msra.mxu0 0.0
        %4227 = vmatprep.subr.mxu0 0.0
        %4228 = vmatpush1.msra.mxu0 0.0
        %4229 = vmatprep.subr.mxu0 0.0
        %4230 = vmatpush1.msra.mxu0 0.0
        %4231 = vmatprep.subr.mxu0 0.0
        %4232 = vmatpush1.msra.mxu0 0.0
        %4233 = vmatprep.subr.mxu0 0.0
        %4234 = vmatpush1.msra.mxu0 0.0
        %4235 = vmatprep.subr.mxu0 0.0
        %4236 = vmatpush1.msra.mxu0 0.0
        %4237 = vmatprep.subr.mxu0 0.0
        %4238 = vmatpush1.msra.mxu0 0.0
        %4239 = vmatprep.subr.mxu0 0.0
        %4240 = vmatpush1.msra.mxu0 0.0
        %4241 = vmatprep.subr.mxu0 0.0
        %4242 = vmatpush1.msra.mxu0 0.0
        %4243 = vmatprep.subr.mxu0 0.0
        %4244 = vmatpush1.msra.mxu0 0.0
        %4245 = vmatprep.subr.mxu0 0.0
        %4246 = vmatpush1.msra.mxu0 0.0
        %4247 = vmatprep.subr.mxu0 0.0
        %4248 = vmatpush1.msra.mxu0 0.0
        %4249 = vmatprep.subr.mxu0 0.0
        %4250 = vmatpush1.msra.mxu0 0.0
        %4251 = vmatprep.subr.mxu0 0.0
        %4252 = vmatpush1.msra.mxu0 0.0
        %4253 = vmatprep.mubr.f32.mxu0 0.0
        %4254 = vmatmul.mubr.f32.gmra.mrb[0].mxu0 %v3981
        %v4255 = vpop.f32.mrb[0].mxu0
        %v4256 = vadd.f32 %v3973, %v4255
        %v4257 = vpop.f32.mrb[0].mxu0
        %v4258 = vadd.f32 %v3973, %v4257
        %4259 = vmatprep.mubr.f32.mxu0 0.0
        %4260 = vmatmul.mubr.f32.gmra.mrb[0].mxu0 %v3984
        %v4261 = vpop.f32.mrb[0].mxu0
        %v4262 = vadd.f32 %v3977, %v4261
        %v4263 = vpop.f32.mrb[0].mxu0
        %v4264 = vadd.f32 %v3977, %v4263
        %4265 = vdwg.mxu0
        %4266 = vmatprep.subr.mxu0 %v1472
        %4267 = vmatpush1.msra.mxu0 %v1368
        %4268 = vmatprep.subr.mxu0 %v4009
        %4269 = vmatpush1.msra.mxu0 %v4006
        %4270 = vmatprep.subr.mxu0 0.0
        %4271 = vmatpush1.msra.mxu0 0.0
        %4272 = vmatprep.subr.mxu0 0.0
        %4273 = vmatpush1.msra.mxu0 0.0
        %4274 = vmatprep.subr.mxu0 0.0
        %4275 = vmatpush1.msra.mxu0 0.0
        %4276 = vmatprep.subr.mxu0 0.0
        %4277 = vmatpush1.msra.mxu0 0.0
        %4278 = vmatprep.subr.mxu0 0.0
        %4279 = vmatpush1.msra.mxu0 0.0
        %4280 = vmatprep.subr.mxu0 0.0
        %4281 = vmatpush1.msra.mxu0 0.0
        %4282 = vmatprep.subr.mxu0 0.0
        %4283 = vmatpush1.msra.mxu0 0.0
        %4284 = vmatprep.subr.mxu0 0.0
        %4285 = vmatpush1.msra.mxu0 0.0
        %4286 = vmatprep.subr.mxu0 0.0
        %4287 = vmatpush1.msra.mxu0 0.0
        %4288 = vmatprep.subr.mxu0 0.0
        %4289 = vmatpush1.msra.mxu0 0.0
        %4290 = vmatprep.subr.mxu0 0.0
        %4291 = vmatpush1.msra.mxu0 0.0
        %4292 = vmatprep.subr.mxu0 0.0
        %4293 = vmatpush1.msra.mxu0 0.0
        %4294 = vmatprep.subr.mxu0 0.0
        %4295 = vmatpush1.msra.mxu0 0.0
        %4296 = vmatprep.subr.mxu0 0.0
        %4297 = vmatpush1.msra.mxu0 0.0
        %4298 = vmatprep.subr.mxu0 0.0
        %4299 = vmatpush1.msra.mxu0 0.0
        %4300 = vmatprep.subr.mxu0 0.0
        %4301 = vmatpush1.msra.mxu0 0.0
        %4302 = vmatprep.subr.mxu0 0.0
        %4303 = vmatpush1.msra.mxu0 0.0
        %4304 = vmatprep.subr.mxu0 0.0
        %4305 = vmatpush1.msra.mxu0 0.0
        %4306 = vmatprep.subr.mxu0 0.0
        %4307 = vmatpush1.msra.mxu0 0.0
        %4308 = vmatprep.subr.mxu0 0.0
        %4309 = vmatpush1.msra.mxu0 0.0
        %4310 = vmatprep.subr.mxu0 0.0
        %4311 = vmatpush1.msra.mxu0 0.0
        %4312 = vmatprep.subr.mxu0 0.0
        %4313 = vmatpush1.msra.mxu0 0.0
        %4314 = vmatprep.subr.mxu0 0.0
        %4315 = vmatpush1.msra.mxu0 0.0
        %4316 = vmatprep.subr.mxu0 0.0
        %4317 = vmatpush1.msra.mxu0 0.0
        %4318 = vmatprep.subr.mxu0 0.0
        %4319 = vmatpush1.msra.mxu0 0.0
        %4320 = vmatprep.subr.mxu0 0.0
        %4321 = vmatpush1.msra.mxu0 0.0
        %4322 = vmatprep.subr.mxu0 0.0
        %4323 = vmatpush1.msra.mxu0 0.0
        %4324 = vmatprep.subr.mxu0 0.0
        %4325 = vmatpush1.msra.mxu0 0.0
        %4326 = vmatprep.subr.mxu0 0.0
        %4327 = vmatpush1.msra.mxu0 0.0
        %4328 = vmatprep.subr.mxu0 0.0
        %4329 = vmatpush1.msra.mxu0 0.0
        %4330 = vmatprep.mubr.f32.mxu0 0.0
        %4331 = vmatmul.mubr.f32.gmra.mrb[0].mxu0 %v3981
        %v4332 = vpop.f32.mrb[0].mxu0
        %v4333 = vadd.f32 %v3973, %v4332
        %v4334 = vpop.f32.mrb[0].mxu0
        %v4335 = vadd.f32 %v3973, %v4334
        %4336 = vmatprep.mubr.f32.mxu0 0.0
        %4337 = vmatmul.mubr.f32.gmra.mrb[0].mxu0 %v3984
        %v4338 = vpop.f32.mrb[0].mxu0
        %v4339 = vadd.f32 %v3977, %v4338
        %v4340 = vpop.f32.mrb[0].mxu0
        %v4341 = vadd.f32 %v3977, %v4340
        %4342 = vdwg.mxu0
        %4343 = vmatprep.subr.mxu0 %v1680
        %4344 = vmatpush1.msra.mxu0 %v1576
        %4345 = vmatprep.subr.mxu0 %v4015
        %4346 = vmatpush1.msra.mxu0 %v4012
        %4347 = vmatprep.subr.mxu0 0.0
        %4348 = vmatpush1.msra.mxu0 0.0
        %4349 = vmatprep.subr.mxu0 0.0
        %4350 = vmatpush1.msra.mxu0 0.0
        %4351 = vmatprep.subr.mxu0 0.0
        %4352 = vmatpush1.msra.mxu0 0.0
        %4353 = vmatprep.subr.mxu0 0.0
        %4354 = vmatpush1.msra.mxu0 0.0
        %4355 = vmatprep.subr.mxu0 0.0
        %4356 = vmatpush1.msra.mxu0 0.0
        %4357 = vmatprep.subr.mxu0 0.0
        %4358 = vmatpush1.msra.mxu0 0.0
        %4359 = vmatprep.subr.mxu0 0.0
        %4360 = vmatpush1.msra.mxu0 0.0
        %4361 = vmatprep.subr.mxu0 0.0
        %4362 = vmatpush1.msra.mxu0 0.0
        %4363 = vmatprep.subr.mxu0 0.0
        %4364 = vmatpush1.msra.mxu0 0.0
        %4365 = vmatprep.subr.mxu0 0.0
        %4366 = vmatpush1.msra.mxu0 0.0
        %4367 = vmatprep.subr.mxu0 0.0
        %4368 = vmatpush1.msra.mxu0 0.0
        %4369 = vmatprep.subr.mxu0 0.0
        %4370 = vmatpush1.msra.mxu0 0.0
        %4371 = vmatprep.subr.mxu0 0.0
        %4372 = vmatpush1.msra.mxu0 0.0
        %4373 = vmatprep.subr.mxu0 0.0
        %4374 = vmatpush1.msra.mxu0 0.0
        %4375 = vmatprep.subr.mxu0 0.0
        %4376 = vmatpush1.msra.mxu0 0.0
        %4377 = vmatprep.subr.mxu0 0.0
        %4378 = vmatpush1.msra.mxu0 0.0
        %4379 = vmatprep.subr.mxu0 0.0
        %4380 = vmatpush1.msra.mxu0 0.0
        %4381 = vmatprep.subr.mxu0 0.0
        %4382 = vmatpush1.msra.mxu0 0.0
        %4383 = vmatprep.subr.mxu0 0.0
        %4384 = vmatpush1.msra.mxu0 0.0
        %4385 = vmatprep.subr.mxu0 0.0
        %4386 = vmatpush1.msra.mxu0 0.0
        %4387 = vmatprep.subr.mxu0 0.0
        %4388 = vmatpush1.msra.mxu0 0.0
        %4389 = vmatprep.subr.mxu0 0.0
        %4390 = vmatpush1.msra.mxu0 0.0
        %4391 = vmatprep.subr.mxu0 0.0
        %4392 = vmatpush1.msra.mxu0 0.0
        %4393 = vmatprep.subr.mxu0 0.0
        %4394 = vmatpush1.msra.mxu0 0.0
        %4395 = vmatprep.subr.mxu0 0.0
        %4396 = vmatpush1.msra.mxu0 0.0
        %4397 = vmatprep.subr.mxu0 0.0
        %4398 = vmatpush1.msra.mxu0 0.0
        %4399 = vmatprep.subr.mxu0 0.0
        %4400 = vmatpush1.msra.mxu0 0.0
        %4401 = vmatprep.subr.mxu0 0.0
        %4402 = vmatpush1.msra.mxu0 0.0
        %4403 = vmatprep.subr.mxu0 0.0
        %4404 = vmatpush1.msra.mxu0 0.0
        %4405 = vmatprep.subr.mxu0 0.0
        %4406 = vmatpush1.msra.mxu0 0.0
        %4407 = vmatprep.mubr.f32.mxu0 0.0
        %4408 = vmatmul.mubr.f32.gmra.mrb[0].mxu0 %v3981
        %v4409 = vpop.f32.mrb[0].mxu0
        %v4410 = vadd.f32 %v3973, %v4409
        %v4411 = vpop.f32.mrb[0].mxu0
        %v4412 = vadd.f32 %v3973, %v4411
        %4413 = vmatprep.mubr.f32.mxu0 0.0
        %4414 = vmatmul.mubr.f32.gmra.mrb[0].mxu0 %v3984
        %v4415 = vpop.f32.mrb[0].mxu0
        %v4416 = vadd.f32 %v3977, %v4415
        %v4417 = vpop.f32.mrb[0].mxu0
        %v4418 = vadd.f32 %v3977, %v4417
        %4419 = vdwg.mxu0
        %4420 = vmatprep.subr.mxu0 %v1888
        %4421 = vmatpush1.msra.mxu0 %v1784
        %4422 = vmatprep.subr.mxu0 %v4021
        %4423 = vmatpush1.msra.mxu0 %v4018
        %4424 = vmatprep.subr.mxu0 0.0
        %4425 = vmatpush1.msra.mxu0 0.0
        %4426 = vmatprep.subr.mxu0 0.0
        %4427 = vmatpush1.msra.mxu0 0.0
        %4428 = vmatprep.subr.mxu0 0.0
        %4429 = vmatpush1.msra.mxu0 0.0
        %4430 = vmatprep.subr.mxu0 0.0
        %4431 = vmatpush1.msra.mxu0 0.0
        %4432 = vmatprep.subr.mxu0 0.0
        %4433 = vmatpush1.msra.mxu0 0.0
        %4434 = vmatprep.subr.mxu0 0.0
        %4435 = vmatpush1.msra.mxu0 0.0
        %4436 = vmatprep.subr.mxu0 0.0
        %4437 = vmatpush1.msra.mxu0 0.0
        %4438 = vmatprep.subr.mxu0 0.0
        %4439 = vmatpush1.msra.mxu0 0.0
        %4440 = vmatprep.subr.mxu0 0.0
        %4441 = vmatpush1.msra.mxu0 0.0
        %4442 = vmatprep.subr.mxu0 0.0
        %4443 = vmatpush1.msra.mxu0 0.0
        %4444 = vmatprep.subr.mxu0 0.0
        %4445 = vmatpush1.msra.mxu0 0.0
        %4446 = vmatprep.subr.mxu0 0.0
        %4447 = vmatpush1.msra.mxu0 0.0
        %4448 = vmatprep.subr.mxu0 0.0
        %4449 = vmatpush1.msra.mxu0 0.0
        %4450 = vmatprep.subr.mxu0 0.0
        %4451 = vmatpush1.msra.mxu0 0.0
        %4452 = vmatprep.subr.mxu0 0.0
        %4453 = vmatpush1.msra.mxu0 0.0
        %4454 = vmatprep.subr.mxu0 0.0
        %4455 = vmatpush1.msra.mxu0 0.0
        %4456 = vmatprep.subr.mxu0 0.0
        %4457 = vmatpush1.msra.mxu0 0.0
        %4458 = vmatprep.subr.mxu0 0.0
        %4459 = vmatpush1.msra.mxu0 0.0
        %4460 = vmatprep.subr.mxu0 0.0
        %4461 = vmatpush1.msra.mxu0 0.0
        %4462 = vmatprep.subr.mxu0 0.0
        %4463 = vmatpush1.msra.mxu0 0.0
        %4464 = vmatprep.subr.mxu0 0.0
        %4465 = vmatpush1.msra.mxu0 0.0
        %4466 = vmatprep.subr.mxu0 0.0
        %4467 = vmatpush1.msra.mxu0 0.0
        %4468 = vmatprep.subr.mxu0 0.0
        %4469 = vmatpush1.msra.mxu0 0.0
        %4470 = vmatprep.subr.mxu0 0.0
        %4471 = vmatpush1.msra.mxu0 0.0
        %4472 = vmatprep.subr.mxu0 0.0
        %4473 = vmatpush1.msra.mxu0 0.0
        %4474 = vmatprep.subr.mxu0 0.0
        %4475 = vmatpush1.msra.mxu0 0.0
        %4476 = vmatprep.subr.mxu0 0.0
        %4477 = vmatpush1.msra.mxu0 0.0
        %4478 = vmatprep.subr.mxu0 0.0
        %4479 = vmatpush1.msra.mxu0 0.0
        %4480 = vmatprep.subr.mxu0 0.0
        %4481 = vmatpush1.msra.mxu0 0.0
        %4482 = vmatprep.subr.mxu0 0.0
        %4483 = vmatpush1.msra.mxu0 0.0
        %4484 = vmatprep.mubr.f32.mxu0 0.0
        %4485 = vmatmul.mubr.f32.gmra.mrb[0].mxu0 %v3981
        %v4486 = vpop.f32.mrb[0].mxu0
        %v4487 = vadd.f32 %v3973, %v4486
        %v4488 = vpop.f32.mrb[0].mxu0
        %v4489 = vadd.f32 %v3973, %v4488
        %4490 = vmatprep.mubr.f32.mxu0 0.0
        %4491 = vmatmul.mubr.f32.gmra.mrb[0].mxu0 %v3984
        %v4492 = vpop.f32.mrb[0].mxu0
        %v4493 = vadd.f32 %v3977, %v4492
        %v4494 = vpop.f32.mrb[0].mxu0
        %v4495 = vadd.f32 %v3977, %v4494
        %4496 = vdwg.mxu0
        %4497 = vmatprep.subr.mxu0 %v2096
        %4498 = vmatpush1.msra.mxu0 %v1992
        %4499 = vmatprep.subr.mxu0 %v4027
        %4500 = vmatpush1.msra.mxu0 %v4024
        %4501 = vmatprep.subr.mxu0 0.0
        %4502 = vmatpush1.msra.mxu0 0.0
        %4503 = vmatprep.subr.mxu0 0.0
        %4504 = vmatpush1.msra.mxu0 0.0
        %4505 = vmatprep.subr.mxu0 0.0
        %4506 = vmatpush1.msra.mxu0 0.0
        %4507 = vmatprep.subr.mxu0 0.0
        %4508 = vmatpush1.msra.mxu0 0.0
        %4509 = vmatprep.subr.mxu0 0.0
        %4510 = vmatpush1.msra.mxu0 0.0
        %4511 = vmatprep.subr.mxu0 0.0
        %4512 = vmatpush1.msra.mxu0 0.0
        %4513 = vmatprep.subr.mxu0 0.0
        %4514 = vmatpush1.msra.mxu0 0.0
        %4515 = vmatprep.subr.mxu0 0.0
        %4516 = vmatpush1.msra.mxu0 0.0
        %4517 = vmatprep.subr.mxu0 0.0
        %4518 = vmatpush1.msra.mxu0 0.0
        %4519 = vmatprep.subr.mxu0 0.0
        %4520 = vmatpush1.msra.mxu0 0.0
        %4521 = vmatprep.subr.mxu0 0.0
        %4522 = vmatpush1.msra.mxu0 0.0
        %4523 = vmatprep.subr.mxu0 0.0
        %4524 = vmatpush1.msra.mxu0 0.0
        %4525 = vmatprep.subr.mxu0 0.0
        %4526 = vmatpush1.msra.mxu0 0.0
        %4527 = vmatprep.subr.mxu0 0.0
        %4528 = vmatpush1.msra.mxu0 0.0
        %4529 = vmatprep.subr.mxu0 0.0
        %4530 = vmatpush1.msra.mxu0 0.0
        %4531 = vmatprep.subr.mxu0 0.0
        %4532 = vmatpush1.msra.mxu0 0.0
        %4533 = vmatprep.subr.mxu0 0.0
        %4534 = vmatpush1.msra.mxu0 0.0
        %4535 = vmatprep.subr.mxu0 0.0
        %4536 = vmatpush1.msra.mxu0 0.0
        %4537 = vmatprep.subr.mxu0 0.0
        %4538 = vmatpush1.msra.mxu0 0.0
        %4539 = vmatprep.subr.mxu0 0.0
        %4540 = vmatpush1.msra.mxu0 0.0
        %4541 = vmatprep.subr.mxu0 0.0
        %4542 = vmatpush1.msra.mxu0 0.0
        %4543 = vmatprep.subr.mxu0 0.0
        %4544 = vmatpush1.msra.mxu0 0.0
        %4545 = vmatprep.subr.mxu0 0.0
        %4546 = vmatpush1.msra.mxu0 0.0
        %4547 = vmatprep.subr.mxu0 0.0
        %4548 = vmatpush1.msra.mxu0 0.0
        %4549 = vmatprep.subr.mxu0 0.0
        %4550 = vmatpush1.msra.mxu0 0.0
        %4551 = vmatprep.subr.mxu0 0.0
        %4552 = vmatpush1.msra.mxu0 0.0
        %4553 = vmatprep.subr.mxu0 0.0
        %4554 = vmatpush1.msra.mxu0 0.0
        %4555 = vmatprep.subr.mxu0 0.0
        %4556 = vmatpush1.msra.mxu0 0.0
        %4557 = vmatprep.subr.mxu0 0.0
        %4558 = vmatpush1.msra.mxu0 0.0
        %4559 = vmatprep.subr.mxu0 0.0
        %4560 = vmatpush1.msra.mxu0 0.0
        %4561 = vmatprep.mubr.f32.mxu0 0.0
        %4562 = vmatmul.mubr.f32.gmra.mrb[0].mxu0 %v3981
        %v4563 = vpop.f32.mrb[0].mxu0
        %v4564 = vadd.f32 %v3973, %v4563
        %v4565 = vpop.f32.mrb[0].mxu0
        %v4566 = vadd.f32 %v3973, %v4565
        %4567 = vmatprep.mubr.f32.mxu0 0.0
        %4568 = vmatmul.mubr.f32.gmra.mrb[0].mxu0 %v3984
        %v4569 = vpop.f32.mrb[0].mxu0
        %v4570 = vadd.f32 %v3977, %v4569
        %v4571 = vpop.f32.mrb[0].mxu0
        %v4572 = vadd.f32 %v3977, %v4571
        %4573 = vdwg.mxu0
        %4574 = vmatprep.subr.mxu0 %v2304
        %4575 = vmatpush1.msra.mxu0 %v2200
        %4576 = vmatprep.subr.mxu0 %v4033
        %4577 = vmatpush1.msra.mxu0 %v4030
        %4578 = vmatprep.subr.mxu0 0.0
        %4579 = vmatpush1.msra.mxu0 0.0
        %4580 = vmatprep.subr.mxu0 0.0
        %4581 = vmatpush1.msra.mxu0 0.0
        %4582 = vmatprep.subr.mxu0 0.0
        %4583 = vmatpush1.msra.mxu0 0.0
        %4584 = vmatprep.subr.mxu0 0.0
        %4585 = vmatpush1.msra.mxu0 0.0
        %4586 = vmatprep.subr.mxu0 0.0
        %4587 = vmatpush1.msra.mxu0 0.0
        %4588 = vmatprep.subr.mxu0 0.0
        %4589 = vmatpush1.msra.mxu0 0.0
        %4590 = vmatprep.subr.mxu0 0.0
        %4591 = vmatpush1.msra.mxu0 0.0
        %4592 = vmatprep.subr.mxu0 0.0
        %4593 = vmatpush1.msra.mxu0 0.0
        %4594 = vmatprep.subr.mxu0 0.0
        %4595 = vmatpush1.msra.mxu0 0.0
        %4596 = vmatprep.subr.mxu0 0.0
        %4597 = vmatpush1.msra.mxu0 0.0
        %4598 = vmatprep.subr.mxu0 0.0
        %4599 = vmatpush1.msra.mxu0 0.0
        %4600 = vmatprep.subr.mxu0 0.0
        %4601 = vmatpush1.msra.mxu0 0.0
        %4602 = vmatprep.subr.mxu0 0.0
        %4603 = vmatpush1.msra.mxu0 0.0
        %4604 = vmatprep.subr.mxu0 0.0
        %4605 = vmatpush1.msra.mxu0 0.0
        %4606 = vmatprep.subr.mxu0 0.0
        %4607 = vmatpush1.msra.mxu0 0.0
        %4608 = vmatprep.subr.mxu0 0.0
        %4609 = vmatpush1.msra.mxu0 0.0
        %4610 = vmatprep.subr.mxu0 0.0
        %4611 = vmatpush1.msra.mxu0 0.0
        %4612 = vmatprep.subr.mxu0 0.0
        %4613 = vmatpush1.msra.mxu0 0.0
        %4614 = vmatprep.subr.mxu0 0.0
        %4615 = vmatpush1.msra.mxu0 0.0
        %4616 = vmatprep.subr.mxu0 0.0
        %4617 = vmatpush1.msra.mxu0 0.0
        %4618 = vmatprep.subr.mxu0 0.0
        %4619 = vmatpush1.msra.mxu0 0.0
        %4620 = vmatprep.subr.mxu0 0.0
        %4621 = vmatpush1.msra.mxu0 0.0
        %4622 = vmatprep.subr.mxu0 0.0
        %4623 = vmatpush1.msra.mxu0 0.0
        %4624 = vmatprep.subr.mxu0 0.0
        %4625 = vmatpush1.msra.mxu0 0.0
        %4626 = vmatprep.subr.mxu0 0.0
        %4627 = vmatpush1.msra.mxu0 0.0
        %4628 = vmatprep.subr.mxu0 0.0
        %4629 = vmatpush1.msra.mxu0 0.0
        %4630 = vmatprep.subr.mxu0 0.0
        %4631 = vmatpush1.msra.mxu0 0.0
        %4632 = vmatprep.subr.mxu0 0.0
        %4633 = vmatpush1.msra.mxu0 0.0
        %4634 = vmatprep.subr.mxu0 0.0
        %4635 = vmatpush1.msra.mxu0 0.0
        %4636 = vmatprep.subr.mxu0 0.0
        %4637 = vmatpush1.msra.mxu0 0.0
        %4638 = vmatprep.mubr.f32.mxu0 0.0
        %4639 = vmatmul.mubr.f32.gmra.mrb[0].mxu0 %v3981
        %v4640 = vpop.f32.mrb[0].mxu0
        %v4641 = vadd.f32 %v3973, %v4640
        %v4642 = vpop.f32.mrb[0].mxu0
        %v4643 = vadd.f32 %v3973, %v4642
        %4644 = vmatprep.mubr.f32.mxu0 0.0
        %4645 = vmatmul.mubr.f32.gmra.mrb[0].mxu0 %v3984
        %v4646 = vpop.f32.mrb[0].mxu0
        %v4647 = vadd.f32 %v3977, %v4646
        %v4648 = vpop.f32.mrb[0].mxu0
        %v4649 = vadd.f32 %v3977, %v4648
        %4650 = vdwg.mxu0
        %v4651 = vand.u32 2147483647, %v4102
        %vm4652 = vcmp.le.f32.partialorder %v4651, 0.7853982
        %vm4653 = vcmp.lt.s32.totalorder %v4102, 0
        %v4654 = vand.u32 %v4102, 2139095040
        %v4655 = vshrl.u32 %v4654, 23
        %v4656 = vsub.s32 %v4655, 127
        %v4657 = vand.u32 2147483647, %v4102
        %v4658 = vand.u32 %v4657, 8388607
        %v4659 = vor.u32 %v4658, 8388608
        %v4660 = vsub.s32 0, %v4659
        %v4661 = vadd.s32 %v4656, 1
        %vm4662 = vcmp.gt.s32.totalorder %v4661, 0
        %v4663 = vsel %vm4662, %v4661, 0
        %v4664 = vshrl.u32 %v4663, 5
        %v4665 = vand.u32 %v4663, 31
        %v4666 = vsub.s32 32, %v4665
        %v4667 = vshrl.u32 683565275, %v4666
        %v4668 = vshll.u32 683565275, %v4665
        %v4669 = vshrl.u32 2475754826, %v4666
        %v4670 = vor.u32 %v4668, %v4669
        %v4671 = vshll.u32 2475754826, %v4665
        %v4672 = vshrl.u32 2131351028, %v4666
        %v4673 = vor.u32 %v4671, %v4672
        %v4674 = vshll.u32 2131351028, %v4665
        %v4675 = vshrl.u32 2102212464, %v4666
        %v4676 = vor.u32 %v4674, %v4675
        %v4677 = vshll.u32 2102212464, %v4665
        %v4678 = vshrl.u32 920167782, %v4666
        %v4679 = vor.u32 %v4677, %v4678
        %v4680 = vshll.u32 920167782, %v4665
        %v4681 = vshrl.u32 1326507024, %v4666
        %v4682 = vor.u32 %v4680, %v4681
        %vm4683 = vcmp.lt.s32.totalorder %v4664, 1
        %vm4684 = vcmp.lt.s32.totalorder %v4664, 2
        %vm4685 = vcmp.lt.s32.totalorder %v4664, 3
        %vm4686 = vcmp.lt.s32.totalorder %v4664, 4
        %v4687 = vsel %vm4683, %v4667, %v4670
        %v4688 = vsel %vm4686, %v4676, 2102212464
        %v4689 = vsel %vm4685, %v4673, %v4688
        %v4690 = vsel %vm4684, %v4687, %v4689
        %v4691 = vsel %vm4683, %v4670, %v4673
        %v4692 = vsel %vm4686, %v4679, 920167782
        %v4693 = vsel %vm4685, %v4676, %v4692
        %v4694 = vsel %vm4684, %v4691, %v4693
        %v4695 = vsel %vm4683, %v4673, %v4676
        %v4696 = vsel %vm4686, %v4682, 1326507024
        %v4697 = vsel %vm4685, %v4679, %v4696
        %v4698 = vsel %vm4684, %v4695, %v4697
        %v4699 = vshll.u32 %v4659, 8
        %v4700 = vmul.u32.u64.compose %v4699, %v4698
        %v4701 = vextract.low.u32 %v4700
        %v4702 = vextract.high.u32 %v4700
        %v4703 = vmul.u32.u64.compose %v4699, %v4694
        %v4704 = vextract.low.u32 %v4703
        %v4705 = vextract.high.u32 %v4703
        %v4706 = vmul.u32 %v4699, %v4690
        %v4707 = vadd.s32 %v4702, %v4704
        %vm4708 = vc.u32 %v4702, %v4704
        %v4709 = vadd.s32 %v4705, 1
        %v4710 = vsel %vm4708, %v4709, %v4705
        %v4711 = vadd.s32 %v4706, %v4710
        %v4712 = vadd.s32 %v4711, 536870912
        %v4713 = vshrl.u32 %v4712, 30
        %v4714 = vshll.u32 %v4713, 30
        %v4715 = vsub.s32 %v4711, %v4714
        %vm4716 = vcmp.lt.s32.totalorder %v4715, 0
        %v4717 = vsub.s32 0, %v4715
        %v4718 = vsel %vm4716, %v4717, %v4715
        %v4719 = vclz %v4718
        %v4720 = vsub.s32 %v4719, 2
        %vm4721 = vcmp.gt.s32.totalorder 0, %v4720
        %v4722 = vsel %vm4721, 0, %v4720
        %v4723 = vsub.s32 32, %v4722
        %v4724 = vshll.u32 %v4715, %v4722
        %v4725 = vshrl.u32 %v4707, %v4723
        %v4726 = vor.u32 %v4724, %v4725
        %v4727 = vsub.s32 4294967266, %v4722
        %v4728 = vadd.s32 %v4727, 127
        %v4729 = vshll.u32 %v4728, 23
        %v4730 = vor.u32 4788187, %v4729
        %v4731 = vand.u32 2147483647, %v4730
        %v4733 = vcvt.s32.f32 %v4726
        %v4734 = vmul.f32 %v4733, %v4731
        %v4735 = vxor.u32 %v4734, 2147483648
        %v4736 = vsel %vm4653, %v4735, %v4734
        %v4737 = vsub.s32 4, %v4713
        %v4738 = vsel %vm4653, %v4737, %v4713
        %v4739 = vsel %vm4652, %v4102, %v4736
        %v4740 = vsel %vm4652, 0, %v4738
        %v4741 = vcosq.f32.pop %v4739
        %v4742 = vsinq.f32.pop %v4739
        %vm4743 = vweird.f32 %v4102
        %v4744 = vadd.s32 %v4740, 3
        %v4745 = vand.u32 %v4744, 3
        %vm4746 = vcmp.lt.s32.totalorder %v4745, 2
        %vm4747 = vcmp.eq.s32.totalorder %v4745, 0
        %v4748 = vxor.u32 %v4742, 2147483648
        %v4749 = vsel %vm4747, %v4741, %v4748
        %vm4750 = vcmp.eq.s32.totalorder %v4745, 2
        %v4751 = vxor.u32 %v4741, 2147483648
        %v4752 = vsel %vm4750, %v4751, %v4742
        %v4753 = vsel %vm4746, %v4749, %v4752
        %v4754 = vsel %vm4743, nan, %v4753
        %v4755 = vand.u32 2147483647, %v4104
        %vm4756 = vcmp.le.f32.partialorder %v4755, 0.7853982
        %vm4757 = vcmp.lt.s32.totalorder %v4104, 0
        %v4758 = vand.u32 %v4104, 2139095040
        %v4759 = vshrl.u32 %v4758, 23
        %v4760 = vsub.s32 %v4759, 127
        %v4761 = vand.u32 2147483647, %v4104
        %v4762 = vand.u32 %v4761, 8388607
        %v4763 = vor.u32 %v4762, 8388608
        %v4764 = vsub.s32 0, %v4763
        %v4765 = vadd.s32 %v4760, 1
        %vm4766 = vcmp.gt.s32.totalorder %v4765, 0
        %v4767 = vsel %vm4766, %v4765, 0
        %v4768 = vshrl.u32 %v4767, 5
        %v4769 = vand.u32 %v4767, 31
        %v4770 = vsub.s32 32, %v4769
        %v4771 = vshrl.u32 683565275, %v4770
        %v4772 = vshll.u32 683565275, %v4769
        %v4773 = vshrl.u32 2475754826, %v4770
        %v4774 = vor.u32 %v4772, %v4773
        %v4775 = vshll.u32 2475754826, %v4769
        %v4776 = vshrl.u32 2131351028, %v4770
        %v4777 = vor.u32 %v4775, %v4776
        %v4778 = vshll.u32 2131351028, %v4769
        %v4779 = vshrl.u32 2102212464, %v4770
        %v4780 = vor.u32 %v4778, %v4779
        %v4781 = vshll.u32 2102212464, %v4769
        %v4782 = vshrl.u32 920167782, %v4770
        %v4783 = vor.u32 %v4781, %v4782
        %v4784 = vshll.u32 920167782, %v4769
        %v4785 = vshrl.u32 1326507024, %v4770
        %v4786 = vor.u32 %v4784, %v4785
        %vm4787 = vcmp.lt.s32.totalorder %v4768, 1
        %vm4788 = vcmp.lt.s32.totalorder %v4768, 2
        %vm4789 = vcmp.lt.s32.totalorder %v4768, 3
        %vm4790 = vcmp.lt.s32.totalorder %v4768, 4
        %v4791 = vsel %vm4787, %v4771, %v4774
        %v4792 = vsel %vm4790, %v4780, 2102212464
        %v4793 = vsel %vm4789, %v4777, %v4792
        %v4794 = vsel %vm4788, %v4791, %v4793
        %v4795 = vsel %vm4787, %v4774, %v4777
        %v4796 = vsel %vm4790, %v4783, 920167782
        %v4797 = vsel %vm4789, %v4780, %v4796
        %v4798 = vsel %vm4788, %v4795, %v4797
        %v4799 = vsel %vm4787, %v4777, %v4780
        %v4800 = vsel %vm4790, %v4786, 1326507024
        %v4801 = vsel %vm4789, %v4783, %v4800
        %v4802 = vsel %vm4788, %v4799, %v4801
        %v4803 = vshll.u32 %v4763, 8
        %v4804 = vmul.u32.u64.compose %v4803, %v4802
        %v4805 = vextract.low.u32 %v4804
        %v4806 = vextract.high.u32 %v4804
        %v4807 = vmul.u32.u64.compose %v4803, %v4798
        %v4808 = vextract.low.u32 %v4807
        %v4809 = vextract.high.u32 %v4807
        %v4810 = vmul.u32 %v4803, %v4794
        %v4811 = vadd.s32 %v4806, %v4808
        %vm4812 = vc.u32 %v4806, %v4808
        %v4813 = vadd.s32 %v4809, 1
        %v4814 = vsel %vm4812, %v4813, %v4809
        %v4815 = vadd.s32 %v4810, %v4814
        %v4816 = vadd.s32 %v4815, 536870912
        %v4817 = vshrl.u32 %v4816, 30
        %v4818 = vshll.u32 %v4817, 30
        %v4819 = vsub.s32 %v4815, %v4818
        %vm4820 = vcmp.lt.s32.totalorder %v4819, 0
        %v4821 = vsub.s32 0, %v4819
        %v4822 = vsel %vm4820, %v4821, %v4819
        %v4823 = vclz %v4822
        %v4824 = vsub.s32 %v4823, 2
        %vm4825 = vcmp.gt.s32.totalorder 0, %v4824
        %v4826 = vsel %vm4825, 0, %v4824
        %v4827 = vsub.s32 32, %v4826
        %v4828 = vshll.u32 %v4819, %v4826
        %v4829 = vshrl.u32 %v4811, %v4827
        %v4830 = vor.u32 %v4828, %v4829
        %v4831 = vsub.s32 4294967266, %v4826
        %v4832 = vadd.s32 %v4831, 127
        %v4833 = vshll.u32 %v4832, 23
        %v4834 = vor.u32 4788187, %v4833
        %v4835 = vand.u32 2147483647, %v4834
        %v4837 = vcvt.s32.f32 %v4830
        %v4838 = vmul.f32 %v4837, %v4835
        %v4839 = vxor.u32 %v4838, 2147483648
        %v4840 = vsel %vm4757, %v4839, %v4838
        %v4841 = vsub.s32 4, %v4817
        %v4842 = vsel %vm4757, %v4841, %v4817
        %v4843 = vsel %vm4756, %v4104, %v4840
        %v4844 = vsel %vm4756, 0, %v4842
        %v4845 = vcosq.f32.pop %v4843
        %v4846 = vsinq.f32.pop %v4843
        %vm4847 = vweird.f32 %v4104
        %v4848 = vadd.s32 %v4844, 3
        %v4849 = vand.u32 %v4848, 3
        %vm4850 = vcmp.lt.s32.totalorder %v4849, 2
        %vm4851 = vcmp.eq.s32.totalorder %v4849, 0
        %v4852 = vxor.u32 %v4846, 2147483648
        %v4853 = vsel %vm4851, %v4845, %v4852
        %vm4854 = vcmp.eq.s32.totalorder %v4849, 2
        %v4855 = vxor.u32 %v4845, 2147483648
        %v4856 = vsel %vm4854, %v4855, %v4846
        %v4857 = vsel %vm4850, %v4853, %v4856
        %v4858 = vsel %vm4847, nan, %v4857
        %v4859 = vand.u32 2147483647, %v4179
        %vm4860 = vcmp.le.f32.partialorder %v4859, 0.7853982
        %vm4861 = vcmp.lt.s32.totalorder %v4179, 0
        %v4862 = vand.u32 %v4179, 2139095040
        %v4863 = vshrl.u32 %v4862, 23
        %v4864 = vsub.s32 %v4863, 127
        %v4865 = vand.u32 2147483647, %v4179
        %v4866 = vand.u32 %v4865, 8388607
        %v4867 = vor.u32 %v4866, 8388608
        %v4868 = vsub.s32 0, %v4867
        %v4869 = vadd.s32 %v4864, 1
        %vm4870 = vcmp.gt.s32.totalorder %v4869, 0
        %v4871 = vsel %vm4870, %v4869, 0
        %v4872 = vshrl.u32 %v4871, 5
        %v4873 = vand.u32 %v4871, 31
        %v4874 = vsub.s32 32, %v4873
        %v4875 = vshrl.u32 683565275, %v4874
        %v4876 = vshll.u32 683565275, %v4873
        %v4877 = vshrl.u32 2475754826, %v4874
        %v4878 = vor.u32 %v4876, %v4877
        %v4879 = vshll.u32 2475754826, %v4873
        %v4880 = vshrl.u32 2131351028, %v4874
        %v4881 = vor.u32 %v4879, %v4880
        %v4882 = vshll.u32 2131351028, %v4873
        %v4883 = vshrl.u32 2102212464, %v4874
        %v4884 = vor.u32 %v4882, %v4883
        %v4885 = vshll.u32 2102212464, %v4873
        %v4886 = vshrl.u32 920167782, %v4874
        %v4887 = vor.u32 %v4885, %v4886
        %v4888 = vshll.u32 920167782, %v4873
        %v4889 = vshrl.u32 1326507024, %v4874
        %v4890 = vor.u32 %v4888, %v4889
        %vm4891 = vcmp.lt.s32.totalorder %v4872, 1
        %vm4892 = vcmp.lt.s32.totalorder %v4872, 2
        %vm4893 = vcmp.lt.s32.totalorder %v4872, 3
        %vm4894 = vcmp.lt.s32.totalorder %v4872, 4
        %v4895 = vsel %vm4891, %v4875, %v4878
        %v4896 = vsel %vm4894, %v4884, 2102212464
        %v4897 = vsel %vm4893, %v4881, %v4896
        %v4898 = vsel %vm4892, %v4895, %v4897
        %v4899 = vsel %vm4891, %v4878, %v4881
        %v4900 = vsel %vm4894, %v4887, 920167782
        %v4901 = vsel %vm4893, %v4884, %v4900
        %v4902 = vsel %vm4892, %v4899, %v4901
        %v4903 = vsel %vm4891, %v4881, %v4884
        %v4904 = vsel %vm4894, %v4890, 1326507024
        %v4905 = vsel %vm4893, %v4887, %v4904
        %v4906 = vsel %vm4892, %v4903, %v4905
        %v4907 = vshll.u32 %v4867, 8
        %v4908 = vmul.u32.u64.compose %v4907, %v4906
        %v4909 = vextract.low.u32 %v4908
        %v4910 = vextract.high.u32 %v4908
        %v4911 = vmul.u32.u64.compose %v4907, %v4902
        %v4912 = vextract.low.u32 %v4911
        %v4913 = vextract.high.u32 %v4911
        %v4914 = vmul.u32 %v4907, %v4898
        %v4915 = vadd.s32 %v4910, %v4912
        %vm4916 = vc.u32 %v4910, %v4912
        %v4917 = vadd.s32 %v4913, 1
        %v4918 = vsel %vm4916, %v4917, %v4913
        %v4919 = vadd.s32 %v4914, %v4918
        %v4920 = vadd.s32 %v4919, 536870912
        %v4921 = vshrl.u32 %v4920, 30
        %v4922 = vshll.u32 %v4921, 30
        %v4923 = vsub.s32 %v4919, %v4922
        %vm4924 = vcmp.lt.s32.totalorder %v4923, 0
        %v4925 = vsub.s32 0, %v4923
        %v4926 = vsel %vm4924, %v4925, %v4923
        %v4927 = vclz %v4926
        %v4928 = vsub.s32 %v4927, 2
        %vm4929 = vcmp.gt.s32.totalorder 0, %v4928
        %v4930 = vsel %vm4929, 0, %v4928
        %v4931 = vsub.s32 32, %v4930
        %v4932 = vshll.u32 %v4923, %v4930
        %v4933 = vshrl.u32 %v4915, %v4931
        %v4934 = vor.u32 %v4932, %v4933
        %v4935 = vsub.s32 4294967266, %v4930
        %v4936 = vadd.s32 %v4935, 127
        %v4937 = vshll.u32 %v4936, 23
        %v4938 = vor.u32 4788187, %v4937
        %v4939 = vand.u32 2147483647, %v4938
        %v4941 = vcvt.s32.f32 %v4934
        %v4942 = vmul.f32 %v4941, %v4939
        %v4943 = vxor.u32 %v4942, 2147483648
        %v4944 = vsel %vm4861, %v4943, %v4942
        %v4945 = vsub.s32 4, %v4921
        %v4946 = vsel %vm4861, %v4945, %v4921
        %v4947 = vsel %vm4860, %v4179, %v4944
        %v4948 = vsel %vm4860, 0, %v4946
        %v4949 = vcosq.f32.pop %v4947
        %v4950 = vsinq.f32.pop %v4947
        %vm4951 = vweird.f32 %v4179
        %v4952 = vadd.s32 %v4948, 3
        %v4953 = vand.u32 %v4952, 3
        %vm4954 = vcmp.lt.s32.totalorder %v4953, 2
        %vm4955 = vcmp.eq.s32.totalorder %v4953, 0
        %v4956 = vxor.u32 %v4950, 2147483648
        %v4957 = vsel %vm4955, %v4949, %v4956
        %vm4958 = vcmp.eq.s32.totalorder %v4953, 2
        %v4959 = vxor.u32 %v4949, 2147483648
        %v4960 = vsel %vm4958, %v4959, %v4950
        %v4961 = vsel %vm4954, %v4957, %v4960
        %v4962 = vsel %vm4951, nan, %v4961
        %v4963 = vand.u32 2147483647, %v4181
        %vm4964 = vcmp.le.f32.partialorder %v4963, 0.7853982
        %vm4965 = vcmp.lt.s32.totalorder %v4181, 0
        %v4966 = vand.u32 %v4181, 2139095040
        %v4967 = vshrl.u32 %v4966, 23
        %v4968 = vsub.s32 %v4967, 127
        %v4969 = vand.u32 2147483647, %v4181
        %v4970 = vand.u32 %v4969, 8388607
        %v4971 = vor.u32 %v4970, 8388608
        %v4972 = vsub.s32 0, %v4971
        %v4973 = vadd.s32 %v4968, 1
        %vm4974 = vcmp.gt.s32.totalorder %v4973, 0
        %v4975 = vsel %vm4974, %v4973, 0
        %v4976 = vshrl.u32 %v4975, 5
        %v4977 = vand.u32 %v4975, 31
        %v4978 = vsub.s32 32, %v4977
        %v4979 = vshrl.u32 683565275, %v4978
        %v4980 = vshll.u32 683565275, %v4977
        %v4981 = vshrl.u32 2475754826, %v4978
        %v4982 = vor.u32 %v4980, %v4981
        %v4983 = vshll.u32 2475754826, %v4977
        %v4984 = vshrl.u32 2131351028, %v4978
        %v4985 = vor.u32 %v4983, %v4984
        %v4986 = vshll.u32 2131351028, %v4977
        %v4987 = vshrl.u32 2102212464, %v4978
        %v4988 = vor.u32 %v4986, %v4987
        %v4989 = vshll.u32 2102212464, %v4977
        %v4990 = vshrl.u32 920167782, %v4978
        %v4991 = vor.u32 %v4989, %v4990
        %v4992 = vshll.u32 920167782, %v4977
        %v4993 = vshrl.u32 1326507024, %v4978
        %v4994 = vor.u32 %v4992, %v4993
        %vm4995 = vcmp.lt.s32.totalorder %v4976, 1
        %vm4996 = vcmp.lt.s32.totalorder %v4976, 2
        %vm4997 = vcmp.lt.s32.totalorder %v4976, 3
        %vm4998 = vcmp.lt.s32.totalorder %v4976, 4
        %v4999 = vsel %vm4995, %v4979, %v4982
        %v5000 = vsel %vm4998, %v4988, 2102212464
        %v5001 = vsel %vm4997, %v4985, %v5000
        %v5002 = vsel %vm4996, %v4999, %v5001
        %v5003 = vsel %vm4995, %v4982, %v4985
        %v5004 = vsel %vm4998, %v4991, 920167782
        %v5005 = vsel %vm4997, %v4988, %v5004
        %v5006 = vsel %vm4996, %v5003, %v5005
        %v5007 = vsel %vm4995, %v4985, %v4988
        %v5008 = vsel %vm4998, %v4994, 1326507024
        %v5009 = vsel %vm4997, %v4991, %v5008
        %v5010 = vsel %vm4996, %v5007, %v5009
        %v5011 = vshll.u32 %v4971, 8
        %v5012 = vmul.u32.u64.compose %v5011, %v5010
        %v5013 = vextract.low.u32 %v5012
        %v5014 = vextract.high.u32 %v5012
        %v5015 = vmul.u32.u64.compose %v5011, %v5006
        %v5016 = vextract.low.u32 %v5015
        %v5017 = vextract.high.u32 %v5015
        %v5018 = vmul.u32 %v5011, %v5002
        %v5019 = vadd.s32 %v5014, %v5016
        %vm5020 = vc.u32 %v5014, %v5016
        %v5021 = vadd.s32 %v5017, 1
        %v5022 = vsel %vm5020, %v5021, %v5017
        %v5023 = vadd.s32 %v5018, %v5022
        %v5024 = vadd.s32 %v5023, 536870912
        %v5025 = vshrl.u32 %v5024, 30
        %v5026 = vshll.u32 %v5025, 30
        %v5027 = vsub.s32 %v5023, %v5026
        %vm5028 = vcmp.lt.s32.totalorder %v5027, 0
        %v5029 = vsub.s32 0, %v5027
        %v5030 = vsel %vm5028, %v5029, %v5027
        %v5031 = vclz %v5030
        %v5032 = vsub.s32 %v5031, 2
        %vm5033 = vcmp.gt.s32.totalorder 0, %v5032
        %v5034 = vsel %vm5033, 0, %v5032
        %v5035 = vsub.s32 32, %v5034
        %v5036 = vshll.u32 %v5027, %v5034
        %v5037 = vshrl.u32 %v5019, %v5035
        %v5038 = vor.u32 %v5036, %v5037
        %v5039 = vsub.s32 4294967266, %v5034
        %v5040 = vadd.s32 %v5039, 127
        %v5041 = vshll.u32 %v5040, 23
        %v5042 = vor.u32 4788187, %v5041
        %v5043 = vand.u32 2147483647, %v5042
        %v5045 = vcvt.s32.f32 %v5038
        %v5046 = vmul.f32 %v5045, %v5043
        %v5047 = vxor.u32 %v5046, 2147483648
        %v5048 = vsel %vm4965, %v5047, %v5046
        %v5049 = vsub.s32 4, %v5025
        %v5050 = vsel %vm4965, %v5049, %v5025
        %v5051 = vsel %vm4964, %v4181, %v5048
        %v5052 = vsel %vm4964, 0, %v5050
        %v5053 = vcosq.f32.pop %v5051
        %v5054 = vsinq.f32.pop %v5051
        %vm5055 = vweird.f32 %v4181
        %v5056 = vadd.s32 %v5052, 3
        %v5057 = vand.u32 %v5056, 3
        %vm5058 = vcmp.lt.s32.totalorder %v5057, 2
        %vm5059 = vcmp.eq.s32.totalorder %v5057, 0
        %v5060 = vxor.u32 %v5054, 2147483648
        %v5061 = vsel %vm5059, %v5053, %v5060
        %vm5062 = vcmp.eq.s32.totalorder %v5057, 2
        %v5063 = vxor.u32 %v5053, 2147483648
        %v5064 = vsel %vm5062, %v5063, %v5054
        %v5065 = vsel %vm5058, %v5061, %v5064
        %v5066 = vsel %vm5055, nan, %v5065
        %v5067 = vand.u32 2147483647, %v4256
        %vm5068 = vcmp.le.f32.partialorder %v5067, 0.7853982
        %vm5069 = vcmp.lt.s32.totalorder %v4256, 0
        %v5070 = vand.u32 %v4256, 2139095040
        %v5071 = vshrl.u32 %v5070, 23
        %v5072 = vsub.s32 %v5071, 127
        %v5073 = vand.u32 2147483647, %v4256
        %v5074 = vand.u32 %v5073, 8388607
        %v5075 = vor.u32 %v5074, 8388608
        %v5076 = vsub.s32 0, %v5075
        %v5077 = vadd.s32 %v5072, 1
        %vm5078 = vcmp.gt.s32.totalorder %v5077, 0
        %v5079 = vsel %vm5078, %v5077, 0
        %v5080 = vshrl.u32 %v5079, 5
        %v5081 = vand.u32 %v5079, 31
        %v5082 = vsub.s32 32, %v5081
        %v5083 = vshrl.u32 683565275, %v5082
        %v5084 = vshll.u32 683565275, %v5081
        %v5085 = vshrl.u32 2475754826, %v5082
        %v5086 = vor.u32 %v5084, %v5085
        %v5087 = vshll.u32 2475754826, %v5081
        %v5088 = vshrl.u32 2131351028, %v5082
        %v5089 = vor.u32 %v5087, %v5088
        %v5090 = vshll.u32 2131351028, %v5081
        %v5091 = vshrl.u32 2102212464, %v5082
        %v5092 = vor.u32 %v5090, %v5091
        %v5093 = vshll.u32 2102212464, %v5081
        %v5094 = vshrl.u32 920167782, %v5082
        %v5095 = vor.u32 %v5093, %v5094
        %v5096 = vshll.u32 920167782, %v5081
        %v5097 = vshrl.u32 1326507024, %v5082
        %v5098 = vor.u32 %v5096, %v5097
        %vm5099 = vcmp.lt.s32.totalorder %v5080, 1
        %vm5100 = vcmp.lt.s32.totalorder %v5080, 2
        %vm5101 = vcmp.lt.s32.totalorder %v5080, 3
        %vm5102 = vcmp.lt.s32.totalorder %v5080, 4
        %v5103 = vsel %vm5099, %v5083, %v5086
        %v5104 = vsel %vm5102, %v5092, 2102212464
        %v5105 = vsel %vm5101, %v5089, %v5104
        %v5106 = vsel %vm5100, %v5103, %v5105
        %v5107 = vsel %vm5099, %v5086, %v5089
        %v5108 = vsel %vm5102, %v5095, 920167782
        %v5109 = vsel %vm5101, %v5092, %v5108
        %v5110 = vsel %vm5100, %v5107, %v5109
        %v5111 = vsel %vm5099, %v5089, %v5092
        %v5112 = vsel %vm5102, %v5098, 1326507024
        %v5113 = vsel %vm5101, %v5095, %v5112
        %v5114 = vsel %vm5100, %v5111, %v5113
        %v5115 = vshll.u32 %v5075, 8
        %v5116 = vmul.u32.u64.compose %v5115, %v5114
        %v5117 = vextract.low.u32 %v5116
        %v5118 = vextract.high.u32 %v5116
        %v5119 = vmul.u32.u64.compose %v5115, %v5110
        %v5120 = vextract.low.u32 %v5119
        %v5121 = vextract.high.u32 %v5119
        %v5122 = vmul.u32 %v5115, %v5106
        %v5123 = vadd.s32 %v5118, %v5120
        %vm5124 = vc.u32 %v5118, %v5120
        %v5125 = vadd.s32 %v5121, 1
        %v5126 = vsel %vm5124, %v5125, %v5121
        %v5127 = vadd.s32 %v5122, %v5126
        %v5128 = vadd.s32 %v5127, 536870912
        %v5129 = vshrl.u32 %v5128, 30
        %v5130 = vshll.u32 %v5129, 30
        %v5131 = vsub.s32 %v5127, %v5130
        %vm5132 = vcmp.lt.s32.totalorder %v5131, 0
        %v5133 = vsub.s32 0, %v5131
        %v5134 = vsel %vm5132, %v5133, %v5131
        %v5135 = vclz %v5134
        %v5136 = vsub.s32 %v5135, 2
        %vm5137 = vcmp.gt.s32.totalorder 0, %v5136
        %v5138 = vsel %vm5137, 0, %v5136
        %v5139 = vsub.s32 32, %v5138
        %v5140 = vshll.u32 %v5131, %v5138
        %v5141 = vshrl.u32 %v5123, %v5139
        %v5142 = vor.u32 %v5140, %v5141
        %v5143 = vsub.s32 4294967266, %v5138
        %v5144 = vadd.s32 %v5143, 127
        %v5145 = vshll.u32 %v5144, 23
        %v5146 = vor.u32 4788187, %v5145
        %v5147 = vand.u32 2147483647, %v5146
        %v5149 = vcvt.s32.f32 %v5142
        %v5150 = vmul.f32 %v5149, %v5147
        %v5151 = vxor.u32 %v5150, 2147483648
        %v5152 = vsel %vm5069, %v5151, %v5150
        %v5153 = vsub.s32 4, %v5129
        %v5154 = vsel %vm5069, %v5153, %v5129
        %v5155 = vsel %vm5068, %v4256, %v5152
        %v5156 = vsel %vm5068, 0, %v5154
        %v5157 = vcosq.f32.pop %v5155
        %v5158 = vsinq.f32.pop %v5155
        %vm5159 = vweird.f32 %v4256
        %v5160 = vadd.s32 %v5156, 3
        %v5161 = vand.u32 %v5160, 3
        %vm5162 = vcmp.lt.s32.totalorder %v5161, 2
        %vm5163 = vcmp.eq.s32.totalorder %v5161, 0
        %v5164 = vxor.u32 %v5158, 2147483648
        %v5165 = vsel %vm5163, %v5157, %v5164
        %vm5166 = vcmp.eq.s32.totalorder %v5161, 2
        %v5167 = vxor.u32 %v5157, 2147483648
        %v5168 = vsel %vm5166, %v5167, %v5158
        %v5169 = vsel %vm5162, %v5165, %v5168
        %v5170 = vsel %vm5159, nan, %v5169
        %v5171 = vand.u32 2147483647, %v4258
        %vm5172 = vcmp.le.f32.partialorder %v5171, 0.7853982
        %vm5173 = vcmp.lt.s32.totalorder %v4258, 0
        %v5174 = vand.u32 %v4258, 2139095040
        %v5175 = vshrl.u32 %v5174, 23
        %v5176 = vsub.s32 %v5175, 127
        %v5177 = vand.u32 2147483647, %v4258
        %v5178 = vand.u32 %v5177, 8388607
        %v5179 = vor.u32 %v5178, 8388608
        %v5180 = vsub.s32 0, %v5179
        %v5181 = vadd.s32 %v5176, 1
        %vm5182 = vcmp.gt.s32.totalorder %v5181, 0
        %v5183 = vsel %vm5182, %v5181, 0
        %v5184 = vshrl.u32 %v5183, 5
        %v5185 = vand.u32 %v5183, 31
        %v5186 = vsub.s32 32, %v5185
        %v5187 = vshrl.u32 683565275, %v5186
        %v5188 = vshll.u32 683565275, %v5185
        %v5189 = vshrl.u32 2475754826, %v5186
        %v5190 = vor.u32 %v5188, %v5189
        %v5191 = vshll.u32 2475754826, %v5185
        %v5192 = vshrl.u32 2131351028, %v5186
        %v5193 = vor.u32 %v5191, %v5192
        %v5194 = vshll.u32 2131351028, %v5185
        %v5195 = vshrl.u32 2102212464, %v5186
        %v5196 = vor.u32 %v5194, %v5195
        %v5197 = vshll.u32 2102212464, %v5185
        %v5198 = vshrl.u32 920167782, %v5186
        %v5199 = vor.u32 %v5197, %v5198
        %v5200 = vshll.u32 920167782, %v5185
        %v5201 = vshrl.u32 1326507024, %v5186
        %v5202 = vor.u32 %v5200, %v5201
        %vm5203 = vcmp.lt.s32.totalorder %v5184, 1
        %vm5204 = vcmp.lt.s32.totalorder %v5184, 2
        %vm5205 = vcmp.lt.s32.totalorder %v5184, 3
        %vm5206 = vcmp.lt.s32.totalorder %v5184, 4
        %v5207 = vsel %vm5203, %v5187, %v5190
        %v5208 = vsel %vm5206, %v5196, 2102212464
        %v5209 = vsel %vm5205, %v5193, %v5208
        %v5210 = vsel %vm5204, %v5207, %v5209
        %v5211 = vsel %vm5203, %v5190, %v5193
        %v5212 = vsel %vm5206, %v5199, 920167782
        %v5213 = vsel %vm5205, %v5196, %v5212
        %v5214 = vsel %vm5204, %v5211, %v5213
        %v5215 = vsel %vm5203, %v5193, %v5196
        %v5216 = vsel %vm5206, %v5202, 1326507024
        %v5217 = vsel %vm5205, %v5199, %v5216
        %v5218 = vsel %vm5204, %v5215, %v5217
        %v5219 = vshll.u32 %v5179, 8
        %v5220 = vmul.u32.u64.compose %v5219, %v5218
        %v5221 = vextract.low.u32 %v5220
        %v5222 = vextract.high.u32 %v5220
        %v5223 = vmul.u32.u64.compose %v5219, %v5214
        %v5224 = vextract.low.u32 %v5223
        %v5225 = vextract.high.u32 %v5223
        %v5226 = vmul.u32 %v5219, %v5210
        %v5227 = vadd.s32 %v5222, %v5224
        %vm5228 = vc.u32 %v5222, %v5224
        %v5229 = vadd.s32 %v5225, 1
        %v5230 = vsel %vm5228, %v5229, %v5225
        %v5231 = vadd.s32 %v5226, %v5230
        %v5232 = vadd.s32 %v5231, 536870912
        %v5233 = vshrl.u32 %v5232, 30
        %v5234 = vshll.u32 %v5233, 30
        %v5235 = vsub.s32 %v5231, %v5234
        %vm5236 = vcmp.lt.s32.totalorder %v5235, 0
        %v5237 = vsub.s32 0, %v5235
        %v5238 = vsel %vm5236, %v5237, %v5235
        %v5239 = vclz %v5238
        %v5240 = vsub.s32 %v5239, 2
        %vm5241 = vcmp.gt.s32.totalorder 0, %v5240
        %v5242 = vsel %vm5241, 0, %v5240
        %v5243 = vsub.s32 32, %v5242
        %v5244 = vshll.u32 %v5235, %v5242
        %v5245 = vshrl.u32 %v5227, %v5243
        %v5246 = vor.u32 %v5244, %v5245
        %v5247 = vsub.s32 4294967266, %v5242
        %v5248 = vadd.s32 %v5247, 127
        %v5249 = vshll.u32 %v5248, 23
        %v5250 = vor.u32 4788187, %v5249
        %v5251 = vand.u32 2147483647, %v5250
        %v5253 = vcvt.s32.f32 %v5246
        %v5254 = vmul.f32 %v5253, %v5251
        %v5255 = vxor.u32 %v5254, 2147483648
        %v5256 = vsel %vm5173, %v5255, %v5254
        %v5257 = vsub.s32 4, %v5233
        %v5258 = vsel %vm5173, %v5257, %v5233
        %v5259 = vsel %vm5172, %v4258, %v5256
        %v5260 = vsel %vm5172, 0, %v5258
        %v5261 = vcosq.f32.pop %v5259
        %v5262 = vsinq.f32.pop %v5259
        %vm5263 = vweird.f32 %v4258
        %v5264 = vadd.s32 %v5260, 3
        %v5265 = vand.u32 %v5264, 3
        %vm5266 = vcmp.lt.s32.totalorder %v5265, 2
        %vm5267 = vcmp.eq.s32.totalorder %v5265, 0
        %v5268 = vxor.u32 %v5262, 2147483648
        %v5269 = vsel %vm5267, %v5261, %v5268
        %vm5270 = vcmp.eq.s32.totalorder %v5265, 2
        %v5271 = vxor.u32 %v5261, 2147483648
        %v5272 = vsel %vm5270, %v5271, %v5262
        %v5273 = vsel %vm5266, %v5269, %v5272
        %v5274 = vsel %vm5263, nan, %v5273
        %v5275 = vand.u32 2147483647, %v4333
        %vm5276 = vcmp.le.f32.partialorder %v5275, 0.7853982
        %vm5277 = vcmp.lt.s32.totalorder %v4333, 0
        %v5278 = vand.u32 %v4333, 2139095040
        %v5279 = vshrl.u32 %v5278, 23
        %v5280 = vsub.s32 %v5279, 127
        %v5281 = vand.u32 2147483647, %v4333
        %v5282 = vand.u32 %v5281, 8388607
        %v5283 = vor.u32 %v5282, 8388608
        %v5284 = vsub.s32 0, %v5283
        %v5285 = vadd.s32 %v5280, 1
        %vm5286 = vcmp.gt.s32.totalorder %v5285, 0
        %v5287 = vsel %vm5286, %v5285, 0
        %v5288 = vshrl.u32 %v5287, 5
        %v5289 = vand.u32 %v5287, 31
        %v5290 = vsub.s32 32, %v5289
        %v5291 = vshrl.u32 683565275, %v5290
        %v5292 = vshll.u32 683565275, %v5289
        %v5293 = vshrl.u32 2475754826, %v5290
        %v5294 = vor.u32 %v5292, %v5293
        %v5295 = vshll.u32 2475754826, %v5289
        %v5296 = vshrl.u32 2131351028, %v5290
        %v5297 = vor.u32 %v5295, %v5296
        %v5298 = vshll.u32 2131351028, %v5289
        %v5299 = vshrl.u32 2102212464, %v5290
        %v5300 = vor.u32 %v5298, %v5299
        %v5301 = vshll.u32 2102212464, %v5289
        %v5302 = vshrl.u32 920167782, %v5290
        %v5303 = vor.u32 %v5301, %v5302
        %v5304 = vshll.u32 920167782, %v5289
        %v5305 = vshrl.u32 1326507024, %v5290
        %v5306 = vor.u32 %v5304, %v5305
        %vm5307 = vcmp.lt.s32.totalorder %v5288, 1
        %vm5308 = vcmp.lt.s32.totalorder %v5288, 2
        %vm5309 = vcmp.lt.s32.totalorder %v5288, 3
        %vm5310 = vcmp.lt.s32.totalorder %v5288, 4
        %v5311 = vsel %vm5307, %v5291, %v5294
        %v5312 = vsel %vm5310, %v5300, 2102212464
        %v5313 = vsel %vm5309, %v5297, %v5312
        %v5314 = vsel %vm5308, %v5311, %v5313
        %v5315 = vsel %vm5307, %v5294, %v5297
        %v5316 = vsel %vm5310, %v5303, 920167782
        %v5317 = vsel %vm5309, %v5300, %v5316
        %v5318 = vsel %vm5308, %v5315, %v5317
        %v5319 = vsel %vm5307, %v5297, %v5300
        %v5320 = vsel %vm5310, %v5306, 1326507024
        %v5321 = vsel %vm5309, %v5303, %v5320
        %v5322 = vsel %vm5308, %v5319, %v5321
        %v5323 = vshll.u32 %v5283, 8
        %v5324 = vmul.u32.u64.compose %v5323, %v5322
        %v5325 = vextract.low.u32 %v5324
        %v5326 = vextract.high.u32 %v5324
        %v5327 = vmul.u32.u64.compose %v5323, %v5318
        %v5328 = vextract.low.u32 %v5327
        %v5329 = vextract.high.u32 %v5327
        %v5330 = vmul.u32 %v5323, %v5314
        %v5331 = vadd.s32 %v5326, %v5328
        %vm5332 = vc.u32 %v5326, %v5328
        %v5333 = vadd.s32 %v5329, 1
        %v5334 = vsel %vm5332, %v5333, %v5329
        %v5335 = vadd.s32 %v5330, %v5334
        %v5336 = vadd.s32 %v5335, 536870912
        %v5337 = vshrl.u32 %v5336, 30
        %v5338 = vshll.u32 %v5337, 30
        %v5339 = vsub.s32 %v5335, %v5338
        %vm5340 = vcmp.lt.s32.totalorder %v5339, 0
        %v5341 = vsub.s32 0, %v5339
        %v5342 = vsel %vm5340, %v5341, %v5339
        %v5343 = vclz %v5342
        %v5344 = vsub.s32 %v5343, 2
        %vm5345 = vcmp.gt.s32.totalorder 0, %v5344
        %v5346 = vsel %vm5345, 0, %v5344
        %v5347 = vsub.s32 32, %v5346
        %v5348 = vshll.u32 %v5339, %v5346
        %v5349 = vshrl.u32 %v5331, %v5347
        %v5350 = vor.u32 %v5348, %v5349
        %v5351 = vsub.s32 4294967266, %v5346
        %v5352 = vadd.s32 %v5351, 127
        %v5353 = vshll.u32 %v5352, 23
        %v5354 = vor.u32 4788187, %v5353
        %v5355 = vand.u32 2147483647, %v5354
        %v5357 = vcvt.s32.f32 %v5350
        %v5358 = vmul.f32 %v5357, %v5355
        %v5359 = vxor.u32 %v5358, 2147483648
        %v5360 = vsel %vm5277, %v5359, %v5358
        %v5361 = vsub.s32 4, %v5337
        %v5362 = vsel %vm5277, %v5361, %v5337
        %v5363 = vsel %vm5276, %v4333, %v5360
        %v5364 = vsel %vm5276, 0, %v5362
        %v5365 = vcosq.f32.pop %v5363
        %v5366 = vsinq.f32.pop %v5363
        %vm5367 = vweird.f32 %v4333
        %v5368 = vadd.s32 %v5364, 3
        %v5369 = vand.u32 %v5368, 3
        %vm5370 = vcmp.lt.s32.totalorder %v5369, 2
        %vm5371 = vcmp.eq.s32.totalorder %v5369, 0
        %v5372 = vxor.u32 %v5366, 2147483648
        %v5373 = vsel %vm5371, %v5365, %v5372
        %vm5374 = vcmp.eq.s32.totalorder %v5369, 2
        %v5375 = vxor.u32 %v5365, 2147483648
        %v5376 = vsel %vm5374, %v5375, %v5366
        %v5377 = vsel %vm5370, %v5373, %v5376
        %v5378 = vsel %vm5367, nan, %v5377
        %v5379 = vand.u32 2147483647, %v4335
        %vm5380 = vcmp.le.f32.partialorder %v5379, 0.7853982
        %vm5381 = vcmp.lt.s32.totalorder %v4335, 0
        %v5382 = vand.u32 %v4335, 2139095040
        %v5383 = vshrl.u32 %v5382, 23
        %v5384 = vsub.s32 %v5383, 127
        %v5385 = vand.u32 2147483647, %v4335
        %v5386 = vand.u32 %v5385, 8388607
        %v5387 = vor.u32 %v5386, 8388608
        %v5388 = vsub.s32 0, %v5387
        %v5389 = vadd.s32 %v5384, 1
        %vm5390 = vcmp.gt.s32.totalorder %v5389, 0
        %v5391 = vsel %vm5390, %v5389, 0
        %v5392 = vshrl.u32 %v5391, 5
        %v5393 = vand.u32 %v5391, 31
        %v5394 = vsub.s32 32, %v5393
        %v5395 = vshrl.u32 683565275, %v5394
        %v5396 = vshll.u32 683565275, %v5393
        %v5397 = vshrl.u32 2475754826, %v5394
        %v5398 = vor.u32 %v5396, %v5397
        %v5399 = vshll.u32 2475754826, %v5393
        %v5400 = vshrl.u32 2131351028, %v5394
        %v5401 = vor.u32 %v5399, %v5400
        %v5402 = vshll.u32 2131351028, %v5393
        %v5403 = vshrl.u32 2102212464, %v5394
        %v5404 = vor.u32 %v5402, %v5403
        %v5405 = vshll.u32 2102212464, %v5393
        %v5406 = vshrl.u32 920167782, %v5394
        %v5407 = vor.u32 %v5405, %v5406
        %v5408 = vshll.u32 920167782, %v5393
        %v5409 = vshrl.u32 1326507024, %v5394
        %v5410 = vor.u32 %v5408, %v5409
        %vm5411 = vcmp.lt.s32.totalorder %v5392, 1
        %vm5412 = vcmp.lt.s32.totalorder %v5392, 2
        %vm5413 = vcmp.lt.s32.totalorder %v5392, 3
        %vm5414 = vcmp.lt.s32.totalorder %v5392, 4
        %v5415 = vsel %vm5411, %v5395, %v5398
        %v5416 = vsel %vm5414, %v5404, 2102212464
        %v5417 = vsel %vm5413, %v5401, %v5416
        %v5418 = vsel %vm5412, %v5415, %v5417
        %v5419 = vsel %vm5411, %v5398, %v5401
        %v5420 = vsel %vm5414, %v5407, 920167782
        %v5421 = vsel %vm5413, %v5404, %v5420
        %v5422 = vsel %vm5412, %v5419, %v5421
        %v5423 = vsel %vm5411, %v5401, %v5404
        %v5424 = vsel %vm5414, %v5410, 1326507024
        %v5425 = vsel %vm5413, %v5407, %v5424
        %v5426 = vsel %vm5412, %v5423, %v5425
        %v5427 = vshll.u32 %v5387, 8
        %v5428 = vmul.u32.u64.compose %v5427, %v5426
        %v5429 = vextract.low.u32 %v5428
        %v5430 = vextract.high.u32 %v5428
        %v5431 = vmul.u32.u64.compose %v5427, %v5422
        %v5432 = vextract.low.u32 %v5431
        %v5433 = vextract.high.u32 %v5431
        %v5434 = vmul.u32 %v5427, %v5418
        %v5435 = vadd.s32 %v5430, %v5432
        %vm5436 = vc.u32 %v5430, %v5432
        %v5437 = vadd.s32 %v5433, 1
        %v5438 = vsel %vm5436, %v5437, %v5433
        %v5439 = vadd.s32 %v5434, %v5438
        %v5440 = vadd.s32 %v5439, 536870912
        %v5441 = vshrl.u32 %v5440, 30
        %v5442 = vshll.u32 %v5441, 30
        %v5443 = vsub.s32 %v5439, %v5442
        %vm5444 = vcmp.lt.s32.totalorder %v5443, 0
        %v5445 = vsub.s32 0, %v5443
        %v5446 = vsel %vm5444, %v5445, %v5443
        %v5447 = vclz %v5446
        %v5448 = vsub.s32 %v5447, 2
        %vm5449 = vcmp.gt.s32.totalorder 0, %v5448
        %v5450 = vsel %vm5449, 0, %v5448
        %v5451 = vsub.s32 32, %v5450
        %v5452 = vshll.u32 %v5443, %v5450
        %v5453 = vshrl.u32 %v5435, %v5451
        %v5454 = vor.u32 %v5452, %v5453
        %v5455 = vsub.s32 4294967266, %v5450
        %v5456 = vadd.s32 %v5455, 127
        %v5457 = vshll.u32 %v5456, 23
        %v5458 = vor.u32 4788187, %v5457
        %v5459 = vand.u32 2147483647, %v5458
        %v5461 = vcvt.s32.f32 %v5454
        %v5462 = vmul.f32 %v5461, %v5459
        %v5463 = vxor.u32 %v5462, 2147483648
        %v5464 = vsel %vm5381, %v5463, %v5462
        %v5465 = vsub.s32 4, %v5441
        %v5466 = vsel %vm5381, %v5465, %v5441
        %v5467 = vsel %vm5380, %v4335, %v5464
        %v5468 = vsel %vm5380, 0, %v5466
        %v5469 = vcosq.f32.pop %v5467
        %v5470 = vsinq.f32.pop %v5467
        %vm5471 = vweird.f32 %v4335
        %v5472 = vadd.s32 %v5468, 3
        %v5473 = vand.u32 %v5472, 3
        %vm5474 = vcmp.lt.s32.totalorder %v5473, 2
        %vm5475 = vcmp.eq.s32.totalorder %v5473, 0
        %v5476 = vxor.u32 %v5470, 2147483648
        %v5477 = vsel %vm5475, %v5469, %v5476
        %vm5478 = vcmp.eq.s32.totalorder %v5473, 2
        %v5479 = vxor.u32 %v5469, 2147483648
        %v5480 = vsel %vm5478, %v5479, %v5470
        %v5481 = vsel %vm5474, %v5477, %v5480
        %v5482 = vsel %vm5471, nan, %v5481
        %v5483 = vand.u32 2147483647, %v4410
        %vm5484 = vcmp.le.f32.partialorder %v5483, 0.7853982
        %vm5485 = vcmp.lt.s32.totalorder %v4410, 0
        %v5486 = vand.u32 %v4410, 2139095040
        %v5487 = vshrl.u32 %v5486, 23
        %v5488 = vsub.s32 %v5487, 127
        %v5489 = vand.u32 2147483647, %v4410
        %v5490 = vand.u32 %v5489, 8388607
        %v5491 = vor.u32 %v5490, 8388608
        %v5492 = vsub.s32 0, %v5491
        %v5493 = vadd.s32 %v5488, 1
        %vm5494 = vcmp.gt.s32.totalorder %v5493, 0
        %v5495 = vsel %vm5494, %v5493, 0
        %v5496 = vshrl.u32 %v5495, 5
        %v5497 = vand.u32 %v5495, 31
        %v5498 = vsub.s32 32, %v5497
        %v5499 = vshrl.u32 683565275, %v5498
        %v5500 = vshll.u32 683565275, %v5497
        %v5501 = vshrl.u32 2475754826, %v5498
        %v5502 = vor.u32 %v5500, %v5501
        %v5503 = vshll.u32 2475754826, %v5497
        %v5504 = vshrl.u32 2131351028, %v5498
        %v5505 = vor.u32 %v5503, %v5504
        %v5506 = vshll.u32 2131351028, %v5497
        %v5507 = vshrl.u32 2102212464, %v5498
        %v5508 = vor.u32 %v5506, %v5507
        %v5509 = vshll.u32 2102212464, %v5497
        %v5510 = vshrl.u32 920167782, %v5498
        %v5511 = vor.u32 %v5509, %v5510
        %v5512 = vshll.u32 920167782, %v5497
        %v5513 = vshrl.u32 1326507024, %v5498
        %v5514 = vor.u32 %v5512, %v5513
        %vm5515 = vcmp.lt.s32.totalorder %v5496, 1
        %vm5516 = vcmp.lt.s32.totalorder %v5496, 2
        %vm5517 = vcmp.lt.s32.totalorder %v5496, 3
        %vm5518 = vcmp.lt.s32.totalorder %v5496, 4
        %v5519 = vsel %vm5515, %v5499, %v5502
        %v5520 = vsel %vm5518, %v5508, 2102212464
        %v5521 = vsel %vm5517, %v5505, %v5520
        %v5522 = vsel %vm5516, %v5519, %v5521
        %v5523 = vsel %vm5515, %v5502, %v5505
        %v5524 = vsel %vm5518, %v5511, 920167782
        %v5525 = vsel %vm5517, %v5508, %v5524
        %v5526 = vsel %vm5516, %v5523, %v5525
        %v5527 = vsel %vm5515, %v5505, %v5508
        %v5528 = vsel %vm5518, %v5514, 1326507024
        %v5529 = vsel %vm5517, %v5511, %v5528
        %v5530 = vsel %vm5516, %v5527, %v5529
        %v5531 = vshll.u32 %v5491, 8
        %v5532 = vmul.u32.u64.compose %v5531, %v5530
        %v5533 = vextract.low.u32 %v5532
        %v5534 = vextract.high.u32 %v5532
        %v5535 = vmul.u32.u64.compose %v5531, %v5526
        %v5536 = vextract.low.u32 %v5535
        %v5537 = vextract.high.u32 %v5535
        %v5538 = vmul.u32 %v5531, %v5522
        %v5539 = vadd.s32 %v5534, %v5536
        %vm5540 = vc.u32 %v5534, %v5536
        %v5541 = vadd.s32 %v5537, 1
        %v5542 = vsel %vm5540, %v5541, %v5537
        %v5543 = vadd.s32 %v5538, %v5542
        %v5544 = vadd.s32 %v5543, 536870912
        %v5545 = vshrl.u32 %v5544, 30
        %v5546 = vshll.u32 %v5545, 30
        %v5547 = vsub.s32 %v5543, %v5546
        %vm5548 = vcmp.lt.s32.totalorder %v5547, 0
        %v5549 = vsub.s32 0, %v5547
        %v5550 = vsel %vm5548, %v5549, %v5547
        %v5551 = vclz %v5550
        %v5552 = vsub.s32 %v5551, 2
        %vm5553 = vcmp.gt.s32.totalorder 0, %v5552
        %v5554 = vsel %vm5553, 0, %v5552
        %v5555 = vsub.s32 32, %v5554
        %v5556 = vshll.u32 %v5547, %v5554
        %v5557 = vshrl.u32 %v5539, %v5555
        %v5558 = vor.u32 %v5556, %v5557
        %v5559 = vsub.s32 4294967266, %v5554
        %v5560 = vadd.s32 %v5559, 127
        %v5561 = vshll.u32 %v5560, 23
        %v5562 = vor.u32 4788187, %v5561
        %v5563 = vand.u32 2147483647, %v5562
        %v5565 = vcvt.s32.f32 %v5558
        %v5566 = vmul.f32 %v5565, %v5563
        %v5567 = vxor.u32 %v5566, 2147483648
        %v5568 = vsel %vm5485, %v5567, %v5566
        %v5569 = vsub.s32 4, %v5545
        %v5570 = vsel %vm5485, %v5569, %v5545
        %v5571 = vsel %vm5484, %v4410, %v5568
        %v5572 = vsel %vm5484, 0, %v5570
        %v5573 = vcosq.f32.pop %v5571
        %v5574 = vsinq.f32.pop %v5571
        %vm5575 = vweird.f32 %v4410
        %v5576 = vadd.s32 %v5572, 3
        %v5577 = vand.u32 %v5576, 3
        %vm5578 = vcmp.lt.s32.totalorder %v5577, 2
        %vm5579 = vcmp.eq.s32.totalorder %v5577, 0
        %v5580 = vxor.u32 %v5574, 2147483648
        %v5581 = vsel %vm5579, %v5573, %v5580
        %vm5582 = vcmp.eq.s32.totalorder %v5577, 2
        %v5583 = vxor.u32 %v5573, 2147483648
        %v5584 = vsel %vm5582, %v5583, %v5574
        %v5585 = vsel %vm5578, %v5581, %v5584
        %v5586 = vsel %vm5575, nan, %v5585
        %v5587 = vand.u32 2147483647, %v4412
        %vm5588 = vcmp.le.f32.partialorder %v5587, 0.7853982
        %vm5589 = vcmp.lt.s32.totalorder %v4412, 0
        %v5590 = vand.u32 %v4412, 2139095040
        %v5591 = vshrl.u32 %v5590, 23
        %v5592 = vsub.s32 %v5591, 127
        %v5593 = vand.u32 2147483647, %v4412
        %v5594 = vand.u32 %v5593, 8388607
        %v5595 = vor.u32 %v5594, 8388608
        %v5596 = vsub.s32 0, %v5595
        %v5597 = vadd.s32 %v5592, 1
        %vm5598 = vcmp.gt.s32.totalorder %v5597, 0
        %v5599 = vsel %vm5598, %v5597, 0
        %v5600 = vshrl.u32 %v5599, 5
        %v5601 = vand.u32 %v5599, 31
        %v5602 = vsub.s32 32, %v5601
        %v5603 = vshrl.u32 683565275, %v5602
        %v5604 = vshll.u32 683565275, %v5601
        %v5605 = vshrl.u32 2475754826, %v5602
        %v5606 = vor.u32 %v5604, %v5605
        %v5607 = vshll.u32 2475754826, %v5601
        %v5608 = vshrl.u32 2131351028, %v5602
        %v5609 = vor.u32 %v5607, %v5608
        %v5610 = vshll.u32 2131351028, %v5601
        %v5611 = vshrl.u32 2102212464, %v5602
        %v5612 = vor.u32 %v5610, %v5611
        %v5613 = vshll.u32 2102212464, %v5601
        %v5614 = vshrl.u32 920167782, %v5602
        %v5615 = vor.u32 %v5613, %v5614
        %v5616 = vshll.u32 920167782, %v5601
        %v5617 = vshrl.u32 1326507024, %v5602
        %v5618 = vor.u32 %v5616, %v5617
        %vm5619 = vcmp.lt.s32.totalorder %v5600, 1
        %vm5620 = vcmp.lt.s32.totalorder %v5600, 2
        %vm5621 = vcmp.lt.s32.totalorder %v5600, 3
        %vm5622 = vcmp.lt.s32.totalorder %v5600, 4
        %v5623 = vsel %vm5619, %v5603, %v5606
        %v5624 = vsel %vm5622, %v5612, 2102212464
        %v5625 = vsel %vm5621, %v5609, %v5624
        %v5626 = vsel %vm5620, %v5623, %v5625
        %v5627 = vsel %vm5619, %v5606, %v5609
        %v5628 = vsel %vm5622, %v5615, 920167782
        %v5629 = vsel %vm5621, %v5612, %v5628
        %v5630 = vsel %vm5620, %v5627, %v5629
        %v5631 = vsel %vm5619, %v5609, %v5612
        %v5632 = vsel %vm5622, %v5618, 1326507024
        %v5633 = vsel %vm5621, %v5615, %v5632
        %v5634 = vsel %vm5620, %v5631, %v5633
        %v5635 = vshll.u32 %v5595, 8
        %v5636 = vmul.u32.u64.compose %v5635, %v5634
        %v5637 = vextract.low.u32 %v5636
        %v5638 = vextract.high.u32 %v5636
        %v5639 = vmul.u32.u64.compose %v5635, %v5630
        %v5640 = vextract.low.u32 %v5639
        %v5641 = vextract.high.u32 %v5639
        %v5642 = vmul.u32 %v5635, %v5626
        %v5643 = vadd.s32 %v5638, %v5640
        %vm5644 = vc.u32 %v5638, %v5640
        %v5645 = vadd.s32 %v5641, 1
        %v5646 = vsel %vm5644, %v5645, %v5641
        %v5647 = vadd.s32 %v5642, %v5646
        %v5648 = vadd.s32 %v5647, 536870912
        %v5649 = vshrl.u32 %v5648, 30
        %v5650 = vshll.u32 %v5649, 30
        %v5651 = vsub.s32 %v5647, %v5650
        %vm5652 = vcmp.lt.s32.totalorder %v5651, 0
        %v5653 = vsub.s32 0, %v5651
        %v5654 = vsel %vm5652, %v5653, %v5651
        %v5655 = vclz %v5654
        %v5656 = vsub.s32 %v5655, 2
        %vm5657 = vcmp.gt.s32.totalorder 0, %v5656
        %v5658 = vsel %vm5657, 0, %v5656
        %v5659 = vsub.s32 32, %v5658
        %v5660 = vshll.u32 %v5651, %v5658
        %v5661 = vshrl.u32 %v5643, %v5659
        %v5662 = vor.u32 %v5660, %v5661
        %v5663 = vsub.s32 4294967266, %v5658
        %v5664 = vadd.s32 %v5663, 127
        %v5665 = vshll.u32 %v5664, 23
        %v5666 = vor.u32 4788187, %v5665
        %v5667 = vand.u32 2147483647, %v5666
        %v5669 = vcvt.s32.f32 %v5662
        %v5670 = vmul.f32 %v5669, %v5667
        %v5671 = vxor.u32 %v5670, 2147483648
        %v5672 = vsel %vm5589, %v5671, %v5670
        %v5673 = vsub.s32 4, %v5649
        %v5674 = vsel %vm5589, %v5673, %v5649
        %v5675 = vsel %vm5588, %v4412, %v5672
        %v5676 = vsel %vm5588, 0, %v5674
        %v5677 = vcosq.f32.pop %v5675
        %v5678 = vsinq.f32.pop %v5675
        %vm5679 = vweird.f32 %v4412
        %v5680 = vadd.s32 %v5676, 3
        %v5681 = vand.u32 %v5680, 3
        %vm5682 = vcmp.lt.s32.totalorder %v5681, 2
        %vm5683 = vcmp.eq.s32.totalorder %v5681, 0
        %v5684 = vxor.u32 %v5678, 2147483648
        %v5685 = vsel %vm5683, %v5677, %v5684
        %vm5686 = vcmp.eq.s32.totalorder %v5681, 2
        %v5687 = vxor.u32 %v5677, 2147483648
        %v5688 = vsel %vm5686, %v5687, %v5678
        %v5689 = vsel %vm5682, %v5685, %v5688
        %v5690 = vsel %vm5679, nan, %v5689
        %v5691 = vand.u32 2147483647, %v4487
        %vm5692 = vcmp.le.f32.partialorder %v5691, 0.7853982
        %vm5693 = vcmp.lt.s32.totalorder %v4487, 0
        %v5694 = vand.u32 %v4487, 2139095040
        %v5695 = vshrl.u32 %v5694, 23
        %v5696 = vsub.s32 %v5695, 127
        %v5697 = vand.u32 2147483647, %v4487
        %v5698 = vand.u32 %v5697, 8388607
        %v5699 = vor.u32 %v5698, 8388608
        %v5700 = vsub.s32 0, %v5699
        %v5701 = vadd.s32 %v5696, 1
        %vm5702 = vcmp.gt.s32.totalorder %v5701, 0
        %v5703 = vsel %vm5702, %v5701, 0
        %v5704 = vshrl.u32 %v5703, 5
        %v5705 = vand.u32 %v5703, 31
        %v5706 = vsub.s32 32, %v5705
        %v5707 = vshrl.u32 683565275, %v5706
        %v5708 = vshll.u32 683565275, %v5705
        %v5709 = vshrl.u32 2475754826, %v5706
        %v5710 = vor.u32 %v5708, %v5709
        %v5711 = vshll.u32 2475754826, %v5705
        %v5712 = vshrl.u32 2131351028, %v5706
        %v5713 = vor.u32 %v5711, %v5712
        %v5714 = vshll.u32 2131351028, %v5705
        %v5715 = vshrl.u32 2102212464, %v5706
        %v5716 = vor.u32 %v5714, %v5715
        %v5717 = vshll.u32 2102212464, %v5705
        %v5718 = vshrl.u32 920167782, %v5706
        %v5719 = vor.u32 %v5717, %v5718
        %v5720 = vshll.u32 920167782, %v5705
        %v5721 = vshrl.u32 1326507024, %v5706
        %v5722 = vor.u32 %v5720, %v5721
        %vm5723 = vcmp.lt.s32.totalorder %v5704, 1
        %vm5724 = vcmp.lt.s32.totalorder %v5704, 2
        %vm5725 = vcmp.lt.s32.totalorder %v5704, 3
        %vm5726 = vcmp.lt.s32.totalorder %v5704, 4
        %v5727 = vsel %vm5723, %v5707, %v5710
        %v5728 = vsel %vm5726, %v5716, 2102212464
        %v5729 = vsel %vm5725, %v5713, %v5728
        %v5730 = vsel %vm5724, %v5727, %v5729
        %v5731 = vsel %vm5723, %v5710, %v5713
        %v5732 = vsel %vm5726, %v5719, 920167782
        %v5733 = vsel %vm5725, %v5716, %v5732
        %v5734 = vsel %vm5724, %v5731, %v5733
        %v5735 = vsel %vm5723, %v5713, %v5716
        %v5736 = vsel %vm5726, %v5722, 1326507024
        %v5737 = vsel %vm5725, %v5719, %v5736
        %v5738 = vsel %vm5724, %v5735, %v5737
        %v5739 = vshll.u32 %v5699, 8
        %v5740 = vmul.u32.u64.compose %v5739, %v5738
        %v5741 = vextract.low.u32 %v5740
        %v5742 = vextract.high.u32 %v5740
        %v5743 = vmul.u32.u64.compose %v5739, %v5734
        %v5744 = vextract.low.u32 %v5743
        %v5745 = vextract.high.u32 %v5743
        %v5746 = vmul.u32 %v5739, %v5730
        %v5747 = vadd.s32 %v5742, %v5744
        %vm5748 = vc.u32 %v5742, %v5744
        %v5749 = vadd.s32 %v5745, 1
        %v5750 = vsel %vm5748, %v5749, %v5745
        %v5751 = vadd.s32 %v5746, %v5750
        %v5752 = vadd.s32 %v5751, 536870912
        %v5753 = vshrl.u32 %v5752, 30
        %v5754 = vshll.u32 %v5753, 30
        %v5755 = vsub.s32 %v5751, %v5754
        %vm5756 = vcmp.lt.s32.totalorder %v5755, 0
        %v5757 = vsub.s32 0, %v5755
        %v5758 = vsel %vm5756, %v5757, %v5755
        %v5759 = vclz %v5758
        %v5760 = vsub.s32 %v5759, 2
        %vm5761 = vcmp.gt.s32.totalorder 0, %v5760
        %v5762 = vsel %vm5761, 0, %v5760
        %v5763 = vsub.s32 32, %v5762
        %v5764 = vshll.u32 %v5755, %v5762
        %v5765 = vshrl.u32 %v5747, %v5763
        %v5766 = vor.u32 %v5764, %v5765
        %v5767 = vsub.s32 4294967266, %v5762
        %v5768 = vadd.s32 %v5767, 127
        %v5769 = vshll.u32 %v5768, 23
        %v5770 = vor.u32 4788187, %v5769
        %v5771 = vand.u32 2147483647, %v5770
        %v5773 = vcvt.s32.f32 %v5766
        %v5774 = vmul.f32 %v5773, %v5771
        %v5775 = vxor.u32 %v5774, 2147483648
        %v5776 = vsel %vm5693, %v5775, %v5774
        %v5777 = vsub.s32 4, %v5753
        %v5778 = vsel %vm5693, %v5777, %v5753
        %v5779 = vsel %vm5692, %v4487, %v5776
        %v5780 = vsel %vm5692, 0, %v5778
        %v5781 = vcosq.f32.pop %v5779
        %v5782 = vsinq.f32.pop %v5779
        %vm5783 = vweird.f32 %v4487
        %v5784 = vadd.s32 %v5780, 3
        %v5785 = vand.u32 %v5784, 3
        %vm5786 = vcmp.lt.s32.totalorder %v5785, 2
        %vm5787 = vcmp.eq.s32.totalorder %v5785, 0
        %v5788 = vxor.u32 %v5782, 2147483648
        %v5789 = vsel %vm5787, %v5781, %v5788
        %vm5790 = vcmp.eq.s32.totalorder %v5785, 2
        %v5791 = vxor.u32 %v5781, 2147483648
        %v5792 = vsel %vm5790, %v5791, %v5782
        %v5793 = vsel %vm5786, %v5789, %v5792
        %v5794 = vsel %vm5783, nan, %v5793
        %v5795 = vand.u32 2147483647, %v4489
        %vm5796 = vcmp.le.f32.partialorder %v5795, 0.7853982
        %vm5797 = vcmp.lt.s32.totalorder %v4489, 0
        %v5798 = vand.u32 %v4489, 2139095040
        %v5799 = vshrl.u32 %v5798, 23
        %v5800 = vsub.s32 %v5799, 127
        %v5801 = vand.u32 2147483647, %v4489
        %v5802 = vand.u32 %v5801, 8388607
        %v5803 = vor.u32 %v5802, 8388608
        %v5804 = vsub.s32 0, %v5803
        %v5805 = vadd.s32 %v5800, 1
        %vm5806 = vcmp.gt.s32.totalorder %v5805, 0
        %v5807 = vsel %vm5806, %v5805, 0
        %v5808 = vshrl.u32 %v5807, 5
        %v5809 = vand.u32 %v5807, 31
        %v5810 = vsub.s32 32, %v5809
        %v5811 = vshrl.u32 683565275, %v5810
        %v5812 = vshll.u32 683565275, %v5809
        %v5813 = vshrl.u32 2475754826, %v5810
        %v5814 = vor.u32 %v5812, %v5813
        %v5815 = vshll.u32 2475754826, %v5809
        %v5816 = vshrl.u32 2131351028, %v5810
        %v5817 = vor.u32 %v5815, %v5816
        %v5818 = vshll.u32 2131351028, %v5809
        %v5819 = vshrl.u32 2102212464, %v5810
        %v5820 = vor.u32 %v5818, %v5819
        %v5821 = vshll.u32 2102212464, %v5809
        %v5822 = vshrl.u32 920167782, %v5810
        %v5823 = vor.u32 %v5821, %v5822
        %v5824 = vshll.u32 920167782, %v5809
        %v5825 = vshrl.u32 1326507024, %v5810
        %v5826 = vor.u32 %v5824, %v5825
        %vm5827 = vcmp.lt.s32.totalorder %v5808, 1
        %vm5828 = vcmp.lt.s32.totalorder %v5808, 2
        %vm5829 = vcmp.lt.s32.totalorder %v5808, 3
        %vm5830 = vcmp.lt.s32.totalorder %v5808, 4
        %v5831 = vsel %vm5827, %v5811, %v5814
        %v5832 = vsel %vm5830, %v5820, 2102212464
        %v5833 = vsel %vm5829, %v5817, %v5832
        %v5834 = vsel %vm5828, %v5831, %v5833
        %v5835 = vsel %vm5827, %v5814, %v5817
        %v5836 = vsel %vm5830, %v5823, 920167782
        %v5837 = vsel %vm5829, %v5820, %v5836
        %v5838 = vsel %vm5828, %v5835, %v5837
        %v5839 = vsel %vm5827, %v5817, %v5820
        %v5840 = vsel %vm5830, %v5826, 1326507024
        %v5841 = vsel %vm5829, %v5823, %v5840
        %v5842 = vsel %vm5828, %v5839, %v5841
        %v5843 = vshll.u32 %v5803, 8
        %v5844 = vmul.u32.u64.compose %v5843, %v5842
        %v5845 = vextract.low.u32 %v5844
        %v5846 = vextract.high.u32 %v5844
        %v5847 = vmul.u32.u64.compose %v5843, %v5838
        %v5848 = vextract.low.u32 %v5847
        %v5849 = vextract.high.u32 %v5847
        %v5850 = vmul.u32 %v5843, %v5834
        %v5851 = vadd.s32 %v5846, %v5848
        %vm5852 = vc.u32 %v5846, %v5848
        %v5853 = vadd.s32 %v5849, 1
        %v5854 = vsel %vm5852, %v5853, %v5849
        %v5855 = vadd.s32 %v5850, %v5854
        %v5856 = vadd.s32 %v5855, 536870912
        %v5857 = vshrl.u32 %v5856, 30
        %v5858 = vshll.u32 %v5857, 30
        %v5859 = vsub.s32 %v5855, %v5858
        %vm5860 = vcmp.lt.s32.totalorder %v5859, 0
        %v5861 = vsub.s32 0, %v5859
        %v5862 = vsel %vm5860, %v5861, %v5859
        %v5863 = vclz %v5862
        %v5864 = vsub.s32 %v5863, 2
        %vm5865 = vcmp.gt.s32.totalorder 0, %v5864
        %v5866 = vsel %vm5865, 0, %v5864
        %v5867 = vsub.s32 32, %v5866
        %v5868 = vshll.u32 %v5859, %v5866
        %v5869 = vshrl.u32 %v5851, %v5867
        %v5870 = vor.u32 %v5868, %v5869
        %v5871 = vsub.s32 4294967266, %v5866
        %v5872 = vadd.s32 %v5871, 127
        %v5873 = vshll.u32 %v5872, 23
        %v5874 = vor.u32 4788187, %v5873
        %v5875 = vand.u32 2147483647, %v5874
        %v5877 = vcvt.s32.f32 %v5870
        %v5878 = vmul.f32 %v5877, %v5875
        %v5879 = vxor.u32 %v5878, 2147483648
        %v5880 = vsel %vm5797, %v5879, %v5878
        %v5881 = vsub.s32 4, %v5857
        %v5882 = vsel %vm5797, %v5881, %v5857
        %v5883 = vsel %vm5796, %v4489, %v5880
        %v5884 = vsel %vm5796, 0, %v5882
        %v5885 = vcosq.f32.pop %v5883
        %v5886 = vsinq.f32.pop %v5883
        %vm5887 = vweird.f32 %v4489
        %v5888 = vadd.s32 %v5884, 3
        %v5889 = vand.u32 %v5888, 3
        %vm5890 = vcmp.lt.s32.totalorder %v5889, 2
        %vm5891 = vcmp.eq.s32.totalorder %v5889, 0
        %v5892 = vxor.u32 %v5886, 2147483648
        %v5893 = vsel %vm5891, %v5885, %v5892
        %vm5894 = vcmp.eq.s32.totalorder %v5889, 2
        %v5895 = vxor.u32 %v5885, 2147483648
        %v5896 = vsel %vm5894, %v5895, %v5886
        %v5897 = vsel %vm5890, %v5893, %v5896
        %v5898 = vsel %vm5887, nan, %v5897
        %v5899 = vand.u32 2147483647, %v4564
        %vm5900 = vcmp.le.f32.partialorder %v5899, 0.7853982
        %vm5901 = vcmp.lt.s32.totalorder %v4564, 0
        %v5902 = vand.u32 %v4564, 2139095040
        %v5903 = vshrl.u32 %v5902, 23
        %v5904 = vsub.s32 %v5903, 127
        %v5905 = vand.u32 2147483647, %v4564
        %v5906 = vand.u32 %v5905, 8388607
        %v5907 = vor.u32 %v5906, 8388608
        %v5908 = vsub.s32 0, %v5907
        %v5909 = vadd.s32 %v5904, 1
        %vm5910 = vcmp.gt.s32.totalorder %v5909, 0
        %v5911 = vsel %vm5910, %v5909, 0
        %v5912 = vshrl.u32 %v5911, 5
        %v5913 = vand.u32 %v5911, 31
        %v5914 = vsub.s32 32, %v5913
        %v5915 = vshrl.u32 683565275, %v5914
        %v5916 = vshll.u32 683565275, %v5913
        %v5917 = vshrl.u32 2475754826, %v5914
        %v5918 = vor.u32 %v5916, %v5917
        %v5919 = vshll.u32 2475754826, %v5913
        %v5920 = vshrl.u32 2131351028, %v5914
        %v5921 = vor.u32 %v5919, %v5920
        %v5922 = vshll.u32 2131351028, %v5913
        %v5923 = vshrl.u32 2102212464, %v5914
        %v5924 = vor.u32 %v5922, %v5923
        %v5925 = vshll.u32 2102212464, %v5913
        %v5926 = vshrl.u32 920167782, %v5914
        %v5927 = vor.u32 %v5925, %v5926
        %v5928 = vshll.u32 920167782, %v5913
        %v5929 = vshrl.u32 1326507024, %v5914
        %v5930 = vor.u32 %v5928, %v5929
        %vm5931 = vcmp.lt.s32.totalorder %v5912, 1
        %vm5932 = vcmp.lt.s32.totalorder %v5912, 2
        %vm5933 = vcmp.lt.s32.totalorder %v5912, 3
        %vm5934 = vcmp.lt.s32.totalorder %v5912, 4
        %v5935 = vsel %vm5931, %v5915, %v5918
        %v5936 = vsel %vm5934, %v5924, 2102212464
        %v5937 = vsel %vm5933, %v5921, %v5936
        %v5938 = vsel %vm5932, %v5935, %v5937
        %v5939 = vsel %vm5931, %v5918, %v5921
        %v5940 = vsel %vm5934, %v5927, 920167782
        %v5941 = vsel %vm5933, %v5924, %v5940
        %v5942 = vsel %vm5932, %v5939, %v5941
        %v5943 = vsel %vm5931, %v5921, %v5924
        %v5944 = vsel %vm5934, %v5930, 1326507024
        %v5945 = vsel %vm5933, %v5927, %v5944
        %v5946 = vsel %vm5932, %v5943, %v5945
        %v5947 = vshll.u32 %v5907, 8
        %v5948 = vmul.u32.u64.compose %v5947, %v5946
        %v5949 = vextract.low.u32 %v5948
        %v5950 = vextract.high.u32 %v5948
        %v5951 = vmul.u32.u64.compose %v5947, %v5942
        %v5952 = vextract.low.u32 %v5951
        %v5953 = vextract.high.u32 %v5951
        %v5954 = vmul.u32 %v5947, %v5938
        %v5955 = vadd.s32 %v5950, %v5952
        %vm5956 = vc.u32 %v5950, %v5952
        %v5957 = vadd.s32 %v5953, 1
        %v5958 = vsel %vm5956, %v5957, %v5953
        %v5959 = vadd.s32 %v5954, %v5958
        %v5960 = vadd.s32 %v5959, 536870912
        %v5961 = vshrl.u32 %v5960, 30
        %v5962 = vshll.u32 %v5961, 30
        %v5963 = vsub.s32 %v5959, %v5962
        %vm5964 = vcmp.lt.s32.totalorder %v5963, 0
        %v5965 = vsub.s32 0, %v5963
        %v5966 = vsel %vm5964, %v5965, %v5963
        %v5967 = vclz %v5966
        %v5968 = vsub.s32 %v5967, 2
        %vm5969 = vcmp.gt.s32.totalorder 0, %v5968
        %v5970 = vsel %vm5969, 0, %v5968
        %v5971 = vsub.s32 32, %v5970
        %v5972 = vshll.u32 %v5963, %v5970
        %v5973 = vshrl.u32 %v5955, %v5971
        %v5974 = vor.u32 %v5972, %v5973
        %v5975 = vsub.s32 4294967266, %v5970
        %v5976 = vadd.s32 %v5975, 127
        %v5977 = vshll.u32 %v5976, 23
        %v5978 = vor.u32 4788187, %v5977
        %v5979 = vand.u32 2147483647, %v5978
        %v5981 = vcvt.s32.f32 %v5974
        %v5982 = vmul.f32 %v5981, %v5979
        %v5983 = vxor.u32 %v5982, 2147483648
        %v5984 = vsel %vm5901, %v5983, %v5982
        %v5985 = vsub.s32 4, %v5961
        %v5986 = vsel %vm5901, %v5985, %v5961
        %v5987 = vsel %vm5900, %v4564, %v5984
        %v5988 = vsel %vm5900, 0, %v5986
        %v5989 = vcosq.f32.pop %v5987
        %v5990 = vsinq.f32.pop %v5987
        %vm5991 = vweird.f32 %v4564
        %v5992 = vadd.s32 %v5988, 3
        %v5993 = vand.u32 %v5992, 3
        %vm5994 = vcmp.lt.s32.totalorder %v5993, 2
        %vm5995 = vcmp.eq.s32.totalorder %v5993, 0
        %v5996 = vxor.u32 %v5990, 2147483648
        %v5997 = vsel %vm5995, %v5989, %v5996
        %vm5998 = vcmp.eq.s32.totalorder %v5993, 2
        %v5999 = vxor.u32 %v5989, 2147483648
        %v6000 = vsel %vm5998, %v5999, %v5990
        %v6001 = vsel %vm5994, %v5997, %v6000
        %v6002 = vsel %vm5991, nan, %v6001
        %v6003 = vand.u32 2147483647, %v4566
        %vm6004 = vcmp.le.f32.partialorder %v6003, 0.7853982
        %vm6005 = vcmp.lt.s32.totalorder %v4566, 0
        %v6006 = vand.u32 %v4566, 2139095040
        %v6007 = vshrl.u32 %v6006, 23
        %v6008 = vsub.s32 %v6007, 127
        %v6009 = vand.u32 2147483647, %v4566
        %v6010 = vand.u32 %v6009, 8388607
        %v6011 = vor.u32 %v6010, 8388608
        %v6012 = vsub.s32 0, %v6011
        %v6013 = vadd.s32 %v6008, 1
        %vm6014 = vcmp.gt.s32.totalorder %v6013, 0
        %v6015 = vsel %vm6014, %v6013, 0
        %v6016 = vshrl.u32 %v6015, 5
        %v6017 = vand.u32 %v6015, 31
        %v6018 = vsub.s32 32, %v6017
        %v6019 = vshrl.u32 683565275, %v6018
        %v6020 = vshll.u32 683565275, %v6017
        %v6021 = vshrl.u32 2475754826, %v6018
        %v6022 = vor.u32 %v6020, %v6021
        %v6023 = vshll.u32 2475754826, %v6017
        %v6024 = vshrl.u32 2131351028, %v6018
        %v6025 = vor.u32 %v6023, %v6024
        %v6026 = vshll.u32 2131351028, %v6017
        %v6027 = vshrl.u32 2102212464, %v6018
        %v6028 = vor.u32 %v6026, %v6027
        %v6029 = vshll.u32 2102212464, %v6017
        %v6030 = vshrl.u32 920167782, %v6018
        %v6031 = vor.u32 %v6029, %v6030
        %v6032 = vshll.u32 920167782, %v6017
        %v6033 = vshrl.u32 1326507024, %v6018
        %v6034 = vor.u32 %v6032, %v6033
        %vm6035 = vcmp.lt.s32.totalorder %v6016, 1
        %vm6036 = vcmp.lt.s32.totalorder %v6016, 2
        %vm6037 = vcmp.lt.s32.totalorder %v6016, 3
        %vm6038 = vcmp.lt.s32.totalorder %v6016, 4
        %v6039 = vsel %vm6035, %v6019, %v6022
        %v6040 = vsel %vm6038, %v6028, 2102212464
        %v6041 = vsel %vm6037, %v6025, %v6040
        %v6042 = vsel %vm6036, %v6039, %v6041
        %v6043 = vsel %vm6035, %v6022, %v6025
        %v6044 = vsel %vm6038, %v6031, 920167782
        %v6045 = vsel %vm6037, %v6028, %v6044
        %v6046 = vsel %vm6036, %v6043, %v6045
        %v6047 = vsel %vm6035, %v6025, %v6028
        %v6048 = vsel %vm6038, %v6034, 1326507024
        %v6049 = vsel %vm6037, %v6031, %v6048
        %v6050 = vsel %vm6036, %v6047, %v6049
        %v6051 = vshll.u32 %v6011, 8
        %v6052 = vmul.u32.u64.compose %v6051, %v6050
        %v6053 = vextract.low.u32 %v6052
        %v6054 = vextract.high.u32 %v6052
        %v6055 = vmul.u32.u64.compose %v6051, %v6046
        %v6056 = vextract.low.u32 %v6055
        %v6057 = vextract.high.u32 %v6055
        %v6058 = vmul.u32 %v6051, %v6042
        %v6059 = vadd.s32 %v6054, %v6056
        %vm6060 = vc.u32 %v6054, %v6056
        %v6061 = vadd.s32 %v6057, 1
        %v6062 = vsel %vm6060, %v6061, %v6057
        %v6063 = vadd.s32 %v6058, %v6062
        %v6064 = vadd.s32 %v6063, 536870912
        %v6065 = vshrl.u32 %v6064, 30
        %v6066 = vshll.u32 %v6065, 30
        %v6067 = vsub.s32 %v6063, %v6066
        %vm6068 = vcmp.lt.s32.totalorder %v6067, 0
        %v6069 = vsub.s32 0, %v6067
        %v6070 = vsel %vm6068, %v6069, %v6067
        %v6071 = vclz %v6070
        %v6072 = vsub.s32 %v6071, 2
        %vm6073 = vcmp.gt.s32.totalorder 0, %v6072
        %v6074 = vsel %vm6073, 0, %v6072
        %v6075 = vsub.s32 32, %v6074
        %v6076 = vshll.u32 %v6067, %v6074
        %v6077 = vshrl.u32 %v6059, %v6075
        %v6078 = vor.u32 %v6076, %v6077
        %v6079 = vsub.s32 4294967266, %v6074
        %v6080 = vadd.s32 %v6079, 127
        %v6081 = vshll.u32 %v6080, 23
        %v6082 = vor.u32 4788187, %v6081
        %v6083 = vand.u32 2147483647, %v6082
        %v6085 = vcvt.s32.f32 %v6078
        %v6086 = vmul.f32 %v6085, %v6083
        %v6087 = vxor.u32 %v6086, 2147483648
        %v6088 = vsel %vm6005, %v6087, %v6086
        %v6089 = vsub.s32 4, %v6065
        %v6090 = vsel %vm6005, %v6089, %v6065
        %v6091 = vsel %vm6004, %v4566, %v6088
        %v6092 = vsel %vm6004, 0, %v6090
        %v6093 = vcosq.f32.pop %v6091
        %v6094 = vsinq.f32.pop %v6091
        %vm6095 = vweird.f32 %v4566
        %v6096 = vadd.s32 %v6092, 3
        %v6097 = vand.u32 %v6096, 3
        %vm6098 = vcmp.lt.s32.totalorder %v6097, 2
        %vm6099 = vcmp.eq.s32.totalorder %v6097, 0
        %v6100 = vxor.u32 %v6094, 2147483648
        %v6101 = vsel %vm6099, %v6093, %v6100
        %vm6102 = vcmp.eq.s32.totalorder %v6097, 2
        %v6103 = vxor.u32 %v6093, 2147483648
        %v6104 = vsel %vm6102, %v6103, %v6094
        %v6105 = vsel %vm6098, %v6101, %v6104
        %v6106 = vsel %vm6095, nan, %v6105
        %v6107 = vand.u32 2147483647, %v4641
        %vm6108 = vcmp.le.f32.partialorder %v6107, 0.7853982
        %vm6109 = vcmp.lt.s32.totalorder %v4641, 0
        %v6110 = vand.u32 %v4641, 2139095040
        %v6111 = vshrl.u32 %v6110, 23
        %v6112 = vsub.s32 %v6111, 127
        %v6113 = vand.u32 2147483647, %v4641
        %v6114 = vand.u32 %v6113, 8388607
        %v6115 = vor.u32 %v6114, 8388608
        %v6116 = vsub.s32 0, %v6115
        %v6117 = vadd.s32 %v6112, 1
        %vm6118 = vcmp.gt.s32.totalorder %v6117, 0
        %v6119 = vsel %vm6118, %v6117, 0
        %v6120 = vshrl.u32 %v6119, 5
        %v6121 = vand.u32 %v6119, 31
        %v6122 = vsub.s32 32, %v6121
        %v6123 = vshrl.u32 683565275, %v6122
        %v6124 = vshll.u32 683565275, %v6121
        %v6125 = vshrl.u32 2475754826, %v6122
        %v6126 = vor.u32 %v6124, %v6125
        %v6127 = vshll.u32 2475754826, %v6121
        %v6128 = vshrl.u32 2131351028, %v6122
        %v6129 = vor.u32 %v6127, %v6128
        %v6130 = vshll.u32 2131351028, %v6121
        %v6131 = vshrl.u32 2102212464, %v6122
        %v6132 = vor.u32 %v6130, %v6131
        %v6133 = vshll.u32 2102212464, %v6121
        %v6134 = vshrl.u32 920167782, %v6122
        %v6135 = vor.u32 %v6133, %v6134
        %v6136 = vshll.u32 920167782, %v6121
        %v6137 = vshrl.u32 1326507024, %v6122
        %v6138 = vor.u32 %v6136, %v6137
        %vm6139 = vcmp.lt.s32.totalorder %v6120, 1
        %vm6140 = vcmp.lt.s32.totalorder %v6120, 2
        %vm6141 = vcmp.lt.s32.totalorder %v6120, 3
        %vm6142 = vcmp.lt.s32.totalorder %v6120, 4
        %v6143 = vsel %vm6139, %v6123, %v6126
        %v6144 = vsel %vm6142, %v6132, 2102212464
        %v6145 = vsel %vm6141, %v6129, %v6144
        %v6146 = vsel %vm6140, %v6143, %v6145
        %v6147 = vsel %vm6139, %v6126, %v6129
        %v6148 = vsel %vm6142, %v6135, 920167782
        %v6149 = vsel %vm6141, %v6132, %v6148
        %v6150 = vsel %vm6140, %v6147, %v6149
        %v6151 = vsel %vm6139, %v6129, %v6132
        %v6152 = vsel %vm6142, %v6138, 1326507024
        %v6153 = vsel %vm6141, %v6135, %v6152
        %v6154 = vsel %vm6140, %v6151, %v6153
        %v6155 = vshll.u32 %v6115, 8
        %v6156 = vmul.u32.u64.compose %v6155, %v6154
        %v6157 = vextract.low.u32 %v6156
        %v6158 = vextract.high.u32 %v6156
        %v6159 = vmul.u32.u64.compose %v6155, %v6150
        %v6160 = vextract.low.u32 %v6159
        %v6161 = vextract.high.u32 %v6159
        %v6162 = vmul.u32 %v6155, %v6146
        %v6163 = vadd.s32 %v6158, %v6160
        %vm6164 = vc.u32 %v6158, %v6160
        %v6165 = vadd.s32 %v6161, 1
        %v6166 = vsel %vm6164, %v6165, %v6161
        %v6167 = vadd.s32 %v6162, %v6166
        %v6168 = vadd.s32 %v6167, 536870912
        %v6169 = vshrl.u32 %v6168, 30
        %v6170 = vshll.u32 %v6169, 30
        %v6171 = vsub.s32 %v6167, %v6170
        %vm6172 = vcmp.lt.s32.totalorder %v6171, 0
        %v6173 = vsub.s32 0, %v6171
        %v6174 = vsel %vm6172, %v6173, %v6171
        %v6175 = vclz %v6174
        %v6176 = vsub.s32 %v6175, 2
        %vm6177 = vcmp.gt.s32.totalorder 0, %v6176
        %v6178 = vsel %vm6177, 0, %v6176
        %v6179 = vsub.s32 32, %v6178
        %v6180 = vshll.u32 %v6171, %v6178
        %v6181 = vshrl.u32 %v6163, %v6179
        %v6182 = vor.u32 %v6180, %v6181
        %v6183 = vsub.s32 4294967266, %v6178
        %v6184 = vadd.s32 %v6183, 127
        %v6185 = vshll.u32 %v6184, 23
        %v6186 = vor.u32 4788187, %v6185
        %v6187 = vand.u32 2147483647, %v6186
        %v6189 = vcvt.s32.f32 %v6182
        %v6190 = vmul.f32 %v6189, %v6187
        %v6191 = vxor.u32 %v6190, 2147483648
        %v6192 = vsel %vm6109, %v6191, %v6190
        %v6193 = vsub.s32 4, %v6169
        %v6194 = vsel %vm6109, %v6193, %v6169
        %v6195 = vsel %vm6108, %v4641, %v6192
        %v6196 = vsel %vm6108, 0, %v6194
        %v6197 = vcosq.f32.pop %v6195
        %v6198 = vsinq.f32.pop %v6195
        %vm6199 = vweird.f32 %v4641
        %v6200 = vadd.s32 %v6196, 3
        %v6201 = vand.u32 %v6200, 3
        %vm6202 = vcmp.lt.s32.totalorder %v6201, 2
        %vm6203 = vcmp.eq.s32.totalorder %v6201, 0
        %v6204 = vxor.u32 %v6198, 2147483648
        %v6205 = vsel %vm6203, %v6197, %v6204
        %vm6206 = vcmp.eq.s32.totalorder %v6201, 2
        %v6207 = vxor.u32 %v6197, 2147483648
        %v6208 = vsel %vm6206, %v6207, %v6198
        %v6209 = vsel %vm6202, %v6205, %v6208
        %v6210 = vsel %vm6199, nan, %v6209
        %v6211 = vand.u32 2147483647, %v4643
        %vm6212 = vcmp.le.f32.partialorder %v6211, 0.7853982
        %vm6213 = vcmp.lt.s32.totalorder %v4643, 0
        %v6214 = vand.u32 %v4643, 2139095040
        %v6215 = vshrl.u32 %v6214, 23
        %v6216 = vsub.s32 %v6215, 127
        %v6217 = vand.u32 2147483647, %v4643
        %v6218 = vand.u32 %v6217, 8388607
        %v6219 = vor.u32 %v6218, 8388608
        %v6220 = vsub.s32 0, %v6219
        %v6221 = vadd.s32 %v6216, 1
        %vm6222 = vcmp.gt.s32.totalorder %v6221, 0
        %v6223 = vsel %vm6222, %v6221, 0
        %v6224 = vshrl.u32 %v6223, 5
        %v6225 = vand.u32 %v6223, 31
        %v6226 = vsub.s32 32, %v6225
        %v6227 = vshrl.u32 683565275, %v6226
        %v6228 = vshll.u32 683565275, %v6225
        %v6229 = vshrl.u32 2475754826, %v6226
        %v6230 = vor.u32 %v6228, %v6229
        %v6231 = vshll.u32 2475754826, %v6225
        %v6232 = vshrl.u32 2131351028, %v6226
        %v6233 = vor.u32 %v6231, %v6232
        %v6234 = vshll.u32 2131351028, %v6225
        %v6235 = vshrl.u32 2102212464, %v6226
        %v6236 = vor.u32 %v6234, %v6235
        %v6237 = vshll.u32 2102212464, %v6225
        %v6238 = vshrl.u32 920167782, %v6226
        %v6239 = vor.u32 %v6237, %v6238
        %v6240 = vshll.u32 920167782, %v6225
        %v6241 = vshrl.u32 1326507024, %v6226
        %v6242 = vor.u32 %v6240, %v6241
        %vm6243 = vcmp.lt.s32.totalorder %v6224, 1
        %vm6244 = vcmp.lt.s32.totalorder %v6224, 2
        %vm6245 = vcmp.lt.s32.totalorder %v6224, 3
        %vm6246 = vcmp.lt.s32.totalorder %v6224, 4
        %v6247 = vsel %vm6243, %v6227, %v6230
        %v6248 = vsel %vm6246, %v6236, 2102212464
        %v6249 = vsel %vm6245, %v6233, %v6248
        %v6250 = vsel %vm6244, %v6247, %v6249
        %v6251 = vsel %vm6243, %v6230, %v6233
        %v6252 = vsel %vm6246, %v6239, 920167782
        %v6253 = vsel %vm6245, %v6236, %v6252
        %v6254 = vsel %vm6244, %v6251, %v6253
        %v6255 = vsel %vm6243, %v6233, %v6236
        %v6256 = vsel %vm6246, %v6242, 1326507024
        %v6257 = vsel %vm6245, %v6239, %v6256
        %v6258 = vsel %vm6244, %v6255, %v6257
        %v6259 = vshll.u32 %v6219, 8
        %v6260 = vmul.u32.u64.compose %v6259, %v6258
        %v6261 = vextract.low.u32 %v6260
        %v6262 = vextract.high.u32 %v6260
        %v6263 = vmul.u32.u64.compose %v6259, %v6254
        %v6264 = vextract.low.u32 %v6263
        %v6265 = vextract.high.u32 %v6263
        %v6266 = vmul.u32 %v6259, %v6250
        %v6267 = vadd.s32 %v6262, %v6264
        %vm6268 = vc.u32 %v6262, %v6264
        %v6269 = vadd.s32 %v6265, 1
        %v6270 = vsel %vm6268, %v6269, %v6265
        %v6271 = vadd.s32 %v6266, %v6270
        %v6272 = vadd.s32 %v6271, 536870912
        %v6273 = vshrl.u32 %v6272, 30
        %v6274 = vshll.u32 %v6273, 30
        %v6275 = vsub.s32 %v6271, %v6274
        %vm6276 = vcmp.lt.s32.totalorder %v6275, 0
        %v6277 = vsub.s32 0, %v6275
        %v6278 = vsel %vm6276, %v6277, %v6275
        %v6279 = vclz %v6278
        %v6280 = vsub.s32 %v6279, 2
        %vm6281 = vcmp.gt.s32.totalorder 0, %v6280
        %v6282 = vsel %vm6281, 0, %v6280
        %v6283 = vsub.s32 32, %v6282
        %v6284 = vshll.u32 %v6275, %v6282
        %v6285 = vshrl.u32 %v6267, %v6283
        %v6286 = vor.u32 %v6284, %v6285
        %v6287 = vsub.s32 4294967266, %v6282
        %v6288 = vadd.s32 %v6287, 127
        %v6289 = vshll.u32 %v6288, 23
        %v6290 = vor.u32 4788187, %v6289
        %v6291 = vand.u32 2147483647, %v6290
        %v6293 = vcvt.s32.f32 %v6286
        %v6294 = vmul.f32 %v6293, %v6291
        %v6295 = vxor.u32 %v6294, 2147483648
        %v6296 = vsel %vm6213, %v6295, %v6294
        %v6297 = vsub.s32 4, %v6273
        %v6298 = vsel %vm6213, %v6297, %v6273
        %v6299 = vsel %vm6212, %v4643, %v6296
        %v6300 = vsel %vm6212, 0, %v6298
        %v6301 = vcosq.f32.pop %v6299
        %v6302 = vsinq.f32.pop %v6299
        %vm6303 = vweird.f32 %v4643
        %v6304 = vadd.s32 %v6300, 3
        %v6305 = vand.u32 %v6304, 3
        %vm6306 = vcmp.lt.s32.totalorder %v6305, 2
        %vm6307 = vcmp.eq.s32.totalorder %v6305, 0
        %v6308 = vxor.u32 %v6302, 2147483648
        %v6309 = vsel %vm6307, %v6301, %v6308
        %vm6310 = vcmp.eq.s32.totalorder %v6305, 2
        %v6311 = vxor.u32 %v6301, 2147483648
        %v6312 = vsel %vm6310, %v6311, %v6302
        %v6313 = vsel %vm6306, %v6309, %v6312
        %v6314 = vsel %vm6303, nan, %v6313
        %v6315 = vand.u32 2147483647, %v4108
        %vm6316 = vcmp.le.f32.partialorder %v6315, 0.7853982
        %vm6317 = vcmp.lt.s32.totalorder %v4108, 0
        %v6318 = vand.u32 %v4108, 2139095040
        %v6319 = vshrl.u32 %v6318, 23
        %v6320 = vsub.s32 %v6319, 127
        %v6321 = vand.u32 2147483647, %v4108
        %v6322 = vand.u32 %v6321, 8388607
        %v6323 = vor.u32 %v6322, 8388608
        %v6324 = vsub.s32 0, %v6323
        %v6325 = vadd.s32 %v6320, 1
        %vm6326 = vcmp.gt.s32.totalorder %v6325, 0
        %v6327 = vsel %vm6326, %v6325, 0
        %v6328 = vshrl.u32 %v6327, 5
        %v6329 = vand.u32 %v6327, 31
        %v6330 = vsub.s32 32, %v6329
        %v6331 = vshrl.u32 683565275, %v6330
        %v6332 = vshll.u32 683565275, %v6329
        %v6333 = vshrl.u32 2475754826, %v6330
        %v6334 = vor.u32 %v6332, %v6333
        %v6335 = vshll.u32 2475754826, %v6329
        %v6336 = vshrl.u32 2131351028, %v6330
        %v6337 = vor.u32 %v6335, %v6336
        %v6338 = vshll.u32 2131351028, %v6329
        %v6339 = vshrl.u32 2102212464, %v6330
        %v6340 = vor.u32 %v6338, %v6339
        %v6341 = vshll.u32 2102212464, %v6329
        %v6342 = vshrl.u32 920167782, %v6330
        %v6343 = vor.u32 %v6341, %v6342
        %v6344 = vshll.u32 920167782, %v6329
        %v6345 = vshrl.u32 1326507024, %v6330
        %v6346 = vor.u32 %v6344, %v6345
        %vm6347 = vcmp.lt.s32.totalorder %v6328, 1
        %vm6348 = vcmp.lt.s32.totalorder %v6328, 2
        %vm6349 = vcmp.lt.s32.totalorder %v6328, 3
        %vm6350 = vcmp.lt.s32.totalorder %v6328, 4
        %v6351 = vsel %vm6347, %v6331, %v6334
        %v6352 = vsel %vm6350, %v6340, 2102212464
        %v6353 = vsel %vm6349, %v6337, %v6352
        %v6354 = vsel %vm6348, %v6351, %v6353
        %v6355 = vsel %vm6347, %v6334, %v6337
        %v6356 = vsel %vm6350, %v6343, 920167782
        %v6357 = vsel %vm6349, %v6340, %v6356
        %v6358 = vsel %vm6348, %v6355, %v6357
        %v6359 = vsel %vm6347, %v6337, %v6340
        %v6360 = vsel %vm6350, %v6346, 1326507024
        %v6361 = vsel %vm6349, %v6343, %v6360
        %v6362 = vsel %vm6348, %v6359, %v6361
        %v6363 = vshll.u32 %v6323, 8
        %v6364 = vmul.u32.u64.compose %v6363, %v6362
        %v6365 = vextract.low.u32 %v6364
        %v6366 = vextract.high.u32 %v6364
        %v6367 = vmul.u32.u64.compose %v6363, %v6358
        %v6368 = vextract.low.u32 %v6367
        %v6369 = vextract.high.u32 %v6367
        %v6370 = vmul.u32 %v6363, %v6354
        %v6371 = vadd.s32 %v6366, %v6368
        %vm6372 = vc.u32 %v6366, %v6368
        %v6373 = vadd.s32 %v6369, 1
        %v6374 = vsel %vm6372, %v6373, %v6369
        %v6375 = vadd.s32 %v6370, %v6374
        %v6376 = vadd.s32 %v6375, 536870912
        %v6377 = vshrl.u32 %v6376, 30
        %v6378 = vshll.u32 %v6377, 30
        %v6379 = vsub.s32 %v6375, %v6378
        %vm6380 = vcmp.lt.s32.totalorder %v6379, 0
        %v6381 = vsub.s32 0, %v6379
        %v6382 = vsel %vm6380, %v6381, %v6379
        %v6383 = vclz %v6382
        %v6384 = vsub.s32 %v6383, 2
        %vm6385 = vcmp.gt.s32.totalorder 0, %v6384
        %v6386 = vsel %vm6385, 0, %v6384
        %v6387 = vsub.s32 32, %v6386
        %v6388 = vshll.u32 %v6379, %v6386
        %v6389 = vshrl.u32 %v6371, %v6387
        %v6390 = vor.u32 %v6388, %v6389
        %v6391 = vsub.s32 4294967266, %v6386
        %v6392 = vadd.s32 %v6391, 127
        %v6393 = vshll.u32 %v6392, 23
        %v6394 = vor.u32 4788187, %v6393
        %v6395 = vand.u32 2147483647, %v6394
        %v6397 = vcvt.s32.f32 %v6390
        %v6398 = vmul.f32 %v6397, %v6395
        %v6399 = vxor.u32 %v6398, 2147483648
        %v6400 = vsel %vm6317, %v6399, %v6398
        %v6401 = vsub.s32 4, %v6377
        %v6402 = vsel %vm6317, %v6401, %v6377
        %v6403 = vsel %vm6316, %v4108, %v6400
        %v6404 = vsel %vm6316, 0, %v6402
        %v6405 = vcosq.f32.pop %v6403
        %v6406 = vsinq.f32.pop %v6403
        %vm6407 = vweird.f32 %v4108
        %v6408 = vadd.s32 %v6404, 3
        %v6409 = vand.u32 %v6408, 3
        %vm6410 = vcmp.lt.s32.totalorder %v6409, 2
        %vm6411 = vcmp.eq.s32.totalorder %v6409, 0
        %v6412 = vxor.u32 %v6406, 2147483648
        %v6413 = vsel %vm6411, %v6405, %v6412
        %vm6414 = vcmp.eq.s32.totalorder %v6409, 2
        %v6415 = vxor.u32 %v6405, 2147483648
        %v6416 = vsel %vm6414, %v6415, %v6406
        %v6417 = vsel %vm6410, %v6413, %v6416
        %v6418 = vsel %vm6407, nan, %v6417
        %v6419 = vand.u32 2147483647, %v4110
        %vm6420 = vcmp.le.f32.partialorder %v6419, 0.7853982
        %vm6421 = vcmp.lt.s32.totalorder %v4110, 0
        %v6422 = vand.u32 %v4110, 2139095040
        %v6423 = vshrl.u32 %v6422, 23
        %v6424 = vsub.s32 %v6423, 127
        %v6425 = vand.u32 2147483647, %v4110
        %v6426 = vand.u32 %v6425, 8388607
        %v6427 = vor.u32 %v6426, 8388608
        %v6428 = vsub.s32 0, %v6427
        %v6429 = vadd.s32 %v6424, 1
        %vm6430 = vcmp.gt.s32.totalorder %v6429, 0
        %v6431 = vsel %vm6430, %v6429, 0
        %v6432 = vshrl.u32 %v6431, 5
        %v6433 = vand.u32 %v6431, 31
        %v6434 = vsub.s32 32, %v6433
        %v6435 = vshrl.u32 683565275, %v6434
        %v6436 = vshll.u32 683565275, %v6433
        %v6437 = vshrl.u32 2475754826, %v6434
        %v6438 = vor.u32 %v6436, %v6437
        %v6439 = vshll.u32 2475754826, %v6433
        %v6440 = vshrl.u32 2131351028, %v6434
        %v6441 = vor.u32 %v6439, %v6440
        %v6442 = vshll.u32 2131351028, %v6433
        %v6443 = vshrl.u32 2102212464, %v6434
        %v6444 = vor.u32 %v6442, %v6443
        %v6445 = vshll.u32 2102212464, %v6433
        %v6446 = vshrl.u32 920167782, %v6434
        %v6447 = vor.u32 %v6445, %v6446
        %v6448 = vshll.u32 920167782, %v6433
        %v6449 = vshrl.u32 1326507024, %v6434
        %v6450 = vor.u32 %v6448, %v6449
        %vm6451 = vcmp.lt.s32.totalorder %v6432, 1
        %vm6452 = vcmp.lt.s32.totalorder %v6432, 2
        %vm6453 = vcmp.lt.s32.totalorder %v6432, 3
        %vm6454 = vcmp.lt.s32.totalorder %v6432, 4
        %v6455 = vsel %vm6451, %v6435, %v6438
        %v6456 = vsel %vm6454, %v6444, 2102212464
        %v6457 = vsel %vm6453, %v6441, %v6456
        %v6458 = vsel %vm6452, %v6455, %v6457
        %v6459 = vsel %vm6451, %v6438, %v6441
        %v6460 = vsel %vm6454, %v6447, 920167782
        %v6461 = vsel %vm6453, %v6444, %v6460
        %v6462 = vsel %vm6452, %v6459, %v6461
        %v6463 = vsel %vm6451, %v6441, %v6444
        %v6464 = vsel %vm6454, %v6450, 1326507024
        %v6465 = vsel %vm6453, %v6447, %v6464
        %v6466 = vsel %vm6452, %v6463, %v6465
        %v6467 = vshll.u32 %v6427, 8
        %v6468 = vmul.u32.u64.compose %v6467, %v6466
        %v6469 = vextract.low.u32 %v6468
        %v6470 = vextract.high.u32 %v6468
        %v6471 = vmul.u32.u64.compose %v6467, %v6462
        %v6472 = vextract.low.u32 %v6471
        %v6473 = vextract.high.u32 %v6471
        %v6474 = vmul.u32 %v6467, %v6458
        %v6475 = vadd.s32 %v6470, %v6472
        %vm6476 = vc.u32 %v6470, %v6472
        %v6477 = vadd.s32 %v6473, 1
        %v6478 = vsel %vm6476, %v6477, %v6473
        %v6479 = vadd.s32 %v6474, %v6478
        %v6480 = vadd.s32 %v6479, 536870912
        %v6481 = vshrl.u32 %v6480, 30
        %v6482 = vshll.u32 %v6481, 30
        %v6483 = vsub.s32 %v6479, %v6482
        %vm6484 = vcmp.lt.s32.totalorder %v6483, 0
        %v6485 = vsub.s32 0, %v6483
        %v6486 = vsel %vm6484, %v6485, %v6483
        %v6487 = vclz %v6486
        %v6488 = vsub.s32 %v6487, 2
        %vm6489 = vcmp.gt.s32.totalorder 0, %v6488
        %v6490 = vsel %vm6489, 0, %v6488
        %v6491 = vsub.s32 32, %v6490
        %v6492 = vshll.u32 %v6483, %v6490
        %v6493 = vshrl.u32 %v6475, %v6491
        %v6494 = vor.u32 %v6492, %v6493
        %v6495 = vsub.s32 4294967266, %v6490
        %v6496 = vadd.s32 %v6495, 127
        %v6497 = vshll.u32 %v6496, 23
        %v6498 = vor.u32 4788187, %v6497
        %v6499 = vand.u32 2147483647, %v6498
        %v6501 = vcvt.s32.f32 %v6494
        %v6502 = vmul.f32 %v6501, %v6499
        %v6503 = vxor.u32 %v6502, 2147483648
        %v6504 = vsel %vm6421, %v6503, %v6502
        %v6505 = vsub.s32 4, %v6481
        %v6506 = vsel %vm6421, %v6505, %v6481
        %v6507 = vsel %vm6420, %v4110, %v6504
        %v6508 = vsel %vm6420, 0, %v6506
        %v6509 = vcosq.f32.pop %v6507
        %v6510 = vsinq.f32.pop %v6507
        %vm6511 = vweird.f32 %v4110
        %v6512 = vadd.s32 %v6508, 3
        %v6513 = vand.u32 %v6512, 3
        %vm6514 = vcmp.lt.s32.totalorder %v6513, 2
        %vm6515 = vcmp.eq.s32.totalorder %v6513, 0
        %v6516 = vxor.u32 %v6510, 2147483648
        %v6517 = vsel %vm6515, %v6509, %v6516
        %vm6518 = vcmp.eq.s32.totalorder %v6513, 2
        %v6519 = vxor.u32 %v6509, 2147483648
        %v6520 = vsel %vm6518, %v6519, %v6510
        %v6521 = vsel %vm6514, %v6517, %v6520
        %v6522 = vsel %vm6511, nan, %v6521
        %v6523 = vand.u32 2147483647, %v4185
        %vm6524 = vcmp.le.f32.partialorder %v6523, 0.7853982
        %vm6525 = vcmp.lt.s32.totalorder %v4185, 0
        %v6526 = vand.u32 %v4185, 2139095040
        %v6527 = vshrl.u32 %v6526, 23
        %v6528 = vsub.s32 %v6527, 127
        %v6529 = vand.u32 2147483647, %v4185
        %v6530 = vand.u32 %v6529, 8388607
        %v6531 = vor.u32 %v6530, 8388608
        %v6532 = vsub.s32 0, %v6531
        %v6533 = vadd.s32 %v6528, 1
        %vm6534 = vcmp.gt.s32.totalorder %v6533, 0
        %v6535 = vsel %vm6534, %v6533, 0
        %v6536 = vshrl.u32 %v6535, 5
        %v6537 = vand.u32 %v6535, 31
        %v6538 = vsub.s32 32, %v6537
        %v6539 = vshrl.u32 683565275, %v6538
        %v6540 = vshll.u32 683565275, %v6537
        %v6541 = vshrl.u32 2475754826, %v6538
        %v6542 = vor.u32 %v6540, %v6541
        %v6543 = vshll.u32 2475754826, %v6537
        %v6544 = vshrl.u32 2131351028, %v6538
        %v6545 = vor.u32 %v6543, %v6544
        %v6546 = vshll.u32 2131351028, %v6537
        %v6547 = vshrl.u32 2102212464, %v6538
        %v6548 = vor.u32 %v6546, %v6547
        %v6549 = vshll.u32 2102212464, %v6537
        %v6550 = vshrl.u32 920167782, %v6538
        %v6551 = vor.u32 %v6549, %v6550
        %v6552 = vshll.u32 920167782, %v6537
        %v6553 = vshrl.u32 1326507024, %v6538
        %v6554 = vor.u32 %v6552, %v6553
        %vm6555 = vcmp.lt.s32.totalorder %v6536, 1
        %vm6556 = vcmp.lt.s32.totalorder %v6536, 2
        %vm6557 = vcmp.lt.s32.totalorder %v6536, 3
        %vm6558 = vcmp.lt.s32.totalorder %v6536, 4
        %v6559 = vsel %vm6555, %v6539, %v6542
        %v6560 = vsel %vm6558, %v6548, 2102212464
        %v6561 = vsel %vm6557, %v6545, %v6560
        %v6562 = vsel %vm6556, %v6559, %v6561
        %v6563 = vsel %vm6555, %v6542, %v6545
        %v6564 = vsel %vm6558, %v6551, 920167782
        %v6565 = vsel %vm6557, %v6548, %v6564
        %v6566 = vsel %vm6556, %v6563, %v6565
        %v6567 = vsel %vm6555, %v6545, %v6548
        %v6568 = vsel %vm6558, %v6554, 1326507024
        %v6569 = vsel %vm6557, %v6551, %v6568
        %v6570 = vsel %vm6556, %v6567, %v6569
        %v6571 = vshll.u32 %v6531, 8
        %v6572 = vmul.u32.u64.compose %v6571, %v6570
        %v6573 = vextract.low.u32 %v6572
        %v6574 = vextract.high.u32 %v6572
        %v6575 = vmul.u32.u64.compose %v6571, %v6566
        %v6576 = vextract.low.u32 %v6575
        %v6577 = vextract.high.u32 %v6575
        %v6578 = vmul.u32 %v6571, %v6562
        %v6579 = vadd.s32 %v6574, %v6576
        %vm6580 = vc.u32 %v6574, %v6576
        %v6581 = vadd.s32 %v6577, 1
        %v6582 = vsel %vm6580, %v6581, %v6577
        %v6583 = vadd.s32 %v6578, %v6582
        %v6584 = vadd.s32 %v6583, 536870912
        %v6585 = vshrl.u32 %v6584, 30
        %v6586 = vshll.u32 %v6585, 30
        %v6587 = vsub.s32 %v6583, %v6586
        %vm6588 = vcmp.lt.s32.totalorder %v6587, 0
        %v6589 = vsub.s32 0, %v6587
        %v6590 = vsel %vm6588, %v6589, %v6587
        %v6591 = vclz %v6590
        %v6592 = vsub.s32 %v6591, 2
        %vm6593 = vcmp.gt.s32.totalorder 0, %v6592
        %v6594 = vsel %vm6593, 0, %v6592
        %v6595 = vsub.s32 32, %v6594
        %v6596 = vshll.u32 %v6587, %v6594
        %v6597 = vshrl.u32 %v6579, %v6595
        %v6598 = vor.u32 %v6596, %v6597
        %v6599 = vsub.s32 4294967266, %v6594
        %v6600 = vadd.s32 %v6599, 127
        %v6601 = vshll.u32 %v6600, 23
        %v6602 = vor.u32 4788187, %v6601
        %v6603 = vand.u32 2147483647, %v6602
        %v6605 = vcvt.s32.f32 %v6598
        %v6606 = vmul.f32 %v6605, %v6603
        %v6607 = vxor.u32 %v6606, 2147483648
        %v6608 = vsel %vm6525, %v6607, %v6606
        %v6609 = vsub.s32 4, %v6585
        %v6610 = vsel %vm6525, %v6609, %v6585
        %v6611 = vsel %vm6524, %v4185, %v6608
        %v6612 = vsel %vm6524, 0, %v6610
        %v6613 = vcosq.f32.pop %v6611
        %v6614 = vsinq.f32.pop %v6611
        %vm6615 = vweird.f32 %v4185
        %v6616 = vadd.s32 %v6612, 3
        %v6617 = vand.u32 %v6616, 3
        %vm6618 = vcmp.lt.s32.totalorder %v6617, 2
        %vm6619 = vcmp.eq.s32.totalorder %v6617, 0
        %v6620 = vxor.u32 %v6614, 2147483648
        %v6621 = vsel %vm6619, %v6613, %v6620
        %vm6622 = vcmp.eq.s32.totalorder %v6617, 2
        %v6623 = vxor.u32 %v6613, 2147483648
        %v6624 = vsel %vm6622, %v6623, %v6614
        %v6625 = vsel %vm6618, %v6621, %v6624
        %v6626 = vsel %vm6615, nan, %v6625
        %v6627 = vand.u32 2147483647, %v4187
        %vm6628 = vcmp.le.f32.partialorder %v6627, 0.7853982
        %vm6629 = vcmp.lt.s32.totalorder %v4187, 0
        %v6630 = vand.u32 %v4187, 2139095040
        %v6631 = vshrl.u32 %v6630, 23
        %v6632 = vsub.s32 %v6631, 127
        %v6633 = vand.u32 2147483647, %v4187
        %v6634 = vand.u32 %v6633, 8388607
        %v6635 = vor.u32 %v6634, 8388608
        %v6636 = vsub.s32 0, %v6635
        %v6637 = vadd.s32 %v6632, 1
        %vm6638 = vcmp.gt.s32.totalorder %v6637, 0
        %v6639 = vsel %vm6638, %v6637, 0
        %v6640 = vshrl.u32 %v6639, 5
        %v6641 = vand.u32 %v6639, 31
        %v6642 = vsub.s32 32, %v6641
        %v6643 = vshrl.u32 683565275, %v6642
        %v6644 = vshll.u32 683565275, %v6641
        %v6645 = vshrl.u32 2475754826, %v6642
        %v6646 = vor.u32 %v6644, %v6645
        %v6647 = vshll.u32 2475754826, %v6641
        %v6648 = vshrl.u32 2131351028, %v6642
        %v6649 = vor.u32 %v6647, %v6648
        %v6650 = vshll.u32 2131351028, %v6641
        %v6651 = vshrl.u32 2102212464, %v6642
        %v6652 = vor.u32 %v6650, %v6651
        %v6653 = vshll.u32 2102212464, %v6641
        %v6654 = vshrl.u32 920167782, %v6642
        %v6655 = vor.u32 %v6653, %v6654
        %v6656 = vshll.u32 920167782, %v6641
        %v6657 = vshrl.u32 1326507024, %v6642
        %v6658 = vor.u32 %v6656, %v6657
        %vm6659 = vcmp.lt.s32.totalorder %v6640, 1
        %vm6660 = vcmp.lt.s32.totalorder %v6640, 2
        %vm6661 = vcmp.lt.s32.totalorder %v6640, 3
        %vm6662 = vcmp.lt.s32.totalorder %v6640, 4
        %v6663 = vsel %vm6659, %v6643, %v6646
        %v6664 = vsel %vm6662, %v6652, 2102212464
        %v6665 = vsel %vm6661, %v6649, %v6664
        %v6666 = vsel %vm6660, %v6663, %v6665
        %v6667 = vsel %vm6659, %v6646, %v6649
        %v6668 = vsel %vm6662, %v6655, 920167782
        %v6669 = vsel %vm6661, %v6652, %v6668
        %v6670 = vsel %vm6660, %v6667, %v6669
        %v6671 = vsel %vm6659, %v6649, %v6652
        %v6672 = vsel %vm6662, %v6658, 1326507024
        %v6673 = vsel %vm6661, %v6655, %v6672
        %v6674 = vsel %vm6660, %v6671, %v6673
        %v6675 = vshll.u32 %v6635, 8
        %v6676 = vmul.u32.u64.compose %v6675, %v6674
        %v6677 = vextract.low.u32 %v6676
        %v6678 = vextract.high.u32 %v6676
        %v6679 = vmul.u32.u64.compose %v6675, %v6670
        %v6680 = vextract.low.u32 %v6679
        %v6681 = vextract.high.u32 %v6679
        %v6682 = vmul.u32 %v6675, %v6666
        %v6683 = vadd.s32 %v6678, %v6680
        %vm6684 = vc.u32 %v6678, %v6680
        %v6685 = vadd.s32 %v6681, 1
        %v6686 = vsel %vm6684, %v6685, %v6681
        %v6687 = vadd.s32 %v6682, %v6686
        %v6688 = vadd.s32 %v6687, 536870912
        %v6689 = vshrl.u32 %v6688, 30
        %v6690 = vshll.u32 %v6689, 30
        %v6691 = vsub.s32 %v6687, %v6690
        %vm6692 = vcmp.lt.s32.totalorder %v6691, 0
        %v6693 = vsub.s32 0, %v6691
        %v6694 = vsel %vm6692, %v6693, %v6691
        %v6695 = vclz %v6694
        %v6696 = vsub.s32 %v6695, 2
        %vm6697 = vcmp.gt.s32.totalorder 0, %v6696
        %v6698 = vsel %vm6697, 0, %v6696
        %v6699 = vsub.s32 32, %v6698
        %v6700 = vshll.u32 %v6691, %v6698
        %v6701 = vshrl.u32 %v6683, %v6699
        %v6702 = vor.u32 %v6700, %v6701
        %v6703 = vsub.s32 4294967266, %v6698
        %v6704 = vadd.s32 %v6703, 127
        %v6705 = vshll.u32 %v6704, 23
        %v6706 = vor.u32 4788187, %v6705
        %v6707 = vand.u32 2147483647, %v6706
        %v6709 = vcvt.s32.f32 %v6702
        %v6710 = vmul.f32 %v6709, %v6707
        %v6711 = vxor.u32 %v6710, 2147483648
        %v6712 = vsel %vm6629, %v6711, %v6710
        %v6713 = vsub.s32 4, %v6689
        %v6714 = vsel %vm6629, %v6713, %v6689
        %v6715 = vsel %vm6628, %v4187, %v6712
        %v6716 = vsel %vm6628, 0, %v6714
        %v6717 = vcosq.f32.pop %v6715
        %v6718 = vsinq.f32.pop %v6715
        %vm6719 = vweird.f32 %v4187
        %v6720 = vadd.s32 %v6716, 3
        %v6721 = vand.u32 %v6720, 3
        %vm6722 = vcmp.lt.s32.totalorder %v6721, 2
        %vm6723 = vcmp.eq.s32.totalorder %v6721, 0
        %v6724 = vxor.u32 %v6718, 2147483648
        %v6725 = vsel %vm6723, %v6717, %v6724
        %vm6726 = vcmp.eq.s32.totalorder %v6721, 2
        %v6727 = vxor.u32 %v6717, 2147483648
        %v6728 = vsel %vm6726, %v6727, %v6718
        %v6729 = vsel %vm6722, %v6725, %v6728
        %v6730 = vsel %vm6719, nan, %v6729
        %v6731 = vand.u32 2147483647, %v4262
        %vm6732 = vcmp.le.f32.partialorder %v6731, 0.7853982
        %vm6733 = vcmp.lt.s32.totalorder %v4262, 0
        %v6734 = vand.u32 %v4262, 2139095040
        %v6735 = vshrl.u32 %v6734, 23
        %v6736 = vsub.s32 %v6735, 127
        %v6737 = vand.u32 2147483647, %v4262
        %v6738 = vand.u32 %v6737, 8388607
        %v6739 = vor.u32 %v6738, 8388608
        %v6740 = vsub.s32 0, %v6739
        %v6741 = vadd.s32 %v6736, 1
        %vm6742 = vcmp.gt.s32.totalorder %v6741, 0
        %v6743 = vsel %vm6742, %v6741, 0
        %v6744 = vshrl.u32 %v6743, 5
        %v6745 = vand.u32 %v6743, 31
        %v6746 = vsub.s32 32, %v6745
        %v6747 = vshrl.u32 683565275, %v6746
        %v6748 = vshll.u32 683565275, %v6745
        %v6749 = vshrl.u32 2475754826, %v6746
        %v6750 = vor.u32 %v6748, %v6749
        %v6751 = vshll.u32 2475754826, %v6745
        %v6752 = vshrl.u32 2131351028, %v6746
        %v6753 = vor.u32 %v6751, %v6752
        %v6754 = vshll.u32 2131351028, %v6745
        %v6755 = vshrl.u32 2102212464, %v6746
        %v6756 = vor.u32 %v6754, %v6755
        %v6757 = vshll.u32 2102212464, %v6745
        %v6758 = vshrl.u32 920167782, %v6746
        %v6759 = vor.u32 %v6757, %v6758
        %v6760 = vshll.u32 920167782, %v6745
        %v6761 = vshrl.u32 1326507024, %v6746
        %v6762 = vor.u32 %v6760, %v6761
        %vm6763 = vcmp.lt.s32.totalorder %v6744, 1
        %vm6764 = vcmp.lt.s32.totalorder %v6744, 2
        %vm6765 = vcmp.lt.s32.totalorder %v6744, 3
        %vm6766 = vcmp.lt.s32.totalorder %v6744, 4
        %v6767 = vsel %vm6763, %v6747, %v6750
        %v6768 = vsel %vm6766, %v6756, 2102212464
        %v6769 = vsel %vm6765, %v6753, %v6768
        %v6770 = vsel %vm6764, %v6767, %v6769
        %v6771 = vsel %vm6763, %v6750, %v6753
        %v6772 = vsel %vm6766, %v6759, 920167782
        %v6773 = vsel %vm6765, %v6756, %v6772
        %v6774 = vsel %vm6764, %v6771, %v6773
        %v6775 = vsel %vm6763, %v6753, %v6756
        %v6776 = vsel %vm6766, %v6762, 1326507024
        %v6777 = vsel %vm6765, %v6759, %v6776
        %v6778 = vsel %vm6764, %v6775, %v6777
        %v6779 = vshll.u32 %v6739, 8
        %v6780 = vmul.u32.u64.compose %v6779, %v6778
        %v6781 = vextract.low.u32 %v6780
        %v6782 = vextract.high.u32 %v6780
        %v6783 = vmul.u32.u64.compose %v6779, %v6774
        %v6784 = vextract.low.u32 %v6783
        %v6785 = vextract.high.u32 %v6783
        %v6786 = vmul.u32 %v6779, %v6770
        %v6787 = vadd.s32 %v6782, %v6784
        %vm6788 = vc.u32 %v6782, %v6784
        %v6789 = vadd.s32 %v6785, 1
        %v6790 = vsel %vm6788, %v6789, %v6785
        %v6791 = vadd.s32 %v6786, %v6790
        %v6792 = vadd.s32 %v6791, 536870912
        %v6793 = vshrl.u32 %v6792, 30
        %v6794 = vshll.u32 %v6793, 30
        %v6795 = vsub.s32 %v6791, %v6794
        %vm6796 = vcmp.lt.s32.totalorder %v6795, 0
        %v6797 = vsub.s32 0, %v6795
        %v6798 = vsel %vm6796, %v6797, %v6795
        %v6799 = vclz %v6798
        %v6800 = vsub.s32 %v6799, 2
        %vm6801 = vcmp.gt.s32.totalorder 0, %v6800
        %v6802 = vsel %vm6801, 0, %v6800
        %v6803 = vsub.s32 32, %v6802
        %v6804 = vshll.u32 %v6795, %v6802
        %v6805 = vshrl.u32 %v6787, %v6803
        %v6806 = vor.u32 %v6804, %v6805
        %v6807 = vsub.s32 4294967266, %v6802
        %v6808 = vadd.s32 %v6807, 127
        %v6809 = vshll.u32 %v6808, 23
        %v6810 = vor.u32 4788187, %v6809
        %v6811 = vand.u32 2147483647, %v6810
        %v6813 = vcvt.s32.f32 %v6806
        %v6814 = vmul.f32 %v6813, %v6811
        %v6815 = vxor.u32 %v6814, 2147483648
        %v6816 = vsel %vm6733, %v6815, %v6814
        %v6817 = vsub.s32 4, %v6793
        %v6818 = vsel %vm6733, %v6817, %v6793
        %v6819 = vsel %vm6732, %v4262, %v6816
        %v6820 = vsel %vm6732, 0, %v6818
        %v6821 = vcosq.f32.pop %v6819
        %v6822 = vsinq.f32.pop %v6819
        %vm6823 = vweird.f32 %v4262
        %v6824 = vadd.s32 %v6820, 3
        %v6825 = vand.u32 %v6824, 3
        %vm6826 = vcmp.lt.s32.totalorder %v6825, 2
        %vm6827 = vcmp.eq.s32.totalorder %v6825, 0
        %v6828 = vxor.u32 %v6822, 2147483648
        %v6829 = vsel %vm6827, %v6821, %v6828
        %vm6830 = vcmp.eq.s32.totalorder %v6825, 2
        %v6831 = vxor.u32 %v6821, 2147483648
        %v6832 = vsel %vm6830, %v6831, %v6822
        %v6833 = vsel %vm6826, %v6829, %v6832
        %v6834 = vsel %vm6823, nan, %v6833
        %v6835 = vand.u32 2147483647, %v4264
        %vm6836 = vcmp.le.f32.partialorder %v6835, 0.7853982
        %vm6837 = vcmp.lt.s32.totalorder %v4264, 0
        %v6838 = vand.u32 %v4264, 2139095040
        %v6839 = vshrl.u32 %v6838, 23
        %v6840 = vsub.s32 %v6839, 127
        %v6841 = vand.u32 2147483647, %v4264
        %v6842 = vand.u32 %v6841, 8388607
        %v6843 = vor.u32 %v6842, 8388608
        %v6844 = vsub.s32 0, %v6843
        %v6845 = vadd.s32 %v6840, 1
        %vm6846 = vcmp.gt.s32.totalorder %v6845, 0
        %v6847 = vsel %vm6846, %v6845, 0
        %v6848 = vshrl.u32 %v6847, 5
        %v6849 = vand.u32 %v6847, 31
        %v6850 = vsub.s32 32, %v6849
        %v6851 = vshrl.u32 683565275, %v6850
        %v6852 = vshll.u32 683565275, %v6849
        %v6853 = vshrl.u32 2475754826, %v6850
        %v6854 = vor.u32 %v6852, %v6853
        %v6855 = vshll.u32 2475754826, %v6849
        %v6856 = vshrl.u32 2131351028, %v6850
        %v6857 = vor.u32 %v6855, %v6856
        %v6858 = vshll.u32 2131351028, %v6849
        %v6859 = vshrl.u32 2102212464, %v6850
        %v6860 = vor.u32 %v6858, %v6859
        %v6861 = vshll.u32 2102212464, %v6849
        %v6862 = vshrl.u32 920167782, %v6850
        %v6863 = vor.u32 %v6861, %v6862
        %v6864 = vshll.u32 920167782, %v6849
        %v6865 = vshrl.u32 1326507024, %v6850
        %v6866 = vor.u32 %v6864, %v6865
        %vm6867 = vcmp.lt.s32.totalorder %v6848, 1
        %vm6868 = vcmp.lt.s32.totalorder %v6848, 2
        %vm6869 = vcmp.lt.s32.totalorder %v6848, 3
        %vm6870 = vcmp.lt.s32.totalorder %v6848, 4
        %v6871 = vsel %vm6867, %v6851, %v6854
        %v6872 = vsel %vm6870, %v6860, 2102212464
        %v6873 = vsel %vm6869, %v6857, %v6872
        %v6874 = vsel %vm6868, %v6871, %v6873
        %v6875 = vsel %vm6867, %v6854, %v6857
        %v6876 = vsel %vm6870, %v6863, 920167782
        %v6877 = vsel %vm6869, %v6860, %v6876
        %v6878 = vsel %vm6868, %v6875, %v6877
        %v6879 = vsel %vm6867, %v6857, %v6860
        %v6880 = vsel %vm6870, %v6866, 1326507024
        %v6881 = vsel %vm6869, %v6863, %v6880
        %v6882 = vsel %vm6868, %v6879, %v6881
        %v6883 = vshll.u32 %v6843, 8
        %v6884 = vmul.u32.u64.compose %v6883, %v6882
        %v6885 = vextract.low.u32 %v6884
        %v6886 = vextract.high.u32 %v6884
        %v6887 = vmul.u32.u64.compose %v6883, %v6878
        %v6888 = vextract.low.u32 %v6887
        %v6889 = vextract.high.u32 %v6887
        %v6890 = vmul.u32 %v6883, %v6874
        %v6891 = vadd.s32 %v6886, %v6888
        %vm6892 = vc.u32 %v6886, %v6888
        %v6893 = vadd.s32 %v6889, 1
        %v6894 = vsel %vm6892, %v6893, %v6889
        %v6895 = vadd.s32 %v6890, %v6894
        %v6896 = vadd.s32 %v6895, 536870912
        %v6897 = vshrl.u32 %v6896, 30
        %v6898 = vshll.u32 %v6897, 30
        %v6899 = vsub.s32 %v6895, %v6898
        %vm6900 = vcmp.lt.s32.totalorder %v6899, 0
        %v6901 = vsub.s32 0, %v6899
        %v6902 = vsel %vm6900, %v6901, %v6899
        %v6903 = vclz %v6902
        %v6904 = vsub.s32 %v6903, 2
        %vm6905 = vcmp.gt.s32.totalorder 0, %v6904
        %v6906 = vsel %vm6905, 0, %v6904
        %v6907 = vsub.s32 32, %v6906
        %v6908 = vshll.u32 %v6899, %v6906
        %v6909 = vshrl.u32 %v6891, %v6907
        %v6910 = vor.u32 %v6908, %v6909
        %v6911 = vsub.s32 4294967266, %v6906
        %v6912 = vadd.s32 %v6911, 127
        %v6913 = vshll.u32 %v6912, 23
        %v6914 = vor.u32 4788187, %v6913
        %v6915 = vand.u32 2147483647, %v6914
        %v6917 = vcvt.s32.f32 %v6910
        %v6918 = vmul.f32 %v6917, %v6915
        %v6919 = vxor.u32 %v6918, 2147483648
        %v6920 = vsel %vm6837, %v6919, %v6918
        %v6921 = vsub.s32 4, %v6897
        %v6922 = vsel %vm6837, %v6921, %v6897
        %v6923 = vsel %vm6836, %v4264, %v6920
        %v6924 = vsel %vm6836, 0, %v6922
        %v6925 = vcosq.f32.pop %v6923
        %v6926 = vsinq.f32.pop %v6923
        %vm6927 = vweird.f32 %v4264
        %v6928 = vadd.s32 %v6924, 3
        %v6929 = vand.u32 %v6928, 3
        %vm6930 = vcmp.lt.s32.totalorder %v6929, 2
        %vm6931 = vcmp.eq.s32.totalorder %v6929, 0
        %v6932 = vxor.u32 %v6926, 2147483648
        %v6933 = vsel %vm6931, %v6925, %v6932
        %vm6934 = vcmp.eq.s32.totalorder %v6929, 2
        %v6935 = vxor.u32 %v6925, 2147483648
        %v6936 = vsel %vm6934, %v6935, %v6926
        %v6937 = vsel %vm6930, %v6933, %v6936
        %v6938 = vsel %vm6927, nan, %v6937
        %v6939 = vand.u32 2147483647, %v4339
        %vm6940 = vcmp.le.f32.partialorder %v6939, 0.7853982
        %vm6941 = vcmp.lt.s32.totalorder %v4339, 0
        %v6942 = vand.u32 %v4339, 2139095040
        %v6943 = vshrl.u32 %v6942, 23
        %v6944 = vsub.s32 %v6943, 127
        %v6945 = vand.u32 2147483647, %v4339
        %v6946 = vand.u32 %v6945, 8388607
        %v6947 = vor.u32 %v6946, 8388608
        %v6948 = vsub.s32 0, %v6947
        %v6949 = vadd.s32 %v6944, 1
        %vm6950 = vcmp.gt.s32.totalorder %v6949, 0
        %v6951 = vsel %vm6950, %v6949, 0
        %v6952 = vshrl.u32 %v6951, 5
        %v6953 = vand.u32 %v6951, 31
        %v6954 = vsub.s32 32, %v6953
        %v6955 = vshrl.u32 683565275, %v6954
        %v6956 = vshll.u32 683565275, %v6953
        %v6957 = vshrl.u32 2475754826, %v6954
        %v6958 = vor.u32 %v6956, %v6957
        %v6959 = vshll.u32 2475754826, %v6953
        %v6960 = vshrl.u32 2131351028, %v6954
        %v6961 = vor.u32 %v6959, %v6960
        %v6962 = vshll.u32 2131351028, %v6953
        %v6963 = vshrl.u32 2102212464, %v6954
        %v6964 = vor.u32 %v6962, %v6963
        %v6965 = vshll.u32 2102212464, %v6953
        %v6966 = vshrl.u32 920167782, %v6954
        %v6967 = vor.u32 %v6965, %v6966
        %v6968 = vshll.u32 920167782, %v6953
        %v6969 = vshrl.u32 1326507024, %v6954
        %v6970 = vor.u32 %v6968, %v6969
        %vm6971 = vcmp.lt.s32.totalorder %v6952, 1
        %vm6972 = vcmp.lt.s32.totalorder %v6952, 2
        %vm6973 = vcmp.lt.s32.totalorder %v6952, 3
        %vm6974 = vcmp.lt.s32.totalorder %v6952, 4
        %v6975 = vsel %vm6971, %v6955, %v6958
        %v6976 = vsel %vm6974, %v6964, 2102212464
        %v6977 = vsel %vm6973, %v6961, %v6976
        %v6978 = vsel %vm6972, %v6975, %v6977
        %v6979 = vsel %vm6971, %v6958, %v6961
        %v6980 = vsel %vm6974, %v6967, 920167782
        %v6981 = vsel %vm6973, %v6964, %v6980
        %v6982 = vsel %vm6972, %v6979, %v6981
        %v6983 = vsel %vm6971, %v6961, %v6964
        %v6984 = vsel %vm6974, %v6970, 1326507024
        %v6985 = vsel %vm6973, %v6967, %v6984
        %v6986 = vsel %vm6972, %v6983, %v6985
        %v6987 = vshll.u32 %v6947, 8
        %v6988 = vmul.u32.u64.compose %v6987, %v6986
        %v6989 = vextract.low.u32 %v6988
        %v6990 = vextract.high.u32 %v6988
        %v6991 = vmul.u32.u64.compose %v6987, %v6982
        %v6992 = vextract.low.u32 %v6991
        %v6993 = vextract.high.u32 %v6991
        %v6994 = vmul.u32 %v6987, %v6978
        %v6995 = vadd.s32 %v6990, %v6992
        %vm6996 = vc.u32 %v6990, %v6992
        %v6997 = vadd.s32 %v6993, 1
        %v6998 = vsel %vm6996, %v6997, %v6993
        %v6999 = vadd.s32 %v6994, %v6998
        %v7000 = vadd.s32 %v6999, 536870912
        %v7001 = vshrl.u32 %v7000, 30
        %v7002 = vshll.u32 %v7001, 30
        %v7003 = vsub.s32 %v6999, %v7002
        %vm7004 = vcmp.lt.s32.totalorder %v7003, 0
        %v7005 = vsub.s32 0, %v7003
        %v7006 = vsel %vm7004, %v7005, %v7003
        %v7007 = vclz %v7006
        %v7008 = vsub.s32 %v7007, 2
        %vm7009 = vcmp.gt.s32.totalorder 0, %v7008
        %v7010 = vsel %vm7009, 0, %v7008
        %v7011 = vsub.s32 32, %v7010
        %v7012 = vshll.u32 %v7003, %v7010
        %v7013 = vshrl.u32 %v6995, %v7011
        %v7014 = vor.u32 %v7012, %v7013
        %v7015 = vsub.s32 4294967266, %v7010
        %v7016 = vadd.s32 %v7015, 127
        %v7017 = vshll.u32 %v7016, 23
        %v7018 = vor.u32 4788187, %v7017
        %v7019 = vand.u32 2147483647, %v7018
        %v7021 = vcvt.s32.f32 %v7014
        %v7022 = vmul.f32 %v7021, %v7019
        %v7023 = vxor.u32 %v7022, 2147483648
        %v7024 = vsel %vm6941, %v7023, %v7022
        %v7025 = vsub.s32 4, %v7001
        %v7026 = vsel %vm6941, %v7025, %v7001
        %v7027 = vsel %vm6940, %v4339, %v7024
        %v7028 = vsel %vm6940, 0, %v7026
        %v7029 = vcosq.f32.pop %v7027
        %v7030 = vsinq.f32.pop %v7027
        %vm7031 = vweird.f32 %v4339
        %v7032 = vadd.s32 %v7028, 3
        %v7033 = vand.u32 %v7032, 3
        %vm7034 = vcmp.lt.s32.totalorder %v7033, 2
        %vm7035 = vcmp.eq.s32.totalorder %v7033, 0
        %v7036 = vxor.u32 %v7030, 2147483648
        %v7037 = vsel %vm7035, %v7029, %v7036
        %vm7038 = vcmp.eq.s32.totalorder %v7033, 2
        %v7039 = vxor.u32 %v7029, 2147483648
        %v7040 = vsel %vm7038, %v7039, %v7030
        %v7041 = vsel %vm7034, %v7037, %v7040
        %v7042 = vsel %vm7031, nan, %v7041
        %v7043 = vand.u32 2147483647, %v4341
        %vm7044 = vcmp.le.f32.partialorder %v7043, 0.7853982
        %vm7045 = vcmp.lt.s32.totalorder %v4341, 0
        %v7046 = vand.u32 %v4341, 2139095040
        %v7047 = vshrl.u32 %v7046, 23
        %v7048 = vsub.s32 %v7047, 127
        %v7049 = vand.u32 2147483647, %v4341
        %v7050 = vand.u32 %v7049, 8388607
        %v7051 = vor.u32 %v7050, 8388608
        %v7052 = vsub.s32 0, %v7051
        %v7053 = vadd.s32 %v7048, 1
        %vm7054 = vcmp.gt.s32.totalorder %v7053, 0
        %v7055 = vsel %vm7054, %v7053, 0
        %v7056 = vshrl.u32 %v7055, 5
        %v7057 = vand.u32 %v7055, 31
        %v7058 = vsub.s32 32, %v7057
        %v7059 = vshrl.u32 683565275, %v7058
        %v7060 = vshll.u32 683565275, %v7057
        %v7061 = vshrl.u32 2475754826, %v7058
        %v7062 = vor.u32 %v7060, %v7061
        %v7063 = vshll.u32 2475754826, %v7057
        %v7064 = vshrl.u32 2131351028, %v7058
        %v7065 = vor.u32 %v7063, %v7064
        %v7066 = vshll.u32 2131351028, %v7057
        %v7067 = vshrl.u32 2102212464, %v7058
        %v7068 = vor.u32 %v7066, %v7067
        %v7069 = vshll.u32 2102212464, %v7057
        %v7070 = vshrl.u32 920167782, %v7058
        %v7071 = vor.u32 %v7069, %v7070
        %v7072 = vshll.u32 920167782, %v7057
        %v7073 = vshrl.u32 1326507024, %v7058
        %v7074 = vor.u32 %v7072, %v7073
        %vm7075 = vcmp.lt.s32.totalorder %v7056, 1
        %vm7076 = vcmp.lt.s32.totalorder %v7056, 2
        %vm7077 = vcmp.lt.s32.totalorder %v7056, 3
        %vm7078 = vcmp.lt.s32.totalorder %v7056, 4
        %v7079 = vsel %vm7075, %v7059, %v7062
        %v7080 = vsel %vm7078, %v7068, 2102212464
        %v7081 = vsel %vm7077, %v7065, %v7080
        %v7082 = vsel %vm7076, %v7079, %v7081
        %v7083 = vsel %vm7075, %v7062, %v7065
        %v7084 = vsel %vm7078, %v7071, 920167782
        %v7085 = vsel %vm7077, %v7068, %v7084
        %v7086 = vsel %vm7076, %v7083, %v7085
        %v7087 = vsel %vm7075, %v7065, %v7068
        %v7088 = vsel %vm7078, %v7074, 1326507024
        %v7089 = vsel %vm7077, %v7071, %v7088
        %v7090 = vsel %vm7076, %v7087, %v7089
        %v7091 = vshll.u32 %v7051, 8
        %v7092 = vmul.u32.u64.compose %v7091, %v7090
        %v7093 = vextract.low.u32 %v7092
        %v7094 = vextract.high.u32 %v7092
        %v7095 = vmul.u32.u64.compose %v7091, %v7086
        %v7096 = vextract.low.u32 %v7095
        %v7097 = vextract.high.u32 %v7095
        %v7098 = vmul.u32 %v7091, %v7082
        %v7099 = vadd.s32 %v7094, %v7096
        %vm7100 = vc.u32 %v7094, %v7096
        %v7101 = vadd.s32 %v7097, 1
        %v7102 = vsel %vm7100, %v7101, %v7097
        %v7103 = vadd.s32 %v7098, %v7102
        %v7104 = vadd.s32 %v7103, 536870912
        %v7105 = vshrl.u32 %v7104, 30
        %v7106 = vshll.u32 %v7105, 30
        %v7107 = vsub.s32 %v7103, %v7106
        %vm7108 = vcmp.lt.s32.totalorder %v7107, 0
        %v7109 = vsub.s32 0, %v7107
        %v7110 = vsel %vm7108, %v7109, %v7107
        %v7111 = vclz %v7110
        %v7112 = vsub.s32 %v7111, 2
        %vm7113 = vcmp.gt.s32.totalorder 0, %v7112
        %v7114 = vsel %vm7113, 0, %v7112
        %v7115 = vsub.s32 32, %v7114
        %v7116 = vshll.u32 %v7107, %v7114
        %v7117 = vshrl.u32 %v7099, %v7115
        %v7118 = vor.u32 %v7116, %v7117
        %v7119 = vsub.s32 4294967266, %v7114
        %v7120 = vadd.s32 %v7119, 127
        %v7121 = vshll.u32 %v7120, 23
        %v7122 = vor.u32 4788187, %v7121
        %v7123 = vand.u32 2147483647, %v7122
        %v7125 = vcvt.s32.f32 %v7118
        %v7126 = vmul.f32 %v7125, %v7123
        %v7127 = vxor.u32 %v7126, 2147483648
        %v7128 = vsel %vm7045, %v7127, %v7126
        %v7129 = vsub.s32 4, %v7105
        %v7130 = vsel %vm7045, %v7129, %v7105
        %v7131 = vsel %vm7044, %v4341, %v7128
        %v7132 = vsel %vm7044, 0, %v7130
        %v7133 = vcosq.f32.pop %v7131
        %v7134 = vsinq.f32.pop %v7131
        %vm7135 = vweird.f32 %v4341
        %v7136 = vadd.s32 %v7132, 3
        %v7137 = vand.u32 %v7136, 3
        %vm7138 = vcmp.lt.s32.totalorder %v7137, 2
        %vm7139 = vcmp.eq.s32.totalorder %v7137, 0
        %v7140 = vxor.u32 %v7134, 2147483648
        %v7141 = vsel %vm7139, %v7133, %v7140
        %vm7142 = vcmp.eq.s32.totalorder %v7137, 2
        %v7143 = vxor.u32 %v7133, 2147483648
        %v7144 = vsel %vm7142, %v7143, %v7134
        %v7145 = vsel %vm7138, %v7141, %v7144
        %v7146 = vsel %vm7135, nan, %v7145
        %v7147 = vand.u32 2147483647, %v4416
        %vm7148 = vcmp.le.f32.partialorder %v7147, 0.7853982
        %vm7149 = vcmp.lt.s32.totalorder %v4416, 0
        %v7150 = vand.u32 %v4416, 2139095040
        %v7151 = vshrl.u32 %v7150, 23
        %v7152 = vsub.s32 %v7151, 127
        %v7153 = vand.u32 2147483647, %v4416
        %v7154 = vand.u32 %v7153, 8388607
        %v7155 = vor.u32 %v7154, 8388608
        %v7156 = vsub.s32 0, %v7155
        %v7157 = vadd.s32 %v7152, 1
        %vm7158 = vcmp.gt.s32.totalorder %v7157, 0
        %v7159 = vsel %vm7158, %v7157, 0
        %v7160 = vshrl.u32 %v7159, 5
        %v7161 = vand.u32 %v7159, 31
        %v7162 = vsub.s32 32, %v7161
        %v7163 = vshrl.u32 683565275, %v7162
        %v7164 = vshll.u32 683565275, %v7161
        %v7165 = vshrl.u32 2475754826, %v7162
        %v7166 = vor.u32 %v7164, %v7165
        %v7167 = vshll.u32 2475754826, %v7161
        %v7168 = vshrl.u32 2131351028, %v7162
        %v7169 = vor.u32 %v7167, %v7168
        %v7170 = vshll.u32 2131351028, %v7161
        %v7171 = vshrl.u32 2102212464, %v7162
        %v7172 = vor.u32 %v7170, %v7171
        %v7173 = vshll.u32 2102212464, %v7161
        %v7174 = vshrl.u32 920167782, %v7162
        %v7175 = vor.u32 %v7173, %v7174
        %v7176 = vshll.u32 920167782, %v7161
        %v7177 = vshrl.u32 1326507024, %v7162
        %v7178 = vor.u32 %v7176, %v7177
        %vm7179 = vcmp.lt.s32.totalorder %v7160, 1
        %vm7180 = vcmp.lt.s32.totalorder %v7160, 2
        %vm7181 = vcmp.lt.s32.totalorder %v7160, 3
        %vm7182 = vcmp.lt.s32.totalorder %v7160, 4
        %v7183 = vsel %vm7179, %v7163, %v7166
        %v7184 = vsel %vm7182, %v7172, 2102212464
        %v7185 = vsel %vm7181, %v7169, %v7184
        %v7186 = vsel %vm7180, %v7183, %v7185
        %v7187 = vsel %vm7179, %v7166, %v7169
        %v7188 = vsel %vm7182, %v7175, 920167782
        %v7189 = vsel %vm7181, %v7172, %v7188
        %v7190 = vsel %vm7180, %v7187, %v7189
        %v7191 = vsel %vm7179, %v7169, %v7172
        %v7192 = vsel %vm7182, %v7178, 1326507024
        %v7193 = vsel %vm7181, %v7175, %v7192
        %v7194 = vsel %vm7180, %v7191, %v7193
        %v7195 = vshll.u32 %v7155, 8
        %v7196 = vmul.u32.u64.compose %v7195, %v7194
        %v7197 = vextract.low.u32 %v7196
        %v7198 = vextract.high.u32 %v7196
        %v7199 = vmul.u32.u64.compose %v7195, %v7190
        %v7200 = vextract.low.u32 %v7199
        %v7201 = vextract.high.u32 %v7199
        %v7202 = vmul.u32 %v7195, %v7186
        %v7203 = vadd.s32 %v7198, %v7200
        %vm7204 = vc.u32 %v7198, %v7200
        %v7205 = vadd.s32 %v7201, 1
        %v7206 = vsel %vm7204, %v7205, %v7201
        %v7207 = vadd.s32 %v7202, %v7206
        %v7208 = vadd.s32 %v7207, 536870912
        %v7209 = vshrl.u32 %v7208, 30
        %v7210 = vshll.u32 %v7209, 30
        %v7211 = vsub.s32 %v7207, %v7210
        %vm7212 = vcmp.lt.s32.totalorder %v7211, 0
        %v7213 = vsub.s32 0, %v7211
        %v7214 = vsel %vm7212, %v7213, %v7211
        %v7215 = vclz %v7214
        %v7216 = vsub.s32 %v7215, 2
        %vm7217 = vcmp.gt.s32.totalorder 0, %v7216
        %v7218 = vsel %vm7217, 0, %v7216
        %v7219 = vsub.s32 32, %v7218
        %v7220 = vshll.u32 %v7211, %v7218
        %v7221 = vshrl.u32 %v7203, %v7219
        %v7222 = vor.u32 %v7220, %v7221
        %v7223 = vsub.s32 4294967266, %v7218
        %v7224 = vadd.s32 %v7223, 127
        %v7225 = vshll.u32 %v7224, 23
        %v7226 = vor.u32 4788187, %v7225
        %v7227 = vand.u32 2147483647, %v7226
        %v7229 = vcvt.s32.f32 %v7222
        %v7230 = vmul.f32 %v7229, %v7227
        %v7231 = vxor.u32 %v7230, 2147483648
        %v7232 = vsel %vm7149, %v7231, %v7230
        %v7233 = vsub.s32 4, %v7209
        %v7234 = vsel %vm7149, %v7233, %v7209
        %v7235 = vsel %vm7148, %v4416, %v7232
        %v7236 = vsel %vm7148, 0, %v7234
        %v7237 = vcosq.f32.pop %v7235
        %v7238 = vsinq.f32.pop %v7235
        %vm7239 = vweird.f32 %v4416
        %v7240 = vadd.s32 %v7236, 3
        %v7241 = vand.u32 %v7240, 3
        %vm7242 = vcmp.lt.s32.totalorder %v7241, 2
        %vm7243 = vcmp.eq.s32.totalorder %v7241, 0
        %v7244 = vxor.u32 %v7238, 2147483648
        %v7245 = vsel %vm7243, %v7237, %v7244
        %vm7246 = vcmp.eq.s32.totalorder %v7241, 2
        %v7247 = vxor.u32 %v7237, 2147483648
        %v7248 = vsel %vm7246, %v7247, %v7238
        %v7249 = vsel %vm7242, %v7245, %v7248
        %v7250 = vsel %vm7239, nan, %v7249
        %v7251 = vand.u32 2147483647, %v4418
        %vm7252 = vcmp.le.f32.partialorder %v7251, 0.7853982
        %vm7253 = vcmp.lt.s32.totalorder %v4418, 0
        %v7254 = vand.u32 %v4418, 2139095040
        %v7255 = vshrl.u32 %v7254, 23
        %v7256 = vsub.s32 %v7255, 127
        %v7257 = vand.u32 2147483647, %v4418
        %v7258 = vand.u32 %v7257, 8388607
        %v7259 = vor.u32 %v7258, 8388608
        %v7260 = vsub.s32 0, %v7259
        %v7261 = vadd.s32 %v7256, 1
        %vm7262 = vcmp.gt.s32.totalorder %v7261, 0
        %v7263 = vsel %vm7262, %v7261, 0
        %v7264 = vshrl.u32 %v7263, 5
        %v7265 = vand.u32 %v7263, 31
        %v7266 = vsub.s32 32, %v7265
        %v7267 = vshrl.u32 683565275, %v7266
        %v7268 = vshll.u32 683565275, %v7265
        %v7269 = vshrl.u32 2475754826, %v7266
        %v7270 = vor.u32 %v7268, %v7269
        %v7271 = vshll.u32 2475754826, %v7265
        %v7272 = vshrl.u32 2131351028, %v7266
        %v7273 = vor.u32 %v7271, %v7272
        %v7274 = vshll.u32 2131351028, %v7265
        %v7275 = vshrl.u32 2102212464, %v7266
        %v7276 = vor.u32 %v7274, %v7275
        %v7277 = vshll.u32 2102212464, %v7265
        %v7278 = vshrl.u32 920167782, %v7266
        %v7279 = vor.u32 %v7277, %v7278
        %v7280 = vshll.u32 920167782, %v7265
        %v7281 = vshrl.u32 1326507024, %v7266
        %v7282 = vor.u32 %v7280, %v7281
        %vm7283 = vcmp.lt.s32.totalorder %v7264, 1
        %vm7284 = vcmp.lt.s32.totalorder %v7264, 2
        %vm7285 = vcmp.lt.s32.totalorder %v7264, 3
        %vm7286 = vcmp.lt.s32.totalorder %v7264, 4
        %v7287 = vsel %vm7283, %v7267, %v7270
        %v7288 = vsel %vm7286, %v7276, 2102212464
        %v7289 = vsel %vm7285, %v7273, %v7288
        %v7290 = vsel %vm7284, %v7287, %v7289
        %v7291 = vsel %vm7283, %v7270, %v7273
        %v7292 = vsel %vm7286, %v7279, 920167782
        %v7293 = vsel %vm7285, %v7276, %v7292
        %v7294 = vsel %vm7284, %v7291, %v7293
        %v7295 = vsel %vm7283, %v7273, %v7276
        %v7296 = vsel %vm7286, %v7282, 1326507024
        %v7297 = vsel %vm7285, %v7279, %v7296
        %v7298 = vsel %vm7284, %v7295, %v7297
        %v7299 = vshll.u32 %v7259, 8
        %v7300 = vmul.u32.u64.compose %v7299, %v7298
        %v7301 = vextract.low.u32 %v7300
        %v7302 = vextract.high.u32 %v7300
        %v7303 = vmul.u32.u64.compose %v7299, %v7294
        %v7304 = vextract.low.u32 %v7303
        %v7305 = vextract.high.u32 %v7303
        %v7306 = vmul.u32 %v7299, %v7290
        %v7307 = vadd.s32 %v7302, %v7304
        %vm7308 = vc.u32 %v7302, %v7304
        %v7309 = vadd.s32 %v7305, 1
        %v7310 = vsel %vm7308, %v7309, %v7305
        %v7311 = vadd.s32 %v7306, %v7310
        %v7312 = vadd.s32 %v7311, 536870912
        %v7313 = vshrl.u32 %v7312, 30
        %v7314 = vshll.u32 %v7313, 30
        %v7315 = vsub.s32 %v7311, %v7314
        %vm7316 = vcmp.lt.s32.totalorder %v7315, 0
        %v7317 = vsub.s32 0, %v7315
        %v7318 = vsel %vm7316, %v7317, %v7315
        %v7319 = vclz %v7318
        %v7320 = vsub.s32 %v7319, 2
        %vm7321 = vcmp.gt.s32.totalorder 0, %v7320
        %v7322 = vsel %vm7321, 0, %v7320
        %v7323 = vsub.s32 32, %v7322
        %v7324 = vshll.u32 %v7315, %v7322
        %v7325 = vshrl.u32 %v7307, %v7323
        %v7326 = vor.u32 %v7324, %v7325
        %v7327 = vsub.s32 4294967266, %v7322
        %v7328 = vadd.s32 %v7327, 127
        %v7329 = vshll.u32 %v7328, 23
        %v7330 = vor.u32 4788187, %v7329
        %v7331 = vand.u32 2147483647, %v7330
        %v7333 = vcvt.s32.f32 %v7326
        %v7334 = vmul.f32 %v7333, %v7331
        %v7335 = vxor.u32 %v7334, 2147483648
        %v7336 = vsel %vm7253, %v7335, %v7334
        %v7337 = vsub.s32 4, %v7313
        %v7338 = vsel %vm7253, %v7337, %v7313
        %v7339 = vsel %vm7252, %v4418, %v7336
        %v7340 = vsel %vm7252, 0, %v7338
        %v7341 = vcosq.f32.pop %v7339
        %v7342 = vsinq.f32.pop %v7339
        %vm7343 = vweird.f32 %v4418
        %v7344 = vadd.s32 %v7340, 3
        %v7345 = vand.u32 %v7344, 3
        %vm7346 = vcmp.lt.s32.totalorder %v7345, 2
        %vm7347 = vcmp.eq.s32.totalorder %v7345, 0
        %v7348 = vxor.u32 %v7342, 2147483648
        %v7349 = vsel %vm7347, %v7341, %v7348
        %vm7350 = vcmp.eq.s32.totalorder %v7345, 2
        %v7351 = vxor.u32 %v7341, 2147483648
        %v7352 = vsel %vm7350, %v7351, %v7342
        %v7353 = vsel %vm7346, %v7349, %v7352
        %v7354 = vsel %vm7343, nan, %v7353
        %v7355 = vand.u32 2147483647, %v4493
        %vm7356 = vcmp.le.f32.partialorder %v7355, 0.7853982
        %vm7357 = vcmp.lt.s32.totalorder %v4493, 0
        %v7358 = vand.u32 %v4493, 2139095040
        %v7359 = vshrl.u32 %v7358, 23
        %v7360 = vsub.s32 %v7359, 127
        %v7361 = vand.u32 2147483647, %v4493
        %v7362 = vand.u32 %v7361, 8388607
        %v7363 = vor.u32 %v7362, 8388608
        %v7364 = vsub.s32 0, %v7363
        %v7365 = vadd.s32 %v7360, 1
        %vm7366 = vcmp.gt.s32.totalorder %v7365, 0
        %v7367 = vsel %vm7366, %v7365, 0
        %v7368 = vshrl.u32 %v7367, 5
        %v7369 = vand.u32 %v7367, 31
        %v7370 = vsub.s32 32, %v7369
        %v7371 = vshrl.u32 683565275, %v7370
        %v7372 = vshll.u32 683565275, %v7369
        %v7373 = vshrl.u32 2475754826, %v7370
        %v7374 = vor.u32 %v7372, %v7373
        %v7375 = vshll.u32 2475754826, %v7369
        %v7376 = vshrl.u32 2131351028, %v7370
        %v7377 = vor.u32 %v7375, %v7376
        %v7378 = vshll.u32 2131351028, %v7369
        %v7379 = vshrl.u32 2102212464, %v7370
        %v7380 = vor.u32 %v7378, %v7379
        %v7381 = vshll.u32 2102212464, %v7369
        %v7382 = vshrl.u32 920167782, %v7370
        %v7383 = vor.u32 %v7381, %v7382
        %v7384 = vshll.u32 920167782, %v7369
        %v7385 = vshrl.u32 1326507024, %v7370
        %v7386 = vor.u32 %v7384, %v7385
        %vm7387 = vcmp.lt.s32.totalorder %v7368, 1
        %vm7388 = vcmp.lt.s32.totalorder %v7368, 2
        %vm7389 = vcmp.lt.s32.totalorder %v7368, 3
        %vm7390 = vcmp.lt.s32.totalorder %v7368, 4
        %v7391 = vsel %vm7387, %v7371, %v7374
        %v7392 = vsel %vm7390, %v7380, 2102212464
        %v7393 = vsel %vm7389, %v7377, %v7392
        %v7394 = vsel %vm7388, %v7391, %v7393
        %v7395 = vsel %vm7387, %v7374, %v7377
        %v7396 = vsel %vm7390, %v7383, 920167782
        %v7397 = vsel %vm7389, %v7380, %v7396
        %v7398 = vsel %vm7388, %v7395, %v7397
        %v7399 = vsel %vm7387, %v7377, %v7380
        %v7400 = vsel %vm7390, %v7386, 1326507024
        %v7401 = vsel %vm7389, %v7383, %v7400
        %v7402 = vsel %vm7388, %v7399, %v7401
        %v7403 = vshll.u32 %v7363, 8
        %v7404 = vmul.u32.u64.compose %v7403, %v7402
        %v7405 = vextract.low.u32 %v7404
        %v7406 = vextract.high.u32 %v7404
        %v7407 = vmul.u32.u64.compose %v7403, %v7398
        %v7408 = vextract.low.u32 %v7407
        %v7409 = vextract.high.u32 %v7407
        %v7410 = vmul.u32 %v7403, %v7394
        %v7411 = vadd.s32 %v7406, %v7408
        %vm7412 = vc.u32 %v7406, %v7408
        %v7413 = vadd.s32 %v7409, 1
        %v7414 = vsel %vm7412, %v7413, %v7409
        %v7415 = vadd.s32 %v7410, %v7414
        %v7416 = vadd.s32 %v7415, 536870912
        %v7417 = vshrl.u32 %v7416, 30
        %v7418 = vshll.u32 %v7417, 30
        %v7419 = vsub.s32 %v7415, %v7418
        %vm7420 = vcmp.lt.s32.totalorder %v7419, 0
        %v7421 = vsub.s32 0, %v7419
        %v7422 = vsel %vm7420, %v7421, %v7419
        %v7423 = vclz %v7422
        %v7424 = vsub.s32 %v7423, 2
        %vm7425 = vcmp.gt.s32.totalorder 0, %v7424
        %v7426 = vsel %vm7425, 0, %v7424
        %v7427 = vsub.s32 32, %v7426
        %v7428 = vshll.u32 %v7419, %v7426
        %v7429 = vshrl.u32 %v7411, %v7427
        %v7430 = vor.u32 %v7428, %v7429
        %v7431 = vsub.s32 4294967266, %v7426
        %v7432 = vadd.s32 %v7431, 127
        %v7433 = vshll.u32 %v7432, 23
        %v7434 = vor.u32 4788187, %v7433
        %v7435 = vand.u32 2147483647, %v7434
        %v7437 = vcvt.s32.f32 %v7430
        %v7438 = vmul.f32 %v7437, %v7435
        %v7439 = vxor.u32 %v7438, 2147483648
        %v7440 = vsel %vm7357, %v7439, %v7438
        %v7441 = vsub.s32 4, %v7417
        %v7442 = vsel %vm7357, %v7441, %v7417
        %v7443 = vsel %vm7356, %v4493, %v7440
        %v7444 = vsel %vm7356, 0, %v7442
        %v7445 = vcosq.f32.pop %v7443
        %v7446 = vsinq.f32.pop %v7443
        %vm7447 = vweird.f32 %v4493
        %v7448 = vadd.s32 %v7444, 3
        %v7449 = vand.u32 %v7448, 3
        %vm7450 = vcmp.lt.s32.totalorder %v7449, 2
        %vm7451 = vcmp.eq.s32.totalorder %v7449, 0
        %v7452 = vxor.u32 %v7446, 2147483648
        %v7453 = vsel %vm7451, %v7445, %v7452
        %vm7454 = vcmp.eq.s32.totalorder %v7449, 2
        %v7455 = vxor.u32 %v7445, 2147483648
        %v7456 = vsel %vm7454, %v7455, %v7446
        %v7457 = vsel %vm7450, %v7453, %v7456
        %v7458 = vsel %vm7447, nan, %v7457
        %v7459 = vand.u32 2147483647, %v4495
        %vm7460 = vcmp.le.f32.partialorder %v7459, 0.7853982
        %vm7461 = vcmp.lt.s32.totalorder %v4495, 0
        %v7462 = vand.u32 %v4495, 2139095040
        %v7463 = vshrl.u32 %v7462, 23
        %v7464 = vsub.s32 %v7463, 127
        %v7465 = vand.u32 2147483647, %v4495
        %v7466 = vand.u32 %v7465, 8388607
        %v7467 = vor.u32 %v7466, 8388608
        %v7468 = vsub.s32 0, %v7467
        %v7469 = vadd.s32 %v7464, 1
        %vm7470 = vcmp.gt.s32.totalorder %v7469, 0
        %v7471 = vsel %vm7470, %v7469, 0
        %v7472 = vshrl.u32 %v7471, 5
        %v7473 = vand.u32 %v7471, 31
        %v7474 = vsub.s32 32, %v7473
        %v7475 = vshrl.u32 683565275, %v7474
        %v7476 = vshll.u32 683565275, %v7473
        %v7477 = vshrl.u32 2475754826, %v7474
        %v7478 = vor.u32 %v7476, %v7477
        %v7479 = vshll.u32 2475754826, %v7473
        %v7480 = vshrl.u32 2131351028, %v7474
        %v7481 = vor.u32 %v7479, %v7480
        %v7482 = vshll.u32 2131351028, %v7473
        %v7483 = vshrl.u32 2102212464, %v7474
        %v7484 = vor.u32 %v7482, %v7483
        %v7485 = vshll.u32 2102212464, %v7473
        %v7486 = vshrl.u32 920167782, %v7474
        %v7487 = vor.u32 %v7485, %v7486
        %v7488 = vshll.u32 920167782, %v7473
        %v7489 = vshrl.u32 1326507024, %v7474
        %v7490 = vor.u32 %v7488, %v7489
        %vm7491 = vcmp.lt.s32.totalorder %v7472, 1
        %vm7492 = vcmp.lt.s32.totalorder %v7472, 2
        %vm7493 = vcmp.lt.s32.totalorder %v7472, 3
        %vm7494 = vcmp.lt.s32.totalorder %v7472, 4
        %v7495 = vsel %vm7491, %v7475, %v7478
        %v7496 = vsel %vm7494, %v7484, 2102212464
        %v7497 = vsel %vm7493, %v7481, %v7496
        %v7498 = vsel %vm7492, %v7495, %v7497
        %v7499 = vsel %vm7491, %v7478, %v7481
        %v7500 = vsel %vm7494, %v7487, 920167782
        %v7501 = vsel %vm7493, %v7484, %v7500
        %v7502 = vsel %vm7492, %v7499, %v7501
        %v7503 = vsel %vm7491, %v7481, %v7484
        %v7504 = vsel %vm7494, %v7490, 1326507024
        %v7505 = vsel %vm7493, %v7487, %v7504
        %v7506 = vsel %vm7492, %v7503, %v7505
        %v7507 = vshll.u32 %v7467, 8
        %v7508 = vmul.u32.u64.compose %v7507, %v7506
        %v7509 = vextract.low.u32 %v7508
        %v7510 = vextract.high.u32 %v7508
        %v7511 = vmul.u32.u64.compose %v7507, %v7502
        %v7512 = vextract.low.u32 %v7511
        %v7513 = vextract.high.u32 %v7511
        %v7514 = vmul.u32 %v7507, %v7498
        %v7515 = vadd.s32 %v7510, %v7512
        %vm7516 = vc.u32 %v7510, %v7512
        %v7517 = vadd.s32 %v7513, 1
        %v7518 = vsel %vm7516, %v7517, %v7513
        %v7519 = vadd.s32 %v7514, %v7518
        %v7520 = vadd.s32 %v7519, 536870912
        %v7521 = vshrl.u32 %v7520, 30
        %v7522 = vshll.u32 %v7521, 30
        %v7523 = vsub.s32 %v7519, %v7522
        %vm7524 = vcmp.lt.s32.totalorder %v7523, 0
        %v7525 = vsub.s32 0, %v7523
        %v7526 = vsel %vm7524, %v7525, %v7523
        %v7527 = vclz %v7526
        %v7528 = vsub.s32 %v7527, 2
        %vm7529 = vcmp.gt.s32.totalorder 0, %v7528
        %v7530 = vsel %vm7529, 0, %v7528
        %v7531 = vsub.s32 32, %v7530
        %v7532 = vshll.u32 %v7523, %v7530
        %v7533 = vshrl.u32 %v7515, %v7531
        %v7534 = vor.u32 %v7532, %v7533
        %v7535 = vsub.s32 4294967266, %v7530
        %v7536 = vadd.s32 %v7535, 127
        %v7537 = vshll.u32 %v7536, 23
        %v7538 = vor.u32 4788187, %v7537
        %v7539 = vand.u32 2147483647, %v7538
        %v7541 = vcvt.s32.f32 %v7534
        %v7542 = vmul.f32 %v7541, %v7539
        %v7543 = vxor.u32 %v7542, 2147483648
        %v7544 = vsel %vm7461, %v7543, %v7542
        %v7545 = vsub.s32 4, %v7521
        %v7546 = vsel %vm7461, %v7545, %v7521
        %v7547 = vsel %vm7460, %v4495, %v7544
        %v7548 = vsel %vm7460, 0, %v7546
        %v7549 = vcosq.f32.pop %v7547
        %v7550 = vsinq.f32.pop %v7547
        %vm7551 = vweird.f32 %v4495
        %v7552 = vadd.s32 %v7548, 3
        %v7553 = vand.u32 %v7552, 3
        %vm7554 = vcmp.lt.s32.totalorder %v7553, 2
        %vm7555 = vcmp.eq.s32.totalorder %v7553, 0
        %v7556 = vxor.u32 %v7550, 2147483648
        %v7557 = vsel %vm7555, %v7549, %v7556
        %vm7558 = vcmp.eq.s32.totalorder %v7553, 2
        %v7559 = vxor.u32 %v7549, 2147483648
        %v7560 = vsel %vm7558, %v7559, %v7550
        %v7561 = vsel %vm7554, %v7557, %v7560
        %v7562 = vsel %vm7551, nan, %v7561
        %v7563 = vand.u32 2147483647, %v4570
        %vm7564 = vcmp.le.f32.partialorder %v7563, 0.7853982
        %vm7565 = vcmp.lt.s32.totalorder %v4570, 0
        %v7566 = vand.u32 %v4570, 2139095040
        %v7567 = vshrl.u32 %v7566, 23
        %v7568 = vsub.s32 %v7567, 127
        %v7569 = vand.u32 2147483647, %v4570
        %v7570 = vand.u32 %v7569, 8388607
        %v7571 = vor.u32 %v7570, 8388608
        %v7572 = vsub.s32 0, %v7571
        %v7573 = vadd.s32 %v7568, 1
        %vm7574 = vcmp.gt.s32.totalorder %v7573, 0
        %v7575 = vsel %vm7574, %v7573, 0
        %v7576 = vshrl.u32 %v7575, 5
        %v7577 = vand.u32 %v7575, 31
        %v7578 = vsub.s32 32, %v7577
        %v7579 = vshrl.u32 683565275, %v7578
        %v7580 = vshll.u32 683565275, %v7577
        %v7581 = vshrl.u32 2475754826, %v7578
        %v7582 = vor.u32 %v7580, %v7581
        %v7583 = vshll.u32 2475754826, %v7577
        %v7584 = vshrl.u32 2131351028, %v7578
        %v7585 = vor.u32 %v7583, %v7584
        %v7586 = vshll.u32 2131351028, %v7577
        %v7587 = vshrl.u32 2102212464, %v7578
        %v7588 = vor.u32 %v7586, %v7587
        %v7589 = vshll.u32 2102212464, %v7577
        %v7590 = vshrl.u32 920167782, %v7578
        %v7591 = vor.u32 %v7589, %v7590
        %v7592 = vshll.u32 920167782, %v7577
        %v7593 = vshrl.u32 1326507024, %v7578
        %v7594 = vor.u32 %v7592, %v7593
        %vm7595 = vcmp.lt.s32.totalorder %v7576, 1
        %vm7596 = vcmp.lt.s32.totalorder %v7576, 2
        %vm7597 = vcmp.lt.s32.totalorder %v7576, 3
        %vm7598 = vcmp.lt.s32.totalorder %v7576, 4
        %v7599 = vsel %vm7595, %v7579, %v7582
        %v7600 = vsel %vm7598, %v7588, 2102212464
        %v7601 = vsel %vm7597, %v7585, %v7600
        %v7602 = vsel %vm7596, %v7599, %v7601
        %v7603 = vsel %vm7595, %v7582, %v7585
        %v7604 = vsel %vm7598, %v7591, 920167782
        %v7605 = vsel %vm7597, %v7588, %v7604
        %v7606 = vsel %vm7596, %v7603, %v7605
        %v7607 = vsel %vm7595, %v7585, %v7588
        %v7608 = vsel %vm7598, %v7594, 1326507024
        %v7609 = vsel %vm7597, %v7591, %v7608
        %v7610 = vsel %vm7596, %v7607, %v7609
        %v7611 = vshll.u32 %v7571, 8
        %v7612 = vmul.u32.u64.compose %v7611, %v7610
        %v7613 = vextract.low.u32 %v7612
        %v7614 = vextract.high.u32 %v7612
        %v7615 = vmul.u32.u64.compose %v7611, %v7606
        %v7616 = vextract.low.u32 %v7615
        %v7617 = vextract.high.u32 %v7615
        %v7618 = vmul.u32 %v7611, %v7602
        %v7619 = vadd.s32 %v7614, %v7616
        %vm7620 = vc.u32 %v7614, %v7616
        %v7621 = vadd.s32 %v7617, 1
        %v7622 = vsel %vm7620, %v7621, %v7617
        %v7623 = vadd.s32 %v7618, %v7622
        %v7624 = vadd.s32 %v7623, 536870912
        %v7625 = vshrl.u32 %v7624, 30
        %v7626 = vshll.u32 %v7625, 30
        %v7627 = vsub.s32 %v7623, %v7626
        %vm7628 = vcmp.lt.s32.totalorder %v7627, 0
        %v7629 = vsub.s32 0, %v7627
        %v7630 = vsel %vm7628, %v7629, %v7627
        %v7631 = vclz %v7630
        %v7632 = vsub.s32 %v7631, 2
        %vm7633 = vcmp.gt.s32.totalorder 0, %v7632
        %v7634 = vsel %vm7633, 0, %v7632
        %v7635 = vsub.s32 32, %v7634
        %v7636 = vshll.u32 %v7627, %v7634
        %v7637 = vshrl.u32 %v7619, %v7635
        %v7638 = vor.u32 %v7636, %v7637
        %v7639 = vsub.s32 4294967266, %v7634
        %v7640 = vadd.s32 %v7639, 127
        %v7641 = vshll.u32 %v7640, 23
        %v7642 = vor.u32 4788187, %v7641
        %v7643 = vand.u32 2147483647, %v7642
        %v7645 = vcvt.s32.f32 %v7638
        %v7646 = vmul.f32 %v7645, %v7643
        %v7647 = vxor.u32 %v7646, 2147483648
        %v7648 = vsel %vm7565, %v7647, %v7646
        %v7649 = vsub.s32 4, %v7625
        %v7650 = vsel %vm7565, %v7649, %v7625
        %v7651 = vsel %vm7564, %v4570, %v7648
        %v7652 = vsel %vm7564, 0, %v7650
        %v7653 = vcosq.f32.pop %v7651
        %v7654 = vsinq.f32.pop %v7651
        %vm7655 = vweird.f32 %v4570
        %v7656 = vadd.s32 %v7652, 3
        %v7657 = vand.u32 %v7656, 3
        %vm7658 = vcmp.lt.s32.totalorder %v7657, 2
        %vm7659 = vcmp.eq.s32.totalorder %v7657, 0
        %v7660 = vxor.u32 %v7654, 2147483648
        %v7661 = vsel %vm7659, %v7653, %v7660
        %vm7662 = vcmp.eq.s32.totalorder %v7657, 2
        %v7663 = vxor.u32 %v7653, 2147483648
        %v7664 = vsel %vm7662, %v7663, %v7654
        %v7665 = vsel %vm7658, %v7661, %v7664
        %v7666 = vsel %vm7655, nan, %v7665
        %v7667 = vand.u32 2147483647, %v4572
        %vm7668 = vcmp.le.f32.partialorder %v7667, 0.7853982
        %vm7669 = vcmp.lt.s32.totalorder %v4572, 0
        %v7670 = vand.u32 %v4572, 2139095040
        %v7671 = vshrl.u32 %v7670, 23
        %v7672 = vsub.s32 %v7671, 127
        %v7673 = vand.u32 2147483647, %v4572
        %v7674 = vand.u32 %v7673, 8388607
        %v7675 = vor.u32 %v7674, 8388608
        %v7676 = vsub.s32 0, %v7675
        %v7677 = vadd.s32 %v7672, 1
        %vm7678 = vcmp.gt.s32.totalorder %v7677, 0
        %v7679 = vsel %vm7678, %v7677, 0
        %v7680 = vshrl.u32 %v7679, 5
        %v7681 = vand.u32 %v7679, 31
        %v7682 = vsub.s32 32, %v7681
        %v7683 = vshrl.u32 683565275, %v7682
        %v7684 = vshll.u32 683565275, %v7681
        %v7685 = vshrl.u32 2475754826, %v7682
        %v7686 = vor.u32 %v7684, %v7685
        %v7687 = vshll.u32 2475754826, %v7681
        %v7688 = vshrl.u32 2131351028, %v7682
        %v7689 = vor.u32 %v7687, %v7688
        %v7690 = vshll.u32 2131351028, %v7681
        %v7691 = vshrl.u32 2102212464, %v7682
        %v7692 = vor.u32 %v7690, %v7691
        %v7693 = vshll.u32 2102212464, %v7681
        %v7694 = vshrl.u32 920167782, %v7682
        %v7695 = vor.u32 %v7693, %v7694
        %v7696 = vshll.u32 920167782, %v7681
        %v7697 = vshrl.u32 1326507024, %v7682
        %v7698 = vor.u32 %v7696, %v7697
        %vm7699 = vcmp.lt.s32.totalorder %v7680, 1
        %vm7700 = vcmp.lt.s32.totalorder %v7680, 2
        %vm7701 = vcmp.lt.s32.totalorder %v7680, 3
        %vm7702 = vcmp.lt.s32.totalorder %v7680, 4
        %v7703 = vsel %vm7699, %v7683, %v7686
        %v7704 = vsel %vm7702, %v7692, 2102212464
        %v7705 = vsel %vm7701, %v7689, %v7704
        %v7706 = vsel %vm7700, %v7703, %v7705
        %v7707 = vsel %vm7699, %v7686, %v7689
        %v7708 = vsel %vm7702, %v7695, 920167782
        %v7709 = vsel %vm7701, %v7692, %v7708
        %v7710 = vsel %vm7700, %v7707, %v7709
        %v7711 = vsel %vm7699, %v7689, %v7692
        %v7712 = vsel %vm7702, %v7698, 1326507024
        %v7713 = vsel %vm7701, %v7695, %v7712
        %v7714 = vsel %vm7700, %v7711, %v7713
        %v7715 = vshll.u32 %v7675, 8
        %v7716 = vmul.u32.u64.compose %v7715, %v7714
        %v7717 = vextract.low.u32 %v7716
        %v7718 = vextract.high.u32 %v7716
        %v7719 = vmul.u32.u64.compose %v7715, %v7710
        %v7720 = vextract.low.u32 %v7719
        %v7721 = vextract.high.u32 %v7719
        %v7722 = vmul.u32 %v7715, %v7706
        %v7723 = vadd.s32 %v7718, %v7720
        %vm7724 = vc.u32 %v7718, %v7720
        %v7725 = vadd.s32 %v7721, 1
        %v7726 = vsel %vm7724, %v7725, %v7721
        %v7727 = vadd.s32 %v7722, %v7726
        %v7728 = vadd.s32 %v7727, 536870912
        %v7729 = vshrl.u32 %v7728, 30
        %v7730 = vshll.u32 %v7729, 30
        %v7731 = vsub.s32 %v7727, %v7730
        %vm7732 = vcmp.lt.s32.totalorder %v7731, 0
        %v7733 = vsub.s32 0, %v7731
        %v7734 = vsel %vm7732, %v7733, %v7731
        %v7735 = vclz %v7734
        %v7736 = vsub.s32 %v7735, 2
        %vm7737 = vcmp.gt.s32.totalorder 0, %v7736
        %v7738 = vsel %vm7737, 0, %v7736
        %v7739 = vsub.s32 32, %v7738
        %v7740 = vshll.u32 %v7731, %v7738
        %v7741 = vshrl.u32 %v7723, %v7739
        %v7742 = vor.u32 %v7740, %v7741
        %v7743 = vsub.s32 4294967266, %v7738
        %v7744 = vadd.s32 %v7743, 127
        %v7745 = vshll.u32 %v7744, 23
        %v7746 = vor.u32 4788187, %v7745
        %v7747 = vand.u32 2147483647, %v7746
        %v7749 = vcvt.s32.f32 %v7742
        %v7750 = vmul.f32 %v7749, %v7747
        %v7751 = vxor.u32 %v7750, 2147483648
        %v7752 = vsel %vm7669, %v7751, %v7750
        %v7753 = vsub.s32 4, %v7729
        %v7754 = vsel %vm7669, %v7753, %v7729
        %v7755 = vsel %vm7668, %v4572, %v7752
        %v7756 = vsel %vm7668, 0, %v7754
        %v7757 = vcosq.f32.pop %v7755
        %v7758 = vsinq.f32.pop %v7755
        %vm7759 = vweird.f32 %v4572
        %v7760 = vadd.s32 %v7756, 3
        %v7761 = vand.u32 %v7760, 3
        %vm7762 = vcmp.lt.s32.totalorder %v7761, 2
        %vm7763 = vcmp.eq.s32.totalorder %v7761, 0
        %v7764 = vxor.u32 %v7758, 2147483648
        %v7765 = vsel %vm7763, %v7757, %v7764
        %vm7766 = vcmp.eq.s32.totalorder %v7761, 2
        %v7767 = vxor.u32 %v7757, 2147483648
        %v7768 = vsel %vm7766, %v7767, %v7758
        %v7769 = vsel %vm7762, %v7765, %v7768
        %v7770 = vsel %vm7759, nan, %v7769
        %v7771 = vand.u32 2147483647, %v4647
        %vm7772 = vcmp.le.f32.partialorder %v7771, 0.7853982
        %vm7773 = vcmp.lt.s32.totalorder %v4647, 0
        %v7774 = vand.u32 %v4647, 2139095040
        %v7775 = vshrl.u32 %v7774, 23
        %v7776 = vsub.s32 %v7775, 127
        %v7777 = vand.u32 2147483647, %v4647
        %v7778 = vand.u32 %v7777, 8388607
        %v7779 = vor.u32 %v7778, 8388608
        %v7780 = vsub.s32 0, %v7779
        %v7781 = vadd.s32 %v7776, 1
        %vm7782 = vcmp.gt.s32.totalorder %v7781, 0
        %v7783 = vsel %vm7782, %v7781, 0
        %v7784 = vshrl.u32 %v7783, 5
        %v7785 = vand.u32 %v7783, 31
        %v7786 = vsub.s32 32, %v7785
        %v7787 = vshrl.u32 683565275, %v7786
        %v7788 = vshll.u32 683565275, %v7785
        %v7789 = vshrl.u32 2475754826, %v7786
        %v7790 = vor.u32 %v7788, %v7789
        %v7791 = vshll.u32 2475754826, %v7785
        %v7792 = vshrl.u32 2131351028, %v7786
        %v7793 = vor.u32 %v7791, %v7792
        %v7794 = vshll.u32 2131351028, %v7785
        %v7795 = vshrl.u32 2102212464, %v7786
        %v7796 = vor.u32 %v7794, %v7795
        %v7797 = vshll.u32 2102212464, %v7785
        %v7798 = vshrl.u32 920167782, %v7786
        %v7799 = vor.u32 %v7797, %v7798
        %v7800 = vshll.u32 920167782, %v7785
        %v7801 = vshrl.u32 1326507024, %v7786
        %v7802 = vor.u32 %v7800, %v7801
        %vm7803 = vcmp.lt.s32.totalorder %v7784, 1
        %vm7804 = vcmp.lt.s32.totalorder %v7784, 2
        %vm7805 = vcmp.lt.s32.totalorder %v7784, 3
        %vm7806 = vcmp.lt.s32.totalorder %v7784, 4
        %v7807 = vsel %vm7803, %v7787, %v7790
        %v7808 = vsel %vm7806, %v7796, 2102212464
        %v7809 = vsel %vm7805, %v7793, %v7808
        %v7810 = vsel %vm7804, %v7807, %v7809
        %v7811 = vsel %vm7803, %v7790, %v7793
        %v7812 = vsel %vm7806, %v7799, 920167782
        %v7813 = vsel %vm7805, %v7796, %v7812
        %v7814 = vsel %vm7804, %v7811, %v7813
        %v7815 = vsel %vm7803, %v7793, %v7796
        %v7816 = vsel %vm7806, %v7802, 1326507024
        %v7817 = vsel %vm7805, %v7799, %v7816
        %v7818 = vsel %vm7804, %v7815, %v7817
        %v7819 = vshll.u32 %v7779, 8
        %v7820 = vmul.u32.u64.compose %v7819, %v7818
        %v7821 = vextract.low.u32 %v7820
        %v7822 = vextract.high.u32 %v7820
        %v7823 = vmul.u32.u64.compose %v7819, %v7814
        %v7824 = vextract.low.u32 %v7823
        %v7825 = vextract.high.u32 %v7823
        %v7826 = vmul.u32 %v7819, %v7810
        %v7827 = vadd.s32 %v7822, %v7824
        %vm7828 = vc.u32 %v7822, %v7824
        %v7829 = vadd.s32 %v7825, 1
        %v7830 = vsel %vm7828, %v7829, %v7825
        %v7831 = vadd.s32 %v7826, %v7830
        %v7832 = vadd.s32 %v7831, 536870912
        %v7833 = vshrl.u32 %v7832, 30
        %v7834 = vshll.u32 %v7833, 30
        %v7835 = vsub.s32 %v7831, %v7834
        %vm7836 = vcmp.lt.s32.totalorder %v7835, 0
        %v7837 = vsub.s32 0, %v7835
        %v7838 = vsel %vm7836, %v7837, %v7835
        %v7839 = vclz %v7838
        %v7840 = vsub.s32 %v7839, 2
        %vm7841 = vcmp.gt.s32.totalorder 0, %v7840
        %v7842 = vsel %vm7841, 0, %v7840
        %v7843 = vsub.s32 32, %v7842
        %v7844 = vshll.u32 %v7835, %v7842
        %v7845 = vshrl.u32 %v7827, %v7843
        %v7846 = vor.u32 %v7844, %v7845
        %v7847 = vsub.s32 4294967266, %v7842
        %v7848 = vadd.s32 %v7847, 127
        %v7849 = vshll.u32 %v7848, 23
        %v7850 = vor.u32 4788187, %v7849
        %v7851 = vand.u32 2147483647, %v7850
        %v7853 = vcvt.s32.f32 %v7846
        %v7854 = vmul.f32 %v7853, %v7851
        %v7855 = vxor.u32 %v7854, 2147483648
        %v7856 = vsel %vm7773, %v7855, %v7854
        %v7857 = vsub.s32 4, %v7833
        %v7858 = vsel %vm7773, %v7857, %v7833
        %v7859 = vsel %vm7772, %v4647, %v7856
        %v7860 = vsel %vm7772, 0, %v7858
        %v7861 = vcosq.f32.pop %v7859
        %v7862 = vsinq.f32.pop %v7859
        %vm7863 = vweird.f32 %v4647
        %v7864 = vadd.s32 %v7860, 3
        %v7865 = vand.u32 %v7864, 3
        %vm7866 = vcmp.lt.s32.totalorder %v7865, 2
        %vm7867 = vcmp.eq.s32.totalorder %v7865, 0
        %v7868 = vxor.u32 %v7862, 2147483648
        %v7869 = vsel %vm7867, %v7861, %v7868
        %vm7870 = vcmp.eq.s32.totalorder %v7865, 2
        %v7871 = vxor.u32 %v7861, 2147483648
        %v7872 = vsel %vm7870, %v7871, %v7862
        %v7873 = vsel %vm7866, %v7869, %v7872
        %v7874 = vsel %vm7863, nan, %v7873
        %v7875 = vand.u32 2147483647, %v4649
        %vm7876 = vcmp.le.f32.partialorder %v7875, 0.7853982
        %vm7877 = vcmp.lt.s32.totalorder %v4649, 0
        %v7878 = vand.u32 %v4649, 2139095040
        %v7879 = vshrl.u32 %v7878, 23
        %v7880 = vsub.s32 %v7879, 127
        %v7881 = vand.u32 2147483647, %v4649
        %v7882 = vand.u32 %v7881, 8388607
        %v7883 = vor.u32 %v7882, 8388608
        %v7884 = vsub.s32 0, %v7883
        %v7885 = vadd.s32 %v7880, 1
        %vm7886 = vcmp.gt.s32.totalorder %v7885, 0
        %v7887 = vsel %vm7886, %v7885, 0
        %v7888 = vshrl.u32 %v7887, 5
        %v7889 = vand.u32 %v7887, 31
        %v7890 = vsub.s32 32, %v7889
        %v7891 = vshrl.u32 683565275, %v7890
        %v7892 = vshll.u32 683565275, %v7889
        %v7893 = vshrl.u32 2475754826, %v7890
        %v7894 = vor.u32 %v7892, %v7893
        %v7895 = vshll.u32 2475754826, %v7889
        %v7896 = vshrl.u32 2131351028, %v7890
        %v7897 = vor.u32 %v7895, %v7896
        %v7898 = vshll.u32 2131351028, %v7889
        %v7899 = vshrl.u32 2102212464, %v7890
        %v7900 = vor.u32 %v7898, %v7899
        %v7901 = vshll.u32 2102212464, %v7889
        %v7902 = vshrl.u32 920167782, %v7890
        %v7903 = vor.u32 %v7901, %v7902
        %v7904 = vshll.u32 920167782, %v7889
        %v7905 = vshrl.u32 1326507024, %v7890
        %v7906 = vor.u32 %v7904, %v7905
        %vm7907 = vcmp.lt.s32.totalorder %v7888, 1
        %vm7908 = vcmp.lt.s32.totalorder %v7888, 2
        %vm7909 = vcmp.lt.s32.totalorder %v7888, 3
        %vm7910 = vcmp.lt.s32.totalorder %v7888, 4
        %v7911 = vsel %vm7907, %v7891, %v7894
        %v7912 = vsel %vm7910, %v7900, 2102212464
        %v7913 = vsel %vm7909, %v7897, %v7912
        %v7914 = vsel %vm7908, %v7911, %v7913
        %v7915 = vsel %vm7907, %v7894, %v7897
        %v7916 = vsel %vm7910, %v7903, 920167782
        %v7917 = vsel %vm7909, %v7900, %v7916
        %v7918 = vsel %vm7908, %v7915, %v7917
        %v7919 = vsel %vm7907, %v7897, %v7900
        %v7920 = vsel %vm7910, %v7906, 1326507024
        %v7921 = vsel %vm7909, %v7903, %v7920
        %v7922 = vsel %vm7908, %v7919, %v7921
        %v7923 = vshll.u32 %v7883, 8
        %v7924 = vmul.u32.u64.compose %v7923, %v7922
        %v7925 = vextract.low.u32 %v7924
        %v7926 = vextract.high.u32 %v7924
        %v7927 = vmul.u32.u64.compose %v7923, %v7918
        %v7928 = vextract.low.u32 %v7927
        %v7929 = vextract.high.u32 %v7927
        %v7930 = vmul.u32 %v7923, %v7914
        %v7931 = vadd.s32 %v7926, %v7928
        %vm7932 = vc.u32 %v7926, %v7928
        %v7933 = vadd.s32 %v7929, 1
        %v7934 = vsel %vm7932, %v7933, %v7929
        %v7935 = vadd.s32 %v7930, %v7934
        %v7936 = vadd.s32 %v7935, 536870912
        %v7937 = vshrl.u32 %v7936, 30
        %v7938 = vshll.u32 %v7937, 30
        %v7939 = vsub.s32 %v7935, %v7938
        %vm7940 = vcmp.lt.s32.totalorder %v7939, 0
        %v7941 = vsub.s32 0, %v7939
        %v7942 = vsel %vm7940, %v7941, %v7939
        %v7943 = vclz %v7942
        %v7944 = vsub.s32 %v7943, 2
        %vm7945 = vcmp.gt.s32.totalorder 0, %v7944
        %v7946 = vsel %vm7945, 0, %v7944
        %v7947 = vsub.s32 32, %v7946
        %v7948 = vshll.u32 %v7939, %v7946
        %v7949 = vshrl.u32 %v7931, %v7947
        %v7950 = vor.u32 %v7948, %v7949
        %v7951 = vsub.s32 4294967266, %v7946
        %v7952 = vadd.s32 %v7951, 127
        %v7953 = vshll.u32 %v7952, 23
        %v7954 = vor.u32 4788187, %v7953
        %v7955 = vand.u32 2147483647, %v7954
        %v7957 = vcvt.s32.f32 %v7950
        %v7958 = vmul.f32 %v7957, %v7955
        %v7959 = vxor.u32 %v7958, 2147483648
        %v7960 = vsel %vm7877, %v7959, %v7958
        %v7961 = vsub.s32 4, %v7937
        %v7962 = vsel %vm7877, %v7961, %v7937
        %v7963 = vsel %vm7876, %v4649, %v7960
        %v7964 = vsel %vm7876, 0, %v7962
        %v7965 = vcosq.f32.pop %v7963
        %v7966 = vsinq.f32.pop %v7963
        %vm7967 = vweird.f32 %v4649
        %v7968 = vadd.s32 %v7964, 3
        %v7969 = vand.u32 %v7968, 3
        %vm7970 = vcmp.lt.s32.totalorder %v7969, 2
        %vm7971 = vcmp.eq.s32.totalorder %v7969, 0
        %v7972 = vxor.u32 %v7966, 2147483648
        %v7973 = vsel %vm7971, %v7965, %v7972
        %vm7974 = vcmp.eq.s32.totalorder %v7969, 2
        %v7975 = vxor.u32 %v7965, 2147483648
        %v7976 = vsel %vm7974, %v7975, %v7966
        %v7977 = vsel %vm7970, %v7973, %v7976
        %v7978 = vsel %vm7967, nan, %v7977
        %7979 = vset.pattern.permute.xlu0 4
        %7980 = vperm.xlu0 %7979, %v193
        %v7981 = vpop.permute.xlu0 %7980
        %7983 = vset.pattern.permute.xlu0 4
        %7984 = vperm.xlu0 %7983, %v194
        %v7985 = vpop.permute.xlu0 %7984
        %v7987 = vmul.f32 %v7981, %v4754
        %v7988 = vmul.f32 %v7981, %v4858
        %v7989 = vmul.f32 %v7981, %v4962
        %v7990 = vmul.f32 %v7981, %v5066
        %v7991 = vmul.f32 %v7981, %v5170
        %v7992 = vmul.f32 %v7981, %v5274
        %v7993 = vmul.f32 %v7981, %v5378
        %v7994 = vmul.f32 %v7981, %v5482
        %v7995 = vmul.f32 %v7981, %v5586
        %v7996 = vmul.f32 %v7981, %v5690
        %v7997 = vmul.f32 %v7981, %v5794
        %v7998 = vmul.f32 %v7981, %v5898
        %v7999 = vmul.f32 %v7981, %v6002
        %v8000 = vmul.f32 %v7981, %v6106
        %v8001 = vmul.f32 %v7981, %v6210
        %v8002 = vmul.f32 %v7981, %v6314
        %v8003 = vmul.f32 %v7985, %v6418
        %v8004 = vmul.f32 %v7985, %v6522
        %v8005 = vmul.f32 %v7985, %v6626
        %v8006 = vmul.f32 %v7985, %v6730
        %v8007 = vmul.f32 %v7985, %v6834
        %v8008 = vmul.f32 %v7985, %v6938
        %v8009 = vmul.f32 %v7985, %v7042
        %v8010 = vmul.f32 %v7985, %v7146
        %v8011 = vmul.f32 %v7985, %v7250
        %v8012 = vmul.f32 %v7985, %v7354
        %v8013 = vmul.f32 %v7985, %v7458
        %v8014 = vmul.f32 %v7985, %v7562
        %v8015 = vmul.f32 %v7985, %v7666
        %v8016 = vmul.f32 %v7985, %v7770
        %v8017 = vmul.f32 %v7985, %v7874
        %v8018 = vmul.f32 %v7985, %v7978
        %v8019 = vsel %vm3986, %v8003, 0.0
        %v8020 = vadd.f32 %v7987, %v8019
        %v8021 = vrot.slane %v8020, 4
        %v8022 = vadd.f32 %v8020, %v8021
        %v8023 = vrot.slane %v8022, 2
        %v8024 = vadd.f32 %v8022, %v8023
        %v8025 = vrot.slane %v8024, 1
        %v8026 = vadd.f32 %v8024, %v8025
        %v8027 = vsel %vm3986, %v8004, 0.0
        %v8028 = vadd.f32 %v7988, %v8027
        %v8029 = vrot.slane %v8028, 4
        %v8030 = vadd.f32 %v8028, %v8029
        %v8031 = vrot.slane %v8030, 2
        %v8032 = vadd.f32 %v8030, %v8031
        %v8033 = vrot.slane %v8032, 1
        %v8034 = vadd.f32 %v8032, %v8033
        %v8035 = vsel %vm3986, %v8005, 0.0
        %v8036 = vadd.f32 %v7989, %v8035
        %v8037 = vrot.slane %v8036, 4
        %v8038 = vadd.f32 %v8036, %v8037
        %v8039 = vrot.slane %v8038, 2
        %v8040 = vadd.f32 %v8038, %v8039
        %v8041 = vrot.slane %v8040, 1
        %v8042 = vadd.f32 %v8040, %v8041
        %v8043 = vsel %vm3986, %v8006, 0.0
        %v8044 = vadd.f32 %v7990, %v8043
        %v8045 = vrot.slane %v8044, 4
        %v8046 = vadd.f32 %v8044, %v8045
        %v8047 = vrot.slane %v8046, 2
        %v8048 = vadd.f32 %v8046, %v8047
        %v8049 = vrot.slane %v8048, 1
        %v8050 = vadd.f32 %v8048, %v8049
        %v8051 = vsel %vm3986, %v8007, 0.0
        %v8052 = vadd.f32 %v7991, %v8051
        %v8053 = vrot.slane %v8052, 4
        %v8054 = vadd.f32 %v8052, %v8053
        %v8055 = vrot.slane %v8054, 2
        %v8056 = vadd.f32 %v8054, %v8055
        %v8057 = vrot.slane %v8056, 1
        %v8058 = vadd.f32 %v8056, %v8057
        %v8059 = vsel %vm3986, %v8008, 0.0
        %v8060 = vadd.f32 %v7992, %v8059
        %v8061 = vrot.slane %v8060, 4
        %v8062 = vadd.f32 %v8060, %v8061
        %v8063 = vrot.slane %v8062, 2
        %v8064 = vadd.f32 %v8062, %v8063
        %v8065 = vrot.slane %v8064, 1
        %v8066 = vadd.f32 %v8064, %v8065
        %v8067 = vsel %vm3986, %v8009, 0.0
        %v8068 = vadd.f32 %v7993, %v8067
        %v8069 = vrot.slane %v8068, 4
        %v8070 = vadd.f32 %v8068, %v8069
        %v8071 = vrot.slane %v8070, 2
        %v8072 = vadd.f32 %v8070, %v8071
        %v8073 = vrot.slane %v8072, 1
        %v8074 = vadd.f32 %v8072, %v8073
        %v8075 = vsel %vm3986, %v8010, 0.0
        %v8076 = vadd.f32 %v7994, %v8075
        %v8077 = vrot.slane %v8076, 4
        %v8078 = vadd.f32 %v8076, %v8077
        %v8079 = vrot.slane %v8078, 2
        %v8080 = vadd.f32 %v8078, %v8079
        %v8081 = vrot.slane %v8080, 1
        %v8082 = vadd.f32 %v8080, %v8081
        %v8083 = vsel %vm3986, %v8011, 0.0
        %v8084 = vadd.f32 %v7995, %v8083
        %v8085 = vrot.slane %v8084, 4
        %v8086 = vadd.f32 %v8084, %v8085
        %v8087 = vrot.slane %v8086, 2
        %v8088 = vadd.f32 %v8086, %v8087
        %v8089 = vrot.slane %v8088, 1
        %v8090 = vadd.f32 %v8088, %v8089
        %v8091 = vsel %vm3986, %v8012, 0.0
        %v8092 = vadd.f32 %v7996, %v8091
        %v8093 = vrot.slane %v8092, 4
        %v8094 = vadd.f32 %v8092, %v8093
        %v8095 = vrot.slane %v8094, 2
        %v8096 = vadd.f32 %v8094, %v8095
        %v8097 = vrot.slane %v8096, 1
        %v8098 = vadd.f32 %v8096, %v8097
        %v8099 = vsel %vm3986, %v8013, 0.0
        %v8100 = vadd.f32 %v7997, %v8099
        %v8101 = vrot.slane %v8100, 4
        %v8102 = vadd.f32 %v8100, %v8101
        %v8103 = vrot.slane %v8102, 2
        %v8104 = vadd.f32 %v8102, %v8103
        %v8105 = vrot.slane %v8104, 1
        %v8106 = vadd.f32 %v8104, %v8105
        %v8107 = vsel %vm3986, %v8014, 0.0
        %v8108 = vadd.f32 %v7998, %v8107
        %v8109 = vrot.slane %v8108, 4
        %v8110 = vadd.f32 %v8108, %v8109
        %v8111 = vrot.slane %v8110, 2
        %v8112 = vadd.f32 %v8110, %v8111
        %v8113 = vrot.slane %v8112, 1
        %v8114 = vadd.f32 %v8112, %v8113
        %v8115 = vsel %vm3986, %v8015, 0.0
        %v8116 = vadd.f32 %v7999, %v8115
        %v8117 = vrot.slane %v8116, 4
        %v8118 = vadd.f32 %v8116, %v8117
        %v8119 = vrot.slane %v8118, 2
        %v8120 = vadd.f32 %v8118, %v8119
        %v8121 = vrot.slane %v8120, 1
        %v8122 = vadd.f32 %v8120, %v8121
        %v8123 = vsel %vm3986, %v8016, 0.0
        %v8124 = vadd.f32 %v8000, %v8123
        %v8125 = vrot.slane %v8124, 4
        %v8126 = vadd.f32 %v8124, %v8125
        %v8127 = vrot.slane %v8126, 2
        %v8128 = vadd.f32 %v8126, %v8127
        %v8129 = vrot.slane %v8128, 1
        %v8130 = vadd.f32 %v8128, %v8129
        %v8131 = vsel %vm3986, %v8017, 0.0
        %v8132 = vadd.f32 %v8001, %v8131
        %v8133 = vrot.slane %v8132, 4
        %v8134 = vadd.f32 %v8132, %v8133
        %v8135 = vrot.slane %v8134, 2
        %v8136 = vadd.f32 %v8134, %v8135
        %v8137 = vrot.slane %v8136, 1
        %v8138 = vadd.f32 %v8136, %v8137
        %v8139 = vsel %vm3986, %v8018, 0.0
        %v8140 = vadd.f32 %v8002, %v8139
        %v8141 = vrot.slane %v8140, 4
        %v8142 = vadd.f32 %v8140, %v8141
        %v8143 = vrot.slane %v8142, 2
        %v8144 = vadd.f32 %v8142, %v8143
        %v8145 = vrot.slane %v8144, 1
        %v8146 = vadd.f32 %v8144, %v8145
        %v8147 = vmul.f32 %v7981, %v212
        %v8148 = vmul.f32 %v7981, %v216
        %v8149 = vmul.f32 %v7981, %v220
        %v8150 = vmul.f32 %v7981, %v224
        %v8151 = vmul.f32 %v7981, %v228
        %v8152 = vmul.f32 %v7981, %v232
        %v8153 = vmul.f32 %v7981, %v236
        %v8154 = vmul.f32 %v7981, %v240
        %v8155 = vmul.f32 %v7981, %v244
        %v8156 = vmul.f32 %v7981, %v248
        %v8157 = vmul.f32 %v7981, %v252
        %v8158 = vmul.f32 %v7981, %v256
        %v8159 = vmul.f32 %v7981, %v260
        %v8160 = vmul.f32 %v7981, %v264
        %v8161 = vmul.f32 %v7981, %v268
        %v8162 = vmul.f32 %v7981, %v272
        %v8163 = vadd.f32 %v8026, %v8147
        %v8164 = vadd.f32 %v8034, %v8148
        %v8165 = vadd.f32 %v8042, %v8149
        %v8166 = vadd.f32 %v8050, %v8150
        %v8167 = vadd.f32 %v8058, %v8151
        %v8168 = vadd.f32 %v8066, %v8152
        %v8169 = vadd.f32 %v8074, %v8153
        %v8170 = vadd.f32 %v8082, %v8154
        %v8171 = vadd.f32 %v8090, %v8155
        %v8172 = vadd.f32 %v8098, %v8156
        %v8173 = vadd.f32 %v8106, %v8157
        %v8174 = vadd.f32 %v8114, %v8158
        %v8175 = vadd.f32 %v8122, %v8159
        %v8176 = vadd.f32 %v8130, %v8160
        %v8177 = vadd.f32 %v8138, %v8161
        %v8178 = vadd.f32 %v8146, %v8162
        %v8179 = vmul.f32 %v7981, %v396
        %v8180 = vmul.f32 %v7981, %v400
        %v8181 = vmul.f32 %v7981, %v404
        %v8182 = vmul.f32 %v7981, %v408
        %v8183 = vmul.f32 %v7981, %v412
        %v8184 = vmul.f32 %v7981, %v416
        %v8185 = vmul.f32 %v7981, %v420
        %v8186 = vmul.f32 %v7981, %v424
        %v8187 = vmul.f32 %v7981, %v428
        %v8188 = vmul.f32 %v7981, %v432
        %v8189 = vmul.f32 %v7981, %v436
        %v8190 = vmul.f32 %v7981, %v440
        %v8191 = vmul.f32 %v7981, %v444
        %v8192 = vmul.f32 %v7981, %v448
        %v8193 = vmul.f32 %v7981, %v452
        %v8194 = vmul.f32 %v7981, %v456
        %v8211 = vrot.slane %v8179, 1
        %v8212 = vrot.slane %v8180, 1
        %v8213 = vrot.slane %v8181, 1
        %v8214 = vrot.slane %v8182, 1
        %v8215 = vrot.slane %v8183, 1
        %v8216 = vrot.slane %v8184, 1
        %v8217 = vrot.slane %v8185, 1
        %v8218 = vrot.slane %v8186, 1
        %v8219 = vrot.slane %v8187, 1
        %v8220 = vrot.slane %v8188, 1
        %v8221 = vrot.slane %v8189, 1
        %v8222 = vrot.slane %v8190, 1
        %v8223 = vrot.slane %v8191, 1
        %v8224 = vrot.slane %v8192, 1
        %v8225 = vrot.slane %v8193, 1
        %v8226 = vrot.slane %v8194, 1
        %v8243 = vadd.f32 %v8163, %v8211
        %v8244 = vadd.f32 %v8164, %v8212
        %v8245 = vadd.f32 %v8165, %v8213
        %v8246 = vadd.f32 %v8166, %v8214
        %v8247 = vadd.f32 %v8167, %v8215
        %v8248 = vadd.f32 %v8168, %v8216
        %v8249 = vadd.f32 %v8169, %v8217
        %v8250 = vadd.f32 %v8170, %v8218
        %v8251 = vadd.f32 %v8171, %v8219
        %v8252 = vadd.f32 %v8172, %v8220
        %v8253 = vadd.f32 %v8173, %v8221
        %v8254 = vadd.f32 %v8174, %v8222
        %v8255 = vadd.f32 %v8175, %v8223
        %v8256 = vadd.f32 %v8176, %v8224
        %v8257 = vadd.f32 %v8177, %v8225
        %v8258 = vadd.f32 %v8178, %v8226
        %8259 = vset.pattern.permute.xlu0 5
        %8260 = vperm.xlu0 %8259, %v193
        %v8261 = vpop.permute.xlu0 %8260
        %v8263 = vadd.f32 %v8243, %v8261
        %v8264 = vadd.f32 %v8244, %v8261
        %v8265 = vadd.f32 %v8245, %v8261
        %v8266 = vadd.f32 %v8246, %v8261
        %v8267 = vadd.f32 %v8247, %v8261
        %v8268 = vadd.f32 %v8248, %v8261
        %v8269 = vadd.f32 %v8249, %v8261
        %v8270 = vadd.f32 %v8250, %v8261
        %v8271 = vadd.f32 %v8251, %v8261
        %v8272 = vadd.f32 %v8252, %v8261
        %v8273 = vadd.f32 %v8253, %v8261
        %v8274 = vadd.f32 %v8254, %v8261
        %v8275 = vadd.f32 %v8255, %v8261
        %v8276 = vadd.f32 %v8256, %v8261
        %v8277 = vadd.f32 %v8257, %v8261
        %v8278 = vadd.f32 %v8258, %v8261
        %v8295 = vcombine.low %v8263, %v8264
        %v8296 = vcombine.low %v8265, %v8266
        %v8297 = vcombine.low %v8267, %v8268
        %v8298 = vcombine.low %v8269, %v8270
        %v8300 = vunpack.c.l.s4 1966171168
        %v8301 = vunpack.c.0.s8 %v8300
        %v8302 = vlaneseq
        %v8303 = vshrl.u32 %v8302, 7
        %v8304 = vsub.s32 %v8301, %v8303
        %v8305 = vrot.slane %v8295, %v8304
        %v8307 = vunpack.c.l.s4 1966171168
        %v8308 = vunpack.c.0.s8 %v8307
        %v8309 = vlaneseq
        %v8310 = vshrl.u32 %v8309, 7
        %v8311 = vsub.s32 %v8308, %v8310
        %v8312 = vrot.slane %v8296, %v8311
        %v8314 = vunpack.c.l.s4 1966171168
        %v8315 = vunpack.c.0.s8 %v8314
        %v8316 = vlaneseq
        %v8317 = vshrl.u32 %v8316, 7
        %v8318 = vsub.s32 %v8315, %v8317
        %v8319 = vrot.slane %v8297, %v8318
        %v8321 = vunpack.c.l.s4 1966171168
        %v8322 = vunpack.c.0.s8 %v8321
        %v8323 = vlaneseq
        %v8324 = vshrl.u32 %v8323, 7
        %v8325 = vsub.s32 %v8322, %v8324
        %v8326 = vrot.slane %v8298, %v8325
        %v8327 = vcombine.low %v8305, %v8312
        %v8328 = vcombine.low %v8319, %v8326
        %v8330 = vunpack.c.l.s4 1966171168
        %v8331 = vunpack.c.0.s8 %v8330
        %v8332 = vlaneseq
        %v8333 = vshrl.u32 %v8332, 7
        %v8334 = vsub.s32 %v8331, %v8333
        %v8335 = vrot.slane %v8327, %v8334
        %v8337 = vunpack.c.l.s4 1966171168
        %v8338 = vunpack.c.0.s8 %v8337
        %v8339 = vlaneseq
        %v8340 = vshrl.u32 %v8339, 7
        %v8341 = vsub.s32 %v8338, %v8340
        %v8342 = vrot.slane %v8328, %v8341
        %v8343 = vcombine.low %v8335, %v8342
        %v8344 = vcombine.low %v8271, %v8272
        %v8345 = vcombine.low %v8273, %v8274
        %v8346 = vcombine.low %v8275, %v8276
        %v8347 = vcombine.low %v8277, %v8278
        %v8349 = vunpack.c.l.s4 1966171168
        %v8350 = vunpack.c.0.s8 %v8349
        %v8351 = vlaneseq
        %v8352 = vshrl.u32 %v8351, 7
        %v8353 = vsub.s32 %v8350, %v8352
        %v8354 = vrot.slane %v8344, %v8353
        %v8356 = vunpack.c.l.s4 1966171168
        %v8357 = vunpack.c.0.s8 %v8356
        %v8358 = vlaneseq
        %v8359 = vshrl.u32 %v8358, 7
        %v8360 = vsub.s32 %v8357, %v8359
        %v8361 = vrot.slane %v8345, %v8360
        %v8363 = vunpack.c.l.s4 1966171168
        %v8364 = vunpack.c.0.s8 %v8363
        %v8365 = vlaneseq
        %v8366 = vshrl.u32 %v8365, 7
        %v8367 = vsub.s32 %v8364, %v8366
        %v8368 = vrot.slane %v8346, %v8367
        %v8370 = vunpack.c.l.s4 1966171168
        %v8371 = vunpack.c.0.s8 %v8370
        %v8372 = vlaneseq
        %v8373 = vshrl.u32 %v8372, 7
        %v8374 = vsub.s32 %v8371, %v8373
        %v8375 = vrot.slane %v8347, %v8374
        %v8376 = vcombine.low %v8354, %v8361
        %v8377 = vcombine.low %v8368, %v8375
        %v8379 = vunpack.c.l.s4 1966171168
        %v8380 = vunpack.c.0.s8 %v8379
        %v8381 = vlaneseq
        %v8382 = vshrl.u32 %v8381, 7
        %v8383 = vsub.s32 %v8380, %v8382
        %v8384 = vrot.slane %v8376, %v8383
        %v8386 = vunpack.c.l.s4 1966171168
        %v8387 = vunpack.c.0.s8 %v8386
        %v8388 = vlaneseq
        %v8389 = vshrl.u32 %v8388, 7
        %v8390 = vsub.s32 %v8387, %v8389
        %v8391 = vrot.slane %v8377, %v8390
        %v8392 = vcombine.low %v8384, %v8391
        %8395 = vst [vmem:[%s186] sm:$0xff] %v8343
        %8396 = vst [vmem:[%s186 + $0x8] sm:$0xff] %v8392
        %s8397 = sand.u32 %s96, 1
        %s8398 = scalar_lea.sflag [#allocation4], %s8397
        %s8399 = sand.u32 %s96, 1
        %s8400 = smul.addr %s8399, 16
        %s8401 = scalar_lea.vmem [#allocation5], %s8400
        // Predicated region
        $region37: #{tpu_custom_call.1} parent=31 // pred_check
          %p8402 = pneg %p106
        $region38: #{tpu_custom_call.1} parent=31 // pred_check_branch
          %8404 = sbr.rel (%p8402) target = $region40
        $region39: #{tpu_custom_call.1} parent=31 // pred_region
          %s8405 = smul.u32 16, %s20
          %s8407 = ssub.s32 256, 256
          %8408 = vsyncadd %s8398, %s8407
          %s8409 = smul.addr %s8405, 16
          %s8410 = scalar_lea.hbm %s3, %s8409
          %s8412 = sshll.u32 %s8401, 4
          %s8413 = int_to_ptr.vmem [resolvable:$true] %s8412
          %8415 = dma.vmem_to_hbm [thread:$0]  %s8413, 256, %s8410, %s8398
        $region40: #{tpu_custom_call.1} parent=31 // pred_fallthru
          _
      $region32: #{tpu_custom_call.1} parent=5 // pred_fallthru
        _
      %p8416 = scmp.le.s32.totalorder 2, %s15
      // Predicated region
      $region41: #{tpu_custom_call.1} parent=5 // pred_check
        %p8417 = pneg %p8416
      $region42: #{tpu_custom_call.1} parent=5 // pred_check_branch
        %8419 = sbr.rel (%p8417) target = $region44
      $region43: #{tpu_custom_call.1} parent=5 // pred_region
        %s8420 = ssub.s32 %s15, 2
        // Predicated region
        $region45: #{tpu_custom_call.1} parent=43 // pred_check
          %p8421 = pneg %p112
        $region46: #{tpu_custom_call.1} parent=43 // pred_check_branch
          %8423 = sbr.rel (%p8421) target = $region48
        $region47: #{tpu_custom_call.1} parent=43 // pred_region
          %s8424 = sand.u32 %s97, 1
          %s8425 = scalar_lea.sflag [#allocation4], %s8424
          %s8426 = sand.u32 %s97, 1
          %s8427 = smul.addr %s8426, 16
          %s8428 = scalar_lea.vmem [#allocation5], %s8427
          %8429 = dma.done %s8425, 256
        $region48: #{tpu_custom_call.1} parent=43 // pred_fallthru
          _
      $region44: #{tpu_custom_call.1} parent=5 // pred_fallthru
        _
    $region6: #{tpu_custom_call.1} parent=1 // loop_footer
      %s19 = sadd.s32 1, %s15
    $region7: #{tpu_custom_call.1} parent=1 // loop_footer_branch
      %14 = sbr.rel target = $region3
    $region8: #{tpu_custom_call.1} parent=1 // loop_exit
      _
    %8430 = vsyncpa [#allocation3], 1
    %s8431 = scalar_lea.sflag [#allocation3], 1
    %8432 = vsyncpa %s8431, 1
    %8433 = vsyncpa [#allocation4], 1
    %s8434 = scalar_lea.sflag [#allocation4], 1
    %8435 = vsyncpa %s8434, 1

</llo_original>
